<compile_context>
chip_gen: v6e
topology: v6e:2x2x1
jax: 0.10.0
libtpu: 0.0.40
codegen_flags: <defaults>
</compile_context>

<pallas_src>
import functools

import jax
import jax.numpy as jnp
from jax import lax
from jax.experimental import pallas as pl
from jax.experimental.pallas import tpu as pltpu


def _erf(x):
    # Abramowitz & Stegun 7.1.26 (max abs err ~1.5e-7): exact-erf nn.GELU
    # semantics using only exp/VALU ops that are guaranteed to lower.
    p = 0.3275911
    a1, a2, a3, a4, a5 = (0.254829592, -0.284496736, 1.421413741,
                          -1.453152027, 1.061405429)
    sgn = jnp.where(x < 0.0, -1.0, 1.0)
    z = x * sgn                                   # |x|
    t = 1.0 / (1.0 + p * z)
    poly = t * (a1 + t * (a2 + t * (a3 + t * (a4 + t * a5))))
    return sgn * (1.0 - poly * jnp.exp(-z * z))


def _gelu_exact(x):
    return 0.5 * x * (1.0 + _erf(x * 0.7071067811865476))


def _attention_block_kernel(xq_ref, xkv_ref,
                            wq_ref, wk_ref, wv_ref,
                            wproj_ref, bproj_ref,
                            ln_g_ref, ln_b_ref,
                            w1_ref, b1_ref, w2_ref, b2_ref,
                            o_ref,
                            qh_ref, kh_ref, vh_ref, ctx_ref,
                            *, num_heads, eps):
    xq = xq_ref[0].astype(jnp.bfloat16)     # (tq, C) query rows of this tile
    xkv = xkv_ref[0].astype(jnp.bfloat16)   # (N, C)  full sequence for K/V
    tq, C = xq.shape
    hd = C // num_heads

    # ---- projections: bf16 operands, f32 accumulation; softmax scale is already
    #      folded into wq at parameter-preparation time ----
    q = jnp.dot(xq, wq_ref[...], preferred_element_type=jnp.float32)    # (tq, C)
    k = jnp.dot(xkv, wk_ref[...], preferred_element_type=jnp.float32)   # (N, C)
    v = jnp.dot(xkv, wv_ref[...], preferred_element_type=jnp.float32)   # (N, C)

    # ---- one relayout pass into head-major bf16 VMEM scratch: bounds live
    #      ranges and lets QK^T / A@V run as single head-batched MXU streams ----
    for h in range(num_heads):
        lo, hi = h * hd, (h + 1) * hd
        qh_ref[h] = q[:, lo:hi].astype(jnp.bfloat16)
        kh_ref[h] = k[:, lo:hi].astype(jnp.bfloat16)
        vh_ref[h] = v[:, lo:hi].astype(jnp.bfloat16)

    # ---- head-batched attention ----
    s = jnp.einsum('hqd,hkd->hqk', qh_ref[...], kh_ref[...],
                   preferred_element_type=jnp.float32)                   # (H, tq, N)
    s = s - jnp.max(s, axis=-1, keepdims=True)
    p = jnp.exp(s)
    inv = pl.reciprocal(jnp.sum(p, axis=-1, keepdims=True), approx=True)
    a = (p * inv).astype(jnp.bfloat16)
    ctx = jnp.einsum('hqk,hkd->hqd', a, vh_ref[...],
                     preferred_element_type=jnp.float32)                 # (H, tq, hd)

    # ---- context back to (tq, C) bf16 scratch (lane-dense when hd == 128) ----
    for h in range(num_heads):
        ctx_ref[:, h * hd:(h + 1) * hd] = ctx[h].astype(jnp.bfloat16)

    # ---- output projection (single full-width matmul) ----
    x_attn = jnp.dot(ctx_ref[...], wproj_ref[...],
                     preferred_element_type=jnp.float32) + bproj_ref[...]  # (tq, C)

    # ---- LayerNorm (eps = 1e-5, PyTorch default), f32 math ----
    mu = jnp.mean(x_attn, axis=-1, keepdims=True)
    var = jnp.mean((x_attn - mu) ** 2, axis=-1, keepdims=True)
    normed = (x_attn - mu) * lax.rsqrt(var + eps) * ln_g_ref[...] + ln_b_ref[...]

    # ---- MLP: Linear -> GELU(exact erf) -> Linear ----
    h1 = jnp.dot(normed.astype(jnp.bfloat16), w1_ref[...],
                 preferred_element_type=jnp.float32) + b1_ref[...]
    h1 = _gelu_exact(h1)
    m = jnp.dot(h1.astype(jnp.bfloat16), w2_ref[...],
                preferred_element_type=jnp.float32) + b2_ref[...]

    # ---- residual ----
    o_ref[0] = (x_attn + m).astype(o_ref.dtype)


def prepare_params(params, num_heads):
    """One-time parameter prep: split wqkv, fold the softmax scale into wq,
    cast matmul weights to bf16. Biases / LayerNorm stay f32."""
    C = params["wproj"].shape[0]
    scale = (C // num_heads) ** -0.5
    wqkv = params["wqkv"]
    return {
        "wq": (wqkv[:, :C] * scale).astype(jnp.bfloat16),
        "wk": wqkv[:, C:2 * C].astype(jnp.bfloat16),
        "wv": wqkv[:, 2 * C:].astype(jnp.bfloat16),
        "wproj": params["wproj"].astype(jnp.bfloat16),
        "bproj": params["bproj"],
        "ln_g": params["ln_g"],
        "ln_b": params["ln_b"],
        "w1": params["w1"].astype(jnp.bfloat16),
        "b1": params["b1"],
        "w2": params["w2"].astype(jnp.bfloat16),
        "b2": params["b2"],
    }


def attention_forward(x, prep, num_heads, *, tq=None):
    B, N, C = x.shape
    assert C % num_heads == 0
    hd = C // num_heads
    hidden = prep["w1"].shape[1]

    if tq is None:
        tq = N if N <= 128 else 128
    assert N % tq == 0
    nq = N // tq

    kernel = functools.partial(_attention_block_kernel,
                               num_heads=num_heads, eps=1e-5)

    def const_spec(shape):
        nd = len(shape)
        return pl.BlockSpec(shape, lambda b, q, _nd=nd: (0,) * _nd)

    in_specs = [
        pl.BlockSpec((1, tq, C), lambda b, q: (b, q, 0)),   # x  (query rows)
        pl.BlockSpec((1, N, C), lambda b, q: (b, 0, 0)),    # x  (key/value rows)
        const_spec((C, C)),          # wq (bf16, scale folded)
        const_spec((C, C)),          # wk (bf16)
        const_spec((C, C)),          # wv (bf16)
        const_spec((C, C)),          # wproj (bf16)
        const_spec((1, C)),          # bproj
        const_spec((1, C)),          # ln gamma
        const_spec((1, C)),          # ln beta
        const_spec((C, hidden)),     # mlp w1 (bf16)
        const_spec((1, hidden)),     # mlp b1
        const_spec((hidden, C)),     # mlp w2 (bf16)
        const_spec((1, C)),          # mlp b2
    ]

    # VMEM budget: bf16 weights (double-buffered by default pipelining) + f32
    # activations; clamped to 48 MiB so the request fits v7x's 64 MiB per-TC VMEM.
    weight_bytes = 2 * (4 * C * C + 2 * C * hidden)
    io_bytes = 2 * 4 * (2 * tq * C + N * C)
    scratch_bytes = 2 * (2 * tq * C + 2 * N * C)
    act_bytes = 4 * (tq * C + 2 * N * C + 2 * num_heads * tq * N
                     + num_heads * tq * hd + 3 * tq * C + 2 * tq * hidden)
    need = 2 * weight_bytes + io_bytes + scratch_bytes + act_bytes
    vmem_limit = int(min(48 * 1024 * 1024,
                         max(32 * 1024 * 1024, need + need // 2)))

    return pl.pallas_call(
        kernel,
        out_shape=jax.ShapeDtypeStruct((B, N, C), x.dtype),
        grid=(B, nq),
        in_specs=in_specs,
        out_specs=pl.BlockSpec((1, tq, C), lambda b, q: (b, q, 0)),
        scratch_shapes=[
            pltpu.VMEM((num_heads, tq, hd), jnp.bfloat16),   # q  (head-major)
            pltpu.VMEM((num_heads, N, hd), jnp.bfloat16),    # k  (head-major)
            pltpu.VMEM((num_heads, N, hd), jnp.bfloat16),    # v  (head-major)
            pltpu.VMEM((tq, C), jnp.bfloat16),               # context (row-major)
        ],
        compiler_params=pltpu.CompilerParams(
            dimension_semantics=("parallel", "parallel"),
            vmem_limit_bytes=vmem_limit),
    )(x, x, prep["wq"], prep["wk"], prep["wv"], prep["wproj"], prep["bproj"],
      prep["ln_g"], prep["ln_b"], prep["w1"], prep["b1"], prep["w2"], prep["b2"])


def reference_forward(x, p, num_heads):
    """Pure-JAX f32 reference mirroring the PyTorch module's forward."""
    B, N, C = x.shape
    hd = C // num_heads
    scale = hd ** -0.5
    qkv = (x @ p["wqkv"]).reshape(B, N, 3, num_heads, hd).transpose(2, 0, 3, 1, 4)
    q, k, v = qkv[0], qkv[1], qkv[2]                      # (B, H, N, hd)
    attn = (q @ jnp.swapaxes(k, -2, -1)) * scale
    attn = jax.nn.softmax(attn, axis=-1)
    o = jnp.swapaxes(attn @ v, 1, 2).reshape(B, N, C)
    o = o @ p["wproj"] + p["bproj"][0]
    mu = jnp.mean(o, axis=-1, keepdims=True)
    var = jnp.mean((o - mu) ** 2, axis=-1, keepdims=True)
    n = (o - mu) * lax.rsqrt(var + 1e-5) * p["ln_g"][0] + p["ln_b"][0]
    h = jax.nn.gelu(n @ p["w1"] + p["b1"][0], approximate=False)
    m = h @ p["w2"] + p["b2"][0]
    return o + m


def init_params(key, dim, num_heads, mlp_ratio=4.0, dtype=jnp.float32):
    hidden = int(dim * mlp_ratio)
    ks = jax.random.split(key, 6)
    s = 0.02
    return {
        "wqkv": jax.random.normal(ks[0], (dim, 3 * dim), dtype) * s,
        "wproj": jax.random.normal(ks[1], (dim, dim), dtype) * s,
        "bproj": jnp.zeros((1, dim), dtype),
        "ln_g": jnp.ones((1, dim), dtype),
        "ln_b": jnp.zeros((1, dim), dtype),
        "w1": jax.random.normal(ks[2], (dim, hidden), dtype) * s,
        "b1": jax.random.normal(ks[3], (1, hidden), dtype) * s,
        "w2": jax.random.normal(ks[4], (hidden, dim), dtype) * s,
        "b2": jax.random.normal(ks[5], (1, dim), dtype) * s,
    }


if __name__ == "__main__":
    # Small but lane/sublane-aligned shapes: C multiple of 128, head_dim = 128
    # (lane-dense per-head layout), two query tiles per batch element.
    B, N, C = 2, 256, 256
    num_heads = 2

    key = jax.random.PRNGKey(0)
    kx, kp = jax.random.split(key)
    x = jax.random.normal(kx, (B, N, C), jnp.float32)
    params = init_params(kp, C, num_heads)
    prep = prepare_params(params, num_heads)   # one-time bf16 cast + scale fold

    out = attention_forward(x, prep, num_heads)
    out = jax.block_until_ready(out)

    ref = reference_forward(x, params, num_heads)
    assert out.shape == (B, N, C)
    # bf16 MXU operands + approx reciprocal vs. f32 reference -> relaxed tolerance
    assert jnp.allclose(out, ref, atol=2e-2, rtol=2e-2), "mismatch vs reference"

    print("KERNEL_OK")
</pallas_src>

<mosaic_0001>
module attributes {stable_mosaic.version = 11 : i64} {
  func.func @_attention_block_kernel(%arg0: i32, %arg1: i32, %arg2: memref<1x128x256xf32, #tpu.memory_space<vmem>>, %arg3: memref<1x256x256xf32, #tpu.memory_space<vmem>>, %arg4: memref<256x256xbf16, #tpu.memory_space<vmem>>, %arg5: memref<256x256xbf16, #tpu.memory_space<vmem>>, %arg6: memref<256x256xbf16, #tpu.memory_space<vmem>>, %arg7: memref<256x256xbf16, #tpu.memory_space<vmem>>, %arg8: memref<1x256xf32, #tpu.memory_space<vmem>>, %arg9: memref<1x256xf32, #tpu.memory_space<vmem>>, %arg10: memref<1x256xf32, #tpu.memory_space<vmem>>, %arg11: memref<256x1024xbf16, #tpu.memory_space<vmem>>, %arg12: memref<1x1024xf32, #tpu.memory_space<vmem>>, %arg13: memref<1024x256xbf16, #tpu.memory_space<vmem>>, %arg14: memref<1x256xf32, #tpu.memory_space<vmem>>, %arg15: memref<1x128x256xf32, #tpu.memory_space<vmem>>, %arg16: memref<2x128x128xbf16, #tpu.memory_space<vmem>>, %arg17: memref<2x256x128xbf16, #tpu.memory_space<vmem>>, %arg18: memref<2x256x128xbf16, #tpu.memory_space<vmem>>, %arg19: memref<128x256xbf16, #tpu.memory_space<vmem>>) attributes {dimension_semantics = [#tpu.dimension_semantics<parallel>, #tpu.dimension_semantics<parallel>], iteration_bounds = array<i64: 2, 2>, scalar_prefetch = 0 : i64, scratch_operands = 4 : i64, tpu.core_type = #tpu.core_type<tc>, window_params = [{transform_indices = @transform_0, window_bounds = array<i64: 1, 128, 256>}, {transform_indices = @transform_1, window_bounds = array<i64: 1, 256, 256>}, {pipeline_mode = #tpu.pipeline_mode<synchronous>, transform_indices = @transform_2, window_bounds = array<i64: 256, 256>}, {pipeline_mode = #tpu.pipeline_mode<synchronous>, transform_indices = @transform_3, window_bounds = array<i64: 256, 256>}, {pipeline_mode = #tpu.pipeline_mode<synchronous>, transform_indices = @transform_4, window_bounds = array<i64: 256, 256>}, {pipeline_mode = #tpu.pipeline_mode<synchronous>, transform_indices = @transform_5, window_bounds = array<i64: 256, 256>}, {pipeline_mode = #tpu.pipeline_mode<synchronous>, transform_indices = @transform_6, window_bounds = array<i64: 1, 256>}, {pipeline_mode = #tpu.pipeline_mode<synchronous>, transform_indices = @transform_7, window_bounds = array<i64: 1, 256>}, {pipeline_mode = #tpu.pipeline_mode<synchronous>, transform_indices = @transform_8, window_bounds = array<i64: 1, 256>}, {pipeline_mode = #tpu.pipeline_mode<synchronous>, transform_indices = @transform_9, window_bounds = array<i64: 256, 1024>}, {pipeline_mode = #tpu.pipeline_mode<synchronous>, transform_indices = @transform_10, window_bounds = array<i64: 1, 1024>}, {pipeline_mode = #tpu.pipeline_mode<synchronous>, transform_indices = @transform_11, window_bounds = array<i64: 1024, 256>}, {pipeline_mode = #tpu.pipeline_mode<synchronous>, transform_indices = @transform_12, window_bounds = array<i64: 1, 256>}, {transform_indices = @transform_13, window_bounds = array<i64: 1, 128, 256>}]} {
    %c0 = arith.constant 0 : index
    %c0_0 = arith.constant 0 : index
    %c0_1 = arith.constant 0 : index
    %0 = vector.load %arg2[%c0, %c0_0, %c0_1] : memref<1x128x256xf32, #tpu.memory_space<vmem>>, vector<1x128x256xf32>
    %1 = vector.shape_cast %0 : vector<1x128x256xf32> to vector<128x256xf32>
    %2 = arith.truncf %1 : vector<128x256xf32> to vector<128x256xbf16>
    %c0_2 = arith.constant 0 : index
    %c0_3 = arith.constant 0 : index
    %c0_4 = arith.constant 0 : index
    %3 = vector.load %arg3[%c0_2, %c0_3, %c0_4] : memref<1x256x256xf32, #tpu.memory_space<vmem>>, vector<1x256x256xf32>
    %4 = vector.shape_cast %3 : vector<1x256x256xf32> to vector<256x256xf32>
    %5 = arith.truncf %4 : vector<256x256xf32> to vector<256x256xbf16>
    %c0_5 = arith.constant 0 : index
    %c0_6 = arith.constant 0 : index
    %6 = vector.load %arg4[%c0_5, %c0_6] : memref<256x256xbf16, #tpu.memory_space<vmem>>, vector<256x256xbf16>
    %cst = arith.constant dense<0.000000e+00> : vector<128x256xf32>
    %7 = tpu.matmul %2, %6, %cst {dimension_numbers = #tpu.dot_dimension_numbers<[1], [0], [0], [1], [0, 0, 1, 1], [], []>} : vector<128x256xbf16>, vector<256x256xbf16>, vector<128x256xf32> -> vector<128x256xf32>
    %c0_7 = arith.constant 0 : index
    %c0_8 = arith.constant 0 : index
    %8 = vector.load %arg5[%c0_7, %c0_8] : memref<256x256xbf16, #tpu.memory_space<vmem>>, vector<256x256xbf16>
    %cst_9 = arith.constant dense<0.000000e+00> : vector<256x256xf32>
    %9 = tpu.matmul %5, %8, %cst_9 {dimension_numbers = #tpu.dot_dimension_numbers<[1], [0], [0], [1], [0, 0, 1, 1], [], []>} : vector<256x256xbf16>, vector<256x256xbf16>, vector<256x256xf32> -> vector<256x256xf32>
    %c0_10 = arith.constant 0 : index
    %c0_11 = arith.constant 0 : index
    %10 = vector.load %arg6[%c0_10, %c0_11] : memref<256x256xbf16, #tpu.memory_space<vmem>>, vector<256x256xbf16>
    %cst_12 = arith.constant dense<0.000000e+00> : vector<256x256xf32>
    %11 = tpu.matmul %5, %10, %cst_12 {dimension_numbers = #tpu.dot_dimension_numbers<[1], [0], [0], [1], [0, 0, 1, 1], [], []>} : vector<256x256xbf16>, vector<256x256xbf16>, vector<256x256xf32> -> vector<256x256xf32>
    %12 = vector.extract_strided_slice %7 {offsets = [0, 0], sizes = [128, 128], strides = [1, 1]} : vector<128x256xf32> to vector<128x128xf32>
    %13 = arith.truncf %12 : vector<128x128xf32> to vector<128x128xbf16>
    %c0_13 = arith.constant 0 : index
    %c0_14 = arith.constant 0 : index
    %c0_15 = arith.constant 0 : index
    %14 = vector.load %arg16[%c0_13, %c0_14, %c0_15] : memref<2x128x128xbf16, #tpu.memory_space<vmem>>, vector<1x128x128xbf16>
    %15 = vector.shape_cast %14 : vector<1x128x128xbf16> to vector<128x128xbf16>
    %16 = vector.shape_cast %13 : vector<128x128xbf16> to vector<1x128x128xbf16>
    tpu.vector_store %arg16[%c0_13, %c0_14, %c0_15], %16 {strides = array<i32>} : memref<2x128x128xbf16, #tpu.memory_space<vmem>>, vector<1x128x128xbf16>,
    %17 = vector.extract_strided_slice %9 {offsets = [0, 0], sizes = [256, 128], strides = [1, 1]} : vector<256x256xf32> to vector<256x128xf32>
    %18 = arith.truncf %17 : vector<256x128xf32> to vector<256x128xbf16>
    %c0_16 = arith.constant 0 : index
    %c0_17 = arith.constant 0 : index
    %c0_18 = arith.constant 0 : index
    %19 = vector.load %arg17[%c0_16, %c0_17, %c0_18] : memref<2x256x128xbf16, #tpu.memory_space<vmem>>, vector<1x256x128xbf16>
    %20 = vector.shape_cast %19 : vector<1x256x128xbf16> to vector<256x128xbf16>
    %21 = vector.shape_cast %18 : vector<256x128xbf16> to vector<1x256x128xbf16>
    tpu.vector_store %arg17[%c0_16, %c0_17, %c0_18], %21 {strides = array<i32>} : memref<2x256x128xbf16, #tpu.memory_space<vmem>>, vector<1x256x128xbf16>,
    %22 = vector.extract_strided_slice %11 {offsets = [0, 0], sizes = [256, 128], strides = [1, 1]} : vector<256x256xf32> to vector<256x128xf32>
    %23 = arith.truncf %22 : vector<256x128xf32> to vector<256x128xbf16>
    %c0_19 = arith.constant 0 : index
    %c0_20 = arith.constant 0 : index
    %c0_21 = arith.constant 0 : index
    %24 = vector.load %arg18[%c0_19, %c0_20, %c0_21] : memref<2x256x128xbf16, #tpu.memory_space<vmem>>, vector<1x256x128xbf16>
    %25 = vector.shape_cast %24 : vector<1x256x128xbf16> to vector<256x128xbf16>
    %26 = vector.shape_cast %23 : vector<256x128xbf16> to vector<1x256x128xbf16>
    tpu.vector_store %arg18[%c0_19, %c0_20, %c0_21], %26 {strides = array<i32>} : memref<2x256x128xbf16, #tpu.memory_space<vmem>>, vector<1x256x128xbf16>,
    %27 = vector.extract_strided_slice %7 {offsets = [0, 128], sizes = [128, 128], strides = [1, 1]} : vector<128x256xf32> to vector<128x128xf32>
    %28 = arith.truncf %27 : vector<128x128xf32> to vector<128x128xbf16>
    %c1 = arith.constant 1 : index
    %c0_22 = arith.constant 0 : index
    %c0_23 = arith.constant 0 : index
    %29 = vector.load %arg16[%c1, %c0_22, %c0_23] : memref<2x128x128xbf16, #tpu.memory_space<vmem>>, vector<1x128x128xbf16>
    %30 = vector.shape_cast %29 : vector<1x128x128xbf16> to vector<128x128xbf16>
    %31 = vector.shape_cast %28 : vector<128x128xbf16> to vector<1x128x128xbf16>
    tpu.vector_store %arg16[%c1, %c0_22, %c0_23], %31 {strides = array<i32>} : memref<2x128x128xbf16, #tpu.memory_space<vmem>>, vector<1x128x128xbf16>,
    %32 = vector.extract_strided_slice %9 {offsets = [0, 128], sizes = [256, 128], strides = [1, 1]} : vector<256x256xf32> to vector<256x128xf32>
    %33 = arith.truncf %32 : vector<256x128xf32> to vector<256x128xbf16>
    %c1_24 = arith.constant 1 : index
    %c0_25 = arith.constant 0 : index
    %c0_26 = arith.constant 0 : index
    %34 = vector.load %arg17[%c1_24, %c0_25, %c0_26] : memref<2x256x128xbf16, #tpu.memory_space<vmem>>, vector<1x256x128xbf16>
    %35 = vector.shape_cast %34 : vector<1x256x128xbf16> to vector<256x128xbf16>
    %36 = vector.shape_cast %33 : vector<256x128xbf16> to vector<1x256x128xbf16>
    tpu.vector_store %arg17[%c1_24, %c0_25, %c0_26], %36 {strides = array<i32>} : memref<2x256x128xbf16, #tpu.memory_space<vmem>>, vector<1x256x128xbf16>,
    %37 = vector.extract_strided_slice %11 {offsets = [0, 128], sizes = [256, 128], strides = [1, 1]} : vector<256x256xf32> to vector<256x128xf32>
    %38 = arith.truncf %37 : vector<256x128xf32> to vector<256x128xbf16>
    %c1_27 = arith.constant 1 : index
    %c0_28 = arith.constant 0 : index
    %c0_29 = arith.constant 0 : index
    %39 = vector.load %arg18[%c1_27, %c0_28, %c0_29] : memref<2x256x128xbf16, #tpu.memory_space<vmem>>, vector<1x256x128xbf16>
    %40 = vector.shape_cast %39 : vector<1x256x128xbf16> to vector<256x128xbf16>
    %41 = vector.shape_cast %38 : vector<256x128xbf16> to vector<1x256x128xbf16>
    tpu.vector_store %arg18[%c1_27, %c0_28, %c0_29], %41 {strides = array<i32>} : memref<2x256x128xbf16, #tpu.memory_space<vmem>>, vector<1x256x128xbf16>,
    %c0_30 = arith.constant 0 : index
    %c0_31 = arith.constant 0 : index
    %c0_32 = arith.constant 0 : index
    %42 = vector.load %arg16[%c0_30, %c0_31, %c0_32] : memref<2x128x128xbf16, #tpu.memory_space<vmem>>, vector<2x128x128xbf16>
    %c0_33 = arith.constant 0 : index
    %c0_34 = arith.constant 0 : index
    %c0_35 = arith.constant 0 : index
    %43 = vector.load %arg17[%c0_33, %c0_34, %c0_35] : memref<2x256x128xbf16, #tpu.memory_space<vmem>>, vector<2x256x128xbf16>
    "tpu.trace_start"() <{level = 10 : i32, message = "hqd,hkd->hqk"}> : () -> ()
    %cst_36 = arith.constant dense<0.000000e+00> : vector<2x128x256xf32>
    %44 = tpu.matmul %42, %43, %cst_36 {dimension_numbers = #tpu.dot_dimension_numbers<[2], [2], [1], [1], [0, 0, 0, 1, 1, 1], [0], [0]>} : vector<2x128x128xbf16>, vector<2x256x128xbf16>, vector<2x128x256xf32> -> vector<2x128x256xf32>
    "tpu.trace_stop"() : () -> ()
    %cst_37 = arith.constant dense<0xFF800000> : vector<2x128xf32>
    %45 = vector.multi_reduction <maximumf>, %44, %cst_37 [2] : vector<2x128x256xf32> to vector<2x128xf32>
    %46 = vector.shape_cast %45 : vector<2x128xf32> to vector<2x128x1xf32>
    %47 = vector.broadcast %46 : vector<2x128x1xf32> to vector<2x128x256xf32>
    %48 = arith.subf %44, %47 : vector<2x128x256xf32>
    %49 = math.exp %48 : vector<2x128x256xf32>
    %cst_38 = arith.constant dense<0.000000e+00> : vector<2x128xf32>
    %50 = vector.multi_reduction <add>, %49, %cst_38 [2] : vector<2x128x256xf32> to vector<2x128xf32>
    %51 = vector.shape_cast %50 : vector<2x128xf32> to vector<2x128x1xf32>
    %52 = tpu.reciprocal %51 {approx = true} : vector<2x128x1xf32> -> vector<2x128x1xf32>
    %53 = vector.broadcast %52 : vector<2x128x1xf32> to vector<2x128x256xf32>
    %54 = arith.mulf %49, %53 : vector<2x128x256xf32>
    %55 = arith.truncf %54 : vector<2x128x256xf32> to vector<2x128x256xbf16>
    %c0_39 = arith.constant 0 : index
    %c0_40 = arith.constant 0 : index
    %c0_41 = arith.constant 0 : index
    %56 = vector.load %arg18[%c0_39, %c0_40, %c0_41] : memref<2x256x128xbf16, #tpu.memory_space<vmem>>, vector<2x256x128xbf16>
    "tpu.trace_start"() <{level = 10 : i32, message = "hqk,hkd->hqd"}> : () -> ()
    %cst_42 = arith.constant dense<0.000000e+00> : vector<2x128x128xf32>
    %57 = tpu.matmul %55, %56, %cst_42 {dimension_numbers = #tpu.dot_dimension_numbers<[2], [1], [1], [2], [0, 0, 0, 1, 1, 2], [0], [0]>} : vector<2x128x256xbf16>, vector<2x256x128xbf16>, vector<2x128x128xf32> -> vector<2x128x128xf32>
    "tpu.trace_stop"() : () -> ()
    %58 = vector.extract_strided_slice %57 {offsets = [0, 0, 0], sizes = [1, 128, 128], strides = [1, 1, 1]} : vector<2x128x128xf32> to vector<1x128x128xf32>
    %59 = vector.shape_cast %58 : vector<1x128x128xf32> to vector<128x128xf32>
    %60 = arith.truncf %59 : vector<128x128xf32> to vector<128x128xbf16>
    %c0_43 = arith.constant 0 : index
    %c0_44 = arith.constant 0 : index
    %61 = vector.load %arg19[%c0_43, %c0_44] : memref<128x256xbf16, #tpu.memory_space<vmem>>, vector<128x128xbf16>
    tpu.vector_store %arg19[%c0_43, %c0_44], %60 {strides = array<i32>} : memref<128x256xbf16, #tpu.memory_space<vmem>>, vector<128x128xbf16>,
    %62 = vector.extract_strided_slice %57 {offsets = [1, 0, 0], sizes = [1, 128, 128], strides = [1, 1, 1]} : vector<2x128x128xf32> to vector<1x128x128xf32>
    %63 = vector.shape_cast %62 : vector<1x128x128xf32> to vector<128x128xf32>
    %64 = arith.truncf %63 : vector<128x128xf32> to vector<128x128xbf16>
    %c0_45 = arith.constant 0 : index
    %c128 = arith.constant 128 : index
    %65 = vector.load %arg19[%c0_45, %c128] : memref<128x256xbf16, #tpu.memory_space<vmem>>, vector<128x128xbf16>
    tpu.vector_store %arg19[%c0_45, %c128], %64 {strides = array<i32>} : memref<128x256xbf16, #tpu.memory_space<vmem>>, vector<128x128xbf16>,
    %c0_46 = arith.constant 0 : index
    %c0_47 = arith.constant 0 : index
    %66 = vector.load %arg19[%c0_46, %c0_47] : memref<128x256xbf16, #tpu.memory_space<vmem>>, vector<128x256xbf16>
    %c0_48 = arith.constant 0 : index
    %c0_49 = arith.constant 0 : index
    %67 = vector.load %arg7[%c0_48, %c0_49] : memref<256x256xbf16, #tpu.memory_space<vmem>>, vector<256x256xbf16>
    %cst_50 = arith.constant dense<0.000000e+00> : vector<128x256xf32>
    %68 = tpu.matmul %66, %67, %cst_50 {dimension_numbers = #tpu.dot_dimension_numbers<[1], [0], [0], [1], [0, 0, 1, 1], [], []>} : vector<128x256xbf16>, vector<256x256xbf16>, vector<128x256xf32> -> vector<128x256xf32>
    %c0_51 = arith.constant 0 : index
    %c0_52 = arith.constant 0 : index
    %69 = vector.load %arg8[%c0_51, %c0_52] : memref<1x256xf32, #tpu.memory_space<vmem>>, vector<1x256xf32>
    %70 = vector.broadcast %69 : vector<1x256xf32> to vector<128x256xf32>
    %71 = arith.addf %68, %70 : vector<128x256xf32>
    %cst_53 = arith.constant dense<0.000000e+00> : vector<128xf32>
    %72 = vector.multi_reduction <add>, %71, %cst_53 [1] : vector<128x256xf32> to vector<128xf32>
    %73 = vector.shape_cast %72 : vector<128xf32> to vector<128x1xf32>
    %cst_54 = arith.constant 2.560000e+02 : f32
    %74 = vector.broadcast %cst_54 : f32 to vector<128x1xf32>
    %75 = arith.divf %73, %74 : vector<128x1xf32>
    %76 = vector.broadcast %75 : vector<128x1xf32> to vector<128x256xf32>
    %77 = arith.subf %71, %76 : vector<128x256xf32>
    %78 = arith.mulf %77, %77 : vector<128x256xf32>
    %cst_55 = arith.constant dense<0.000000e+00> : vector<128xf32>
    %79 = vector.multi_reduction <add>, %78, %cst_55 [1] : vector<128x256xf32> to vector<128xf32>
    %80 = vector.shape_cast %79 : vector<128xf32> to vector<128x1xf32>
    %cst_56 = arith.constant 2.560000e+02 : f32
    %81 = vector.broadcast %cst_56 : f32 to vector<128x1xf32>
    %82 = arith.divf %80, %81 : vector<128x1xf32>
    %83 = vector.broadcast %75 : vector<128x1xf32> to vector<128x256xf32>
    %84 = arith.subf %71, %83 : vector<128x256xf32>
    %cst_57 = arith.constant 9.99999974E-6 : f32
    %85 = vector.broadcast %cst_57 : f32 to vector<128x1xf32>
    %86 = arith.addf %82, %85 : vector<128x1xf32>
    %87 = math.rsqrt %86 : vector<128x1xf32>
    %88 = vector.broadcast %87 : vector<128x1xf32> to vector<128x256xf32>
    %89 = arith.mulf %84, %88 : vector<128x256xf32>
    %c0_58 = arith.constant 0 : index
    %c0_59 = arith.constant 0 : index
    %90 = vector.load %arg9[%c0_58, %c0_59] : memref<1x256xf32, #tpu.memory_space<vmem>>, vector<1x256xf32>
    %91 = vector.broadcast %90 : vector<1x256xf32> to vector<128x256xf32>
    %92 = arith.mulf %89, %91 : vector<128x256xf32>
    %c0_60 = arith.constant 0 : index
    %c0_61 = arith.constant 0 : index
    %93 = vector.load %arg10[%c0_60, %c0_61] : memref<1x256xf32, #tpu.memory_space<vmem>>, vector<1x256xf32>
    %94 = vector.broadcast %93 : vector<1x256xf32> to vector<128x256xf32>
    %95 = arith.addf %92, %94 : vector<128x256xf32>
    %96 = arith.truncf %95 : vector<128x256xf32> to vector<128x256xbf16>
    %c0_62 = arith.constant 0 : index
    %c0_63 = arith.constant 0 : index
    %97 = vector.load %arg11[%c0_62, %c0_63] : memref<256x1024xbf16, #tpu.memory_space<vmem>>, vector<256x1024xbf16>
    %cst_64 = arith.constant dense<0.000000e+00> : vector<128x1024xf32>
    %98 = tpu.matmul %96, %97, %cst_64 {dimension_numbers = #tpu.dot_dimension_numbers<[1], [0], [0], [1], [0, 0, 1, 1], [], []>} : vector<128x256xbf16>, vector<256x1024xbf16>, vector<128x1024xf32> -> vector<128x1024xf32>
    %c0_65 = arith.constant 0 : index
    %c0_66 = arith.constant 0 : index
    %99 = vector.load %arg12[%c0_65, %c0_66] : memref<1x1024xf32, #tpu.memory_space<vmem>>, vector<1x1024xf32>
    %100 = vector.broadcast %99 : vector<1x1024xf32> to vector<128x1024xf32>
    %101 = arith.addf %98, %100 : vector<128x1024xf32>
    %cst_67 = arith.constant 5.000000e-01 : f32
    %102 = vector.broadcast %cst_67 : f32 to vector<128x1024xf32>
    %103 = arith.mulf %102, %101 : vector<128x1024xf32>
    %cst_68 = arith.constant 0.707106769 : f32
    %104 = vector.broadcast %cst_68 : f32 to vector<128x1024xf32>
    %105 = arith.mulf %101, %104 : vector<128x1024xf32>
    %cst_69 = arith.constant 0.000000e+00 : f32
    %106 = vector.broadcast %cst_69 : f32 to vector<128x1024xf32>
    %107 = arith.cmpf olt, %105, %106 : vector<128x1024xf32>
    %cst_70 = arith.constant -1.000000e+00 : f32
    %cst_71 = arith.constant 1.000000e+00 : f32
    %108 = vector.broadcast %cst_70 : f32 to vector<128x1024xf32>
    %109 = vector.broadcast %cst_71 : f32 to vector<128x1024xf32>
    %110 = arith.select %107, %108, %109 : vector<128x1024xi1>, vector<128x1024xf32>
    %111 = arith.mulf %105, %110 : vector<128x1024xf32>
    %cst_72 = arith.constant 0.327591091 : f32
    %112 = vector.broadcast %cst_72 : f32 to vector<128x1024xf32>
    %113 = arith.mulf %112, %111 : vector<128x1024xf32>
    %cst_73 = arith.constant 1.000000e+00 : f32
    %114 = vector.broadcast %cst_73 : f32 to vector<128x1024xf32>
    %115 = arith.addf %114, %113 : vector<128x1024xf32>
    %cst_74 = arith.constant 1.000000e+00 : f32
    %116 = vector.broadcast %cst_74 : f32 to vector<128x1024xf32>
    %117 = arith.divf %116, %115 : vector<128x1024xf32>
    %cst_75 = arith.constant 1.06140542 : f32
    %118 = vector.broadcast %cst_75 : f32 to vector<128x1024xf32>
    %119 = arith.mulf %117, %118 : vector<128x1024xf32>
    %cst_76 = arith.constant -1.45315206 : f32
    %120 = vector.broadcast %cst_76 : f32 to vector<128x1024xf32>
    %121 = arith.addf %120, %119 : vector<128x1024xf32>
    %122 = arith.mulf %117, %121 : vector<128x1024xf32>
    %cst_77 = arith.constant 1.42141378 : f32
    %123 = vector.broadcast %cst_77 : f32 to vector<128x1024xf32>
    %124 = arith.addf %123, %122 : vector<128x1024xf32>
    %125 = arith.mulf %117, %124 : vector<128x1024xf32>
    %cst_78 = arith.constant -0.284496725 : f32
    %126 = vector.broadcast %cst_78 : f32 to vector<128x1024xf32>
    %127 = arith.addf %126, %125 : vector<128x1024xf32>
    %128 = arith.mulf %117, %127 : vector<128x1024xf32>
    %cst_79 = arith.constant 0.254829586 : f32
    %129 = vector.broadcast %cst_79 : f32 to vector<128x1024xf32>
    %130 = arith.addf %129, %128 : vector<128x1024xf32>
    %131 = arith.mulf %117, %130 : vector<128x1024xf32>
    %cst_80 = arith.constant 0.000000e+00 : f32
    %132 = vector.broadcast %cst_80 : f32 to vector<128x1024xf32>
    %133 = arith.subf %132, %111 : vector<128x1024xf32>
    %134 = arith.mulf %133, %111 : vector<128x1024xf32>
    %135 = math.exp %134 : vector<128x1024xf32>
    %136 = arith.mulf %131, %135 : vector<128x1024xf32>
    %cst_81 = arith.constant 1.000000e+00 : f32
    %137 = vector.broadcast %cst_81 : f32 to vector<128x1024xf32>
    %138 = arith.subf %137, %136 : vector<128x1024xf32>
    %139 = arith.mulf %110, %138 : vector<128x1024xf32>
    %cst_82 = arith.constant 1.000000e+00 : f32
    %140 = vector.broadcast %cst_82 : f32 to vector<128x1024xf32>
    %141 = arith.addf %140, %139 : vector<128x1024xf32>
    %142 = arith.mulf %103, %141 : vector<128x1024xf32>
    %143 = arith.truncf %142 : vector<128x1024xf32> to vector<128x1024xbf16>
    %c0_83 = arith.constant 0 : index
    %c0_84 = arith.constant 0 : index
    %144 = vector.load %arg13[%c0_83, %c0_84] : memref<1024x256xbf16, #tpu.memory_space<vmem>>, vector<1024x256xbf16>
    %cst_85 = arith.constant dense<0.000000e+00> : vector<128x256xf32>
    %145 = tpu.matmul %143, %144, %cst_85 {dimension_numbers = #tpu.dot_dimension_numbers<[1], [0], [0], [1], [0, 0, 1, 1], [], []>} : vector<128x1024xbf16>, vector<1024x256xbf16>, vector<128x256xf32> -> vector<128x256xf32>
    %c0_86 = arith.constant 0 : index
    %c0_87 = arith.constant 0 : index
    %146 = vector.load %arg14[%c0_86, %c0_87] : memref<1x256xf32, #tpu.memory_space<vmem>>, vector<1x256xf32>
    %147 = vector.broadcast %146 : vector<1x256xf32> to vector<128x256xf32>
    %148 = arith.addf %145, %147 : vector<128x256xf32>
    %149 = arith.addf %71, %148 : vector<128x256xf32>
    %c0_88 = arith.constant 0 : index
    %c0_89 = arith.constant 0 : index
    %c0_90 = arith.constant 0 : index
    %150 = vector.load %arg15[%c0_88, %c0_89, %c0_90] : memref<1x128x256xf32, #tpu.memory_space<vmem>>, vector<1x128x256xf32>
    %151 = vector.shape_cast %150 : vector<1x128x256xf32> to vector<128x256xf32>
    %152 = vector.shape_cast %149 : vector<128x256xf32> to vector<1x128x256xf32>
    tpu.vector_store %arg15[%c0_88, %c0_89, %c0_90], %152 {strides = array<i32>} : memref<1x128x256xf32, #tpu.memory_space<vmem>>, vector<1x128x256xf32>,
    return
  }
  func.func @transform_0(%arg0: i32, %arg1: i32) -> (i32, i32, i32) {
    %c0_i32 = arith.constant 0 : i32
    %c0_i32_0 = arith.constant 0 : i32
    return %arg0, %arg1, %c0_i32 : i32, i32, i32
  }
  func.func @transform_1(%arg0: i32, %arg1: i32) -> (i32, i32, i32) {
    %c0_i32 = arith.constant 0 : i32
    %c0_i32_0 = arith.constant 0 : i32
    %c0_i32_1 = arith.constant 0 : i32
    return %arg0, %c0_i32, %c0_i32_0 : i32, i32, i32
  }
  func.func @transform_2(%arg0: i32, %arg1: i32) -> (i32, i32) {
    %c0_i32 = arith.constant 0 : i32
    %c0_i32_0 = arith.constant 0 : i32
    %c0_i32_1 = arith.constant 0 : i32
    return %c0_i32, %c0_i32_0 : i32, i32
  }
  func.func @transform_3(%arg0: i32, %arg1: i32) -> (i32, i32) {
    %c0_i32 = arith.constant 0 : i32
    %c0_i32_0 = arith.constant 0 : i32
    %c0_i32_1 = arith.constant 0 : i32
    return %c0_i32, %c0_i32_0 : i32, i32
  }
  func.func @transform_4(%arg0: i32, %arg1: i32) -> (i32, i32) {
    %c0_i32 = arith.constant 0 : i32
    %c0_i32_0 = arith.constant 0 : i32
    %c0_i32_1 = arith.constant 0 : i32
    return %c0_i32, %c0_i32_0 : i32, i32
  }
  func.func @transform_5(%arg0: i32, %arg1: i32) -> (i32, i32) {
    %c0_i32 = arith.constant 0 : i32
    %c0_i32_0 = arith.constant 0 : i32
    %c0_i32_1 = arith.constant 0 : i32
    return %c0_i32, %c0_i32_0 : i32, i32
  }
  func.func @transform_6(%arg0: i32, %arg1: i32) -> (i32, i32) {
    %c0_i32 = arith.constant 0 : i32
    %c0_i32_0 = arith.constant 0 : i32
    %c0_i32_1 = arith.constant 0 : i32
    return %c0_i32, %c0_i32_0 : i32, i32
  }
  func.func @transform_7(%arg0: i32, %arg1: i32) -> (i32, i32) {
    %c0_i32 = arith.constant 0 : i32
    %c0_i32_0 = arith.constant 0 : i32
    %c0_i32_1 = arith.constant 0 : i32
    return %c0_i32, %c0_i32_0 : i32, i32
  }
  func.func @transform_8(%arg0: i32, %arg1: i32) -> (i32, i32) {
    %c0_i32 = arith.constant 0 : i32
    %c0_i32_0 = arith.constant 0 : i32
    %c0_i32_1 = arith.constant 0 : i32
    return %c0_i32, %c0_i32_0 : i32, i32
  }
  func.func @transform_9(%arg0: i32, %arg1: i32) -> (i32, i32) {
    %c0_i32 = arith.constant 0 : i32
    %c0_i32_0 = arith.constant 0 : i32
    %c0_i32_1 = arith.constant 0 : i32
    return %c0_i32, %c0_i32_0 : i32, i32
  }
  func.func @transform_10(%arg0: i32, %arg1: i32) -> (i32, i32) {
    %c0_i32 = arith.constant 0 : i32
    %c0_i32_0 = arith.constant 0 : i32
    %c0_i32_1 = arith.constant 0 : i32
    return %c0_i32, %c0_i32_0 : i32, i32
  }
  func.func @transform_11(%arg0: i32, %arg1: i32) -> (i32, i32) {
    %c0_i32 = arith.constant 0 : i32
    %c0_i32_0 = arith.constant 0 : i32
    %c0_i32_1 = arith.constant 0 : i32
    return %c0_i32, %c0_i32_0 : i32, i32
  }
  func.func @transform_12(%arg0: i32, %arg1: i32) -> (i32, i32) {
    %c0_i32 = arith.constant 0 : i32
    %c0_i32_0 = arith.constant 0 : i32
    %c0_i32_1 = arith.constant 0 : i32
    return %c0_i32, %c0_i32_0 : i32, i32
  }
  func.func @transform_13(%arg0: i32, %arg1: i32) -> (i32, i32, i32) {
    %c0_i32 = arith.constant 0 : i32
    %c0_i32_0 = arith.constant 0 : i32
    return %arg0, %arg1, %c0_i32 : i32, i32, i32
  }
}

</mosaic_0001>

<llo_original>
// kernel: tpu_custom_call.1
$region0: #{tpu_custom_call.1}
  #allocation0 [shape = 'u32[]', space=smem, size = 0x4, offset = 0x4, fixed_abs, tag = 'smem constant byte address 0x4 - core index']
  #allocation1 [shape = 'u32[144,128]{1,0:T(1,128)}', space=vmem, size = 0x12000, scoped, tag = 'internal scratch']
  #allocation2 [shape = 'bf16[2,128,128]{2,1,0:T(8,128)(2,1)}', space=vmem, size = 0x10000, scoped, tag = 'scratch operand']
  #allocation3 [shape = 'bf16[2,256,128]{2,1,0:T(8,128)(2,1)}', space=vmem, size = 0x20000, scoped, tag = 'scratch operand']
  #allocation4 [shape = 'bf16[2,256,128]{2,1,0:T(8,128)(2,1)}', space=vmem, size = 0x20000, scoped, tag = 'scratch operand']
  #allocation5 [shape = 'bf16[128,256]{1,0:T(8,128)(2,1)}', space=vmem, size = 0x10000, scoped, tag = 'scratch operand']
  %s0 = inlined_call_operand.hbm [shape: f32[2,256,256], index: 0, kind: input, shape index: {}]
  %s1 = inlined_call_operand.hbm [shape: f32[2,256,256], index: 1, kind: input, shape index: {}]
  %s2 = inlined_call_operand.hbm [shape: bf16[256,256], index: 2, kind: input, shape index: {}]
  %s3 = inlined_call_operand.hbm [shape: bf16[256,256], index: 3, kind: input, shape index: {}]
  %s4 = inlined_call_operand.hbm [shape: bf16[256,256], index: 4, kind: input, shape index: {}]
  %s5 = inlined_call_operand.hbm [shape: bf16[256,256], index: 5, kind: input, shape index: {}]
  %s6 = inlined_call_operand.vmem [shape: f32[1,256], index: 6, kind: input, shape index: {}]
  %s7 = inlined_call_operand.vmem [shape: f32[1,256], index: 7, kind: input, shape index: {}]
  %s8 = inlined_call_operand.vmem [shape: f32[1,256], index: 8, kind: input, shape index: {}]
  %s9 = inlined_call_operand.hbm [shape: bf16[256,1024], index: 9, kind: input, shape index: {}]
  %s10 = inlined_call_operand.vmem [shape: f32[1,1024], index: 10, kind: input, shape index: {}]
  %s11 = inlined_call_operand.hbm [shape: bf16[1024,256], index: 11, kind: input, shape index: {}]
  %s12 = inlined_call_operand.vmem [shape: f32[1,256], index: 12, kind: input, shape index: {}]
  %s13 = inlined_call_operand.hbm [shape: f32[2,256,256], index: 13, kind: output, shape index: {}]
  %s14 = sld [smem:[#allocation0]]
  $region117: #{tpu_custom_call.1} parent=0
    _
  %s16 = ssub.s32 1, %s14
  %s17 = scalar_select 0, %s16, %s14
  $region1: #{tpu_custom_call.1} parent=0
    #allocation6 [shape = 'u8[262144]{0}', space=vmem, size = 0x40000, scoped, tag = 'input window, operand 0']
    #allocation7 [shape = 's32[2]{0}', space=sflag, size = 0x8, scoped, tag = 'scoped memory for tpu_custom_call.1']
    #allocation8 [shape = 's32[2]{0}', space=sflag, size = 0x8, scoped, tag = 'scoped memory for tpu_custom_call.1']
    #allocation9 [shape = 'u8[524288]{0}', space=vmem, size = 0x80000, scoped, tag = 'input window, operand 1']
    #allocation10 [shape = 's32[2]{0}', space=sflag, size = 0x8, scoped, tag = 'scoped memory for tpu_custom_call.1']
    #allocation11 [shape = 'u8[131072]{0}', space=vmem, size = 0x20000, scoped, tag = 'input window, operand 2, single buffered']
    #allocation12 [shape = 'u8[131072]{0}', space=vmem, size = 0x20000, scoped, tag = 'input window, operand 3, single buffered']
    #allocation13 [shape = 's32[1]{0}', space=sflag, size = 0x4, scoped, tag = 'scoped memory for tpu_custom_call.1']
    #allocation14 [shape = 'u8[131072]{0}', space=vmem, size = 0x20000, scoped, tag = 'input window, operand 4, single buffered']
    #allocation15 [shape = 'u8[131072]{0}', space=vmem, size = 0x20000, scoped, tag = 'input window, operand 5, single buffered']
    #allocation16 [shape = 's32[1]{0}', space=sflag, size = 0x4, scoped, tag = 'scoped memory for tpu_custom_call.1']
    #allocation17 [shape = 'u8[524288]{0}', space=vmem, size = 0x80000, scoped, tag = 'input window, operand 9, single buffered']
    #allocation18 [shape = 'u8[524288]{0}', space=vmem, size = 0x80000, scoped, tag = 'input window, operand 11, single buffered']
    #allocation19 [shape = 's32[1]{0}', space=sflag, size = 0x4, scoped, tag = 'scoped memory for tpu_custom_call.1']
    #allocation20 [shape = 'u8[262144]{0}', space=vmem, size = 0x40000, scoped, tag = 'output window, operand 0']
    %18 = vsyncpa [#allocation7], 0
    %s19 = scalar_lea.sflag [#allocation7], 1
    %20 = vsyncpa %s19, 0
    %21 = vsyncpa [#allocation10], 0
    %s22 = scalar_lea.sflag [#allocation10], 1
    %23 = vsyncpa %s22, 0
    %24 = vsyncpa [#allocation13], 0
    %25 = vsyncpa [#allocation16], 0
    %26 = vsyncpa [#allocation19], 0
    %27 = vsyncpa [#allocation8], 0
    %s28 = scalar_lea.sflag [#allocation8], 1
    %29 = vsyncpa %s28, 0
    loop: start=0, step=1, limit=6
    $region2: #{tpu_custom_call.1} parent=1 // loop_pre_header
      _
    $region3: #{tpu_custom_call.1} parent=1 // loop_header
      %s31 = sphi 0, %s35
      %p32 = scmp.ge.s32.totalorder %s31, 6
      %s38 = sphi 0, %s50
      %s39 = sphi 0, %s46
      %s40 = sphi 0, %s38
      %s41 = sphi 0, %s39
      %s42 = sphi 0, %s40
      %s43 = sphi 0, %s41
      %s55 = sphi 0, %s57
      %s58 = sphi 0, %s55
      %s59 = sphi 0, %s58
      %s75 = sphi 0, %s59
      %s81 = sphi 0, %s83
      %s84 = sphi 0, %s81
      %s85 = sphi 0, %s84
      %s101 = sphi 0, %s85
      %s105 = sphi 0, %s105
      %s107 = sphi 0, %s105
      %s108 = sphi 0, %s107
      %s122 = sphi 0, %s108
      %s126 = sphi 0, %s126
      %s128 = sphi 0, %s126
      %s129 = sphi 0, %s128
      %s143 = sphi 0, %s129
      %s147 = sphi 0, %s147
      %s149 = sphi 0, %s147
      %s150 = sphi 0, %s149
      %s164 = sphi 0, %s150
      %s168 = sphi 0, %s168
      %s170 = sphi 0, %s168
      %s171 = sphi 0, %s170
      %s185 = sphi 0, %s171
      %s189 = sphi 0, %s189
      %s191 = sphi 0, %s189
      %s192 = sphi 0, %s191
      %s206 = sphi 0, %s192
      %s210 = sphi 0, %s210
      %s212 = sphi 0, %s210
      %s213 = sphi 0, %s212
      %s227 = sphi 0, %s213
      %s231 = sphi 0, %s231
      %s233 = sphi 0, %s231
      %s234 = sphi 0, %s233
      %s248 = sphi 0, %s234
      %s252 = sphi 0, %s252
      %s254 = sphi 0, %s252
      %s255 = sphi 0, %s254
      %s269 = sphi 0, %s255
      %s273 = sphi 0, %s273
      %s275 = sphi 0, %s273
      %s276 = sphi 0, %s275
      %s290 = sphi 0, %s276
      %s294 = sphi 0, %s294
      %s296 = sphi 0, %s294
      %s297 = sphi 0, %s296
      %s311 = sphi 0, %s297
      %s315 = sphi 0, %s315
      %s317 = sphi 0, %s315
      %s318 = sphi 0, %s317
      %s332 = sphi 0, %s318
      %s340 = sphi 0, %s342
      %s343 = sphi 0, %s340
      %s344 = sphi 0, %s343
      %s360 = sphi 0, %s344
    $region4: #{tpu_custom_call.1} parent=1 // loop_header_branch
      %34 = sbr.rel (%p32) target = $region8
    $region5: #{tpu_custom_call.1} parent=1 // loop_body
      %s36 = ssub.s32 %s31, 1
      %s37 = ssub.s32 %s31, 2
      %s44 = sadd.s32 1, %s39
      %p45 = scmp.ge.s32.totalorder %s44, 2
      %s46 = scalar_select %p45, 0, %s44
      %s47 = sadd.s32 1, %s38
      %s48 = scalar_select %p45, %s47, %s38
      %p49 = scmp.ge.s32.totalorder %s48, 2
      %s50 = scalar_select %p49, 0, %s48
      %s51 = ssub.s32 %s38, %s50
      %s52 = ssub.s32 %s39, %s46
      %s53 = sor.u32 %s51, %s52
      %p54 = scmp.eq.s32.totalorder %s53, 0
      %s56 = sadd.s32 %s55, 1
      %s57 = scalar_select %p54, %s55, %s56
      %p60 = pneg %p54
      %p61 = scmp.eq.s32.totalorder %s31, 3
      %p62 = por %p60, %p61
      %p63 = scmp.ne.s32.totalorder %s55, %s58
      %p64 = scmp.eq.s32.totalorder %s31, 0
      %p65 = por %p63, %p64
      %p66 = scmp.ne.s32.totalorder %s55, %s58
      %p67 = scmp.eq.s32.totalorder %s36, 3
      %p68 = por %p66, %p67
      %p69 = scmp.ne.s32.totalorder %s58, %s59
      %p70 = scmp.eq.s32.totalorder %s36, 0
      %p71 = por %p69, %p70
      %p72 = scmp.ne.s32.totalorder %s58, %s59
      %p73 = scmp.eq.s32.totalorder %s37, 3
      %p74 = por %p72, %p73
      %p76 = scmp.ne.s32.totalorder %s59, %s75
      %p77 = scmp.eq.s32.totalorder %s37, 0
      %p78 = por %p76, %p77
      %s79 = ssub.s32 %s38, %s50
      %p80 = scmp.eq.s32.totalorder %s79, 0
      %s82 = sadd.s32 %s81, 1
      %s83 = scalar_select %p80, %s81, %s82
      %p86 = pneg %p80
      %p87 = scmp.eq.s32.totalorder %s31, 3
      %p88 = por %p86, %p87
      %p89 = scmp.ne.s32.totalorder %s81, %s84
      %p90 = scmp.eq.s32.totalorder %s31, 0
      %p91 = por %p89, %p90
      %p92 = scmp.ne.s32.totalorder %s81, %s84
      %p93 = scmp.eq.s32.totalorder %s36, 3
      %p94 = por %p92, %p93
      %p95 = scmp.ne.s32.totalorder %s84, %s85
      %p96 = scmp.eq.s32.totalorder %s36, 0
      %p97 = por %p95, %p96
      %p98 = scmp.ne.s32.totalorder %s84, %s85
      %p99 = scmp.eq.s32.totalorder %s37, 3
      %p100 = por %p98, %p99
      %p102 = scmp.ne.s32.totalorder %s85, %s101
      %p103 = scmp.eq.s32.totalorder %s37, 0
      %p104 = por %p102, %p103
      %s106 = sadd.s32 %s105, 1
      %p109 = scmp.eq.s32.totalorder %s31, 3
      %p110 = scmp.ne.s32.totalorder %s105, %s107
      %p111 = scmp.eq.s32.totalorder %s31, 0
      %p112 = por %p110, %p111
      %p113 = scmp.ne.s32.totalorder %s105, %s107
      %p114 = scmp.eq.s32.totalorder %s36, 3
      %p115 = por %p113, %p114
      %p116 = scmp.ne.s32.totalorder %s107, %s108
      %p117 = scmp.eq.s32.totalorder %s36, 0
      %p118 = por %p116, %p117
      %p119 = scmp.ne.s32.totalorder %s107, %s108
      %p120 = scmp.eq.s32.totalorder %s37, 3
      %p121 = por %p119, %p120
      %p123 = scmp.ne.s32.totalorder %s108, %s122
      %p124 = scmp.eq.s32.totalorder %s37, 0
      %p125 = por %p123, %p124
      %s127 = sadd.s32 %s126, 1
      %p130 = scmp.eq.s32.totalorder %s31, 3
      %p131 = scmp.ne.s32.totalorder %s126, %s128
      %p132 = scmp.eq.s32.totalorder %s31, 0
      %p133 = por %p131, %p132
      %p134 = scmp.ne.s32.totalorder %s126, %s128
      %p135 = scmp.eq.s32.totalorder %s36, 3
      %p136 = por %p134, %p135
      %p137 = scmp.ne.s32.totalorder %s128, %s129
      %p138 = scmp.eq.s32.totalorder %s36, 0
      %p139 = por %p137, %p138
      %p140 = scmp.ne.s32.totalorder %s128, %s129
      %p141 = scmp.eq.s32.totalorder %s37, 3
      %p142 = por %p140, %p141
      %p144 = scmp.ne.s32.totalorder %s129, %s143
      %p145 = scmp.eq.s32.totalorder %s37, 0
      %p146 = por %p144, %p145
      %s148 = sadd.s32 %s147, 1
      %p151 = scmp.eq.s32.totalorder %s31, 3
      %p152 = scmp.ne.s32.totalorder %s147, %s149
      %p153 = scmp.eq.s32.totalorder %s31, 0
      %p154 = por %p152, %p153
      %p155 = scmp.ne.s32.totalorder %s147, %s149
      %p156 = scmp.eq.s32.totalorder %s36, 3
      %p157 = por %p155, %p156
      %p158 = scmp.ne.s32.totalorder %s149, %s150
      %p159 = scmp.eq.s32.totalorder %s36, 0
      %p160 = por %p158, %p159
      %p161 = scmp.ne.s32.totalorder %s149, %s150
      %p162 = scmp.eq.s32.totalorder %s37, 3
      %p163 = por %p161, %p162
      %p165 = scmp.ne.s32.totalorder %s150, %s164
      %p166 = scmp.eq.s32.totalorder %s37, 0
      %p167 = por %p165, %p166
      %s169 = sadd.s32 %s168, 1
      %p172 = scmp.eq.s32.totalorder %s31, 3
      %p173 = scmp.ne.s32.totalorder %s168, %s170
      %p174 = scmp.eq.s32.totalorder %s31, 0
      %p175 = por %p173, %p174
      %p176 = scmp.ne.s32.totalorder %s168, %s170
      %p177 = scmp.eq.s32.totalorder %s36, 3
      %p178 = por %p176, %p177
      %p179 = scmp.ne.s32.totalorder %s170, %s171
      %p180 = scmp.eq.s32.totalorder %s36, 0
      %p181 = por %p179, %p180
      %p182 = scmp.ne.s32.totalorder %s170, %s171
      %p183 = scmp.eq.s32.totalorder %s37, 3
      %p184 = por %p182, %p183
      %p186 = scmp.ne.s32.totalorder %s171, %s185
      %p187 = scmp.eq.s32.totalorder %s37, 0
      %p188 = por %p186, %p187
      %s190 = sadd.s32 %s189, 1
      %p193 = scmp.eq.s32.totalorder %s31, 3
      %p194 = scmp.ne.s32.totalorder %s189, %s191
      %p195 = scmp.eq.s32.totalorder %s31, 0
      %p196 = por %p194, %p195
      %p197 = scmp.ne.s32.totalorder %s189, %s191
      %p198 = scmp.eq.s32.totalorder %s36, 3
      %p199 = por %p197, %p198
      %p200 = scmp.ne.s32.totalorder %s191, %s192
      %p201 = scmp.eq.s32.totalorder %s36, 0
      %p202 = por %p200, %p201
      %p203 = scmp.ne.s32.totalorder %s191, %s192
      %p204 = scmp.eq.s32.totalorder %s37, 3
      %p205 = por %p203, %p204
      %p207 = scmp.ne.s32.totalorder %s192, %s206
      %p208 = scmp.eq.s32.totalorder %s37, 0
      %p209 = por %p207, %p208
      %s211 = sadd.s32 %s210, 1
      %p214 = scmp.eq.s32.totalorder %s31, 3
      %p215 = scmp.ne.s32.totalorder %s210, %s212
      %p216 = scmp.eq.s32.totalorder %s31, 0
      %p217 = por %p215, %p216
      %p218 = scmp.ne.s32.totalorder %s210, %s212
      %p219 = scmp.eq.s32.totalorder %s36, 3
      %p220 = por %p218, %p219
      %p221 = scmp.ne.s32.totalorder %s212, %s213
      %p222 = scmp.eq.s32.totalorder %s36, 0
      %p223 = por %p221, %p222
      %p224 = scmp.ne.s32.totalorder %s212, %s213
      %p225 = scmp.eq.s32.totalorder %s37, 3
      %p226 = por %p224, %p225
      %p228 = scmp.ne.s32.totalorder %s213, %s227
      %p229 = scmp.eq.s32.totalorder %s37, 0
      %p230 = por %p228, %p229
      %s232 = sadd.s32 %s231, 1
      %p235 = scmp.eq.s32.totalorder %s31, 3
      %p236 = scmp.ne.s32.totalorder %s231, %s233
      %p237 = scmp.eq.s32.totalorder %s31, 0
      %p238 = por %p236, %p237
      %p239 = scmp.ne.s32.totalorder %s231, %s233
      %p240 = scmp.eq.s32.totalorder %s36, 3
      %p241 = por %p239, %p240
      %p242 = scmp.ne.s32.totalorder %s233, %s234
      %p243 = scmp.eq.s32.totalorder %s36, 0
      %p244 = por %p242, %p243
      %p245 = scmp.ne.s32.totalorder %s233, %s234
      %p246 = scmp.eq.s32.totalorder %s37, 3
      %p247 = por %p245, %p246
      %p249 = scmp.ne.s32.totalorder %s234, %s248
      %p250 = scmp.eq.s32.totalorder %s37, 0
      %p251 = por %p249, %p250
      %s253 = sadd.s32 %s252, 1
      %p256 = scmp.eq.s32.totalorder %s31, 3
      %p257 = scmp.ne.s32.totalorder %s252, %s254
      %p258 = scmp.eq.s32.totalorder %s31, 0
      %p259 = por %p257, %p258
      %p260 = scmp.ne.s32.totalorder %s252, %s254
      %p261 = scmp.eq.s32.totalorder %s36, 3
      %p262 = por %p260, %p261
      %p263 = scmp.ne.s32.totalorder %s254, %s255
      %p264 = scmp.eq.s32.totalorder %s36, 0
      %p265 = por %p263, %p264
      %p266 = scmp.ne.s32.totalorder %s254, %s255
      %p267 = scmp.eq.s32.totalorder %s37, 3
      %p268 = por %p266, %p267
      %p270 = scmp.ne.s32.totalorder %s255, %s269
      %p271 = scmp.eq.s32.totalorder %s37, 0
      %p272 = por %p270, %p271
      %s274 = sadd.s32 %s273, 1
      %p277 = scmp.eq.s32.totalorder %s31, 3
      %p278 = scmp.ne.s32.totalorder %s273, %s275
      %p279 = scmp.eq.s32.totalorder %s31, 0
      %p280 = por %p278, %p279
      %p281 = scmp.ne.s32.totalorder %s273, %s275
      %p282 = scmp.eq.s32.totalorder %s36, 3
      %p283 = por %p281, %p282
      %p284 = scmp.ne.s32.totalorder %s275, %s276
      %p285 = scmp.eq.s32.totalorder %s36, 0
      %p286 = por %p284, %p285
      %p287 = scmp.ne.s32.totalorder %s275, %s276
      %p288 = scmp.eq.s32.totalorder %s37, 3
      %p289 = por %p287, %p288
      %p291 = scmp.ne.s32.totalorder %s276, %s290
      %p292 = scmp.eq.s32.totalorder %s37, 0
      %p293 = por %p291, %p292
      %s295 = sadd.s32 %s294, 1
      %p298 = scmp.eq.s32.totalorder %s31, 3
      %p299 = scmp.ne.s32.totalorder %s294, %s296
      %p300 = scmp.eq.s32.totalorder %s31, 0
      %p301 = por %p299, %p300
      %p302 = scmp.ne.s32.totalorder %s294, %s296
      %p303 = scmp.eq.s32.totalorder %s36, 3
      %p304 = por %p302, %p303
      %p305 = scmp.ne.s32.totalorder %s296, %s297
      %p306 = scmp.eq.s32.totalorder %s36, 0
      %p307 = por %p305, %p306
      %p308 = scmp.ne.s32.totalorder %s296, %s297
      %p309 = scmp.eq.s32.totalorder %s37, 3
      %p310 = por %p308, %p309
      %p312 = scmp.ne.s32.totalorder %s297, %s311
      %p313 = scmp.eq.s32.totalorder %s37, 0
      %p314 = por %p312, %p313
      %s316 = sadd.s32 %s315, 1
      %p319 = scmp.eq.s32.totalorder %s31, 3
      %p320 = scmp.ne.s32.totalorder %s315, %s317
      %p321 = scmp.eq.s32.totalorder %s31, 0
      %p322 = por %p320, %p321
      %p323 = scmp.ne.s32.totalorder %s315, %s317
      %p324 = scmp.eq.s32.totalorder %s36, 3
      %p325 = por %p323, %p324
      %p326 = scmp.ne.s32.totalorder %s317, %s318
      %p327 = scmp.eq.s32.totalorder %s36, 0
      %p328 = por %p326, %p327
      %p329 = scmp.ne.s32.totalorder %s317, %s318
      %p330 = scmp.eq.s32.totalorder %s37, 3
      %p331 = por %p329, %p330
      %p333 = scmp.ne.s32.totalorder %s318, %s332
      %p334 = scmp.eq.s32.totalorder %s37, 0
      %p335 = por %p333, %p334
      %s336 = ssub.s32 %s38, %s50
      %s337 = ssub.s32 %s39, %s46
      %s338 = sor.u32 %s336, %s337
      %p339 = scmp.eq.s32.totalorder %s338, 0
      %s341 = sadd.s32 %s340, 1
      %s342 = scalar_select %p339, %s340, %s341
      %p345 = pneg %p339
      %p346 = scmp.eq.s32.totalorder %s31, 3
      %p347 = por %p345, %p346
      %p348 = scmp.ne.s32.totalorder %s340, %s343
      %p349 = scmp.eq.s32.totalorder %s31, 0
      %p350 = por %p348, %p349
      %p351 = scmp.ne.s32.totalorder %s340, %s343
      %p352 = scmp.eq.s32.totalorder %s36, 3
      %p353 = por %p351, %p352
      %p354 = scmp.ne.s32.totalorder %s343, %s344
      %p355 = scmp.eq.s32.totalorder %s36, 0
      %p356 = por %p354, %p355
      %p357 = scmp.ne.s32.totalorder %s343, %s344
      %p358 = scmp.eq.s32.totalorder %s37, 3
      %p359 = por %p357, %p358
      %p361 = scmp.ne.s32.totalorder %s344, %s360
      %p362 = scmp.eq.s32.totalorder %s37, 0
      %p363 = por %p361, %p362
      %p364 = scmp.le.s32.totalorder 1, %s31
      %p365 = scmp.lt.s32.totalorder %s31, 5
      %p366 = pnand %p364, %p365
      %p367 = pneg %p366
      // Predicated region
      $region9: #{tpu_custom_call.1} parent=5 // pred_check
        _
      $region10: #{tpu_custom_call.1} parent=5 // pred_check_branch
        %369 = sbr.rel (%p366) target = $region12
      $region11: #{tpu_custom_call.1} parent=5 // pred_region
        %s370 = ssub.s32 %s31, 1
        // Predicated region
        $region13: #{tpu_custom_call.1} parent=11 // pred_check
          %p371 = pneg %p118
        $region14: #{tpu_custom_call.1} parent=11 // pred_check_branch
          %373 = sbr.rel (%p371) target = $region16
        $region15: #{tpu_custom_call.1} parent=11 // pred_region
          %s375 = ssub.s32 4096, 4096
          %376 = vsyncadd [#allocation10], %s375
          %s377 = sshll.u32 [#allocation11], 4
          %s378 = int_to_ptr.vmem [resolvable:$true] %s377
          %383 = dma.hbm_to_vmem [thread:$0]  %s2, 4096, %s378, [#allocation10], 128, 128, 8
        $region16: #{tpu_custom_call.1} parent=11 // pred_fallthru
          _
        // Predicated region
        $region17: #{tpu_custom_call.1} parent=11 // pred_check
          %p384 = pneg %p139
        $region18: #{tpu_custom_call.1} parent=11 // pred_check_branch
          %386 = sbr.rel (%p384) target = $region20
        $region19: #{tpu_custom_call.1} parent=11 // pred_region
          %s388 = ssub.s32 4096, 4096
          %389 = vsyncadd [#allocation13], %s388
          %s390 = sshll.u32 [#allocation12], 4
          %s391 = int_to_ptr.vmem [resolvable:$true] %s390
          %396 = dma.hbm_to_vmem [thread:$0]  %s3, 4096, %s391, [#allocation13], 128, 128, 8
        $region20: #{tpu_custom_call.1} parent=11 // pred_fallthru
          _
        // Predicated region
        $region21: #{tpu_custom_call.1} parent=11 // pred_check
          %p397 = pneg %p160
        $region22: #{tpu_custom_call.1} parent=11 // pred_check_branch
          %399 = sbr.rel (%p397) target = $region24
        $region23: #{tpu_custom_call.1} parent=11 // pred_region
          %s401 = ssub.s32 4096, 4096
          %402 = vsyncadd [#allocation13], %s401
          %s403 = sshll.u32 [#allocation14], 4
          %s404 = int_to_ptr.vmem [resolvable:$true] %s403
          %409 = dma.hbm_to_vmem [thread:$0]  %s4, 4096, %s404, [#allocation13], 128, 128, 8
        $region24: #{tpu_custom_call.1} parent=11 // pred_fallthru
          _
        // Predicated region
        $region25: #{tpu_custom_call.1} parent=11 // pred_check
          %p410 = pneg %p181
        $region26: #{tpu_custom_call.1} parent=11 // pred_check_branch
          %412 = sbr.rel (%p410) target = $region28
        $region27: #{tpu_custom_call.1} parent=11 // pred_region
          %s414 = ssub.s32 4096, 4096
          %415 = vsyncadd [#allocation16], %s414
          %s416 = sshll.u32 [#allocation15], 4
          %s417 = int_to_ptr.vmem [resolvable:$true] %s416
          %422 = dma.hbm_to_vmem [thread:$0]  %s5, 4096, %s417, [#allocation16], 128, 128, 8
        $region28: #{tpu_custom_call.1} parent=11 // pred_fallthru
          _
        // Predicated region
        $region29: #{tpu_custom_call.1} parent=11 // pred_check
          %p423 = pneg %p202
        $region30: #{tpu_custom_call.1} parent=11 // pred_check_branch
          %425 = sbr.rel (%p423) target = $region32
        $region31: #{tpu_custom_call.1} parent=11 // pred_region
          _
        $region32: #{tpu_custom_call.1} parent=11 // pred_fallthru
          _
        // Predicated region
        $region33: #{tpu_custom_call.1} parent=11 // pred_check
          %p426 = pneg %p223
        $region34: #{tpu_custom_call.1} parent=11 // pred_check_branch
          %428 = sbr.rel (%p426) target = $region36
        $region35: #{tpu_custom_call.1} parent=11 // pred_region
          _
        $region36: #{tpu_custom_call.1} parent=11 // pred_fallthru
          _
        // Predicated region
        $region37: #{tpu_custom_call.1} parent=11 // pred_check
          %p429 = pneg %p244
        $region38: #{tpu_custom_call.1} parent=11 // pred_check_branch
          %431 = sbr.rel (%p429) target = $region40
        $region39: #{tpu_custom_call.1} parent=11 // pred_region
          _
        $region40: #{tpu_custom_call.1} parent=11 // pred_fallthru
          _
        // Predicated region
        $region41: #{tpu_custom_call.1} parent=11 // pred_check
          %p432 = pneg %p265
        $region42: #{tpu_custom_call.1} parent=11 // pred_check_branch
          %434 = sbr.rel (%p432) target = $region44
        $region43: #{tpu_custom_call.1} parent=11 // pred_region
          %s436 = ssub.s32 16384, 16384
          %437 = vsyncadd [#allocation16], %s436
          %s438 = sshll.u32 [#allocation17], 4
          %s439 = int_to_ptr.vmem [resolvable:$true] %s438
          %444 = dma.hbm_to_vmem [thread:$0]  %s9, 16384, %s439, [#allocation16], 512, 512, 32
        $region44: #{tpu_custom_call.1} parent=11 // pred_fallthru
          _
        // Predicated region
        $region45: #{tpu_custom_call.1} parent=11 // pred_check
          %p445 = pneg %p286
        $region46: #{tpu_custom_call.1} parent=11 // pred_check_branch
          %447 = sbr.rel (%p445) target = $region48
        $region47: #{tpu_custom_call.1} parent=11 // pred_region
          _
        $region48: #{tpu_custom_call.1} parent=11 // pred_fallthru
          _
        // Predicated region
        $region49: #{tpu_custom_call.1} parent=11 // pred_check
          %p448 = pneg %p307
        $region50: #{tpu_custom_call.1} parent=11 // pred_check_branch
          %450 = sbr.rel (%p448) target = $region52
        $region51: #{tpu_custom_call.1} parent=11 // pred_region
          %s452 = ssub.s32 16384, 16384
          %453 = vsyncadd [#allocation19], %s452
          %s454 = sshll.u32 [#allocation18], 4
          %s455 = int_to_ptr.vmem [resolvable:$true] %s454
          %460 = dma.hbm_to_vmem [thread:$0]  %s11, 16384, %s455, [#allocation19], 128, 128, 8
        $region52: #{tpu_custom_call.1} parent=11 // pred_fallthru
          _
        // Predicated region
        $region53: #{tpu_custom_call.1} parent=11 // pred_check
          %p461 = pneg %p328
        $region54: #{tpu_custom_call.1} parent=11 // pred_check_branch
          %463 = sbr.rel (%p461) target = $region56
        $region55: #{tpu_custom_call.1} parent=11 // pred_region
          _
        $region56: #{tpu_custom_call.1} parent=11 // pred_fallthru
          _
      $region12: #{tpu_custom_call.1} parent=5 // pred_fallthru
        _
      %p464 = scmp.lt.s32.totalorder %s31, 4
      // Predicated region
      $region57: #{tpu_custom_call.1} parent=5 // pred_check
        %p465 = pneg %p464
      $region58: #{tpu_custom_call.1} parent=5 // pred_check_branch
        %467 = sbr.rel (%p465) target = $region60
      $region59: #{tpu_custom_call.1} parent=5 // pred_region
        // Predicated region
        $region61: #{tpu_custom_call.1} parent=59 // pred_check
          %p468 = pneg %p65
        $region62: #{tpu_custom_call.1} parent=59 // pred_check_branch
          %470 = sbr.rel (%p468) target = $region64
        $region63: #{tpu_custom_call.1} parent=59 // pred_region
          %s471 = sand.u32 %s55, 1
          %s472 = scalar_lea.sflag [#allocation7], %s471
          %s473 = sand.u32 %s55, 1
          %s474 = smul.addr %s473, 256
          %s475 = scalar_lea.vmem [#allocation6], %s474
          %s476 = smul.u32 16, %s39
          %s478 = ssub.s32 4096, 4096
          %479 = vsyncadd %s472, %s478
          %s480 = smul.addr %s476, 2
          %s481 = smul.addr %s38, 64
          %s482 = sadd.s32 %s480, %s481
          %s483 = smul.addr %s482, 128
          %s484 = scalar_lea.hbm %s0, %s483
          %s485 = sshll.u32 %s475, 4
          %s486 = int_to_ptr.vmem [resolvable:$true] %s485
          %491 = dma.hbm_to_vmem [thread:$0]  %s484, 4096, %s486, %s472, 256, 256, 16
        $region64: #{tpu_custom_call.1} parent=59 // pred_fallthru
          _
        // Predicated region
        $region65: #{tpu_custom_call.1} parent=59 // pred_check
          %p492 = pneg %p91
        $region66: #{tpu_custom_call.1} parent=59 // pred_check_branch
          %494 = sbr.rel (%p492) target = $region68
        $region67: #{tpu_custom_call.1} parent=59 // pred_region
          %s495 = sand.u32 %s31, 1
          %s496 = scalar_lea.sflag [#allocation10], %s495
          %s497 = sand.u32 %s81, 1
          %s498 = smul.addr %s497, 512
          %s499 = scalar_lea.vmem [#allocation9], %s498
          %s501 = ssub.s32 8192, 8192
          %502 = vsyncadd %s496, %s501
          %s503 = smul.addr %s38, 64
          %s504 = smul.addr %s503, 128
          %s505 = scalar_lea.hbm %s1, %s504
          %s506 = sshll.u32 %s499, 4
          %s507 = int_to_ptr.vmem [resolvable:$true] %s506
          %512 = dma.hbm_to_vmem [thread:$0]  %s505, 8192, %s507, %s496, 256, 256, 16
        $region68: #{tpu_custom_call.1} parent=59 // pred_fallthru
          _
      $region60: #{tpu_custom_call.1} parent=5 // pred_fallthru
        _
      %p513 = scmp.le.s32.totalorder 1, %s31
      %p514 = scmp.lt.s32.totalorder %s31, 5
      %p515 = pnand %p513, %p514
      %p516 = pneg %p515
      // Predicated region
      $region69: #{tpu_custom_call.1} parent=5 // pred_check
        _
      $region70: #{tpu_custom_call.1} parent=5 // pred_check_branch
        %518 = sbr.rel (%p515) target = $region72
      $region71: #{tpu_custom_call.1} parent=5 // pred_region
        %s519 = ssub.s32 %s31, 1
        %s520 = sand.u32 %s58, 1
        %s521 = scalar_lea.sflag [#allocation7], %s520
        %s522 = sand.u32 %s58, 1
        %s523 = smul.addr %s522, 256
        %s524 = scalar_lea.vmem [#allocation6], %s523
        // Predicated region
        $region73: #{tpu_custom_call.1} parent=71 // pred_check
          %p525 = pneg %p71
        $region74: #{tpu_custom_call.1} parent=71 // pred_check_branch
          %527 = sbr.rel (%p525) target = $region76
        $region75: #{tpu_custom_call.1} parent=71 // pred_region
          %528 = dma.done %s521, 4096
        $region76: #{tpu_custom_call.1} parent=71 // pred_fallthru
          _
        %s529 = sand.u32 %s36, 1
        %s530 = scalar_lea.sflag [#allocation10], %s529
        %s531 = sand.u32 %s84, 1
        %s532 = smul.addr %s531, 512
        %s533 = scalar_lea.vmem [#allocation9], %s532
        // Predicated region
        $region77: #{tpu_custom_call.1} parent=71 // pred_check
          %p534 = pneg %p97
        $region78: #{tpu_custom_call.1} parent=71 // pred_check_branch
          %536 = sbr.rel (%p534) target = $region80
        $region79: #{tpu_custom_call.1} parent=71 // pred_region
          %537 = dma.done %s530, 8192
        $region80: #{tpu_custom_call.1} parent=71 // pred_fallthru
          _
        // Predicated region
        $region81: #{tpu_custom_call.1} parent=71 // pred_check
          %p538 = pneg %p118
        $region82: #{tpu_custom_call.1} parent=71 // pred_check_branch
          %540 = sbr.rel (%p538) target = $region84
        $region83: #{tpu_custom_call.1} parent=71 // pred_region
          %541 = dma.done [#allocation10], 4096
        $region84: #{tpu_custom_call.1} parent=71 // pred_fallthru
          _
        // Predicated region
        $region85: #{tpu_custom_call.1} parent=71 // pred_check
          %p542 = pneg %p139
        $region86: #{tpu_custom_call.1} parent=71 // pred_check_branch
          %544 = sbr.rel (%p542) target = $region88
        $region87: #{tpu_custom_call.1} parent=71 // pred_region
          %545 = dma.done [#allocation13], 4096
        $region88: #{tpu_custom_call.1} parent=71 // pred_fallthru
          _
        // Predicated region
        $region89: #{tpu_custom_call.1} parent=71 // pred_check
          %p546 = pneg %p160
        $region90: #{tpu_custom_call.1} parent=71 // pred_check_branch
          %548 = sbr.rel (%p546) target = $region92
        $region91: #{tpu_custom_call.1} parent=71 // pred_region
          %549 = dma.done [#allocation13], 4096
        $region92: #{tpu_custom_call.1} parent=71 // pred_fallthru
          _
        // Predicated region
        $region93: #{tpu_custom_call.1} parent=71 // pred_check
          %p550 = pneg %p181
        $region94: #{tpu_custom_call.1} parent=71 // pred_check_branch
          %552 = sbr.rel (%p550) target = $region96
        $region95: #{tpu_custom_call.1} parent=71 // pred_region
          %553 = dma.done [#allocation16], 4096
        $region96: #{tpu_custom_call.1} parent=71 // pred_fallthru
          _
        // Predicated region
        $region97: #{tpu_custom_call.1} parent=71 // pred_check
          %p554 = pneg %p265
        $region98: #{tpu_custom_call.1} parent=71 // pred_check_branch
          %556 = sbr.rel (%p554) target = $region100
        $region99: #{tpu_custom_call.1} parent=71 // pred_region
          %557 = dma.done [#allocation16], 16384
        $region100: #{tpu_custom_call.1} parent=71 // pred_fallthru
          _
        // Predicated region
        $region101: #{tpu_custom_call.1} parent=71 // pred_check
          %p558 = pneg %p307
        $region102: #{tpu_custom_call.1} parent=71 // pred_check_branch
          %560 = sbr.rel (%p558) target = $region104
        $region103: #{tpu_custom_call.1} parent=71 // pred_region
          %561 = dma.done [#allocation19], 16384
        $region104: #{tpu_custom_call.1} parent=71 // pred_fallthru
          _
        %s562 = sand.u32 %s58, 1
        %s563 = scalar_lea.sflag [#allocation7], %s562
        %s564 = sand.u32 %s58, 1
        %s565 = smul.addr %s564, 256
        %s566 = scalar_lea.vmem [#allocation6], %s565
        %p567 = pneg %p71
        %p568 = pneg %p68
        %s569 = sand.u32 %s36, 1
        %s570 = scalar_lea.sflag [#allocation10], %s569
        %s571 = sand.u32 %s84, 1
        %s572 = smul.addr %s571, 512
        %s573 = scalar_lea.vmem [#allocation9], %s572
        %p574 = pneg %p97
        %p575 = pneg %p94
        %p576 = pneg %p118
        %p577 = pneg %p115
        %p578 = pneg %p139
        %p579 = pneg %p136
        %p580 = pneg %p160
        %p581 = pneg %p157
        %p582 = pneg %p181
        %p583 = pneg %p178
        %p584 = pneg %p202
        %p585 = pneg %p199
        %p586 = pneg %p223
        %p587 = pneg %p220
        %p588 = pneg %p244
        %p589 = pneg %p241
        %p590 = pneg %p265
        %p591 = pneg %p262
        %p592 = pneg %p286
        %p593 = pneg %p283
        %p594 = pneg %p307
        %p595 = pneg %p304
        %p596 = pneg %p328
        %p597 = pneg %p325
        %p598 = pneg %p356
        %p599 = pneg %p353
        %s600 = sand.u32 %s343, 1
        %s601 = scalar_lea.sflag [#allocation8], %s600
        %s602 = sand.u32 %s343, 1
        %s603 = smul.addr %s602, 256
        %s604 = scalar_lea.vmem [#allocation20], %s603
        %s605 = smul.u32 16, %s41
        %s606 = smul.u32 16, %s41
        %v608 = vld [vmem:[%s524] sm:$0xff]
        %v609 = vld [vmem:[%s524 + $0x8] sm:$0xff]
        %v610 = vld [vmem:[%s524 + $0x10] sm:$0xff]
        %v611 = vld [vmem:[%s524 + $0x18] sm:$0xff]
        %v612 = vld [vmem:[%s524 + $0x20] sm:$0xff]
        %v613 = vld [vmem:[%s524 + $0x28] sm:$0xff]
        %v614 = vld [vmem:[%s524 + $0x30] sm:$0xff]
        %v615 = vld [vmem:[%s524 + $0x38] sm:$0xff]
        %v616 = vld [vmem:[%s524 + $0x40] sm:$0xff]
        %v617 = vld [vmem:[%s524 + $0x48] sm:$0xff]
        %v618 = vld [vmem:[%s524 + $0x50] sm:$0xff]
        %v619 = vld [vmem:[%s524 + $0x58] sm:$0xff]
        %v620 = vld [vmem:[%s524 + $0x60] sm:$0xff]
        %v621 = vld [vmem:[%s524 + $0x68] sm:$0xff]
        %v622 = vld [vmem:[%s524 + $0x70] sm:$0xff]
        %v623 = vld [vmem:[%s524 + $0x78] sm:$0xff]
        %v624 = vld [vmem:[%s524 + $0x80] sm:$0xff]
        %v625 = vld [vmem:[%s524 + $0x88] sm:$0xff]
        %v626 = vld [vmem:[%s524 + $0x90] sm:$0xff]
        %v627 = vld [vmem:[%s524 + $0x98] sm:$0xff]
        %v628 = vld [vmem:[%s524 + $0xa0] sm:$0xff]
        %v629 = vld [vmem:[%s524 + $0xa8] sm:$0xff]
        %v630 = vld [vmem:[%s524 + $0xb0] sm:$0xff]
        %v631 = vld [vmem:[%s524 + $0xb8] sm:$0xff]
        %v632 = vld [vmem:[%s524 + $0xc0] sm:$0xff]
        %v633 = vld [vmem:[%s524 + $0xc8] sm:$0xff]
        %v634 = vld [vmem:[%s524 + $0xd0] sm:$0xff]
        %v635 = vld [vmem:[%s524 + $0xd8] sm:$0xff]
        %v636 = vld [vmem:[%s524 + $0xe0] sm:$0xff]
        %v637 = vld [vmem:[%s524 + $0xe8] sm:$0xff]
        %v638 = vld [vmem:[%s524 + $0xf0] sm:$0xff]
        %v639 = vld [vmem:[%s524 + $0xf8] sm:$0xff]
        %v640 = vpack.c.bf16 %v610, %v608
        %v641 = vpack.c.bf16 %v611, %v609
        %v642 = vpack.c.bf16 %v614, %v612
        %v643 = vpack.c.bf16 %v615, %v613
        %v644 = vpack.c.bf16 %v618, %v616
        %v645 = vpack.c.bf16 %v619, %v617
        %v646 = vpack.c.bf16 %v622, %v620
        %v647 = vpack.c.bf16 %v623, %v621
        %v648 = vpack.c.bf16 %v626, %v624
        %v649 = vpack.c.bf16 %v627, %v625
        %v650 = vpack.c.bf16 %v630, %v628
        %v651 = vpack.c.bf16 %v631, %v629
        %v652 = vpack.c.bf16 %v634, %v632
        %v653 = vpack.c.bf16 %v635, %v633
        %v654 = vpack.c.bf16 %v638, %v636
        %v655 = vpack.c.bf16 %v639, %v637
        %v656 = vld [vmem:[%s533] sm:$0xff]
        %v657 = vld [vmem:[%s533 + $0x8] sm:$0xff]
        %v658 = vld [vmem:[%s533 + $0x10] sm:$0xff]
        %v659 = vld [vmem:[%s533 + $0x18] sm:$0xff]
        %v660 = vld [vmem:[%s533 + $0x20] sm:$0xff]
        %v661 = vld [vmem:[%s533 + $0x28] sm:$0xff]
        %v662 = vld [vmem:[%s533 + $0x30] sm:$0xff]
        %v663 = vld [vmem:[%s533 + $0x38] sm:$0xff]
        %v664 = vld [vmem:[%s533 + $0x40] sm:$0xff]
        %v665 = vld [vmem:[%s533 + $0x48] sm:$0xff]
        %v666 = vld [vmem:[%s533 + $0x50] sm:$0xff]
        %v667 = vld [vmem:[%s533 + $0x58] sm:$0xff]
        %v668 = vld [vmem:[%s533 + $0x60] sm:$0xff]
        %v669 = vld [vmem:[%s533 + $0x68] sm:$0xff]
        %v670 = vld [vmem:[%s533 + $0x70] sm:$0xff]
        %v671 = vld [vmem:[%s533 + $0x78] sm:$0xff]
        %v672 = vld [vmem:[%s533 + $0x80] sm:$0xff]
        %v673 = vld [vmem:[%s533 + $0x88] sm:$0xff]
        %v674 = vld [vmem:[%s533 + $0x90] sm:$0xff]
        %v675 = vld [vmem:[%s533 + $0x98] sm:$0xff]
        %v676 = vld [vmem:[%s533 + $0xa0] sm:$0xff]
        %v677 = vld [vmem:[%s533 + $0xa8] sm:$0xff]
        %v678 = vld [vmem:[%s533 + $0xb0] sm:$0xff]
        %v679 = vld [vmem:[%s533 + $0xb8] sm:$0xff]
        %v680 = vld [vmem:[%s533 + $0xc0] sm:$0xff]
        %v681 = vld [vmem:[%s533 + $0xc8] sm:$0xff]
        %v682 = vld [vmem:[%s533 + $0xd0] sm:$0xff]
        %v683 = vld [vmem:[%s533 + $0xd8] sm:$0xff]
        %v684 = vld [vmem:[%s533 + $0xe0] sm:$0xff]
        %v685 = vld [vmem:[%s533 + $0xe8] sm:$0xff]
        %v686 = vld [vmem:[%s533 + $0xf0] sm:$0xff]
        %v687 = vld [vmem:[%s533 + $0xf8] sm:$0xff]
        %v688 = vld [vmem:[%s533 + $0x100] sm:$0xff]
        %v689 = vld [vmem:[%s533 + $0x108] sm:$0xff]
        %v690 = vld [vmem:[%s533 + $0x110] sm:$0xff]
        %v691 = vld [vmem:[%s533 + $0x118] sm:$0xff]
        %v692 = vld [vmem:[%s533 + $0x120] sm:$0xff]
        %v693 = vld [vmem:[%s533 + $0x128] sm:$0xff]
        %v694 = vld [vmem:[%s533 + $0x130] sm:$0xff]
        %v695 = vld [vmem:[%s533 + $0x138] sm:$0xff]
        %v696 = vld [vmem:[%s533 + $0x140] sm:$0xff]
        %v697 = vld [vmem:[%s533 + $0x148] sm:$0xff]
        %v698 = vld [vmem:[%s533 + $0x150] sm:$0xff]
        %v699 = vld [vmem:[%s533 + $0x158] sm:$0xff]
        %v700 = vld [vmem:[%s533 + $0x160] sm:$0xff]
        %v701 = vld [vmem:[%s533 + $0x168] sm:$0xff]
        %v702 = vld [vmem:[%s533 + $0x170] sm:$0xff]
        %v703 = vld [vmem:[%s533 + $0x178] sm:$0xff]
        %v704 = vld [vmem:[%s533 + $0x180] sm:$0xff]
        %v705 = vld [vmem:[%s533 + $0x188] sm:$0xff]
        %v706 = vld [vmem:[%s533 + $0x190] sm:$0xff]
        %v707 = vld [vmem:[%s533 + $0x198] sm:$0xff]
        %v708 = vld [vmem:[%s533 + $0x1a0] sm:$0xff]
        %v709 = vld [vmem:[%s533 + $0x1a8] sm:$0xff]
        %v710 = vld [vmem:[%s533 + $0x1b0] sm:$0xff]
        %v711 = vld [vmem:[%s533 + $0x1b8] sm:$0xff]
        %v712 = vld [vmem:[%s533 + $0x1c0] sm:$0xff]
        %v713 = vld [vmem:[%s533 + $0x1c8] sm:$0xff]
        %v714 = vld [vmem:[%s533 + $0x1d0] sm:$0xff]
        %v715 = vld [vmem:[%s533 + $0x1d8] sm:$0xff]
        %v716 = vld [vmem:[%s533 + $0x1e0] sm:$0xff]
        %v717 = vld [vmem:[%s533 + $0x1e8] sm:$0xff]
        %v718 = vld [vmem:[%s533 + $0x1f0] sm:$0xff]
        %v719 = vld [vmem:[%s533 + $0x1f8] sm:$0xff]
        %v720 = vpack.c.bf16 %v658, %v656
        %v721 = vpack.c.bf16 %v659, %v657
        %v722 = vpack.c.bf16 %v662, %v660
        %v723 = vpack.c.bf16 %v663, %v661
        %v724 = vpack.c.bf16 %v666, %v664
        %v725 = vpack.c.bf16 %v667, %v665
        %v726 = vpack.c.bf16 %v670, %v668
        %v727 = vpack.c.bf16 %v671, %v669
        %v728 = vpack.c.bf16 %v674, %v672
        %v729 = vpack.c.bf16 %v675, %v673
        %v730 = vpack.c.bf16 %v678, %v676
        %v731 = vpack.c.bf16 %v679, %v677
        %v732 = vpack.c.bf16 %v682, %v680
        %v733 = vpack.c.bf16 %v683, %v681
        %v734 = vpack.c.bf16 %v686, %v684
        %v735 = vpack.c.bf16 %v687, %v685
        %v736 = vpack.c.bf16 %v690, %v688
        %v737 = vpack.c.bf16 %v691, %v689
        %v738 = vpack.c.bf16 %v694, %v692
        %v739 = vpack.c.bf16 %v695, %v693
        %v740 = vpack.c.bf16 %v698, %v696
        %v741 = vpack.c.bf16 %v699, %v697
        %v742 = vpack.c.bf16 %v702, %v700
        %v743 = vpack.c.bf16 %v703, %v701
        %v744 = vpack.c.bf16 %v706, %v704
        %v745 = vpack.c.bf16 %v707, %v705
        %v746 = vpack.c.bf16 %v710, %v708
        %v747 = vpack.c.bf16 %v711, %v709
        %v748 = vpack.c.bf16 %v714, %v712
        %v749 = vpack.c.bf16 %v715, %v713
        %v750 = vpack.c.bf16 %v718, %v716
        %v751 = vpack.c.bf16 %v719, %v717
        %v752 = vld [vmem:[#allocation11] sm:$0xff]
        %v753 = vld [vmem:[#allocation11 + $0x8] sm:$0xff]
        %v754 = vld [vmem:[#allocation11 + $0x10] sm:$0xff]
        %v755 = vld [vmem:[#allocation11 + $0x18] sm:$0xff]
        %v756 = vld [vmem:[#allocation11 + $0x20] sm:$0xff]
        %v757 = vld [vmem:[#allocation11 + $0x28] sm:$0xff]
        %v758 = vld [vmem:[#allocation11 + $0x30] sm:$0xff]
        %v759 = vld [vmem:[#allocation11 + $0x38] sm:$0xff]
        %v760 = vld [vmem:[#allocation11 + $0x40] sm:$0xff]
        %v761 = vld [vmem:[#allocation11 + $0x48] sm:$0xff]
        %v762 = vld [vmem:[#allocation11 + $0x50] sm:$0xff]
        %v763 = vld [vmem:[#allocation11 + $0x58] sm:$0xff]
        %v764 = vld [vmem:[#allocation11 + $0x60] sm:$0xff]
        %v765 = vld [vmem:[#allocation11 + $0x68] sm:$0xff]
        %v766 = vld [vmem:[#allocation11 + $0x70] sm:$0xff]
        %v767 = vld [vmem:[#allocation11 + $0x78] sm:$0xff]
        %v768 = vld [vmem:[#allocation11 + $0x80] sm:$0xff]
        %v769 = vld [vmem:[#allocation11 + $0x88] sm:$0xff]
        %v770 = vld [vmem:[#allocation11 + $0x90] sm:$0xff]
        %v771 = vld [vmem:[#allocation11 + $0x98] sm:$0xff]
        %v772 = vld [vmem:[#allocation11 + $0xa0] sm:$0xff]
        %v773 = vld [vmem:[#allocation11 + $0xa8] sm:$0xff]
        %v774 = vld [vmem:[#allocation11 + $0xb0] sm:$0xff]
        %v775 = vld [vmem:[#allocation11 + $0xb8] sm:$0xff]
        %v776 = vld [vmem:[#allocation11 + $0xc0] sm:$0xff]
        %v777 = vld [vmem:[#allocation11 + $0xc8] sm:$0xff]
        %v778 = vld [vmem:[#allocation11 + $0xd0] sm:$0xff]
        %v779 = vld [vmem:[#allocation11 + $0xd8] sm:$0xff]
        %v780 = vld [vmem:[#allocation11 + $0xe0] sm:$0xff]
        %v781 = vld [vmem:[#allocation11 + $0xe8] sm:$0xff]
        %v782 = vld [vmem:[#allocation11 + $0xf0] sm:$0xff]
        %v783 = vld [vmem:[#allocation11 + $0xf8] sm:$0xff]
        %v816 = vunpack.c.l.b16 %v752
        %v817 = vunpack.c.h.b16 %v752
        %v818 = vunpack.c.l.b16 %v753
        %v819 = vunpack.c.h.b16 %v753
        %v820 = vunpack.c.l.b16 %v754
        %v821 = vunpack.c.h.b16 %v754
        %v822 = vunpack.c.l.b16 %v755
        %v823 = vunpack.c.h.b16 %v755
        %v824 = vunpack.c.l.b16 %v756
        %v825 = vunpack.c.h.b16 %v756
        %v826 = vunpack.c.l.b16 %v757
        %v827 = vunpack.c.h.b16 %v757
        %v828 = vunpack.c.l.b16 %v758
        %v829 = vunpack.c.h.b16 %v758
        %v830 = vunpack.c.l.b16 %v759
        %v831 = vunpack.c.h.b16 %v759
        %v832 = vunpack.c.l.b16 %v760
        %v833 = vunpack.c.h.b16 %v760
        %v834 = vunpack.c.l.b16 %v761
        %v835 = vunpack.c.h.b16 %v761
        %v836 = vunpack.c.l.b16 %v762
        %v837 = vunpack.c.h.b16 %v762
        %v838 = vunpack.c.l.b16 %v763
        %v839 = vunpack.c.h.b16 %v763
        %v840 = vunpack.c.l.b16 %v764
        %v841 = vunpack.c.h.b16 %v764
        %v842 = vunpack.c.l.b16 %v765
        %v843 = vunpack.c.h.b16 %v765
        %v844 = vunpack.c.l.b16 %v766
        %v845 = vunpack.c.h.b16 %v766
        %v846 = vunpack.c.l.b16 %v767
        %v847 = vunpack.c.h.b16 %v767
        %v848 = vunpack.c.l.b16 %v768
        %v849 = vunpack.c.h.b16 %v768
        %v850 = vunpack.c.l.b16 %v769
        %v851 = vunpack.c.h.b16 %v769
        %v852 = vunpack.c.l.b16 %v770
        %v853 = vunpack.c.h.b16 %v770
        %v854 = vunpack.c.l.b16 %v771
        %v855 = vunpack.c.h.b16 %v771
        %v856 = vunpack.c.l.b16 %v772
        %v857 = vunpack.c.h.b16 %v772
        %v858 = vunpack.c.l.b16 %v773
        %v859 = vunpack.c.h.b16 %v773
        %v860 = vunpack.c.l.b16 %v774
        %v861 = vunpack.c.h.b16 %v774
        %v862 = vunpack.c.l.b16 %v775
        %v863 = vunpack.c.h.b16 %v775
        %v864 = vunpack.c.l.b16 %v776
        %v865 = vunpack.c.h.b16 %v776
        %v866 = vunpack.c.l.b16 %v777
        %v867 = vunpack.c.h.b16 %v777
        %v868 = vunpack.c.l.b16 %v778
        %v869 = vunpack.c.h.b16 %v778
        %v870 = vunpack.c.l.b16 %v779
        %v871 = vunpack.c.h.b16 %v779
        %v872 = vunpack.c.l.b16 %v780
        %v873 = vunpack.c.h.b16 %v780
        %v874 = vunpack.c.l.b16 %v781
        %v875 = vunpack.c.h.b16 %v781
        %v876 = vunpack.c.l.b16 %v782
        %v877 = vunpack.c.h.b16 %v782
        %v878 = vunpack.c.l.b16 %v783
        %v879 = vunpack.c.h.b16 %v783
        %v880 = vpack.c.b16 %v818, %v816
        %v881 = vpack.c.b16 %v819, %v817
        %v882 = vpack.c.b16 %v822, %v820
        %v883 = vpack.c.b16 %v823, %v821
        %v884 = vpack.c.b16 %v826, %v824
        %v885 = vpack.c.b16 %v827, %v825
        %v886 = vpack.c.b16 %v830, %v828
        %v887 = vpack.c.b16 %v831, %v829
        %v888 = vpack.c.b16 %v834, %v832
        %v889 = vpack.c.b16 %v835, %v833
        %v890 = vpack.c.b16 %v838, %v836
        %v891 = vpack.c.b16 %v839, %v837
        %v892 = vpack.c.b16 %v842, %v840
        %v893 = vpack.c.b16 %v843, %v841
        %v894 = vpack.c.b16 %v846, %v844
        %v895 = vpack.c.b16 %v847, %v845
        %v896 = vpack.c.b16 %v850, %v848
        %v897 = vpack.c.b16 %v851, %v849
        %v898 = vpack.c.b16 %v854, %v852
        %v899 = vpack.c.b16 %v855, %v853
        %v900 = vpack.c.b16 %v858, %v856
        %v901 = vpack.c.b16 %v859, %v857
        %v902 = vpack.c.b16 %v862, %v860
        %v903 = vpack.c.b16 %v863, %v861
        %v904 = vpack.c.b16 %v866, %v864
        %v905 = vpack.c.b16 %v867, %v865
        %v906 = vpack.c.b16 %v870, %v868
        %v907 = vpack.c.b16 %v871, %v869
        %v908 = vpack.c.b16 %v874, %v872
        %v909 = vpack.c.b16 %v875, %v873
        %v910 = vpack.c.b16 %v878, %v876
        %v911 = vpack.c.b16 %v879, %v877
        %944 = vmatprep.subr.bf16.mxu0 %v895
        %945 = vmatpush1.bf16.msra.mxu0 %v894
        %946 = vmatprep.subr.bf16.mxu0 %v893
        %947 = vmatpush1.bf16.msra.mxu0 %v892
        %948 = vmatprep.subr.bf16.mxu0 %v891
        %949 = vmatpush1.bf16.msra.mxu0 %v890
        %950 = vmatprep.subr.bf16.mxu0 %v889
        %951 = vmatpush1.bf16.msra.mxu0 %v888
        %952 = vmatprep.subr.bf16.mxu0 %v887
        %953 = vmatpush1.bf16.msra.mxu0 %v886
        %954 = vmatprep.subr.bf16.mxu0 %v885
        %955 = vmatpush1.bf16.msra.mxu0 %v884
        %956 = vmatprep.subr.bf16.mxu0 %v883
        %957 = vmatpush1.bf16.msra.mxu0 %v882
        %958 = vmatprep.subr.bf16.mxu0 %v881
        %959 = vmatpush1.bf16.msra.mxu0 %v880
        %960 = vmatprep.subr.bf16.mxu0 %v911
        %961 = vmatpush2.bf16.msra.mxu0 %v910
        %962 = vmatprep.subr.bf16.mxu0 %v909
        %963 = vmatpush2.bf16.msra.mxu0 %v908
        %964 = vmatprep.subr.bf16.mxu0 %v907
        %965 = vmatpush2.bf16.msra.mxu0 %v906
        %966 = vmatprep.subr.bf16.mxu0 %v905
        %967 = vmatpush2.bf16.msra.mxu0 %v904
        %968 = vmatprep.subr.bf16.mxu0 %v903
        %969 = vmatpush2.bf16.msra.mxu0 %v902
        %970 = vmatprep.subr.bf16.mxu0 %v901
        %971 = vmatpush2.bf16.msra.mxu0 %v900
        %972 = vmatprep.subr.bf16.mxu0 %v899
        %973 = vmatpush2.bf16.msra.mxu0 %v898
        %974 = vmatprep.subr.bf16.mxu0 %v897
        %975 = vmatpush2.bf16.msra.mxu0 %v896
        %976 = vmatprep.mubr.bf16.mxu0 %v641
        %977 = vmatmul.mubr.bf16.gmra.mxu0 %v640
        %v978 = vpop.f32.mrf.mxu0
        %v979 = vadd.f32 0.0, %v978
        %v980 = vpop.f32.mrf.mxu0
        %v981 = vadd.f32 0.0, %v980
        %v982 = vpop.f32.mrf.mxu0
        %v983 = vadd.f32 0.0, %v982
        %v984 = vpop.f32.mrf.mxu0
        %v985 = vadd.f32 0.0, %v984
        %986 = vmatprep.mubr.bf16.mxu0 %v643
        %987 = vmatmul.mubr.bf16.gmra.mxu0 %v642
        %v988 = vpop.f32.mrf.mxu0
        %v989 = vadd.f32 0.0, %v988
        %v990 = vpop.f32.mrf.mxu0
        %v991 = vadd.f32 0.0, %v990
        %v992 = vpop.f32.mrf.mxu0
        %v993 = vadd.f32 0.0, %v992
        %v994 = vpop.f32.mrf.mxu0
        %v995 = vadd.f32 0.0, %v994
        %996 = vmatprep.mubr.bf16.mxu0 %v645
        %997 = vmatmul.mubr.bf16.gmra.mxu0 %v644
        %v998 = vpop.f32.mrf.mxu0
        %v999 = vadd.f32 0.0, %v998
        %v1000 = vpop.f32.mrf.mxu0
        %v1001 = vadd.f32 0.0, %v1000
        %v1002 = vpop.f32.mrf.mxu0
        %v1003 = vadd.f32 0.0, %v1002
        %v1004 = vpop.f32.mrf.mxu0
        %v1005 = vadd.f32 0.0, %v1004
        %1006 = vmatprep.mubr.bf16.mxu0 %v647
        %1007 = vmatmul.mubr.bf16.gmra.mxu0 %v646
        %v1008 = vpop.f32.mrf.mxu0
        %v1009 = vadd.f32 0.0, %v1008
        %v1010 = vpop.f32.mrf.mxu0
        %v1011 = vadd.f32 0.0, %v1010
        %v1012 = vpop.f32.mrf.mxu0
        %v1013 = vadd.f32 0.0, %v1012
        %v1014 = vpop.f32.mrf.mxu0
        %v1015 = vadd.f32 0.0, %v1014
        %1016 = vmatprep.mubr.bf16.mxu0 %v649
        %1017 = vmatmul.mubr.bf16.gmra.mxu0 %v648
        %v1018 = vpop.f32.mrf.mxu0
        %v1019 = vadd.f32 0.0, %v1018
        %v1020 = vpop.f32.mrf.mxu0
        %v1021 = vadd.f32 0.0, %v1020
        %v1022 = vpop.f32.mrf.mxu0
        %v1023 = vadd.f32 0.0, %v1022
        %v1024 = vpop.f32.mrf.mxu0
        %v1025 = vadd.f32 0.0, %v1024
        %1026 = vmatprep.mubr.bf16.mxu0 %v651
        %1027 = vmatmul.mubr.bf16.gmra.mxu0 %v650
        %v1028 = vpop.f32.mrf.mxu0
        %v1029 = vadd.f32 0.0, %v1028
        %v1030 = vpop.f32.mrf.mxu0
        %v1031 = vadd.f32 0.0, %v1030
        %v1032 = vpop.f32.mrf.mxu0
        %v1033 = vadd.f32 0.0, %v1032
        %v1034 = vpop.f32.mrf.mxu0
        %v1035 = vadd.f32 0.0, %v1034
        %1036 = vmatprep.mubr.bf16.mxu0 %v653
        %1037 = vmatmul.mubr.bf16.gmra.mxu0 %v652
        %v1038 = vpop.f32.mrf.mxu0
        %v1039 = vadd.f32 0.0, %v1038
        %v1040 = vpop.f32.mrf.mxu0
        %v1041 = vadd.f32 0.0, %v1040
        %v1042 = vpop.f32.mrf.mxu0
        %v1043 = vadd.f32 0.0, %v1042
        %v1044 = vpop.f32.mrf.mxu0
        %v1045 = vadd.f32 0.0, %v1044
        %1046 = vmatprep.mubr.bf16.mxu0 %v655
        %1047 = vmatmul.mubr.bf16.gmra.mxu0 %v654
        %v1048 = vpop.f32.mrf.mxu0
        %v1049 = vadd.f32 0.0, %v1048
        %v1050 = vpop.f32.mrf.mxu0
        %v1051 = vadd.f32 0.0, %v1050
        %v1052 = vpop.f32.mrf.mxu0
        %v1053 = vadd.f32 0.0, %v1052
        %v1054 = vpop.f32.mrf.mxu0
        %v1055 = vadd.f32 0.0, %v1054
        %1056 = vdwg.mxu0
        %v1057 = vld [vmem:[#allocation12] sm:$0xff]
        %v1058 = vld [vmem:[#allocation12 + $0x8] sm:$0xff]
        %v1059 = vld [vmem:[#allocation12 + $0x10] sm:$0xff]
        %v1060 = vld [vmem:[#allocation12 + $0x18] sm:$0xff]
        %v1061 = vld [vmem:[#allocation12 + $0x20] sm:$0xff]
        %v1062 = vld [vmem:[#allocation12 + $0x28] sm:$0xff]
        %v1063 = vld [vmem:[#allocation12 + $0x30] sm:$0xff]
        %v1064 = vld [vmem:[#allocation12 + $0x38] sm:$0xff]
        %v1065 = vld [vmem:[#allocation12 + $0x40] sm:$0xff]
        %v1066 = vld [vmem:[#allocation12 + $0x48] sm:$0xff]
        %v1067 = vld [vmem:[#allocation12 + $0x50] sm:$0xff]
        %v1068 = vld [vmem:[#allocation12 + $0x58] sm:$0xff]
        %v1069 = vld [vmem:[#allocation12 + $0x60] sm:$0xff]
        %v1070 = vld [vmem:[#allocation12 + $0x68] sm:$0xff]
        %v1071 = vld [vmem:[#allocation12 + $0x70] sm:$0xff]
        %v1072 = vld [vmem:[#allocation12 + $0x78] sm:$0xff]
        %v1073 = vld [vmem:[#allocation12 + $0x80] sm:$0xff]
        %v1074 = vld [vmem:[#allocation12 + $0x88] sm:$0xff]
        %v1075 = vld [vmem:[#allocation12 + $0x90] sm:$0xff]
        %v1076 = vld [vmem:[#allocation12 + $0x98] sm:$0xff]
        %v1077 = vld [vmem:[#allocation12 + $0xa0] sm:$0xff]
        %v1078 = vld [vmem:[#allocation12 + $0xa8] sm:$0xff]
        %v1079 = vld [vmem:[#allocation12 + $0xb0] sm:$0xff]
        %v1080 = vld [vmem:[#allocation12 + $0xb8] sm:$0xff]
        %v1081 = vld [vmem:[#allocation12 + $0xc0] sm:$0xff]
        %v1082 = vld [vmem:[#allocation12 + $0xc8] sm:$0xff]
        %v1083 = vld [vmem:[#allocation12 + $0xd0] sm:$0xff]
        %v1084 = vld [vmem:[#allocation12 + $0xd8] sm:$0xff]
        %v1085 = vld [vmem:[#allocation12 + $0xe0] sm:$0xff]
        %v1086 = vld [vmem:[#allocation12 + $0xe8] sm:$0xff]
        %v1087 = vld [vmem:[#allocation12 + $0xf0] sm:$0xff]
        %v1088 = vld [vmem:[#allocation12 + $0xf8] sm:$0xff]
        %v1121 = vunpack.c.l.b16 %v1057
        %v1122 = vunpack.c.h.b16 %v1057
        %v1123 = vunpack.c.l.b16 %v1058
        %v1124 = vunpack.c.h.b16 %v1058
        %v1125 = vunpack.c.l.b16 %v1059
        %v1126 = vunpack.c.h.b16 %v1059
        %v1127 = vunpack.c.l.b16 %v1060
        %v1128 = vunpack.c.h.b16 %v1060
        %v1129 = vunpack.c.l.b16 %v1061
        %v1130 = vunpack.c.h.b16 %v1061
        %v1131 = vunpack.c.l.b16 %v1062
        %v1132 = vunpack.c.h.b16 %v1062
        %v1133 = vunpack.c.l.b16 %v1063
        %v1134 = vunpack.c.h.b16 %v1063
        %v1135 = vunpack.c.l.b16 %v1064
        %v1136 = vunpack.c.h.b16 %v1064
        %v1137 = vunpack.c.l.b16 %v1065
        %v1138 = vunpack.c.h.b16 %v1065
        %v1139 = vunpack.c.l.b16 %v1066
        %v1140 = vunpack.c.h.b16 %v1066
        %v1141 = vunpack.c.l.b16 %v1067
        %v1142 = vunpack.c.h.b16 %v1067
        %v1143 = vunpack.c.l.b16 %v1068
        %v1144 = vunpack.c.h.b16 %v1068
        %v1145 = vunpack.c.l.b16 %v1069
        %v1146 = vunpack.c.h.b16 %v1069
        %v1147 = vunpack.c.l.b16 %v1070
        %v1148 = vunpack.c.h.b16 %v1070
        %v1149 = vunpack.c.l.b16 %v1071
        %v1150 = vunpack.c.h.b16 %v1071
        %v1151 = vunpack.c.l.b16 %v1072
        %v1152 = vunpack.c.h.b16 %v1072
        %v1153 = vunpack.c.l.b16 %v1073
        %v1154 = vunpack.c.h.b16 %v1073
        %v1155 = vunpack.c.l.b16 %v1074
        %v1156 = vunpack.c.h.b16 %v1074
        %v1157 = vunpack.c.l.b16 %v1075
        %v1158 = vunpack.c.h.b16 %v1075
        %v1159 = vunpack.c.l.b16 %v1076
        %v1160 = vunpack.c.h.b16 %v1076
        %v1161 = vunpack.c.l.b16 %v1077
        %v1162 = vunpack.c.h.b16 %v1077
        %v1163 = vunpack.c.l.b16 %v1078
        %v1164 = vunpack.c.h.b16 %v1078
        %v1165 = vunpack.c.l.b16 %v1079
        %v1166 = vunpack.c.h.b16 %v1079
        %v1167 = vunpack.c.l.b16 %v1080
        %v1168 = vunpack.c.h.b16 %v1080
        %v1169 = vunpack.c.l.b16 %v1081
        %v1170 = vunpack.c.h.b16 %v1081
        %v1171 = vunpack.c.l.b16 %v1082
        %v1172 = vunpack.c.h.b16 %v1082
        %v1173 = vunpack.c.l.b16 %v1083
        %v1174 = vunpack.c.h.b16 %v1083
        %v1175 = vunpack.c.l.b16 %v1084
        %v1176 = vunpack.c.h.b16 %v1084
        %v1177 = vunpack.c.l.b16 %v1085
        %v1178 = vunpack.c.h.b16 %v1085
        %v1179 = vunpack.c.l.b16 %v1086
        %v1180 = vunpack.c.h.b16 %v1086
        %v1181 = vunpack.c.l.b16 %v1087
        %v1182 = vunpack.c.h.b16 %v1087
        %v1183 = vunpack.c.l.b16 %v1088
        %v1184 = vunpack.c.h.b16 %v1088
        %v1185 = vpack.c.b16 %v1123, %v1121
        %v1186 = vpack.c.b16 %v1124, %v1122
        %v1187 = vpack.c.b16 %v1127, %v1125
        %v1188 = vpack.c.b16 %v1128, %v1126
        %v1189 = vpack.c.b16 %v1131, %v1129
        %v1190 = vpack.c.b16 %v1132, %v1130
        %v1191 = vpack.c.b16 %v1135, %v1133
        %v1192 = vpack.c.b16 %v1136, %v1134
        %v1193 = vpack.c.b16 %v1139, %v1137
        %v1194 = vpack.c.b16 %v1140, %v1138
        %v1195 = vpack.c.b16 %v1143, %v1141
        %v1196 = vpack.c.b16 %v1144, %v1142
        %v1197 = vpack.c.b16 %v1147, %v1145
        %v1198 = vpack.c.b16 %v1148, %v1146
        %v1199 = vpack.c.b16 %v1151, %v1149
        %v1200 = vpack.c.b16 %v1152, %v1150
        %v1201 = vpack.c.b16 %v1155, %v1153
        %v1202 = vpack.c.b16 %v1156, %v1154
        %v1203 = vpack.c.b16 %v1159, %v1157
        %v1204 = vpack.c.b16 %v1160, %v1158
        %v1205 = vpack.c.b16 %v1163, %v1161
        %v1206 = vpack.c.b16 %v1164, %v1162
        %v1207 = vpack.c.b16 %v1167, %v1165
        %v1208 = vpack.c.b16 %v1168, %v1166
        %v1209 = vpack.c.b16 %v1171, %v1169
        %v1210 = vpack.c.b16 %v1172, %v1170
        %v1211 = vpack.c.b16 %v1175, %v1173
        %v1212 = vpack.c.b16 %v1176, %v1174
        %v1213 = vpack.c.b16 %v1179, %v1177
        %v1214 = vpack.c.b16 %v1180, %v1178
        %v1215 = vpack.c.b16 %v1183, %v1181
        %v1216 = vpack.c.b16 %v1184, %v1182
        %1249 = vmatprep.subr.bf16.mxu0 %v1200
        %1250 = vmatpush1.bf16.msra.mxu0 %v1199
        %1251 = vmatprep.subr.bf16.mxu0 %v1198
        %1252 = vmatpush1.bf16.msra.mxu0 %v1197
        %1253 = vmatprep.subr.bf16.mxu0 %v1196
        %1254 = vmatpush1.bf16.msra.mxu0 %v1195
        %1255 = vmatprep.subr.bf16.mxu0 %v1194
        %1256 = vmatpush1.bf16.msra.mxu0 %v1193
        %1257 = vmatprep.subr.bf16.mxu0 %v1192
        %1258 = vmatpush1.bf16.msra.mxu0 %v1191
        %1259 = vmatprep.subr.bf16.mxu0 %v1190
        %1260 = vmatpush1.bf16.msra.mxu0 %v1189
        %1261 = vmatprep.subr.bf16.mxu0 %v1188
        %1262 = vmatpush1.bf16.msra.mxu0 %v1187
        %1263 = vmatprep.subr.bf16.mxu0 %v1186
        %1264 = vmatpush1.bf16.msra.mxu0 %v1185
        %1265 = vmatprep.subr.bf16.mxu0 %v1216
        %1266 = vmatpush2.bf16.msra.mxu0 %v1215
        %1267 = vmatprep.subr.bf16.mxu0 %v1214
        %1268 = vmatpush2.bf16.msra.mxu0 %v1213
        %1269 = vmatprep.subr.bf16.mxu0 %v1212
        %1270 = vmatpush2.bf16.msra.mxu0 %v1211
        %1271 = vmatprep.subr.bf16.mxu0 %v1210
        %1272 = vmatpush2.bf16.msra.mxu0 %v1209
        %1273 = vmatprep.subr.bf16.mxu0 %v1208
        %1274 = vmatpush2.bf16.msra.mxu0 %v1207
        %1275 = vmatprep.subr.bf16.mxu0 %v1206
        %1276 = vmatpush2.bf16.msra.mxu0 %v1205
        %1277 = vmatprep.subr.bf16.mxu0 %v1204
        %1278 = vmatpush2.bf16.msra.mxu0 %v1203
        %1279 = vmatprep.subr.bf16.mxu0 %v1202
        %1280 = vmatpush2.bf16.msra.mxu0 %v1201
        %1281 = vmatprep.mubr.bf16.mxu0 %v721
        %1282 = vmatmul.mubr.bf16.gmra.mxu0 %v720
        %v1283 = vpop.f32.mrf.mxu0
        %v1284 = vadd.f32 0.0, %v1283
        %v1285 = vpop.f32.mrf.mxu0
        %v1286 = vadd.f32 0.0, %v1285
        %v1287 = vpop.f32.mrf.mxu0
        %v1288 = vadd.f32 0.0, %v1287
        %v1289 = vpop.f32.mrf.mxu0
        %v1290 = vadd.f32 0.0, %v1289
        %1291 = vmatprep.mubr.bf16.mxu0 %v723
        %1292 = vmatmul.mubr.bf16.gmra.mxu0 %v722
        %v1293 = vpop.f32.mrf.mxu0
        %v1294 = vadd.f32 0.0, %v1293
        %v1295 = vpop.f32.mrf.mxu0
        %v1296 = vadd.f32 0.0, %v1295
        %v1297 = vpop.f32.mrf.mxu0
        %v1298 = vadd.f32 0.0, %v1297
        %v1299 = vpop.f32.mrf.mxu0
        %v1300 = vadd.f32 0.0, %v1299
        %1301 = vmatprep.mubr.bf16.mxu0 %v725
        %1302 = vmatmul.mubr.bf16.gmra.mxu0 %v724
        %v1303 = vpop.f32.mrf.mxu0
        %v1304 = vadd.f32 0.0, %v1303
        %v1305 = vpop.f32.mrf.mxu0
        %v1306 = vadd.f32 0.0, %v1305
        %v1307 = vpop.f32.mrf.mxu0
        %v1308 = vadd.f32 0.0, %v1307
        %v1309 = vpop.f32.mrf.mxu0
        %v1310 = vadd.f32 0.0, %v1309
        %1311 = vmatprep.mubr.bf16.mxu0 %v727
        %1312 = vmatmul.mubr.bf16.gmra.mxu0 %v726
        %v1313 = vpop.f32.mrf.mxu0
        %v1314 = vadd.f32 0.0, %v1313
        %v1315 = vpop.f32.mrf.mxu0
        %v1316 = vadd.f32 0.0, %v1315
        %v1317 = vpop.f32.mrf.mxu0
        %v1318 = vadd.f32 0.0, %v1317
        %v1319 = vpop.f32.mrf.mxu0
        %v1320 = vadd.f32 0.0, %v1319
        %1321 = vmatprep.mubr.bf16.mxu0 %v729
        %1322 = vmatmul.mubr.bf16.gmra.mxu0 %v728
        %v1323 = vpop.f32.mrf.mxu0
        %v1324 = vadd.f32 0.0, %v1323
        %v1325 = vpop.f32.mrf.mxu0
        %v1326 = vadd.f32 0.0, %v1325
        %v1327 = vpop.f32.mrf.mxu0
        %v1328 = vadd.f32 0.0, %v1327
        %v1329 = vpop.f32.mrf.mxu0
        %v1330 = vadd.f32 0.0, %v1329
        %1331 = vmatprep.mubr.bf16.mxu0 %v731
        %1332 = vmatmul.mubr.bf16.gmra.mxu0 %v730
        %v1333 = vpop.f32.mrf.mxu0
        %v1334 = vadd.f32 0.0, %v1333
        %v1335 = vpop.f32.mrf.mxu0
        %v1336 = vadd.f32 0.0, %v1335
        %v1337 = vpop.f32.mrf.mxu0
        %v1338 = vadd.f32 0.0, %v1337
        %v1339 = vpop.f32.mrf.mxu0
        %v1340 = vadd.f32 0.0, %v1339
        %1341 = vmatprep.mubr.bf16.mxu0 %v733
        %1342 = vmatmul.mubr.bf16.gmra.mxu0 %v732
        %v1343 = vpop.f32.mrf.mxu0
        %v1344 = vadd.f32 0.0, %v1343
        %v1345 = vpop.f32.mrf.mxu0
        %v1346 = vadd.f32 0.0, %v1345
        %v1347 = vpop.f32.mrf.mxu0
        %v1348 = vadd.f32 0.0, %v1347
        %v1349 = vpop.f32.mrf.mxu0
        %v1350 = vadd.f32 0.0, %v1349
        %1351 = vmatprep.mubr.bf16.mxu0 %v735
        %1352 = vmatmul.mubr.bf16.gmra.mxu0 %v734
        %v1353 = vpop.f32.mrf.mxu0
        %v1354 = vadd.f32 0.0, %v1353
        %v1355 = vpop.f32.mrf.mxu0
        %v1356 = vadd.f32 0.0, %v1355
        %v1357 = vpop.f32.mrf.mxu0
        %v1358 = vadd.f32 0.0, %v1357
        %v1359 = vpop.f32.mrf.mxu0
        %v1360 = vadd.f32 0.0, %v1359
        %1361 = vmatprep.mubr.bf16.mxu0 %v737
        %1362 = vmatmul.mubr.bf16.gmra.mxu0 %v736
        %v1363 = vpop.f32.mrf.mxu0
        %v1364 = vadd.f32 0.0, %v1363
        %v1365 = vpop.f32.mrf.mxu0
        %v1366 = vadd.f32 0.0, %v1365
        %v1367 = vpop.f32.mrf.mxu0
        %v1368 = vadd.f32 0.0, %v1367
        %v1369 = vpop.f32.mrf.mxu0
        %v1370 = vadd.f32 0.0, %v1369
        %1371 = vmatprep.mubr.bf16.mxu0 %v739
        %1372 = vmatmul.mubr.bf16.gmra.mxu0 %v738
        %v1373 = vpop.f32.mrf.mxu0
        %v1374 = vadd.f32 0.0, %v1373
        %v1375 = vpop.f32.mrf.mxu0
        %v1376 = vadd.f32 0.0, %v1375
        %v1377 = vpop.f32.mrf.mxu0
        %v1378 = vadd.f32 0.0, %v1377
        %v1379 = vpop.f32.mrf.mxu0
        %v1380 = vadd.f32 0.0, %v1379
        %1381 = vmatprep.mubr.bf16.mxu0 %v741
        %1382 = vmatmul.mubr.bf16.gmra.mxu0 %v740
        %v1383 = vpop.f32.mrf.mxu0
        %v1384 = vadd.f32 0.0, %v1383
        %v1385 = vpop.f32.mrf.mxu0
        %v1386 = vadd.f32 0.0, %v1385
        %v1387 = vpop.f32.mrf.mxu0
        %v1388 = vadd.f32 0.0, %v1387
        %v1389 = vpop.f32.mrf.mxu0
        %v1390 = vadd.f32 0.0, %v1389
        %1391 = vmatprep.mubr.bf16.mxu0 %v743
        %1392 = vmatmul.mubr.bf16.gmra.mxu0 %v742
        %v1393 = vpop.f32.mrf.mxu0
        %v1394 = vadd.f32 0.0, %v1393
        %v1395 = vpop.f32.mrf.mxu0
        %v1396 = vadd.f32 0.0, %v1395
        %v1397 = vpop.f32.mrf.mxu0
        %v1398 = vadd.f32 0.0, %v1397
        %v1399 = vpop.f32.mrf.mxu0
        %v1400 = vadd.f32 0.0, %v1399
        %1401 = vmatprep.mubr.bf16.mxu0 %v745
        %1402 = vmatmul.mubr.bf16.gmra.mxu0 %v744
        %v1403 = vpop.f32.mrf.mxu0
        %v1404 = vadd.f32 0.0, %v1403
        %v1405 = vpop.f32.mrf.mxu0
        %v1406 = vadd.f32 0.0, %v1405
        %v1407 = vpop.f32.mrf.mxu0
        %v1408 = vadd.f32 0.0, %v1407
        %v1409 = vpop.f32.mrf.mxu0
        %v1410 = vadd.f32 0.0, %v1409
        %1411 = vmatprep.mubr.bf16.mxu0 %v747
        %1412 = vmatmul.mubr.bf16.gmra.mxu0 %v746
        %v1413 = vpop.f32.mrf.mxu0
        %v1414 = vadd.f32 0.0, %v1413
        %v1415 = vpop.f32.mrf.mxu0
        %v1416 = vadd.f32 0.0, %v1415
        %v1417 = vpop.f32.mrf.mxu0
        %v1418 = vadd.f32 0.0, %v1417
        %v1419 = vpop.f32.mrf.mxu0
        %v1420 = vadd.f32 0.0, %v1419
        %1421 = vmatprep.mubr.bf16.mxu0 %v749
        %1422 = vmatmul.mubr.bf16.gmra.mxu0 %v748
        %v1423 = vpop.f32.mrf.mxu0
        %v1424 = vadd.f32 0.0, %v1423
        %v1425 = vpop.f32.mrf.mxu0
        %v1426 = vadd.f32 0.0, %v1425
        %v1427 = vpop.f32.mrf.mxu0
        %v1428 = vadd.f32 0.0, %v1427
        %v1429 = vpop.f32.mrf.mxu0
        %v1430 = vadd.f32 0.0, %v1429
        %1431 = vmatprep.mubr.bf16.mxu0 %v751
        %1432 = vmatmul.mubr.bf16.gmra.mxu0 %v750
        %v1433 = vpop.f32.mrf.mxu0
        %v1434 = vadd.f32 0.0, %v1433
        %v1435 = vpop.f32.mrf.mxu0
        %v1436 = vadd.f32 0.0, %v1435
        %v1437 = vpop.f32.mrf.mxu0
        %v1438 = vadd.f32 0.0, %v1437
        %v1439 = vpop.f32.mrf.mxu0
        %v1440 = vadd.f32 0.0, %v1439
        %1441 = vdwg.mxu0
        %v1442 = vld [vmem:[#allocation14] sm:$0xff]
        %v1443 = vld [vmem:[#allocation14 + $0x8] sm:$0xff]
        %v1444 = vld [vmem:[#allocation14 + $0x10] sm:$0xff]
        %v1445 = vld [vmem:[#allocation14 + $0x18] sm:$0xff]
        %v1446 = vld [vmem:[#allocation14 + $0x20] sm:$0xff]
        %v1447 = vld [vmem:[#allocation14 + $0x28] sm:$0xff]
        %v1448 = vld [vmem:[#allocation14 + $0x30] sm:$0xff]
        %v1449 = vld [vmem:[#allocation14 + $0x38] sm:$0xff]
        %v1450 = vld [vmem:[#allocation14 + $0x40] sm:$0xff]
        %v1451 = vld [vmem:[#allocation14 + $0x48] sm:$0xff]
        %v1452 = vld [vmem:[#allocation14 + $0x50] sm:$0xff]
        %v1453 = vld [vmem:[#allocation14 + $0x58] sm:$0xff]
        %v1454 = vld [vmem:[#allocation14 + $0x60] sm:$0xff]
        %v1455 = vld [vmem:[#allocation14 + $0x68] sm:$0xff]
        %v1456 = vld [vmem:[#allocation14 + $0x70] sm:$0xff]
        %v1457 = vld [vmem:[#allocation14 + $0x78] sm:$0xff]
        %v1458 = vld [vmem:[#allocation14 + $0x80] sm:$0xff]
        %v1459 = vld [vmem:[#allocation14 + $0x88] sm:$0xff]
        %v1460 = vld [vmem:[#allocation14 + $0x90] sm:$0xff]
        %v1461 = vld [vmem:[#allocation14 + $0x98] sm:$0xff]
        %v1462 = vld [vmem:[#allocation14 + $0xa0] sm:$0xff]
        %v1463 = vld [vmem:[#allocation14 + $0xa8] sm:$0xff]
        %v1464 = vld [vmem:[#allocation14 + $0xb0] sm:$0xff]
        %v1465 = vld [vmem:[#allocation14 + $0xb8] sm:$0xff]
        %v1466 = vld [vmem:[#allocation14 + $0xc0] sm:$0xff]
        %v1467 = vld [vmem:[#allocation14 + $0xc8] sm:$0xff]
        %v1468 = vld [vmem:[#allocation14 + $0xd0] sm:$0xff]
        %v1469 = vld [vmem:[#allocation14 + $0xd8] sm:$0xff]
        %v1470 = vld [vmem:[#allocation14 + $0xe0] sm:$0xff]
        %v1471 = vld [vmem:[#allocation14 + $0xe8] sm:$0xff]
        %v1472 = vld [vmem:[#allocation14 + $0xf0] sm:$0xff]
        %v1473 = vld [vmem:[#allocation14 + $0xf8] sm:$0xff]
        %v1506 = vunpack.c.l.b16 %v1442
        %v1507 = vunpack.c.h.b16 %v1442
        %v1508 = vunpack.c.l.b16 %v1443
        %v1509 = vunpack.c.h.b16 %v1443
        %v1510 = vunpack.c.l.b16 %v1444
        %v1511 = vunpack.c.h.b16 %v1444
        %v1512 = vunpack.c.l.b16 %v1445
        %v1513 = vunpack.c.h.b16 %v1445
        %v1514 = vunpack.c.l.b16 %v1446
        %v1515 = vunpack.c.h.b16 %v1446
        %v1516 = vunpack.c.l.b16 %v1447
        %v1517 = vunpack.c.h.b16 %v1447
        %v1518 = vunpack.c.l.b16 %v1448
        %v1519 = vunpack.c.h.b16 %v1448
        %v1520 = vunpack.c.l.b16 %v1449
        %v1521 = vunpack.c.h.b16 %v1449
        %v1522 = vunpack.c.l.b16 %v1450
        %v1523 = vunpack.c.h.b16 %v1450
        %v1524 = vunpack.c.l.b16 %v1451
        %v1525 = vunpack.c.h.b16 %v1451
        %v1526 = vunpack.c.l.b16 %v1452
        %v1527 = vunpack.c.h.b16 %v1452
        %v1528 = vunpack.c.l.b16 %v1453
        %v1529 = vunpack.c.h.b16 %v1453
        %v1530 = vunpack.c.l.b16 %v1454
        %v1531 = vunpack.c.h.b16 %v1454
        %v1532 = vunpack.c.l.b16 %v1455
        %v1533 = vunpack.c.h.b16 %v1455
        %v1534 = vunpack.c.l.b16 %v1456
        %v1535 = vunpack.c.h.b16 %v1456
        %v1536 = vunpack.c.l.b16 %v1457
        %v1537 = vunpack.c.h.b16 %v1457
        %v1538 = vunpack.c.l.b16 %v1458
        %v1539 = vunpack.c.h.b16 %v1458
        %v1540 = vunpack.c.l.b16 %v1459
        %v1541 = vunpack.c.h.b16 %v1459
        %v1542 = vunpack.c.l.b16 %v1460
        %v1543 = vunpack.c.h.b16 %v1460
        %v1544 = vunpack.c.l.b16 %v1461
        %v1545 = vunpack.c.h.b16 %v1461
        %v1546 = vunpack.c.l.b16 %v1462
        %v1547 = vunpack.c.h.b16 %v1462
        %v1548 = vunpack.c.l.b16 %v1463
        %v1549 = vunpack.c.h.b16 %v1463
        %v1550 = vunpack.c.l.b16 %v1464
        %v1551 = vunpack.c.h.b16 %v1464
        %v1552 = vunpack.c.l.b16 %v1465
        %v1553 = vunpack.c.h.b16 %v1465
        %v1554 = vunpack.c.l.b16 %v1466
        %v1555 = vunpack.c.h.b16 %v1466
        %v1556 = vunpack.c.l.b16 %v1467
        %v1557 = vunpack.c.h.b16 %v1467
        %v1558 = vunpack.c.l.b16 %v1468
        %v1559 = vunpack.c.h.b16 %v1468
        %v1560 = vunpack.c.l.b16 %v1469
        %v1561 = vunpack.c.h.b16 %v1469
        %v1562 = vunpack.c.l.b16 %v1470
        %v1563 = vunpack.c.h.b16 %v1470
        %v1564 = vunpack.c.l.b16 %v1471
        %v1565 = vunpack.c.h.b16 %v1471
        %v1566 = vunpack.c.l.b16 %v1472
        %v1567 = vunpack.c.h.b16 %v1472
        %v1568 = vunpack.c.l.b16 %v1473
        %v1569 = vunpack.c.h.b16 %v1473
        %v1570 = vpack.c.b16 %v1508, %v1506
        %v1571 = vpack.c.b16 %v1509, %v1507
        %v1572 = vpack.c.b16 %v1512, %v1510
        %v1573 = vpack.c.b16 %v1513, %v1511
        %v1574 = vpack.c.b16 %v1516, %v1514
        %v1575 = vpack.c.b16 %v1517, %v1515
        %v1576 = vpack.c.b16 %v1520, %v1518
        %v1577 = vpack.c.b16 %v1521, %v1519
        %v1578 = vpack.c.b16 %v1524, %v1522
        %v1579 = vpack.c.b16 %v1525, %v1523
        %v1580 = vpack.c.b16 %v1528, %v1526
        %v1581 = vpack.c.b16 %v1529, %v1527
        %v1582 = vpack.c.b16 %v1532, %v1530
        %v1583 = vpack.c.b16 %v1533, %v1531
        %v1584 = vpack.c.b16 %v1536, %v1534
        %v1585 = vpack.c.b16 %v1537, %v1535
        %v1586 = vpack.c.b16 %v1540, %v1538
        %v1587 = vpack.c.b16 %v1541, %v1539
        %v1588 = vpack.c.b16 %v1544, %v1542
        %v1589 = vpack.c.b16 %v1545, %v1543
        %v1590 = vpack.c.b16 %v1548, %v1546
        %v1591 = vpack.c.b16 %v1549, %v1547
        %v1592 = vpack.c.b16 %v1552, %v1550
        %v1593 = vpack.c.b16 %v1553, %v1551
        %v1594 = vpack.c.b16 %v1556, %v1554
        %v1595 = vpack.c.b16 %v1557, %v1555
        %v1596 = vpack.c.b16 %v1560, %v1558
        %v1597 = vpack.c.b16 %v1561, %v1559
        %v1598 = vpack.c.b16 %v1564, %v1562
        %v1599 = vpack.c.b16 %v1565, %v1563
        %v1600 = vpack.c.b16 %v1568, %v1566
        %v1601 = vpack.c.b16 %v1569, %v1567
        %1634 = vmatprep.subr.bf16.mxu0 %v1585
        %1635 = vmatpush1.bf16.msra.mxu0 %v1584
        %1636 = vmatprep.subr.bf16.mxu0 %v1583
        %1637 = vmatpush1.bf16.msra.mxu0 %v1582
        %1638 = vmatprep.subr.bf16.mxu0 %v1581
        %1639 = vmatpush1.bf16.msra.mxu0 %v1580
        %1640 = vmatprep.subr.bf16.mxu0 %v1579
        %1641 = vmatpush1.bf16.msra.mxu0 %v1578
        %1642 = vmatprep.subr.bf16.mxu0 %v1577
        %1643 = vmatpush1.bf16.msra.mxu0 %v1576
        %1644 = vmatprep.subr.bf16.mxu0 %v1575
        %1645 = vmatpush1.bf16.msra.mxu0 %v1574
        %1646 = vmatprep.subr.bf16.mxu0 %v1573
        %1647 = vmatpush1.bf16.msra.mxu0 %v1572
        %1648 = vmatprep.subr.bf16.mxu0 %v1571
        %1649 = vmatpush1.bf16.msra.mxu0 %v1570
        %1650 = vmatprep.subr.bf16.mxu0 %v1601
        %1651 = vmatpush2.bf16.msra.mxu0 %v1600
        %1652 = vmatprep.subr.bf16.mxu0 %v1599
        %1653 = vmatpush2.bf16.msra.mxu0 %v1598
        %1654 = vmatprep.subr.bf16.mxu0 %v1597
        %1655 = vmatpush2.bf16.msra.mxu0 %v1596
        %1656 = vmatprep.subr.bf16.mxu0 %v1595
        %1657 = vmatpush2.bf16.msra.mxu0 %v1594
        %1658 = vmatprep.subr.bf16.mxu0 %v1593
        %1659 = vmatpush2.bf16.msra.mxu0 %v1592
        %1660 = vmatprep.subr.bf16.mxu0 %v1591
        %1661 = vmatpush2.bf16.msra.mxu0 %v1590
        %1662 = vmatprep.subr.bf16.mxu0 %v1589
        %1663 = vmatpush2.bf16.msra.mxu0 %v1588
        %1664 = vmatprep.subr.bf16.mxu0 %v1587
        %1665 = vmatpush2.bf16.msra.mxu0 %v1586
        %1666 = vmatprep.mubr.bf16.mxu0 %v721
        %1667 = vmatmul.mubr.bf16.gmra.mxu0 %v720
        %v1668 = vpop.f32.mrf.mxu0
        %v1669 = vadd.f32 0.0, %v1668
        %v1670 = vpop.f32.mrf.mxu0
        %v1671 = vadd.f32 0.0, %v1670
        %v1672 = vpop.f32.mrf.mxu0
        %v1673 = vadd.f32 0.0, %v1672
        %v1674 = vpop.f32.mrf.mxu0
        %v1675 = vadd.f32 0.0, %v1674
        %1676 = vmatprep.mubr.bf16.mxu0 %v723
        %1677 = vmatmul.mubr.bf16.gmra.mxu0 %v722
        %v1678 = vpop.f32.mrf.mxu0
        %v1679 = vadd.f32 0.0, %v1678
        %v1680 = vpop.f32.mrf.mxu0
        %v1681 = vadd.f32 0.0, %v1680
        %v1682 = vpop.f32.mrf.mxu0
        %v1683 = vadd.f32 0.0, %v1682
        %v1684 = vpop.f32.mrf.mxu0
        %v1685 = vadd.f32 0.0, %v1684
        %1686 = vmatprep.mubr.bf16.mxu0 %v725
        %1687 = vmatmul.mubr.bf16.gmra.mxu0 %v724
        %v1688 = vpop.f32.mrf.mxu0
        %v1689 = vadd.f32 0.0, %v1688
        %v1690 = vpop.f32.mrf.mxu0
        %v1691 = vadd.f32 0.0, %v1690
        %v1692 = vpop.f32.mrf.mxu0
        %v1693 = vadd.f32 0.0, %v1692
        %v1694 = vpop.f32.mrf.mxu0
        %v1695 = vadd.f32 0.0, %v1694
        %1696 = vmatprep.mubr.bf16.mxu0 %v727
        %1697 = vmatmul.mubr.bf16.gmra.mxu0 %v726
        %v1698 = vpop.f32.mrf.mxu0
        %v1699 = vadd.f32 0.0, %v1698
        %v1700 = vpop.f32.mrf.mxu0
        %v1701 = vadd.f32 0.0, %v1700
        %v1702 = vpop.f32.mrf.mxu0
        %v1703 = vadd.f32 0.0, %v1702
        %v1704 = vpop.f32.mrf.mxu0
        %v1705 = vadd.f32 0.0, %v1704
        %1706 = vmatprep.mubr.bf16.mxu0 %v729
        %1707 = vmatmul.mubr.bf16.gmra.mxu0 %v728
        %v1708 = vpop.f32.mrf.mxu0
        %v1709 = vadd.f32 0.0, %v1708
        %v1710 = vpop.f32.mrf.mxu0
        %v1711 = vadd.f32 0.0, %v1710
        %v1712 = vpop.f32.mrf.mxu0
        %v1713 = vadd.f32 0.0, %v1712
        %v1714 = vpop.f32.mrf.mxu0
        %v1715 = vadd.f32 0.0, %v1714
        %1716 = vmatprep.mubr.bf16.mxu0 %v731
        %1717 = vmatmul.mubr.bf16.gmra.mxu0 %v730
        %v1718 = vpop.f32.mrf.mxu0
        %v1719 = vadd.f32 0.0, %v1718
        %v1720 = vpop.f32.mrf.mxu0
        %v1721 = vadd.f32 0.0, %v1720
        %v1722 = vpop.f32.mrf.mxu0
        %v1723 = vadd.f32 0.0, %v1722
        %v1724 = vpop.f32.mrf.mxu0
        %v1725 = vadd.f32 0.0, %v1724
        %1726 = vmatprep.mubr.bf16.mxu0 %v733
        %1727 = vmatmul.mubr.bf16.gmra.mxu0 %v732
        %v1728 = vpop.f32.mrf.mxu0
        %v1729 = vadd.f32 0.0, %v1728
        %v1730 = vpop.f32.mrf.mxu0
        %v1731 = vadd.f32 0.0, %v1730
        %v1732 = vpop.f32.mrf.mxu0
        %v1733 = vadd.f32 0.0, %v1732
        %v1734 = vpop.f32.mrf.mxu0
        %v1735 = vadd.f32 0.0, %v1734
        %1736 = vmatprep.mubr.bf16.mxu0 %v735
        %1737 = vmatmul.mubr.bf16.gmra.mxu0 %v734
        %v1738 = vpop.f32.mrf.mxu0
        %v1739 = vadd.f32 0.0, %v1738
        %v1740 = vpop.f32.mrf.mxu0
        %v1741 = vadd.f32 0.0, %v1740
        %v1742 = vpop.f32.mrf.mxu0
        %v1743 = vadd.f32 0.0, %v1742
        %v1744 = vpop.f32.mrf.mxu0
        %v1745 = vadd.f32 0.0, %v1744
        %1746 = vmatprep.mubr.bf16.mxu0 %v737
        %1747 = vmatmul.mubr.bf16.gmra.mxu0 %v736
        %v1748 = vpop.f32.mrf.mxu0
        %v1749 = vadd.f32 0.0, %v1748
        %v1750 = vpop.f32.mrf.mxu0
        %v1751 = vadd.f32 0.0, %v1750
        %v1752 = vpop.f32.mrf.mxu0
        %v1753 = vadd.f32 0.0, %v1752
        %v1754 = vpop.f32.mrf.mxu0
        %v1755 = vadd.f32 0.0, %v1754
        %1756 = vmatprep.mubr.bf16.mxu0 %v739
        %1757 = vmatmul.mubr.bf16.gmra.mxu0 %v738
        %v1758 = vpop.f32.mrf.mxu0
        %v1759 = vadd.f32 0.0, %v1758
        %v1760 = vpop.f32.mrf.mxu0
        %v1761 = vadd.f32 0.0, %v1760
        %v1762 = vpop.f32.mrf.mxu0
        %v1763 = vadd.f32 0.0, %v1762
        %v1764 = vpop.f32.mrf.mxu0
        %v1765 = vadd.f32 0.0, %v1764
        %1766 = vmatprep.mubr.bf16.mxu0 %v741
        %1767 = vmatmul.mubr.bf16.gmra.mxu0 %v740
        %v1768 = vpop.f32.mrf.mxu0
        %v1769 = vadd.f32 0.0, %v1768
        %v1770 = vpop.f32.mrf.mxu0
        %v1771 = vadd.f32 0.0, %v1770
        %v1772 = vpop.f32.mrf.mxu0
        %v1773 = vadd.f32 0.0, %v1772
        %v1774 = vpop.f32.mrf.mxu0
        %v1775 = vadd.f32 0.0, %v1774
        %1776 = vmatprep.mubr.bf16.mxu0 %v743
        %1777 = vmatmul.mubr.bf16.gmra.mxu0 %v742
        %v1778 = vpop.f32.mrf.mxu0
        %v1779 = vadd.f32 0.0, %v1778
        %v1780 = vpop.f32.mrf.mxu0
        %v1781 = vadd.f32 0.0, %v1780
        %v1782 = vpop.f32.mrf.mxu0
        %v1783 = vadd.f32 0.0, %v1782
        %v1784 = vpop.f32.mrf.mxu0
        %v1785 = vadd.f32 0.0, %v1784
        %1786 = vmatprep.mubr.bf16.mxu0 %v745
        %1787 = vmatmul.mubr.bf16.gmra.mxu0 %v744
        %v1788 = vpop.f32.mrf.mxu0
        %v1789 = vadd.f32 0.0, %v1788
        %v1790 = vpop.f32.mrf.mxu0
        %v1791 = vadd.f32 0.0, %v1790
        %v1792 = vpop.f32.mrf.mxu0
        %v1793 = vadd.f32 0.0, %v1792
        %v1794 = vpop.f32.mrf.mxu0
        %v1795 = vadd.f32 0.0, %v1794
        %1796 = vmatprep.mubr.bf16.mxu0 %v747
        %1797 = vmatmul.mubr.bf16.gmra.mxu0 %v746
        %v1798 = vpop.f32.mrf.mxu0
        %v1799 = vadd.f32 0.0, %v1798
        %v1800 = vpop.f32.mrf.mxu0
        %v1801 = vadd.f32 0.0, %v1800
        %v1802 = vpop.f32.mrf.mxu0
        %v1803 = vadd.f32 0.0, %v1802
        %v1804 = vpop.f32.mrf.mxu0
        %v1805 = vadd.f32 0.0, %v1804
        %1806 = vmatprep.mubr.bf16.mxu0 %v749
        %1807 = vmatmul.mubr.bf16.gmra.mxu0 %v748
        %v1808 = vpop.f32.mrf.mxu0
        %v1809 = vadd.f32 0.0, %v1808
        %v1810 = vpop.f32.mrf.mxu0
        %v1811 = vadd.f32 0.0, %v1810
        %v1812 = vpop.f32.mrf.mxu0
        %v1813 = vadd.f32 0.0, %v1812
        %v1814 = vpop.f32.mrf.mxu0
        %v1815 = vadd.f32 0.0, %v1814
        %1816 = vmatprep.mubr.bf16.mxu0 %v751
        %1817 = vmatmul.mubr.bf16.gmra.mxu0 %v750
        %v1818 = vpop.f32.mrf.mxu0
        %v1819 = vadd.f32 0.0, %v1818
        %v1820 = vpop.f32.mrf.mxu0
        %v1821 = vadd.f32 0.0, %v1820
        %v1822 = vpop.f32.mrf.mxu0
        %v1823 = vadd.f32 0.0, %v1822
        %v1824 = vpop.f32.mrf.mxu0
        %v1825 = vadd.f32 0.0, %v1824
        %1826 = vdwg.mxu0
        %v1827 = vpack.c.bf16 %v983, %v979
        %v1828 = vpack.c.bf16 %v993, %v989
        %v1829 = vpack.c.bf16 %v1003, %v999
        %v1830 = vpack.c.bf16 %v1013, %v1009
        %v1831 = vpack.c.bf16 %v1023, %v1019
        %v1832 = vpack.c.bf16 %v1033, %v1029
        %v1833 = vpack.c.bf16 %v1043, %v1039
        %v1834 = vpack.c.bf16 %v1053, %v1049
        %v1843 = vunpack.c.l.b16 %v1827
        %v1844 = vunpack.c.h.b16 %v1827
        %v1845 = vunpack.c.l.b16 %v1828
        %v1846 = vunpack.c.h.b16 %v1828
        %v1847 = vunpack.c.l.b16 %v1829
        %v1848 = vunpack.c.h.b16 %v1829
        %v1849 = vunpack.c.l.b16 %v1830
        %v1850 = vunpack.c.h.b16 %v1830
        %v1851 = vunpack.c.l.b16 %v1831
        %v1852 = vunpack.c.h.b16 %v1831
        %v1853 = vunpack.c.l.b16 %v1832
        %v1854 = vunpack.c.h.b16 %v1832
        %v1855 = vunpack.c.l.b16 %v1833
        %v1856 = vunpack.c.h.b16 %v1833
        %v1857 = vunpack.c.l.b16 %v1834
        %v1858 = vunpack.c.h.b16 %v1834
        %v1859 = vpack.c.b16 %v1843, %v1843
        %v1860 = vpack.c.b16 %v1844, %v1844
        %v1861 = vpack.c.b16 %v1845, %v1845
        %v1862 = vpack.c.b16 %v1846, %v1846
        %v1863 = vpack.c.b16 %v1847, %v1847
        %v1864 = vpack.c.b16 %v1848, %v1848
        %v1865 = vpack.c.b16 %v1849, %v1849
        %v1866 = vpack.c.b16 %v1850, %v1850
        %v1867 = vpack.c.b16 %v1851, %v1851
        %v1868 = vpack.c.b16 %v1852, %v1852
        %v1869 = vpack.c.b16 %v1853, %v1853
        %v1870 = vpack.c.b16 %v1854, %v1854
        %v1871 = vpack.c.b16 %v1855, %v1855
        %v1872 = vpack.c.b16 %v1856, %v1856
        %v1873 = vpack.c.b16 %v1857, %v1857
        %v1874 = vpack.c.b16 %v1858, %v1858
        %1891 = vst [vmem:[#allocation2] sm:$0xf] %v1859
        %1892 = vst [vmem:[#allocation2 + $0x4] sm:$0xf] %v1860
        %1893 = vst [vmem:[#allocation2 + $0x8] sm:$0xf] %v1861
        %1894 = vst [vmem:[#allocation2 + $0xc] sm:$0xf] %v1862
        %1895 = vst [vmem:[#allocation2 + $0x10] sm:$0xf] %v1863
        %1896 = vst [vmem:[#allocation2 + $0x14] sm:$0xf] %v1864
        %1897 = vst [vmem:[#allocation2 + $0x18] sm:$0xf] %v1865
        %1898 = vst [vmem:[#allocation2 + $0x1c] sm:$0xf] %v1866
        %1899 = vst [vmem:[#allocation2 + $0x20] sm:$0xf] %v1867
        %1900 = vst [vmem:[#allocation2 + $0x24] sm:$0xf] %v1868
        %1901 = vst [vmem:[#allocation2 + $0x28] sm:$0xf] %v1869
        %1902 = vst [vmem:[#allocation2 + $0x2c] sm:$0xf] %v1870
        %1903 = vst [vmem:[#allocation2 + $0x30] sm:$0xf] %v1871
        %1904 = vst [vmem:[#allocation2 + $0x34] sm:$0xf] %v1872
        %1905 = vst [vmem:[#allocation2 + $0x38] sm:$0xf] %v1873
        %1906 = vst [vmem:[#allocation2 + $0x3c] sm:$0xf] %v1874
        %v1907 = vpack.c.bf16 %v1288, %v1284
        %v1908 = vpack.c.bf16 %v1298, %v1294
        %v1909 = vpack.c.bf16 %v1308, %v1304
        %v1910 = vpack.c.bf16 %v1318, %v1314
        %v1911 = vpack.c.bf16 %v1328, %v1324
        %v1912 = vpack.c.bf16 %v1338, %v1334
        %v1913 = vpack.c.bf16 %v1348, %v1344
        %v1914 = vpack.c.bf16 %v1358, %v1354
        %v1915 = vpack.c.bf16 %v1368, %v1364
        %v1916 = vpack.c.bf16 %v1378, %v1374
        %v1917 = vpack.c.bf16 %v1388, %v1384
        %v1918 = vpack.c.bf16 %v1398, %v1394
        %v1919 = vpack.c.bf16 %v1408, %v1404
        %v1920 = vpack.c.bf16 %v1418, %v1414
        %v1921 = vpack.c.bf16 %v1428, %v1424
        %v1922 = vpack.c.bf16 %v1438, %v1434
        %v1939 = vunpack.c.l.b16 %v1907
        %v1940 = vunpack.c.h.b16 %v1907
        %v1941 = vunpack.c.l.b16 %v1908
        %v1942 = vunpack.c.h.b16 %v1908
        %v1943 = vunpack.c.l.b16 %v1909
        %v1944 = vunpack.c.h.b16 %v1909
        %v1945 = vunpack.c.l.b16 %v1910
        %v1946 = vunpack.c.h.b16 %v1910
        %v1947 = vunpack.c.l.b16 %v1911
        %v1948 = vunpack.c.h.b16 %v1911
        %v1949 = vunpack.c.l.b16 %v1912
        %v1950 = vunpack.c.h.b16 %v1912
        %v1951 = vunpack.c.l.b16 %v1913
        %v1952 = vunpack.c.h.b16 %v1913
        %v1953 = vunpack.c.l.b16 %v1914
        %v1954 = vunpack.c.h.b16 %v1914
        %v1955 = vunpack.c.l.b16 %v1915
        %v1956 = vunpack.c.h.b16 %v1915
        %v1957 = vunpack.c.l.b16 %v1916
        %v1958 = vunpack.c.h.b16 %v1916
        %v1959 = vunpack.c.l.b16 %v1917
        %v1960 = vunpack.c.h.b16 %v1917
        %v1961 = vunpack.c.l.b16 %v1918
        %v1962 = vunpack.c.h.b16 %v1918
        %v1963 = vunpack.c.l.b16 %v1919
        %v1964 = vunpack.c.h.b16 %v1919
        %v1965 = vunpack.c.l.b16 %v1920
        %v1966 = vunpack.c.h.b16 %v1920
        %v1967 = vunpack.c.l.b16 %v1921
        %v1968 = vunpack.c.h.b16 %v1921
        %v1969 = vunpack.c.l.b16 %v1922
        %v1970 = vunpack.c.h.b16 %v1922
        %v1971 = vpack.c.b16 %v1939, %v1939
        %v1972 = vpack.c.b16 %v1940, %v1940
        %v1973 = vpack.c.b16 %v1941, %v1941
        %v1974 = vpack.c.b16 %v1942, %v1942
        %v1975 = vpack.c.b16 %v1943, %v1943
        %v1976 = vpack.c.b16 %v1944, %v1944
        %v1977 = vpack.c.b16 %v1945, %v1945
        %v1978 = vpack.c.b16 %v1946, %v1946
        %v1979 = vpack.c.b16 %v1947, %v1947
        %v1980 = vpack.c.b16 %v1948, %v1948
        %v1981 = vpack.c.b16 %v1949, %v1949
        %v1982 = vpack.c.b16 %v1950, %v1950
        %v1983 = vpack.c.b16 %v1951, %v1951
        %v1984 = vpack.c.b16 %v1952, %v1952
        %v1985 = vpack.c.b16 %v1953, %v1953
        %v1986 = vpack.c.b16 %v1954, %v1954
        %v1987 = vpack.c.b16 %v1955, %v1955
        %v1988 = vpack.c.b16 %v1956, %v1956
        %v1989 = vpack.c.b16 %v1957, %v1957
        %v1990 = vpack.c.b16 %v1958, %v1958
        %v1991 = vpack.c.b16 %v1959, %v1959
        %v1992 = vpack.c.b16 %v1960, %v1960
        %v1993 = vpack.c.b16 %v1961, %v1961
        %v1994 = vpack.c.b16 %v1962, %v1962
        %v1995 = vpack.c.b16 %v1963, %v1963
        %v1996 = vpack.c.b16 %v1964, %v1964
        %v1997 = vpack.c.b16 %v1965, %v1965
        %v1998 = vpack.c.b16 %v1966, %v1966
        %v1999 = vpack.c.b16 %v1967, %v1967
        %v2000 = vpack.c.b16 %v1968, %v1968
        %v2001 = vpack.c.b16 %v1969, %v1969
        %v2002 = vpack.c.b16 %v1970, %v1970
        %2035 = vst [vmem:[#allocation3] sm:$0xf] %v1971
        %2036 = vst [vmem:[#allocation3 + $0x4] sm:$0xf] %v1972
        %2037 = vst [vmem:[#allocation3 + $0x8] sm:$0xf] %v1973
        %2038 = vst [vmem:[#allocation3 + $0xc] sm:$0xf] %v1974
        %2039 = vst [vmem:[#allocation3 + $0x10] sm:$0xf] %v1975
        %2040 = vst [vmem:[#allocation3 + $0x14] sm:$0xf] %v1976
        %2041 = vst [vmem:[#allocation3 + $0x18] sm:$0xf] %v1977
        %2042 = vst [vmem:[#allocation3 + $0x1c] sm:$0xf] %v1978
        %2043 = vst [vmem:[#allocation3 + $0x20] sm:$0xf] %v1979
        %2044 = vst [vmem:[#allocation3 + $0x24] sm:$0xf] %v1980
        %2045 = vst [vmem:[#allocation3 + $0x28] sm:$0xf] %v1981
        %2046 = vst [vmem:[#allocation3 + $0x2c] sm:$0xf] %v1982
        %2047 = vst [vmem:[#allocation3 + $0x30] sm:$0xf] %v1983
        %2048 = vst [vmem:[#allocation3 + $0x34] sm:$0xf] %v1984
        %2049 = vst [vmem:[#allocation3 + $0x38] sm:$0xf] %v1985
        %2050 = vst [vmem:[#allocation3 + $0x3c] sm:$0xf] %v1986
        %2051 = vst [vmem:[#allocation3 + $0x40] sm:$0xf] %v1987
        %2052 = vst [vmem:[#allocation3 + $0x44] sm:$0xf] %v1988
        %2053 = vst [vmem:[#allocation3 + $0x48] sm:$0xf] %v1989
        %2054 = vst [vmem:[#allocation3 + $0x4c] sm:$0xf] %v1990
        %2055 = vst [vmem:[#allocation3 + $0x50] sm:$0xf] %v1991
        %2056 = vst [vmem:[#allocation3 + $0x54] sm:$0xf] %v1992
        %2057 = vst [vmem:[#allocation3 + $0x58] sm:$0xf] %v1993
        %2058 = vst [vmem:[#allocation3 + $0x5c] sm:$0xf] %v1994
        %2059 = vst [vmem:[#allocation3 + $0x60] sm:$0xf] %v1995
        %2060 = vst [vmem:[#allocation3 + $0x64] sm:$0xf] %v1996
        %2061 = vst [vmem:[#allocation3 + $0x68] sm:$0xf] %v1997
        %2062 = vst [vmem:[#allocation3 + $0x6c] sm:$0xf] %v1998
        %2063 = vst [vmem:[#allocation3 + $0x70] sm:$0xf] %v1999
        %2064 = vst [vmem:[#allocation3 + $0x74] sm:$0xf] %v2000
        %2065 = vst [vmem:[#allocation3 + $0x78] sm:$0xf] %v2001
        %2066 = vst [vmem:[#allocation3 + $0x7c] sm:$0xf] %v2002
        %v2067 = vpack.c.bf16 %v1673, %v1669
        %v2068 = vpack.c.bf16 %v1683, %v1679
        %v2069 = vpack.c.bf16 %v1693, %v1689
        %v2070 = vpack.c.bf16 %v1703, %v1699
        %v2071 = vpack.c.bf16 %v1713, %v1709
        %v2072 = vpack.c.bf16 %v1723, %v1719
        %v2073 = vpack.c.bf16 %v1733, %v1729
        %v2074 = vpack.c.bf16 %v1743, %v1739
        %v2075 = vpack.c.bf16 %v1753, %v1749
        %v2076 = vpack.c.bf16 %v1763, %v1759
        %v2077 = vpack.c.bf16 %v1773, %v1769
        %v2078 = vpack.c.bf16 %v1783, %v1779
        %v2079 = vpack.c.bf16 %v1793, %v1789
        %v2080 = vpack.c.bf16 %v1803, %v1799
        %v2081 = vpack.c.bf16 %v1813, %v1809
        %v2082 = vpack.c.bf16 %v1823, %v1819
        %v2099 = vunpack.c.l.b16 %v2067
        %v2100 = vunpack.c.h.b16 %v2067
        %v2101 = vunpack.c.l.b16 %v2068
        %v2102 = vunpack.c.h.b16 %v2068
        %v2103 = vunpack.c.l.b16 %v2069
        %v2104 = vunpack.c.h.b16 %v2069
        %v2105 = vunpack.c.l.b16 %v2070
        %v2106 = vunpack.c.h.b16 %v2070
        %v2107 = vunpack.c.l.b16 %v2071
        %v2108 = vunpack.c.h.b16 %v2071
        %v2109 = vunpack.c.l.b16 %v2072
        %v2110 = vunpack.c.h.b16 %v2072
        %v2111 = vunpack.c.l.b16 %v2073
        %v2112 = vunpack.c.h.b16 %v2073
        %v2113 = vunpack.c.l.b16 %v2074
        %v2114 = vunpack.c.h.b16 %v2074
        %v2115 = vunpack.c.l.b16 %v2075
        %v2116 = vunpack.c.h.b16 %v2075
        %v2117 = vunpack.c.l.b16 %v2076
        %v2118 = vunpack.c.h.b16 %v2076
        %v2119 = vunpack.c.l.b16 %v2077
        %v2120 = vunpack.c.h.b16 %v2077
        %v2121 = vunpack.c.l.b16 %v2078
        %v2122 = vunpack.c.h.b16 %v2078
        %v2123 = vunpack.c.l.b16 %v2079
        %v2124 = vunpack.c.h.b16 %v2079
        %v2125 = vunpack.c.l.b16 %v2080
        %v2126 = vunpack.c.h.b16 %v2080
        %v2127 = vunpack.c.l.b16 %v2081
        %v2128 = vunpack.c.h.b16 %v2081
        %v2129 = vunpack.c.l.b16 %v2082
        %v2130 = vunpack.c.h.b16 %v2082
        %v2131 = vpack.c.b16 %v2099, %v2099
        %v2132 = vpack.c.b16 %v2100, %v2100
        %v2133 = vpack.c.b16 %v2101, %v2101
        %v2134 = vpack.c.b16 %v2102, %v2102
        %v2135 = vpack.c.b16 %v2103, %v2103
        %v2136 = vpack.c.b16 %v2104, %v2104
        %v2137 = vpack.c.b16 %v2105, %v2105
        %v2138 = vpack.c.b16 %v2106, %v2106
        %v2139 = vpack.c.b16 %v2107, %v2107
        %v2140 = vpack.c.b16 %v2108, %v2108
        %v2141 = vpack.c.b16 %v2109, %v2109
        %v2142 = vpack.c.b16 %v2110, %v2110
        %v2143 = vpack.c.b16 %v2111, %v2111
        %v2144 = vpack.c.b16 %v2112, %v2112
        %v2145 = vpack.c.b16 %v2113, %v2113
        %v2146 = vpack.c.b16 %v2114, %v2114
        %v2147 = vpack.c.b16 %v2115, %v2115
        %v2148 = vpack.c.b16 %v2116, %v2116
        %v2149 = vpack.c.b16 %v2117, %v2117
        %v2150 = vpack.c.b16 %v2118, %v2118
        %v2151 = vpack.c.b16 %v2119, %v2119
        %v2152 = vpack.c.b16 %v2120, %v2120
        %v2153 = vpack.c.b16 %v2121, %v2121
        %v2154 = vpack.c.b16 %v2122, %v2122
        %v2155 = vpack.c.b16 %v2123, %v2123
        %v2156 = vpack.c.b16 %v2124, %v2124
        %v2157 = vpack.c.b16 %v2125, %v2125
        %v2158 = vpack.c.b16 %v2126, %v2126
        %v2159 = vpack.c.b16 %v2127, %v2127
        %v2160 = vpack.c.b16 %v2128, %v2128
        %v2161 = vpack.c.b16 %v2129, %v2129
        %v2162 = vpack.c.b16 %v2130, %v2130
        %2195 = vst [vmem:[#allocation4] sm:$0xf] %v2131
        %2196 = vst [vmem:[#allocation4 + $0x4] sm:$0xf] %v2132
        %2197 = vst [vmem:[#allocation4 + $0x8] sm:$0xf] %v2133
        %2198 = vst [vmem:[#allocation4 + $0xc] sm:$0xf] %v2134
        %2199 = vst [vmem:[#allocation4 + $0x10] sm:$0xf] %v2135
        %2200 = vst [vmem:[#allocation4 + $0x14] sm:$0xf] %v2136
        %2201 = vst [vmem:[#allocation4 + $0x18] sm:$0xf] %v2137
        %2202 = vst [vmem:[#allocation4 + $0x1c] sm:$0xf] %v2138
        %2203 = vst [vmem:[#allocation4 + $0x20] sm:$0xf] %v2139
        %2204 = vst [vmem:[#allocation4 + $0x24] sm:$0xf] %v2140
        %2205 = vst [vmem:[#allocation4 + $0x28] sm:$0xf] %v2141
        %2206 = vst [vmem:[#allocation4 + $0x2c] sm:$0xf] %v2142
        %2207 = vst [vmem:[#allocation4 + $0x30] sm:$0xf] %v2143
        %2208 = vst [vmem:[#allocation4 + $0x34] sm:$0xf] %v2144
        %2209 = vst [vmem:[#allocation4 + $0x38] sm:$0xf] %v2145
        %2210 = vst [vmem:[#allocation4 + $0x3c] sm:$0xf] %v2146
        %2211 = vst [vmem:[#allocation4 + $0x40] sm:$0xf] %v2147
        %2212 = vst [vmem:[#allocation4 + $0x44] sm:$0xf] %v2148
        %2213 = vst [vmem:[#allocation4 + $0x48] sm:$0xf] %v2149
        %2214 = vst [vmem:[#allocation4 + $0x4c] sm:$0xf] %v2150
        %2215 = vst [vmem:[#allocation4 + $0x50] sm:$0xf] %v2151
        %2216 = vst [vmem:[#allocation4 + $0x54] sm:$0xf] %v2152
        %2217 = vst [vmem:[#allocation4 + $0x58] sm:$0xf] %v2153
        %2218 = vst [vmem:[#allocation4 + $0x5c] sm:$0xf] %v2154
        %2219 = vst [vmem:[#allocation4 + $0x60] sm:$0xf] %v2155
        %2220 = vst [vmem:[#allocation4 + $0x64] sm:$0xf] %v2156
        %2221 = vst [vmem:[#allocation4 + $0x68] sm:$0xf] %v2157
        %2222 = vst [vmem:[#allocation4 + $0x6c] sm:$0xf] %v2158
        %2223 = vst [vmem:[#allocation4 + $0x70] sm:$0xf] %v2159
        %2224 = vst [vmem:[#allocation4 + $0x74] sm:$0xf] %v2160
        %2225 = vst [vmem:[#allocation4 + $0x78] sm:$0xf] %v2161
        %2226 = vst [vmem:[#allocation4 + $0x7c] sm:$0xf] %v2162
        %v2227 = vpack.c.bf16 %v985, %v981
        %v2228 = vpack.c.bf16 %v995, %v991
        %v2229 = vpack.c.bf16 %v1005, %v1001
        %v2230 = vpack.c.bf16 %v1015, %v1011
        %v2231 = vpack.c.bf16 %v1025, %v1021
        %v2232 = vpack.c.bf16 %v1035, %v1031
        %v2233 = vpack.c.bf16 %v1045, %v1041
        %v2234 = vpack.c.bf16 %v1055, %v1051
        %v2243 = vunpack.c.l.b16 %v2227
        %v2244 = vunpack.c.h.b16 %v2227
        %v2245 = vunpack.c.l.b16 %v2228
        %v2246 = vunpack.c.h.b16 %v2228
        %v2247 = vunpack.c.l.b16 %v2229
        %v2248 = vunpack.c.h.b16 %v2229
        %v2249 = vunpack.c.l.b16 %v2230
        %v2250 = vunpack.c.h.b16 %v2230
        %v2251 = vunpack.c.l.b16 %v2231
        %v2252 = vunpack.c.h.b16 %v2231
        %v2253 = vunpack.c.l.b16 %v2232
        %v2254 = vunpack.c.h.b16 %v2232
        %v2255 = vunpack.c.l.b16 %v2233
        %v2256 = vunpack.c.h.b16 %v2233
        %v2257 = vunpack.c.l.b16 %v2234
        %v2258 = vunpack.c.h.b16 %v2234
        %v2259 = vpack.c.b16 %v2243, %v2243
        %v2260 = vpack.c.b16 %v2244, %v2244
        %v2261 = vpack.c.b16 %v2245, %v2245
        %v2262 = vpack.c.b16 %v2246, %v2246
        %v2263 = vpack.c.b16 %v2247, %v2247
        %v2264 = vpack.c.b16 %v2248, %v2248
        %v2265 = vpack.c.b16 %v2249, %v2249
        %v2266 = vpack.c.b16 %v2250, %v2250
        %v2267 = vpack.c.b16 %v2251, %v2251
        %v2268 = vpack.c.b16 %v2252, %v2252
        %v2269 = vpack.c.b16 %v2253, %v2253
        %v2270 = vpack.c.b16 %v2254, %v2254
        %v2271 = vpack.c.b16 %v2255, %v2255
        %v2272 = vpack.c.b16 %v2256, %v2256
        %v2273 = vpack.c.b16 %v2257, %v2257
        %v2274 = vpack.c.b16 %v2258, %v2258
        %s2291 = scalar_lea.vmem [#allocation2], 64
        %2292 = vst [vmem:[%s2291] sm:$0xf] %v2259
        %2293 = vst [vmem:[%s2291 + $0x4] sm:$0xf] %v2260
        %2294 = vst [vmem:[%s2291 + $0x8] sm:$0xf] %v2261
        %2295 = vst [vmem:[%s2291 + $0xc] sm:$0xf] %v2262
        %2296 = vst [vmem:[%s2291 + $0x10] sm:$0xf] %v2263
        %2297 = vst [vmem:[%s2291 + $0x14] sm:$0xf] %v2264
        %2298 = vst [vmem:[%s2291 + $0x18] sm:$0xf] %v2265
        %2299 = vst [vmem:[%s2291 + $0x1c] sm:$0xf] %v2266
        %2300 = vst [vmem:[%s2291 + $0x20] sm:$0xf] %v2267
        %2301 = vst [vmem:[%s2291 + $0x24] sm:$0xf] %v2268
        %2302 = vst [vmem:[%s2291 + $0x28] sm:$0xf] %v2269
        %2303 = vst [vmem:[%s2291 + $0x2c] sm:$0xf] %v2270
        %2304 = vst [vmem:[%s2291 + $0x30] sm:$0xf] %v2271
        %2305 = vst [vmem:[%s2291 + $0x34] sm:$0xf] %v2272
        %2306 = vst [vmem:[%s2291 + $0x38] sm:$0xf] %v2273
        %2307 = vst [vmem:[%s2291 + $0x3c] sm:$0xf] %v2274
        %v2308 = vpack.c.bf16 %v1290, %v1286
        %v2309 = vpack.c.bf16 %v1300, %v1296
        %v2310 = vpack.c.bf16 %v1310, %v1306
        %v2311 = vpack.c.bf16 %v1320, %v1316
        %v2312 = vpack.c.bf16 %v1330, %v1326
        %v2313 = vpack.c.bf16 %v1340, %v1336
        %v2314 = vpack.c.bf16 %v1350, %v1346
        %v2315 = vpack.c.bf16 %v1360, %v1356
        %v2316 = vpack.c.bf16 %v1370, %v1366
        %v2317 = vpack.c.bf16 %v1380, %v1376
        %v2318 = vpack.c.bf16 %v1390, %v1386
        %v2319 = vpack.c.bf16 %v1400, %v1396
        %v2320 = vpack.c.bf16 %v1410, %v1406
        %v2321 = vpack.c.bf16 %v1420, %v1416
        %v2322 = vpack.c.bf16 %v1430, %v1426
        %v2323 = vpack.c.bf16 %v1440, %v1436
        %v2340 = vunpack.c.l.b16 %v2308
        %v2341 = vunpack.c.h.b16 %v2308
        %v2342 = vunpack.c.l.b16 %v2309
        %v2343 = vunpack.c.h.b16 %v2309
        %v2344 = vunpack.c.l.b16 %v2310
        %v2345 = vunpack.c.h.b16 %v2310
        %v2346 = vunpack.c.l.b16 %v2311
        %v2347 = vunpack.c.h.b16 %v2311
        %v2348 = vunpack.c.l.b16 %v2312
        %v2349 = vunpack.c.h.b16 %v2312
        %v2350 = vunpack.c.l.b16 %v2313
        %v2351 = vunpack.c.h.b16 %v2313
        %v2352 = vunpack.c.l.b16 %v2314
        %v2353 = vunpack.c.h.b16 %v2314
        %v2354 = vunpack.c.l.b16 %v2315
        %v2355 = vunpack.c.h.b16 %v2315
        %v2356 = vunpack.c.l.b16 %v2316
        %v2357 = vunpack.c.h.b16 %v2316
        %v2358 = vunpack.c.l.b16 %v2317
        %v2359 = vunpack.c.h.b16 %v2317
        %v2360 = vunpack.c.l.b16 %v2318
        %v2361 = vunpack.c.h.b16 %v2318
        %v2362 = vunpack.c.l.b16 %v2319
        %v2363 = vunpack.c.h.b16 %v2319
        %v2364 = vunpack.c.l.b16 %v2320
        %v2365 = vunpack.c.h.b16 %v2320
        %v2366 = vunpack.c.l.b16 %v2321
        %v2367 = vunpack.c.h.b16 %v2321
        %v2368 = vunpack.c.l.b16 %v2322
        %v2369 = vunpack.c.h.b16 %v2322
        %v2370 = vunpack.c.l.b16 %v2323
        %v2371 = vunpack.c.h.b16 %v2323
        %v2372 = vpack.c.b16 %v2340, %v2340
        %v2373 = vpack.c.b16 %v2341, %v2341
        %v2374 = vpack.c.b16 %v2342, %v2342
        %v2375 = vpack.c.b16 %v2343, %v2343
        %v2376 = vpack.c.b16 %v2344, %v2344
        %v2377 = vpack.c.b16 %v2345, %v2345
        %v2378 = vpack.c.b16 %v2346, %v2346
        %v2379 = vpack.c.b16 %v2347, %v2347
        %v2380 = vpack.c.b16 %v2348, %v2348
        %v2381 = vpack.c.b16 %v2349, %v2349
        %v2382 = vpack.c.b16 %v2350, %v2350
        %v2383 = vpack.c.b16 %v2351, %v2351
        %v2384 = vpack.c.b16 %v2352, %v2352
        %v2385 = vpack.c.b16 %v2353, %v2353
        %v2386 = vpack.c.b16 %v2354, %v2354
        %v2387 = vpack.c.b16 %v2355, %v2355
        %v2388 = vpack.c.b16 %v2356, %v2356
        %v2389 = vpack.c.b16 %v2357, %v2357
        %v2390 = vpack.c.b16 %v2358, %v2358
        %v2391 = vpack.c.b16 %v2359, %v2359
        %v2392 = vpack.c.b16 %v2360, %v2360
        %v2393 = vpack.c.b16 %v2361, %v2361
        %v2394 = vpack.c.b16 %v2362, %v2362
        %v2395 = vpack.c.b16 %v2363, %v2363
        %v2396 = vpack.c.b16 %v2364, %v2364
        %v2397 = vpack.c.b16 %v2365, %v2365
        %v2398 = vpack.c.b16 %v2366, %v2366
        %v2399 = vpack.c.b16 %v2367, %v2367
        %v2400 = vpack.c.b16 %v2368, %v2368
        %v2401 = vpack.c.b16 %v2369, %v2369
        %v2402 = vpack.c.b16 %v2370, %v2370
        %v2403 = vpack.c.b16 %v2371, %v2371
        %s2436 = scalar_lea.vmem [#allocation3], 128
        %2437 = vst [vmem:[%s2436] sm:$0xf] %v2372
        %2438 = vst [vmem:[%s2436 + $0x4] sm:$0xf] %v2373
        %2439 = vst [vmem:[%s2436 + $0x8] sm:$0xf] %v2374
        %2440 = vst [vmem:[%s2436 + $0xc] sm:$0xf] %v2375
        %2441 = vst [vmem:[%s2436 + $0x10] sm:$0xf] %v2376
        %2442 = vst [vmem:[%s2436 + $0x14] sm:$0xf] %v2377
        %2443 = vst [vmem:[%s2436 + $0x18] sm:$0xf] %v2378
        %2444 = vst [vmem:[%s2436 + $0x1c] sm:$0xf] %v2379
        %2445 = vst [vmem:[%s2436 + $0x20] sm:$0xf] %v2380
        %2446 = vst [vmem:[%s2436 + $0x24] sm:$0xf] %v2381
        %2447 = vst [vmem:[%s2436 + $0x28] sm:$0xf] %v2382
        %2448 = vst [vmem:[%s2436 + $0x2c] sm:$0xf] %v2383
        %2449 = vst [vmem:[%s2436 + $0x30] sm:$0xf] %v2384
        %2450 = vst [vmem:[%s2436 + $0x34] sm:$0xf] %v2385
        %2451 = vst [vmem:[%s2436 + $0x38] sm:$0xf] %v2386
        %2452 = vst [vmem:[%s2436 + $0x3c] sm:$0xf] %v2387
        %2453 = vst [vmem:[%s2436 + $0x40] sm:$0xf] %v2388
        %2454 = vst [vmem:[%s2436 + $0x44] sm:$0xf] %v2389
        %2455 = vst [vmem:[%s2436 + $0x48] sm:$0xf] %v2390
        %2456 = vst [vmem:[%s2436 + $0x4c] sm:$0xf] %v2391
        %2457 = vst [vmem:[%s2436 + $0x50] sm:$0xf] %v2392
        %2458 = vst [vmem:[%s2436 + $0x54] sm:$0xf] %v2393
        %2459 = vst [vmem:[%s2436 + $0x58] sm:$0xf] %v2394
        %2460 = vst [vmem:[%s2436 + $0x5c] sm:$0xf] %v2395
        %2461 = vst [vmem:[%s2436 + $0x60] sm:$0xf] %v2396
        %2462 = vst [vmem:[%s2436 + $0x64] sm:$0xf] %v2397
        %2463 = vst [vmem:[%s2436 + $0x68] sm:$0xf] %v2398
        %2464 = vst [vmem:[%s2436 + $0x6c] sm:$0xf] %v2399
        %2465 = vst [vmem:[%s2436 + $0x70] sm:$0xf] %v2400
        %2466 = vst [vmem:[%s2436 + $0x74] sm:$0xf] %v2401
        %2467 = vst [vmem:[%s2436 + $0x78] sm:$0xf] %v2402
        %2468 = vst [vmem:[%s2436 + $0x7c] sm:$0xf] %v2403
        %v2469 = vpack.c.bf16 %v1675, %v1671
        %v2470 = vpack.c.bf16 %v1685, %v1681
        %v2471 = vpack.c.bf16 %v1695, %v1691
        %v2472 = vpack.c.bf16 %v1705, %v1701
        %v2473 = vpack.c.bf16 %v1715, %v1711
        %v2474 = vpack.c.bf16 %v1725, %v1721
        %v2475 = vpack.c.bf16 %v1735, %v1731
        %v2476 = vpack.c.bf16 %v1745, %v1741
        %v2477 = vpack.c.bf16 %v1755, %v1751
        %v2478 = vpack.c.bf16 %v1765, %v1761
        %v2479 = vpack.c.bf16 %v1775, %v1771
        %v2480 = vpack.c.bf16 %v1785, %v1781
        %v2481 = vpack.c.bf16 %v1795, %v1791
        %v2482 = vpack.c.bf16 %v1805, %v1801
        %v2483 = vpack.c.bf16 %v1815, %v1811
        %v2484 = vpack.c.bf16 %v1825, %v1821
        %v2501 = vunpack.c.l.b16 %v2469
        %v2502 = vunpack.c.h.b16 %v2469
        %v2503 = vunpack.c.l.b16 %v2470
        %v2504 = vunpack.c.h.b16 %v2470
        %v2505 = vunpack.c.l.b16 %v2471
        %v2506 = vunpack.c.h.b16 %v2471
        %v2507 = vunpack.c.l.b16 %v2472
        %v2508 = vunpack.c.h.b16 %v2472
        %v2509 = vunpack.c.l.b16 %v2473
        %v2510 = vunpack.c.h.b16 %v2473
        %v2511 = vunpack.c.l.b16 %v2474
        %v2512 = vunpack.c.h.b16 %v2474
        %v2513 = vunpack.c.l.b16 %v2475
        %v2514 = vunpack.c.h.b16 %v2475
        %v2515 = vunpack.c.l.b16 %v2476
        %v2516 = vunpack.c.h.b16 %v2476
        %v2517 = vunpack.c.l.b16 %v2477
        %v2518 = vunpack.c.h.b16 %v2477
        %v2519 = vunpack.c.l.b16 %v2478
        %v2520 = vunpack.c.h.b16 %v2478
        %v2521 = vunpack.c.l.b16 %v2479
        %v2522 = vunpack.c.h.b16 %v2479
        %v2523 = vunpack.c.l.b16 %v2480
        %v2524 = vunpack.c.h.b16 %v2480
        %v2525 = vunpack.c.l.b16 %v2481
        %v2526 = vunpack.c.h.b16 %v2481
        %v2527 = vunpack.c.l.b16 %v2482
        %v2528 = vunpack.c.h.b16 %v2482
        %v2529 = vunpack.c.l.b16 %v2483
        %v2530 = vunpack.c.h.b16 %v2483
        %v2531 = vunpack.c.l.b16 %v2484
        %v2532 = vunpack.c.h.b16 %v2484
        %v2533 = vpack.c.b16 %v2501, %v2501
        %v2534 = vpack.c.b16 %v2502, %v2502
        %v2535 = vpack.c.b16 %v2503, %v2503
        %v2536 = vpack.c.b16 %v2504, %v2504
        %v2537 = vpack.c.b16 %v2505, %v2505
        %v2538 = vpack.c.b16 %v2506, %v2506
        %v2539 = vpack.c.b16 %v2507, %v2507
        %v2540 = vpack.c.b16 %v2508, %v2508
        %v2541 = vpack.c.b16 %v2509, %v2509
        %v2542 = vpack.c.b16 %v2510, %v2510
        %v2543 = vpack.c.b16 %v2511, %v2511
        %v2544 = vpack.c.b16 %v2512, %v2512
        %v2545 = vpack.c.b16 %v2513, %v2513
        %v2546 = vpack.c.b16 %v2514, %v2514
        %v2547 = vpack.c.b16 %v2515, %v2515
        %v2548 = vpack.c.b16 %v2516, %v2516
        %v2549 = vpack.c.b16 %v2517, %v2517
        %v2550 = vpack.c.b16 %v2518, %v2518
        %v2551 = vpack.c.b16 %v2519, %v2519
        %v2552 = vpack.c.b16 %v2520, %v2520
        %v2553 = vpack.c.b16 %v2521, %v2521
        %v2554 = vpack.c.b16 %v2522, %v2522
        %v2555 = vpack.c.b16 %v2523, %v2523
        %v2556 = vpack.c.b16 %v2524, %v2524
        %v2557 = vpack.c.b16 %v2525, %v2525
        %v2558 = vpack.c.b16 %v2526, %v2526
        %v2559 = vpack.c.b16 %v2527, %v2527
        %v2560 = vpack.c.b16 %v2528, %v2528
        %v2561 = vpack.c.b16 %v2529, %v2529
        %v2562 = vpack.c.b16 %v2530, %v2530
        %v2563 = vpack.c.b16 %v2531, %v2531
        %v2564 = vpack.c.b16 %v2532, %v2532
        %s2597 = scalar_lea.vmem [#allocation4], 128
        %2598 = vst [vmem:[%s2597] sm:$0xf] %v2533
        %2599 = vst [vmem:[%s2597 + $0x4] sm:$0xf] %v2534
        %2600 = vst [vmem:[%s2597 + $0x8] sm:$0xf] %v2535
        %2601 = vst [vmem:[%s2597 + $0xc] sm:$0xf] %v2536
        %2602 = vst [vmem:[%s2597 + $0x10] sm:$0xf] %v2537
        %2603 = vst [vmem:[%s2597 + $0x14] sm:$0xf] %v2538
        %2604 = vst [vmem:[%s2597 + $0x18] sm:$0xf] %v2539
        %2605 = vst [vmem:[%s2597 + $0x1c] sm:$0xf] %v2540
        %2606 = vst [vmem:[%s2597 + $0x20] sm:$0xf] %v2541
        %2607 = vst [vmem:[%s2597 + $0x24] sm:$0xf] %v2542
        %2608 = vst [vmem:[%s2597 + $0x28] sm:$0xf] %v2543
        %2609 = vst [vmem:[%s2597 + $0x2c] sm:$0xf] %v2544
        %2610 = vst [vmem:[%s2597 + $0x30] sm:$0xf] %v2545
        %2611 = vst [vmem:[%s2597 + $0x34] sm:$0xf] %v2546
        %2612 = vst [vmem:[%s2597 + $0x38] sm:$0xf] %v2547
        %2613 = vst [vmem:[%s2597 + $0x3c] sm:$0xf] %v2548
        %2614 = vst [vmem:[%s2597 + $0x40] sm:$0xf] %v2549
        %2615 = vst [vmem:[%s2597 + $0x44] sm:$0xf] %v2550
        %2616 = vst [vmem:[%s2597 + $0x48] sm:$0xf] %v2551
        %2617 = vst [vmem:[%s2597 + $0x4c] sm:$0xf] %v2552
        %2618 = vst [vmem:[%s2597 + $0x50] sm:$0xf] %v2553
        %2619 = vst [vmem:[%s2597 + $0x54] sm:$0xf] %v2554
        %2620 = vst [vmem:[%s2597 + $0x58] sm:$0xf] %v2555
        %2621 = vst [vmem:[%s2597 + $0x5c] sm:$0xf] %v2556
        %2622 = vst [vmem:[%s2597 + $0x60] sm:$0xf] %v2557
        %2623 = vst [vmem:[%s2597 + $0x64] sm:$0xf] %v2558
        %2624 = vst [vmem:[%s2597 + $0x68] sm:$0xf] %v2559
        %2625 = vst [vmem:[%s2597 + $0x6c] sm:$0xf] %v2560
        %2626 = vst [vmem:[%s2597 + $0x70] sm:$0xf] %v2561
        %2627 = vst [vmem:[%s2597 + $0x74] sm:$0xf] %v2562
        %2628 = vst [vmem:[%s2597 + $0x78] sm:$0xf] %v2563
        %2629 = vst [vmem:[%s2597 + $0x7c] sm:$0xf] %v2564
        %v2630 = vld [vmem:[#allocation2] sm:$0xf]
        %v2631 = vld [vmem:[#allocation2 + $0x4] sm:$0xf]
        %v2632 = vld [vmem:[#allocation2 + $0x8] sm:$0xf]
        %v2633 = vld [vmem:[#allocation2 + $0xc] sm:$0xf]
        %v2634 = vld [vmem:[#allocation2 + $0x10] sm:$0xf]
        %v2635 = vld [vmem:[#allocation2 + $0x14] sm:$0xf]
        %v2636 = vld [vmem:[#allocation2 + $0x18] sm:$0xf]
        %v2637 = vld [vmem:[#allocation2 + $0x1c] sm:$0xf]
        %v2638 = vld [vmem:[#allocation2 + $0x20] sm:$0xf]
        %v2639 = vld [vmem:[#allocation2 + $0x24] sm:$0xf]
        %v2640 = vld [vmem:[#allocation2 + $0x28] sm:$0xf]
        %v2641 = vld [vmem:[#allocation2 + $0x2c] sm:$0xf]
        %v2642 = vld [vmem:[#allocation2 + $0x30] sm:$0xf]
        %v2643 = vld [vmem:[#allocation2 + $0x34] sm:$0xf]
        %v2644 = vld [vmem:[#allocation2 + $0x38] sm:$0xf]
        %v2645 = vld [vmem:[#allocation2 + $0x3c] sm:$0xf]
        %v2646 = vld [vmem:[#allocation2 + $0x40] sm:$0xf]
        %v2647 = vld [vmem:[#allocation2 + $0x44] sm:$0xf]
        %v2648 = vld [vmem:[#allocation2 + $0x48] sm:$0xf]
        %v2649 = vld [vmem:[#allocation2 + $0x4c] sm:$0xf]
        %v2650 = vld [vmem:[#allocation2 + $0x50] sm:$0xf]
        %v2651 = vld [vmem:[#allocation2 + $0x54] sm:$0xf]
        %v2652 = vld [vmem:[#allocation2 + $0x58] sm:$0xf]
        %v2653 = vld [vmem:[#allocation2 + $0x5c] sm:$0xf]
        %v2654 = vld [vmem:[#allocation2 + $0x60] sm:$0xf]
        %v2655 = vld [vmem:[#allocation2 + $0x64] sm:$0xf]
        %v2656 = vld [vmem:[#allocation2 + $0x68] sm:$0xf]
        %v2657 = vld [vmem:[#allocation2 + $0x6c] sm:$0xf]
        %v2658 = vld [vmem:[#allocation2 + $0x70] sm:$0xf]
        %v2659 = vld [vmem:[#allocation2 + $0x74] sm:$0xf]
        %v2660 = vld [vmem:[#allocation2 + $0x78] sm:$0xf]
        %v2661 = vld [vmem:[#allocation2 + $0x7c] sm:$0xf]
        %v2662 = vld [vmem:[#allocation3] sm:$0xf]
        %v2663 = vld [vmem:[#allocation3 + $0x4] sm:$0xf]
        %v2664 = vld [vmem:[#allocation3 + $0x8] sm:$0xf]
        %v2665 = vld [vmem:[#allocation3 + $0xc] sm:$0xf]
        %v2666 = vld [vmem:[#allocation3 + $0x10] sm:$0xf]
        %v2667 = vld [vmem:[#allocation3 + $0x14] sm:$0xf]
        %v2668 = vld [vmem:[#allocation3 + $0x18] sm:$0xf]
        %v2669 = vld [vmem:[#allocation3 + $0x1c] sm:$0xf]
        %v2670 = vld [vmem:[#allocation3 + $0x20] sm:$0xf]
        %v2671 = vld [vmem:[#allocation3 + $0x24] sm:$0xf]
        %v2672 = vld [vmem:[#allocation3 + $0x28] sm:$0xf]
        %v2673 = vld [vmem:[#allocation3 + $0x2c] sm:$0xf]
        %v2674 = vld [vmem:[#allocation3 + $0x30] sm:$0xf]
        %v2675 = vld [vmem:[#allocation3 + $0x34] sm:$0xf]
        %v2676 = vld [vmem:[#allocation3 + $0x38] sm:$0xf]
        %v2677 = vld [vmem:[#allocation3 + $0x3c] sm:$0xf]
        %v2678 = vld [vmem:[#allocation3 + $0x40] sm:$0xf]
        %v2679 = vld [vmem:[#allocation3 + $0x44] sm:$0xf]
        %v2680 = vld [vmem:[#allocation3 + $0x48] sm:$0xf]
        %v2681 = vld [vmem:[#allocation3 + $0x4c] sm:$0xf]
        %v2682 = vld [vmem:[#allocation3 + $0x50] sm:$0xf]
        %v2683 = vld [vmem:[#allocation3 + $0x54] sm:$0xf]
        %v2684 = vld [vmem:[#allocation3 + $0x58] sm:$0xf]
        %v2685 = vld [vmem:[#allocation3 + $0x5c] sm:$0xf]
        %v2686 = vld [vmem:[#allocation3 + $0x60] sm:$0xf]
        %v2687 = vld [vmem:[#allocation3 + $0x64] sm:$0xf]
        %v2688 = vld [vmem:[#allocation3 + $0x68] sm:$0xf]
        %v2689 = vld [vmem:[#allocation3 + $0x6c] sm:$0xf]
        %v2690 = vld [vmem:[#allocation3 + $0x70] sm:$0xf]
        %v2691 = vld [vmem:[#allocation3 + $0x74] sm:$0xf]
        %v2692 = vld [vmem:[#allocation3 + $0x78] sm:$0xf]
        %v2693 = vld [vmem:[#allocation3 + $0x7c] sm:$0xf]
        %v2694 = vld [vmem:[#allocation3 + $0x80] sm:$0xf]
        %v2695 = vld [vmem:[#allocation3 + $0x84] sm:$0xf]
        %v2696 = vld [vmem:[#allocation3 + $0x88] sm:$0xf]
        %v2697 = vld [vmem:[#allocation3 + $0x8c] sm:$0xf]
        %v2698 = vld [vmem:[#allocation3 + $0x90] sm:$0xf]
        %v2699 = vld [vmem:[#allocation3 + $0x94] sm:$0xf]
        %v2700 = vld [vmem:[#allocation3 + $0x98] sm:$0xf]
        %v2701 = vld [vmem:[#allocation3 + $0x9c] sm:$0xf]
        %v2702 = vld [vmem:[#allocation3 + $0xa0] sm:$0xf]
        %v2703 = vld [vmem:[#allocation3 + $0xa4] sm:$0xf]
        %v2704 = vld [vmem:[#allocation3 + $0xa8] sm:$0xf]
        %v2705 = vld [vmem:[#allocation3 + $0xac] sm:$0xf]
        %v2706 = vld [vmem:[#allocation3 + $0xb0] sm:$0xf]
        %v2707 = vld [vmem:[#allocation3 + $0xb4] sm:$0xf]
        %v2708 = vld [vmem:[#allocation3 + $0xb8] sm:$0xf]
        %v2709 = vld [vmem:[#allocation3 + $0xbc] sm:$0xf]
        %v2710 = vld [vmem:[#allocation3 + $0xc0] sm:$0xf]
        %v2711 = vld [vmem:[#allocation3 + $0xc4] sm:$0xf]
        %v2712 = vld [vmem:[#allocation3 + $0xc8] sm:$0xf]
        %v2713 = vld [vmem:[#allocation3 + $0xcc] sm:$0xf]
        %v2714 = vld [vmem:[#allocation3 + $0xd0] sm:$0xf]
        %v2715 = vld [vmem:[#allocation3 + $0xd4] sm:$0xf]
        %v2716 = vld [vmem:[#allocation3 + $0xd8] sm:$0xf]
        %v2717 = vld [vmem:[#allocation3 + $0xdc] sm:$0xf]
        %v2718 = vld [vmem:[#allocation3 + $0xe0] sm:$0xf]
        %v2719 = vld [vmem:[#allocation3 + $0xe4] sm:$0xf]
        %v2720 = vld [vmem:[#allocation3 + $0xe8] sm:$0xf]
        %v2721 = vld [vmem:[#allocation3 + $0xec] sm:$0xf]
        %v2722 = vld [vmem:[#allocation3 + $0xf0] sm:$0xf]
        %v2723 = vld [vmem:[#allocation3 + $0xf4] sm:$0xf]
        %v2724 = vld [vmem:[#allocation3 + $0xf8] sm:$0xf]
        %v2725 = vld [vmem:[#allocation3 + $0xfc] sm:$0xf]
        %v2742 = vunpack.c.l.b16 %v2630
        %v2743 = vunpack.c.l.b16 %v2631
        %v2744 = vunpack.c.l.b16 %v2632
        %v2745 = vunpack.c.l.b16 %v2633
        %v2746 = vunpack.c.l.b16 %v2634
        %v2747 = vunpack.c.l.b16 %v2635
        %v2748 = vunpack.c.l.b16 %v2636
        %v2749 = vunpack.c.l.b16 %v2637
        %v2750 = vunpack.c.l.b16 %v2638
        %v2751 = vunpack.c.l.b16 %v2639
        %v2752 = vunpack.c.l.b16 %v2640
        %v2753 = vunpack.c.l.b16 %v2641
        %v2754 = vunpack.c.l.b16 %v2642
        %v2755 = vunpack.c.l.b16 %v2643
        %v2756 = vunpack.c.l.b16 %v2644
        %v2757 = vunpack.c.l.b16 %v2645
        %v2758 = vpack.c.b16 %v2743, %v2742
        %v2759 = vpack.c.b16 %v2745, %v2744
        %v2760 = vpack.c.b16 %v2747, %v2746
        %v2761 = vpack.c.b16 %v2749, %v2748
        %v2762 = vpack.c.b16 %v2751, %v2750
        %v2763 = vpack.c.b16 %v2753, %v2752
        %v2764 = vpack.c.b16 %v2755, %v2754
        %v2765 = vpack.c.b16 %v2757, %v2756
        %v2806 = vunpack.c.l.b16 %v2662
        %v2807 = vunpack.c.l.b16 %v2663
        %v2808 = vunpack.c.l.b16 %v2664
        %v2809 = vunpack.c.l.b16 %v2665
        %v2810 = vunpack.c.l.b16 %v2666
        %v2811 = vunpack.c.l.b16 %v2667
        %v2812 = vunpack.c.l.b16 %v2668
        %v2813 = vunpack.c.l.b16 %v2669
        %v2814 = vunpack.c.l.b16 %v2670
        %v2815 = vunpack.c.l.b16 %v2671
        %v2816 = vunpack.c.l.b16 %v2672
        %v2817 = vunpack.c.l.b16 %v2673
        %v2818 = vunpack.c.l.b16 %v2674
        %v2819 = vunpack.c.l.b16 %v2675
        %v2820 = vunpack.c.l.b16 %v2676
        %v2821 = vunpack.c.l.b16 %v2677
        %v2822 = vunpack.c.l.b16 %v2678
        %v2823 = vunpack.c.l.b16 %v2679
        %v2824 = vunpack.c.l.b16 %v2680
        %v2825 = vunpack.c.l.b16 %v2681
        %v2826 = vunpack.c.l.b16 %v2682
        %v2827 = vunpack.c.l.b16 %v2683
        %v2828 = vunpack.c.l.b16 %v2684
        %v2829 = vunpack.c.l.b16 %v2685
        %v2830 = vunpack.c.l.b16 %v2686
        %v2831 = vunpack.c.l.b16 %v2687
        %v2832 = vunpack.c.l.b16 %v2688
        %v2833 = vunpack.c.l.b16 %v2689
        %v2834 = vunpack.c.l.b16 %v2690
        %v2835 = vunpack.c.l.b16 %v2691
        %v2836 = vunpack.c.l.b16 %v2692
        %v2837 = vunpack.c.l.b16 %v2693
        %v2838 = vpack.c.b16 %v2807, %v2806
        %v2839 = vpack.c.b16 %v2809, %v2808
        %v2840 = vpack.c.b16 %v2811, %v2810
        %v2841 = vpack.c.b16 %v2813, %v2812
        %v2842 = vpack.c.b16 %v2815, %v2814
        %v2843 = vpack.c.b16 %v2817, %v2816
        %v2844 = vpack.c.b16 %v2819, %v2818
        %v2845 = vpack.c.b16 %v2821, %v2820
        %v2846 = vpack.c.b16 %v2823, %v2822
        %v2847 = vpack.c.b16 %v2825, %v2824
        %v2848 = vpack.c.b16 %v2827, %v2826
        %v2849 = vpack.c.b16 %v2829, %v2828
        %v2850 = vpack.c.b16 %v2831, %v2830
        %v2851 = vpack.c.b16 %v2833, %v2832
        %v2852 = vpack.c.b16 %v2835, %v2834
        %v2853 = vpack.c.b16 %v2837, %v2836
        %2870 = vmatprep.subr.bf16.mxu0 0
        %2871 = vmatpush1.bf16.xpose.msra.mxu0 %v2845
        %2872 = vmatprep.subr.bf16.mxu0 0
        %2873 = vmatpush1.bf16.xpose.msra.mxu0 %v2844
        %2874 = vmatprep.subr.bf16.mxu0 0
        %2875 = vmatpush1.bf16.xpose.msra.mxu0 %v2843
        %2876 = vmatprep.subr.bf16.mxu0 0
        %2877 = vmatpush1.bf16.xpose.msra.mxu0 %v2842
        %2878 = vmatprep.subr.bf16.mxu0 0
        %2879 = vmatpush1.bf16.xpose.msra.mxu0 %v2841
        %2880 = vmatprep.subr.bf16.mxu0 0
        %2881 = vmatpush1.bf16.xpose.msra.mxu0 %v2840
        %2882 = vmatprep.subr.bf16.mxu0 0
        %2883 = vmatpush1.bf16.xpose.msra.mxu0 %v2839
        %2884 = vmatprep.subr.bf16.mxu0 0
        %2885 = vmatpush1.bf16.xpose.msra.mxu0 %v2838
        %2886 = vmatprep.subr.bf16.mxu0 0
        %2887 = vmatpush2.bf16.xpose.msra.mxu0 %v2853
        %2888 = vmatprep.subr.bf16.mxu0 0
        %2889 = vmatpush2.bf16.xpose.msra.mxu0 %v2852
        %2890 = vmatprep.subr.bf16.mxu0 0
        %2891 = vmatpush2.bf16.xpose.msra.mxu0 %v2851
        %2892 = vmatprep.subr.bf16.mxu0 0
        %2893 = vmatpush2.bf16.xpose.msra.mxu0 %v2850
        %2894 = vmatprep.subr.bf16.mxu0 0
        %2895 = vmatpush2.bf16.xpose.msra.mxu0 %v2849
        %2896 = vmatprep.subr.bf16.mxu0 0
        %2897 = vmatpush2.bf16.xpose.msra.mxu0 %v2848
        %2898 = vmatprep.subr.bf16.mxu0 0
        %2899 = vmatpush2.bf16.xpose.msra.mxu0 %v2847
        %2900 = vmatprep.subr.bf16.mxu0 0
        %2901 = vmatpush2.bf16.xpose.msra.mxu0 %v2846
        %2902 = vmatprep.mubr.bf16.mxu0 0
        %2903 = vmatmul.mubr.bf16.gmra.mxu0 %v2758
        %v2904 = vpop.f32.mrf.mxu0
        %v2905 = vadd.f32 0.0, %v2904
        %v2906 = vpop.f32.mrf.mxu0
        %v2907 = vadd.f32 0.0, %v2906
        %v2908 = vpop.f32.mrf.mxu0
        %v2909 = vadd.f32 0.0, %v2908
        %v2910 = vpop.f32.mrf.mxu0
        %v2911 = vadd.f32 0.0, %v2910
        %2912 = vmatprep.mubr.bf16.mxu0 0
        %2913 = vmatmul.mubr.bf16.gmra.mxu0 %v2759
        %v2914 = vpop.f32.mrf.mxu0
        %v2915 = vadd.f32 0.0, %v2914
        %v2916 = vpop.f32.mrf.mxu0
        %v2917 = vadd.f32 0.0, %v2916
        %v2918 = vpop.f32.mrf.mxu0
        %v2919 = vadd.f32 0.0, %v2918
        %v2920 = vpop.f32.mrf.mxu0
        %v2921 = vadd.f32 0.0, %v2920
        %2922 = vmatprep.mubr.bf16.mxu0 0
        %2923 = vmatmul.mubr.bf16.gmra.mxu0 %v2760
        %v2924 = vpop.f32.mrf.mxu0
        %v2925 = vadd.f32 0.0, %v2924
        %v2926 = vpop.f32.mrf.mxu0
        %v2927 = vadd.f32 0.0, %v2926
        %v2928 = vpop.f32.mrf.mxu0
        %v2929 = vadd.f32 0.0, %v2928
        %v2930 = vpop.f32.mrf.mxu0
        %v2931 = vadd.f32 0.0, %v2930
        %2932 = vmatprep.mubr.bf16.mxu0 0
        %2933 = vmatmul.mubr.bf16.gmra.mxu0 %v2761
        %v2934 = vpop.f32.mrf.mxu0
        %v2935 = vadd.f32 0.0, %v2934
        %v2936 = vpop.f32.mrf.mxu0
        %v2937 = vadd.f32 0.0, %v2936
        %v2938 = vpop.f32.mrf.mxu0
        %v2939 = vadd.f32 0.0, %v2938
        %v2940 = vpop.f32.mrf.mxu0
        %v2941 = vadd.f32 0.0, %v2940
        %2942 = vmatprep.mubr.bf16.mxu0 0
        %2943 = vmatmul.mubr.bf16.gmra.mxu0 %v2762
        %v2944 = vpop.f32.mrf.mxu0
        %v2945 = vadd.f32 0.0, %v2944
        %v2946 = vpop.f32.mrf.mxu0
        %v2947 = vadd.f32 0.0, %v2946
        %v2948 = vpop.f32.mrf.mxu0
        %v2949 = vadd.f32 0.0, %v2948
        %v2950 = vpop.f32.mrf.mxu0
        %v2951 = vadd.f32 0.0, %v2950
        %2952 = vmatprep.mubr.bf16.mxu0 0
        %2953 = vmatmul.mubr.bf16.gmra.mxu0 %v2763
        %v2954 = vpop.f32.mrf.mxu0
        %v2955 = vadd.f32 0.0, %v2954
        %v2956 = vpop.f32.mrf.mxu0
        %v2957 = vadd.f32 0.0, %v2956
        %v2958 = vpop.f32.mrf.mxu0
        %v2959 = vadd.f32 0.0, %v2958
        %v2960 = vpop.f32.mrf.mxu0
        %v2961 = vadd.f32 0.0, %v2960
        %2962 = vmatprep.mubr.bf16.mxu0 0
        %2963 = vmatmul.mubr.bf16.gmra.mxu0 %v2764
        %v2964 = vpop.f32.mrf.mxu0
        %v2965 = vadd.f32 0.0, %v2964
        %v2966 = vpop.f32.mrf.mxu0
        %v2967 = vadd.f32 0.0, %v2966
        %v2968 = vpop.f32.mrf.mxu0
        %v2969 = vadd.f32 0.0, %v2968
        %v2970 = vpop.f32.mrf.mxu0
        %v2971 = vadd.f32 0.0, %v2970
        %2972 = vmatprep.mubr.bf16.mxu0 0
        %2973 = vmatmul.mubr.bf16.gmra.mxu0 %v2765
        %v2974 = vpop.f32.mrf.mxu0
        %v2975 = vadd.f32 0.0, %v2974
        %v2976 = vpop.f32.mrf.mxu0
        %v2977 = vadd.f32 0.0, %v2976
        %v2978 = vpop.f32.mrf.mxu0
        %v2979 = vadd.f32 0.0, %v2978
        %v2980 = vpop.f32.mrf.mxu0
        %v2981 = vadd.f32 0.0, %v2980
        %2982 = vdwg.mxu0
        %v2999 = vunpack.c.l.b16 %v2646
        %v3000 = vunpack.c.l.b16 %v2647
        %v3001 = vunpack.c.l.b16 %v2648
        %v3002 = vunpack.c.l.b16 %v2649
        %v3003 = vunpack.c.l.b16 %v2650
        %v3004 = vunpack.c.l.b16 %v2651
        %v3005 = vunpack.c.l.b16 %v2652
        %v3006 = vunpack.c.l.b16 %v2653
        %v3007 = vunpack.c.l.b16 %v2654
        %v3008 = vunpack.c.l.b16 %v2655
        %v3009 = vunpack.c.l.b16 %v2656
        %v3010 = vunpack.c.l.b16 %v2657
        %v3011 = vunpack.c.l.b16 %v2658
        %v3012 = vunpack.c.l.b16 %v2659
        %v3013 = vunpack.c.l.b16 %v2660
        %v3014 = vunpack.c.l.b16 %v2661
        %v3015 = vpack.c.b16 %v3000, %v2999
        %v3016 = vpack.c.b16 %v3002, %v3001
        %v3017 = vpack.c.b16 %v3004, %v3003
        %v3018 = vpack.c.b16 %v3006, %v3005
        %v3019 = vpack.c.b16 %v3008, %v3007
        %v3020 = vpack.c.b16 %v3010, %v3009
        %v3021 = vpack.c.b16 %v3012, %v3011
        %v3022 = vpack.c.b16 %v3014, %v3013
        %v3063 = vunpack.c.l.b16 %v2694
        %v3064 = vunpack.c.l.b16 %v2695
        %v3065 = vunpack.c.l.b16 %v2696
        %v3066 = vunpack.c.l.b16 %v2697
        %v3067 = vunpack.c.l.b16 %v2698
        %v3068 = vunpack.c.l.b16 %v2699
        %v3069 = vunpack.c.l.b16 %v2700
        %v3070 = vunpack.c.l.b16 %v2701
        %v3071 = vunpack.c.l.b16 %v2702
        %v3072 = vunpack.c.l.b16 %v2703
        %v3073 = vunpack.c.l.b16 %v2704
        %v3074 = vunpack.c.l.b16 %v2705
        %v3075 = vunpack.c.l.b16 %v2706
        %v3076 = vunpack.c.l.b16 %v2707
        %v3077 = vunpack.c.l.b16 %v2708
        %v3078 = vunpack.c.l.b16 %v2709
        %v3079 = vunpack.c.l.b16 %v2710
        %v3080 = vunpack.c.l.b16 %v2711
        %v3081 = vunpack.c.l.b16 %v2712
        %v3082 = vunpack.c.l.b16 %v2713
        %v3083 = vunpack.c.l.b16 %v2714
        %v3084 = vunpack.c.l.b16 %v2715
        %v3085 = vunpack.c.l.b16 %v2716
        %v3086 = vunpack.c.l.b16 %v2717
        %v3087 = vunpack.c.l.b16 %v2718
        %v3088 = vunpack.c.l.b16 %v2719
        %v3089 = vunpack.c.l.b16 %v2720
        %v3090 = vunpack.c.l.b16 %v2721
        %v3091 = vunpack.c.l.b16 %v2722
        %v3092 = vunpack.c.l.b16 %v2723
        %v3093 = vunpack.c.l.b16 %v2724
        %v3094 = vunpack.c.l.b16 %v2725
        %v3095 = vpack.c.b16 %v3064, %v3063
        %v3096 = vpack.c.b16 %v3066, %v3065
        %v3097 = vpack.c.b16 %v3068, %v3067
        %v3098 = vpack.c.b16 %v3070, %v3069
        %v3099 = vpack.c.b16 %v3072, %v3071
        %v3100 = vpack.c.b16 %v3074, %v3073
        %v3101 = vpack.c.b16 %v3076, %v3075
        %v3102 = vpack.c.b16 %v3078, %v3077
        %v3103 = vpack.c.b16 %v3080, %v3079
        %v3104 = vpack.c.b16 %v3082, %v3081
        %v3105 = vpack.c.b16 %v3084, %v3083
        %v3106 = vpack.c.b16 %v3086, %v3085
        %v3107 = vpack.c.b16 %v3088, %v3087
        %v3108 = vpack.c.b16 %v3090, %v3089
        %v3109 = vpack.c.b16 %v3092, %v3091
        %v3110 = vpack.c.b16 %v3094, %v3093
        %3127 = vmatprep.subr.bf16.mxu0 0
        %3128 = vmatpush1.bf16.xpose.msra.mxu0 %v3102
        %3129 = vmatprep.subr.bf16.mxu0 0
        %3130 = vmatpush1.bf16.xpose.msra.mxu0 %v3101
        %3131 = vmatprep.subr.bf16.mxu0 0
        %3132 = vmatpush1.bf16.xpose.msra.mxu0 %v3100
        %3133 = vmatprep.subr.bf16.mxu0 0
        %3134 = vmatpush1.bf16.xpose.msra.mxu0 %v3099
        %3135 = vmatprep.subr.bf16.mxu0 0
        %3136 = vmatpush1.bf16.xpose.msra.mxu0 %v3098
        %3137 = vmatprep.subr.bf16.mxu0 0
        %3138 = vmatpush1.bf16.xpose.msra.mxu0 %v3097
        %3139 = vmatprep.subr.bf16.mxu0 0
        %3140 = vmatpush1.bf16.xpose.msra.mxu0 %v3096
        %3141 = vmatprep.subr.bf16.mxu0 0
        %3142 = vmatpush1.bf16.xpose.msra.mxu0 %v3095
        %3143 = vmatprep.subr.bf16.mxu0 0
        %3144 = vmatpush2.bf16.xpose.msra.mxu0 %v3110
        %3145 = vmatprep.subr.bf16.mxu0 0
        %3146 = vmatpush2.bf16.xpose.msra.mxu0 %v3109
        %3147 = vmatprep.subr.bf16.mxu0 0
        %3148 = vmatpush2.bf16.xpose.msra.mxu0 %v3108
        %3149 = vmatprep.subr.bf16.mxu0 0
        %3150 = vmatpush2.bf16.xpose.msra.mxu0 %v3107
        %3151 = vmatprep.subr.bf16.mxu0 0
        %3152 = vmatpush2.bf16.xpose.msra.mxu0 %v3106
        %3153 = vmatprep.subr.bf16.mxu0 0
        %3154 = vmatpush2.bf16.xpose.msra.mxu0 %v3105
        %3155 = vmatprep.subr.bf16.mxu0 0
        %3156 = vmatpush2.bf16.xpose.msra.mxu0 %v3104
        %3157 = vmatprep.subr.bf16.mxu0 0
        %3158 = vmatpush2.bf16.xpose.msra.mxu0 %v3103
        %3159 = vmatprep.mubr.bf16.mxu0 0
        %3160 = vmatmul.mubr.bf16.gmra.mxu0 %v3015
        %v3161 = vpop.f32.mrf.mxu0
        %v3162 = vadd.f32 0.0, %v3161
        %v3163 = vpop.f32.mrf.mxu0
        %v3164 = vadd.f32 0.0, %v3163
        %v3165 = vpop.f32.mrf.mxu0
        %v3166 = vadd.f32 0.0, %v3165
        %v3167 = vpop.f32.mrf.mxu0
        %v3168 = vadd.f32 0.0, %v3167
        %3169 = vmatprep.mubr.bf16.mxu0 0
        %3170 = vmatmul.mubr.bf16.gmra.mxu0 %v3016
        %v3171 = vpop.f32.mrf.mxu0
        %v3172 = vadd.f32 0.0, %v3171
        %v3173 = vpop.f32.mrf.mxu0
        %v3174 = vadd.f32 0.0, %v3173
        %v3175 = vpop.f32.mrf.mxu0
        %v3176 = vadd.f32 0.0, %v3175
        %v3177 = vpop.f32.mrf.mxu0
        %v3178 = vadd.f32 0.0, %v3177
        %3179 = vmatprep.mubr.bf16.mxu0 0
        %3180 = vmatmul.mubr.bf16.gmra.mxu0 %v3017
        %v3181 = vpop.f32.mrf.mxu0
        %v3182 = vadd.f32 0.0, %v3181
        %v3183 = vpop.f32.mrf.mxu0
        %v3184 = vadd.f32 0.0, %v3183
        %v3185 = vpop.f32.mrf.mxu0
        %v3186 = vadd.f32 0.0, %v3185
        %v3187 = vpop.f32.mrf.mxu0
        %v3188 = vadd.f32 0.0, %v3187
        %3189 = vmatprep.mubr.bf16.mxu0 0
        %3190 = vmatmul.mubr.bf16.gmra.mxu0 %v3018
        %v3191 = vpop.f32.mrf.mxu0
        %v3192 = vadd.f32 0.0, %v3191
        %v3193 = vpop.f32.mrf.mxu0
        %v3194 = vadd.f32 0.0, %v3193
        %v3195 = vpop.f32.mrf.mxu0
        %v3196 = vadd.f32 0.0, %v3195
        %v3197 = vpop.f32.mrf.mxu0
        %v3198 = vadd.f32 0.0, %v3197
        %3199 = vmatprep.mubr.bf16.mxu0 0
        %3200 = vmatmul.mubr.bf16.gmra.mxu0 %v3019
        %v3201 = vpop.f32.mrf.mxu0
        %v3202 = vadd.f32 0.0, %v3201
        %v3203 = vpop.f32.mrf.mxu0
        %v3204 = vadd.f32 0.0, %v3203
        %v3205 = vpop.f32.mrf.mxu0
        %v3206 = vadd.f32 0.0, %v3205
        %v3207 = vpop.f32.mrf.mxu0
        %v3208 = vadd.f32 0.0, %v3207
        %3209 = vmatprep.mubr.bf16.mxu0 0
        %3210 = vmatmul.mubr.bf16.gmra.mxu0 %v3020
        %v3211 = vpop.f32.mrf.mxu0
        %v3212 = vadd.f32 0.0, %v3211
        %v3213 = vpop.f32.mrf.mxu0
        %v3214 = vadd.f32 0.0, %v3213
        %v3215 = vpop.f32.mrf.mxu0
        %v3216 = vadd.f32 0.0, %v3215
        %v3217 = vpop.f32.mrf.mxu0
        %v3218 = vadd.f32 0.0, %v3217
        %3219 = vmatprep.mubr.bf16.mxu0 0
        %3220 = vmatmul.mubr.bf16.gmra.mxu0 %v3021
        %v3221 = vpop.f32.mrf.mxu0
        %v3222 = vadd.f32 0.0, %v3221
        %v3223 = vpop.f32.mrf.mxu0
        %v3224 = vadd.f32 0.0, %v3223
        %v3225 = vpop.f32.mrf.mxu0
        %v3226 = vadd.f32 0.0, %v3225
        %v3227 = vpop.f32.mrf.mxu0
        %v3228 = vadd.f32 0.0, %v3227
        %3229 = vmatprep.mubr.bf16.mxu0 0
        %3230 = vmatmul.mubr.bf16.gmra.mxu0 %v3022
        %v3231 = vpop.f32.mrf.mxu0
        %v3232 = vadd.f32 0.0, %v3231
        %v3233 = vpop.f32.mrf.mxu0
        %v3234 = vadd.f32 0.0, %v3233
        %v3235 = vpop.f32.mrf.mxu0
        %v3236 = vadd.f32 0.0, %v3235
        %v3237 = vpop.f32.mrf.mxu0
        %v3238 = vadd.f32 0.0, %v3237
        %3239 = vdwg.mxu0
        %v3240 = vmax.f32 %v2905, %v2907
        %3241 = vmax.xlane.f32.xlu0 %v3240
        %v3242 = vpop.xlane.xlu0 %3241
        %v3243 = vmax.f32 %v2909, %v2911
        %3244 = vmax.xlane.f32.xlu0 %v3243
        %v3245 = vpop.xlane.xlu0 %3244
        %v3246 = vmax.f32 %v2915, %v2917
        %3247 = vmax.xlane.f32.xlu0 %v3246
        %v3248 = vpop.xlane.xlu0 %3247
        %v3249 = vmax.f32 %v2919, %v2921
        %3250 = vmax.xlane.f32.xlu0 %v3249
        %v3251 = vpop.xlane.xlu0 %3250
        %v3252 = vmax.f32 %v2925, %v2927
        %3253 = vmax.xlane.f32.xlu0 %v3252
        %v3254 = vpop.xlane.xlu0 %3253
        %v3255 = vmax.f32 %v2929, %v2931
        %3256 = vmax.xlane.f32.xlu0 %v3255
        %v3257 = vpop.xlane.xlu0 %3256
        %v3258 = vmax.f32 %v2935, %v2937
        %3259 = vmax.xlane.f32.xlu0 %v3258
        %v3260 = vpop.xlane.xlu0 %3259
        %v3261 = vmax.f32 %v2939, %v2941
        %3262 = vmax.xlane.f32.xlu0 %v3261
        %v3263 = vpop.xlane.xlu0 %3262
        %v3264 = vmax.f32 %v2945, %v2947
        %3265 = vmax.xlane.f32.xlu0 %v3264
        %v3266 = vpop.xlane.xlu0 %3265
        %v3267 = vmax.f32 %v2949, %v2951
        %3268 = vmax.xlane.f32.xlu0 %v3267
        %v3269 = vpop.xlane.xlu0 %3268
        %v3270 = vmax.f32 %v2955, %v2957
        %3271 = vmax.xlane.f32.xlu0 %v3270
        %v3272 = vpop.xlane.xlu0 %3271
        %v3273 = vmax.f32 %v2959, %v2961
        %3274 = vmax.xlane.f32.xlu0 %v3273
        %v3275 = vpop.xlane.xlu0 %3274
        %v3276 = vmax.f32 %v2965, %v2967
        %3277 = vmax.xlane.f32.xlu0 %v3276
        %v3278 = vpop.xlane.xlu0 %3277
        %v3279 = vmax.f32 %v2969, %v2971
        %3280 = vmax.xlane.f32.xlu0 %v3279
        %v3281 = vpop.xlane.xlu0 %3280
        %v3282 = vmax.f32 %v2975, %v2977
        %3283 = vmax.xlane.f32.xlu0 %v3282
        %v3284 = vpop.xlane.xlu0 %3283
        %v3285 = vmax.f32 %v2979, %v2981
        %3286 = vmax.xlane.f32.xlu0 %v3285
        %v3287 = vpop.xlane.xlu0 %3286
        %v3288 = vmax.f32 %v3162, %v3164
        %3289 = vmax.xlane.f32.xlu0 %v3288
        %v3290 = vpop.xlane.xlu0 %3289
        %v3291 = vmax.f32 %v3166, %v3168
        %3292 = vmax.xlane.f32.xlu0 %v3291
        %v3293 = vpop.xlane.xlu0 %3292
        %v3294 = vmax.f32 %v3172, %v3174
        %3295 = vmax.xlane.f32.xlu0 %v3294
        %v3296 = vpop.xlane.xlu0 %3295
        %v3297 = vmax.f32 %v3176, %v3178
        %3298 = vmax.xlane.f32.xlu0 %v3297
        %v3299 = vpop.xlane.xlu0 %3298
        %v3300 = vmax.f32 %v3182, %v3184
        %3301 = vmax.xlane.f32.xlu0 %v3300
        %v3302 = vpop.xlane.xlu0 %3301
        %v3303 = vmax.f32 %v3186, %v3188
        %3304 = vmax.xlane.f32.xlu0 %v3303
        %v3305 = vpop.xlane.xlu0 %3304
        %v3306 = vmax.f32 %v3192, %v3194
        %3307 = vmax.xlane.f32.xlu0 %v3306
        %v3308 = vpop.xlane.xlu0 %3307
        %v3309 = vmax.f32 %v3196, %v3198
        %3310 = vmax.xlane.f32.xlu0 %v3309
        %v3311 = vpop.xlane.xlu0 %3310
        %v3312 = vmax.f32 %v3202, %v3204
        %3313 = vmax.xlane.f32.xlu0 %v3312
        %v3314 = vpop.xlane.xlu0 %3313
        %v3315 = vmax.f32 %v3206, %v3208
        %3316 = vmax.xlane.f32.xlu0 %v3315
        %v3317 = vpop.xlane.xlu0 %3316
        %v3318 = vmax.f32 %v3212, %v3214
        %3319 = vmax.xlane.f32.xlu0 %v3318
        %v3320 = vpop.xlane.xlu0 %3319
        %v3321 = vmax.f32 %v3216, %v3218
        %3322 = vmax.xlane.f32.xlu0 %v3321
        %v3323 = vpop.xlane.xlu0 %3322
        %v3324 = vmax.f32 %v3222, %v3224
        %3325 = vmax.xlane.f32.xlu0 %v3324
        %v3326 = vpop.xlane.xlu0 %3325
        %v3327 = vmax.f32 %v3226, %v3228
        %3328 = vmax.xlane.f32.xlu0 %v3327
        %v3329 = vpop.xlane.xlu0 %3328
        %v3330 = vmax.f32 %v3232, %v3234
        %3331 = vmax.xlane.f32.xlu0 %v3330
        %v3332 = vpop.xlane.xlu0 %3331
        %v3333 = vmax.f32 %v3236, %v3238
        %3334 = vmax.xlane.f32.xlu0 %v3333
        %v3335 = vpop.xlane.xlu0 %3334
        %v3336 = vsub.f32 %v2905, %v3242
        %v3337 = vsub.f32 %v2907, %v3242
        %v3338 = vsub.f32 %v2909, %v3245
        %v3339 = vsub.f32 %v2911, %v3245
        %v3340 = vsub.f32 %v2915, %v3248
        %v3341 = vsub.f32 %v2917, %v3248
        %v3342 = vsub.f32 %v2919, %v3251
        %v3343 = vsub.f32 %v2921, %v3251
        %v3344 = vsub.f32 %v2925, %v3254
        %v3345 = vsub.f32 %v2927, %v3254
        %v3346 = vsub.f32 %v2929, %v3257
        %v3347 = vsub.f32 %v2931, %v3257
        %v3348 = vsub.f32 %v2935, %v3260
        %v3349 = vsub.f32 %v2937, %v3260
        %v3350 = vsub.f32 %v2939, %v3263
        %v3351 = vsub.f32 %v2941, %v3263
        %v3352 = vsub.f32 %v2945, %v3266
        %v3353 = vsub.f32 %v2947, %v3266
        %v3354 = vsub.f32 %v2949, %v3269
        %v3355 = vsub.f32 %v2951, %v3269
        %v3356 = vsub.f32 %v2955, %v3272
        %v3357 = vsub.f32 %v2957, %v3272
        %v3358 = vsub.f32 %v2959, %v3275
        %v3359 = vsub.f32 %v2961, %v3275
        %v3360 = vsub.f32 %v2965, %v3278
        %v3361 = vsub.f32 %v2967, %v3278
        %v3362 = vsub.f32 %v2969, %v3281
        %v3363 = vsub.f32 %v2971, %v3281
        %v3364 = vsub.f32 %v2975, %v3284
        %v3365 = vsub.f32 %v2977, %v3284
        %v3366 = vsub.f32 %v2979, %v3287
        %v3367 = vsub.f32 %v2981, %v3287
        %v3368 = vsub.f32 %v3162, %v3290
        %v3369 = vsub.f32 %v3164, %v3290
        %v3370 = vsub.f32 %v3166, %v3293
        %v3371 = vsub.f32 %v3168, %v3293
        %v3372 = vsub.f32 %v3172, %v3296
        %v3373 = vsub.f32 %v3174, %v3296
        %v3374 = vsub.f32 %v3176, %v3299
        %v3375 = vsub.f32 %v3178, %v3299
        %v3376 = vsub.f32 %v3182, %v3302
        %v3377 = vsub.f32 %v3184, %v3302
        %v3378 = vsub.f32 %v3186, %v3305
        %v3379 = vsub.f32 %v3188, %v3305
        %v3380 = vsub.f32 %v3192, %v3308
        %v3381 = vsub.f32 %v3194, %v3308
        %v3382 = vsub.f32 %v3196, %v3311
        %v3383 = vsub.f32 %v3198, %v3311
        %v3384 = vsub.f32 %v3202, %v3314
        %v3385 = vsub.f32 %v3204, %v3314
        %v3386 = vsub.f32 %v3206, %v3317
        %v3387 = vsub.f32 %v3208, %v3317
        %v3388 = vsub.f32 %v3212, %v3320
        %v3389 = vsub.f32 %v3214, %v3320
        %v3390 = vsub.f32 %v3216, %v3323
        %v3391 = vsub.f32 %v3218, %v3323
        %v3392 = vsub.f32 %v3222, %v3326
        %v3393 = vsub.f32 %v3224, %v3326
        %v3394 = vsub.f32 %v3226, %v3329
        %v3395 = vsub.f32 %v3228, %v3329
        %v3396 = vsub.f32 %v3232, %v3332
        %v3397 = vsub.f32 %v3234, %v3332
        %v3398 = vsub.f32 %v3236, %v3335
        %v3399 = vsub.f32 %v3238, %v3335
        %v3400 = vmul.f32 %v3336, 1.442695
        %v3401 = vpow.pop %v3400
        %v3402 = vmul.f32 %v3337, 1.442695
        %v3403 = vpow.pop %v3402
        %v3404 = vmul.f32 %v3338, 1.442695
        %v3405 = vpow.pop %v3404
        %v3406 = vmul.f32 %v3339, 1.442695
        %v3407 = vpow.pop %v3406
        %v3408 = vmul.f32 %v3340, 1.442695
        %v3409 = vpow.pop %v3408
        %v3410 = vmul.f32 %v3341, 1.442695
        %v3411 = vpow.pop %v3410
        %v3412 = vmul.f32 %v3342, 1.442695
        %v3413 = vpow.pop %v3412
        %v3414 = vmul.f32 %v3343, 1.442695
        %v3415 = vpow.pop %v3414
        %v3416 = vmul.f32 %v3344, 1.442695
        %v3417 = vpow.pop %v3416
        %v3418 = vmul.f32 %v3345, 1.442695
        %v3419 = vpow.pop %v3418
        %v3420 = vmul.f32 %v3346, 1.442695
        %v3421 = vpow.pop %v3420
        %v3422 = vmul.f32 %v3347, 1.442695
        %v3423 = vpow.pop %v3422
        %v3424 = vmul.f32 %v3348, 1.442695
        %v3425 = vpow.pop %v3424
        %v3426 = vmul.f32 %v3349, 1.442695
        %v3427 = vpow.pop %v3426
        %v3428 = vmul.f32 %v3350, 1.442695
        %v3429 = vpow.pop %v3428
        %v3430 = vmul.f32 %v3351, 1.442695
        %v3431 = vpow.pop %v3430
        %v3432 = vmul.f32 %v3352, 1.442695
        %v3433 = vpow.pop %v3432
        %v3434 = vmul.f32 %v3353, 1.442695
        %v3435 = vpow.pop %v3434
        %v3436 = vmul.f32 %v3354, 1.442695
        %v3437 = vpow.pop %v3436
        %v3438 = vmul.f32 %v3355, 1.442695
        %v3439 = vpow.pop %v3438
        %v3440 = vmul.f32 %v3356, 1.442695
        %v3441 = vpow.pop %v3440
        %v3442 = vmul.f32 %v3357, 1.442695
        %v3443 = vpow.pop %v3442
        %v3444 = vmul.f32 %v3358, 1.442695
        %v3445 = vpow.pop %v3444
        %v3446 = vmul.f32 %v3359, 1.442695
        %v3447 = vpow.pop %v3446
        %v3448 = vmul.f32 %v3360, 1.442695
        %v3449 = vpow.pop %v3448
        %v3450 = vmul.f32 %v3361, 1.442695
        %v3451 = vpow.pop %v3450
        %v3452 = vmul.f32 %v3362, 1.442695
        %v3453 = vpow.pop %v3452
        %v3454 = vmul.f32 %v3363, 1.442695
        %v3455 = vpow.pop %v3454
        %v3456 = vmul.f32 %v3364, 1.442695
        %v3457 = vpow.pop %v3456
        %v3458 = vmul.f32 %v3365, 1.442695
        %v3459 = vpow.pop %v3458
        %v3460 = vmul.f32 %v3366, 1.442695
        %v3461 = vpow.pop %v3460
        %v3462 = vmul.f32 %v3367, 1.442695
        %v3463 = vpow.pop %v3462
        %v3464 = vmul.f32 %v3368, 1.442695
        %v3465 = vpow.pop %v3464
        %v3466 = vmul.f32 %v3369, 1.442695
        %v3467 = vpow.pop %v3466
        %v3468 = vmul.f32 %v3370, 1.442695
        %v3469 = vpow.pop %v3468
        %v3470 = vmul.f32 %v3371, 1.442695
        %v3471 = vpow.pop %v3470
        %v3472 = vmul.f32 %v3372, 1.442695
        %v3473 = vpow.pop %v3472
        %v3474 = vmul.f32 %v3373, 1.442695
        %v3475 = vpow.pop %v3474
        %v3476 = vmul.f32 %v3374, 1.442695
        %v3477 = vpow.pop %v3476
        %v3478 = vmul.f32 %v3375, 1.442695
        %v3479 = vpow.pop %v3478
        %v3480 = vmul.f32 %v3376, 1.442695
        %v3481 = vpow.pop %v3480
        %v3482 = vmul.f32 %v3377, 1.442695
        %v3483 = vpow.pop %v3482
        %v3484 = vmul.f32 %v3378, 1.442695
        %v3485 = vpow.pop %v3484
        %v3486 = vmul.f32 %v3379, 1.442695
        %v3487 = vpow.pop %v3486
        %v3488 = vmul.f32 %v3380, 1.442695
        %v3489 = vpow.pop %v3488
        %v3490 = vmul.f32 %v3381, 1.442695
        %v3491 = vpow.pop %v3490
        %v3492 = vmul.f32 %v3382, 1.442695
        %v3493 = vpow.pop %v3492
        %v3494 = vmul.f32 %v3383, 1.442695
        %v3495 = vpow.pop %v3494
        %v3496 = vmul.f32 %v3384, 1.442695
        %v3497 = vpow.pop %v3496
        %v3498 = vmul.f32 %v3385, 1.442695
        %v3499 = vpow.pop %v3498
        %v3500 = vmul.f32 %v3386, 1.442695
        %v3501 = vpow.pop %v3500
        %v3502 = vmul.f32 %v3387, 1.442695
        %v3503 = vpow.pop %v3502
        %v3504 = vmul.f32 %v3388, 1.442695
        %v3505 = vpow.pop %v3504
        %v3506 = vmul.f32 %v3389, 1.442695
        %v3507 = vpow.pop %v3506
        %v3508 = vmul.f32 %v3390, 1.442695
        %v3509 = vpow.pop %v3508
        %v3510 = vmul.f32 %v3391, 1.442695
        %v3511 = vpow.pop %v3510
        %v3512 = vmul.f32 %v3392, 1.442695
        %v3513 = vpow.pop %v3512
        %v3514 = vmul.f32 %v3393, 1.442695
        %v3515 = vpow.pop %v3514
        %v3516 = vmul.f32 %v3394, 1.442695
        %v3517 = vpow.pop %v3516
        %v3518 = vmul.f32 %v3395, 1.442695
        %v3519 = vpow.pop %v3518
        %v3520 = vmul.f32 %v3396, 1.442695
        %v3521 = vpow.pop %v3520
        %v3522 = vmul.f32 %v3397, 1.442695
        %v3523 = vpow.pop %v3522
        %v3524 = vmul.f32 %v3398, 1.442695
        %v3525 = vpow.pop %v3524
        %v3526 = vmul.f32 %v3399, 1.442695
        %v3527 = vpow.pop %v3526
        %v3528 = vadd.f32 %v3401, %v3403
        %3529 = vadd.xlane.f32.xlu0 %v3528
        %v3530 = vpop.xlane.xlu0 %3529
        %v3531 = vadd.f32 %v3405, %v3407
        %3532 = vadd.xlane.f32.xlu0 %v3531
        %v3533 = vpop.xlane.xlu0 %3532
        %v3534 = vadd.f32 %v3409, %v3411
        %3535 = vadd.xlane.f32.xlu0 %v3534
        %v3536 = vpop.xlane.xlu0 %3535
        %v3537 = vadd.f32 %v3413, %v3415
        %3538 = vadd.xlane.f32.xlu0 %v3537
        %v3539 = vpop.xlane.xlu0 %3538
        %v3540 = vadd.f32 %v3417, %v3419
        %3541 = vadd.xlane.f32.xlu0 %v3540
        %v3542 = vpop.xlane.xlu0 %3541
        %v3543 = vadd.f32 %v3421, %v3423
        %3544 = vadd.xlane.f32.xlu0 %v3543
        %v3545 = vpop.xlane.xlu0 %3544
        %v3546 = vadd.f32 %v3425, %v3427
        %3547 = vadd.xlane.f32.xlu0 %v3546
        %v3548 = vpop.xlane.xlu0 %3547
        %v3549 = vadd.f32 %v3429, %v3431
        %3550 = vadd.xlane.f32.xlu0 %v3549
        %v3551 = vpop.xlane.xlu0 %3550
        %v3552 = vadd.f32 %v3433, %v3435
        %3553 = vadd.xlane.f32.xlu0 %v3552
        %v3554 = vpop.xlane.xlu0 %3553
        %v3555 = vadd.f32 %v3437, %v3439
        %3556 = vadd.xlane.f32.xlu0 %v3555
        %v3557 = vpop.xlane.xlu0 %3556
        %v3558 = vadd.f32 %v3441, %v3443
        %3559 = vadd.xlane.f32.xlu0 %v3558
        %v3560 = vpop.xlane.xlu0 %3559
        %v3561 = vadd.f32 %v3445, %v3447
        %3562 = vadd.xlane.f32.xlu0 %v3561
        %v3563 = vpop.xlane.xlu0 %3562
        %v3564 = vadd.f32 %v3449, %v3451
        %3565 = vadd.xlane.f32.xlu0 %v3564
        %v3566 = vpop.xlane.xlu0 %3565
        %v3567 = vadd.f32 %v3453, %v3455
        %3568 = vadd.xlane.f32.xlu0 %v3567
        %v3569 = vpop.xlane.xlu0 %3568
        %v3570 = vadd.f32 %v3457, %v3459
        %3571 = vadd.xlane.f32.xlu0 %v3570
        %v3572 = vpop.xlane.xlu0 %3571
        %v3573 = vadd.f32 %v3461, %v3463
        %3574 = vadd.xlane.f32.xlu0 %v3573
        %v3575 = vpop.xlane.xlu0 %3574
        %v3576 = vadd.f32 %v3465, %v3467
        %3577 = vadd.xlane.f32.xlu0 %v3576
        %v3578 = vpop.xlane.xlu0 %3577
        %v3579 = vadd.f32 %v3469, %v3471
        %3580 = vadd.xlane.f32.xlu0 %v3579
        %v3581 = vpop.xlane.xlu0 %3580
        %v3582 = vadd.f32 %v3473, %v3475
        %3583 = vadd.xlane.f32.xlu0 %v3582
        %v3584 = vpop.xlane.xlu0 %3583
        %v3585 = vadd.f32 %v3477, %v3479
        %3586 = vadd.xlane.f32.xlu0 %v3585
        %v3587 = vpop.xlane.xlu0 %3586
        %v3588 = vadd.f32 %v3481, %v3483
        %3589 = vadd.xlane.f32.xlu0 %v3588
        %v3590 = vpop.xlane.xlu0 %3589
        %v3591 = vadd.f32 %v3485, %v3487
        %3592 = vadd.xlane.f32.xlu0 %v3591
        %v3593 = vpop.xlane.xlu0 %3592
        %v3594 = vadd.f32 %v3489, %v3491
        %3595 = vadd.xlane.f32.xlu0 %v3594
        %v3596 = vpop.xlane.xlu0 %3595
        %v3597 = vadd.f32 %v3493, %v3495
        %3598 = vadd.xlane.f32.xlu0 %v3597
        %v3599 = vpop.xlane.xlu0 %3598
        %v3600 = vadd.f32 %v3497, %v3499
        %3601 = vadd.xlane.f32.xlu0 %v3600
        %v3602 = vpop.xlane.xlu0 %3601
        %v3603 = vadd.f32 %v3501, %v3503
        %3604 = vadd.xlane.f32.xlu0 %v3603
        %v3605 = vpop.xlane.xlu0 %3604
        %v3606 = vadd.f32 %v3505, %v3507
        %3607 = vadd.xlane.f32.xlu0 %v3606
        %v3608 = vpop.xlane.xlu0 %3607
        %v3609 = vadd.f32 %v3509, %v3511
        %3610 = vadd.xlane.f32.xlu0 %v3609
        %v3611 = vpop.xlane.xlu0 %3610
        %v3612 = vadd.f32 %v3513, %v3515
        %3613 = vadd.xlane.f32.xlu0 %v3612
        %v3614 = vpop.xlane.xlu0 %3613
        %v3615 = vadd.f32 %v3517, %v3519
        %3616 = vadd.xlane.f32.xlu0 %v3615
        %v3617 = vpop.xlane.xlu0 %3616
        %v3618 = vadd.f32 %v3521, %v3523
        %3619 = vadd.xlane.f32.xlu0 %v3618
        %v3620 = vpop.xlane.xlu0 %3619
        %v3621 = vadd.f32 %v3525, %v3527
        %3622 = vadd.xlane.f32.xlu0 %v3621
        %v3623 = vpop.xlane.xlu0 %3622
        %v3624 = vrcp.pop %v3530
        %v3625 = vrcp.pop %v3533
        %v3626 = vrcp.pop %v3536
        %v3627 = vrcp.pop %v3539
        %v3628 = vrcp.pop %v3542
        %v3629 = vrcp.pop %v3545
        %v3630 = vrcp.pop %v3548
        %v3631 = vrcp.pop %v3551
        %v3632 = vrcp.pop %v3554
        %v3633 = vrcp.pop %v3557
        %v3634 = vrcp.pop %v3560
        %v3635 = vrcp.pop %v3563
        %v3636 = vrcp.pop %v3566
        %v3637 = vrcp.pop %v3569
        %v3638 = vrcp.pop %v3572
        %v3639 = vrcp.pop %v3575
        %v3640 = vrcp.pop %v3578
        %v3641 = vrcp.pop %v3581
        %v3642 = vrcp.pop %v3584
        %v3643 = vrcp.pop %v3587
        %v3644 = vrcp.pop %v3590
        %v3645 = vrcp.pop %v3593
        %v3646 = vrcp.pop %v3596
        %v3647 = vrcp.pop %v3599
        %v3648 = vrcp.pop %v3602
        %v3649 = vrcp.pop %v3605
        %v3650 = vrcp.pop %v3608
        %v3651 = vrcp.pop %v3611
        %v3652 = vrcp.pop %v3614
        %v3653 = vrcp.pop %v3617
        %v3654 = vrcp.pop %v3620
        %v3655 = vrcp.pop %v3623
        %v3656 = vmul.f32 %v3401, %v3624
        %v3657 = vmul.f32 %v3403, %v3624
        %v3658 = vmul.f32 %v3405, %v3625
        %v3659 = vmul.f32 %v3407, %v3625
        %v3660 = vmul.f32 %v3409, %v3626
        %v3661 = vmul.f32 %v3411, %v3626
        %v3662 = vmul.f32 %v3413, %v3627
        %v3663 = vmul.f32 %v3415, %v3627
        %v3664 = vmul.f32 %v3417, %v3628
        %v3665 = vmul.f32 %v3419, %v3628
        %v3666 = vmul.f32 %v3421, %v3629
        %v3667 = vmul.f32 %v3423, %v3629
        %v3668 = vmul.f32 %v3425, %v3630
        %v3669 = vmul.f32 %v3427, %v3630
        %v3670 = vmul.f32 %v3429, %v3631
        %v3671 = vmul.f32 %v3431, %v3631
        %v3672 = vmul.f32 %v3433, %v3632
        %v3673 = vmul.f32 %v3435, %v3632
        %v3674 = vmul.f32 %v3437, %v3633
        %v3675 = vmul.f32 %v3439, %v3633
        %v3676 = vmul.f32 %v3441, %v3634
        %v3677 = vmul.f32 %v3443, %v3634
        %v3678 = vmul.f32 %v3445, %v3635
        %v3679 = vmul.f32 %v3447, %v3635
        %v3680 = vmul.f32 %v3449, %v3636
        %v3681 = vmul.f32 %v3451, %v3636
        %v3682 = vmul.f32 %v3453, %v3637
        %v3683 = vmul.f32 %v3455, %v3637
        %v3684 = vmul.f32 %v3457, %v3638
        %v3685 = vmul.f32 %v3459, %v3638
        %v3686 = vmul.f32 %v3461, %v3639
        %v3687 = vmul.f32 %v3463, %v3639
        %v3688 = vmul.f32 %v3465, %v3640
        %v3689 = vmul.f32 %v3467, %v3640
        %v3690 = vmul.f32 %v3469, %v3641
        %v3691 = vmul.f32 %v3471, %v3641
        %v3692 = vmul.f32 %v3473, %v3642
        %v3693 = vmul.f32 %v3475, %v3642
        %v3694 = vmul.f32 %v3477, %v3643
        %v3695 = vmul.f32 %v3479, %v3643
        %v3696 = vmul.f32 %v3481, %v3644
        %v3697 = vmul.f32 %v3483, %v3644
        %v3698 = vmul.f32 %v3485, %v3645
        %v3699 = vmul.f32 %v3487, %v3645
        %v3700 = vmul.f32 %v3489, %v3646
        %v3701 = vmul.f32 %v3491, %v3646
        %v3702 = vmul.f32 %v3493, %v3647
        %v3703 = vmul.f32 %v3495, %v3647
        %v3704 = vmul.f32 %v3497, %v3648
        %v3705 = vmul.f32 %v3499, %v3648
        %v3706 = vmul.f32 %v3501, %v3649
        %v3707 = vmul.f32 %v3503, %v3649
        %v3708 = vmul.f32 %v3505, %v3650
        %v3709 = vmul.f32 %v3507, %v3650
        %v3710 = vmul.f32 %v3509, %v3651
        %v3711 = vmul.f32 %v3511, %v3651
        %v3712 = vmul.f32 %v3513, %v3652
        %v3713 = vmul.f32 %v3515, %v3652
        %v3714 = vmul.f32 %v3517, %v3653
        %v3715 = vmul.f32 %v3519, %v3653
        %v3716 = vmul.f32 %v3521, %v3654
        %v3717 = vmul.f32 %v3523, %v3654
        %v3718 = vmul.f32 %v3525, %v3655
        %v3719 = vmul.f32 %v3527, %v3655
        %v3720 = vpack.c.bf16 %v3658, %v3656
        %v3721 = vpack.c.bf16 %v3659, %v3657
        %v3722 = vpack.c.bf16 %v3662, %v3660
        %v3723 = vpack.c.bf16 %v3663, %v3661
        %v3724 = vpack.c.bf16 %v3666, %v3664
        %v3725 = vpack.c.bf16 %v3667, %v3665
        %v3726 = vpack.c.bf16 %v3670, %v3668
        %v3727 = vpack.c.bf16 %v3671, %v3669
        %v3728 = vpack.c.bf16 %v3674, %v3672
        %v3729 = vpack.c.bf16 %v3675, %v3673
        %v3730 = vpack.c.bf16 %v3678, %v3676
        %v3731 = vpack.c.bf16 %v3679, %v3677
        %v3732 = vpack.c.bf16 %v3682, %v3680
        %v3733 = vpack.c.bf16 %v3683, %v3681
        %v3734 = vpack.c.bf16 %v3686, %v3684
        %v3735 = vpack.c.bf16 %v3687, %v3685
        %v3736 = vpack.c.bf16 %v3690, %v3688
        %v3737 = vpack.c.bf16 %v3691, %v3689
        %v3738 = vpack.c.bf16 %v3694, %v3692
        %v3739 = vpack.c.bf16 %v3695, %v3693
        %v3740 = vpack.c.bf16 %v3698, %v3696
        %v3741 = vpack.c.bf16 %v3699, %v3697
        %v3742 = vpack.c.bf16 %v3702, %v3700
        %v3743 = vpack.c.bf16 %v3703, %v3701
        %v3744 = vpack.c.bf16 %v3706, %v3704
        %v3745 = vpack.c.bf16 %v3707, %v3705
        %v3746 = vpack.c.bf16 %v3710, %v3708
        %v3747 = vpack.c.bf16 %v3711, %v3709
        %v3748 = vpack.c.bf16 %v3714, %v3712
        %v3749 = vpack.c.bf16 %v3715, %v3713
        %v3750 = vpack.c.bf16 %v3718, %v3716
        %v3751 = vpack.c.bf16 %v3719, %v3717
        %v3752 = vld [vmem:[#allocation4] sm:$0xf]
        %v3753 = vld [vmem:[#allocation4 + $0x4] sm:$0xf]
        %v3754 = vld [vmem:[#allocation4 + $0x8] sm:$0xf]
        %v3755 = vld [vmem:[#allocation4 + $0xc] sm:$0xf]
        %v3756 = vld [vmem:[#allocation4 + $0x10] sm:$0xf]
        %v3757 = vld [vmem:[#allocation4 + $0x14] sm:$0xf]
        %v3758 = vld [vmem:[#allocation4 + $0x18] sm:$0xf]
        %v3759 = vld [vmem:[#allocation4 + $0x1c] sm:$0xf]
        %v3760 = vld [vmem:[#allocation4 + $0x20] sm:$0xf]
        %v3761 = vld [vmem:[#allocation4 + $0x24] sm:$0xf]
        %v3762 = vld [vmem:[#allocation4 + $0x28] sm:$0xf]
        %v3763 = vld [vmem:[#allocation4 + $0x2c] sm:$0xf]
        %v3764 = vld [vmem:[#allocation4 + $0x30] sm:$0xf]
        %v3765 = vld [vmem:[#allocation4 + $0x34] sm:$0xf]
        %v3766 = vld [vmem:[#allocation4 + $0x38] sm:$0xf]
        %v3767 = vld [vmem:[#allocation4 + $0x3c] sm:$0xf]
        %v3768 = vld [vmem:[#allocation4 + $0x40] sm:$0xf]
        %v3769 = vld [vmem:[#allocation4 + $0x44] sm:$0xf]
        %v3770 = vld [vmem:[#allocation4 + $0x48] sm:$0xf]
        %v3771 = vld [vmem:[#allocation4 + $0x4c] sm:$0xf]
        %v3772 = vld [vmem:[#allocation4 + $0x50] sm:$0xf]
        %v3773 = vld [vmem:[#allocation4 + $0x54] sm:$0xf]
        %v3774 = vld [vmem:[#allocation4 + $0x58] sm:$0xf]
        %v3775 = vld [vmem:[#allocation4 + $0x5c] sm:$0xf]
        %v3776 = vld [vmem:[#allocation4 + $0x60] sm:$0xf]
        %v3777 = vld [vmem:[#allocation4 + $0x64] sm:$0xf]
        %v3778 = vld [vmem:[#allocation4 + $0x68] sm:$0xf]
        %v3779 = vld [vmem:[#allocation4 + $0x6c] sm:$0xf]
        %v3780 = vld [vmem:[#allocation4 + $0x70] sm:$0xf]
        %v3781 = vld [vmem:[#allocation4 + $0x74] sm:$0xf]
        %v3782 = vld [vmem:[#allocation4 + $0x78] sm:$0xf]
        %v3783 = vld [vmem:[#allocation4 + $0x7c] sm:$0xf]
        %v3784 = vld [vmem:[#allocation4 + $0x80] sm:$0xf]
        %v3785 = vld [vmem:[#allocation4 + $0x84] sm:$0xf]
        %v3786 = vld [vmem:[#allocation4 + $0x88] sm:$0xf]
        %v3787 = vld [vmem:[#allocation4 + $0x8c] sm:$0xf]
        %v3788 = vld [vmem:[#allocation4 + $0x90] sm:$0xf]
        %v3789 = vld [vmem:[#allocation4 + $0x94] sm:$0xf]
        %v3790 = vld [vmem:[#allocation4 + $0x98] sm:$0xf]
        %v3791 = vld [vmem:[#allocation4 + $0x9c] sm:$0xf]
        %v3792 = vld [vmem:[#allocation4 + $0xa0] sm:$0xf]
        %v3793 = vld [vmem:[#allocation4 + $0xa4] sm:$0xf]
        %v3794 = vld [vmem:[#allocation4 + $0xa8] sm:$0xf]
        %v3795 = vld [vmem:[#allocation4 + $0xac] sm:$0xf]
        %v3796 = vld [vmem:[#allocation4 + $0xb0] sm:$0xf]
        %v3797 = vld [vmem:[#allocation4 + $0xb4] sm:$0xf]
        %v3798 = vld [vmem:[#allocation4 + $0xb8] sm:$0xf]
        %v3799 = vld [vmem:[#allocation4 + $0xbc] sm:$0xf]
        %v3800 = vld [vmem:[#allocation4 + $0xc0] sm:$0xf]
        %v3801 = vld [vmem:[#allocation4 + $0xc4] sm:$0xf]
        %v3802 = vld [vmem:[#allocation4 + $0xc8] sm:$0xf]
        %v3803 = vld [vmem:[#allocation4 + $0xcc] sm:$0xf]
        %v3804 = vld [vmem:[#allocation4 + $0xd0] sm:$0xf]
        %v3805 = vld [vmem:[#allocation4 + $0xd4] sm:$0xf]
        %v3806 = vld [vmem:[#allocation4 + $0xd8] sm:$0xf]
        %v3807 = vld [vmem:[#allocation4 + $0xdc] sm:$0xf]
        %v3808 = vld [vmem:[#allocation4 + $0xe0] sm:$0xf]
        %v3809 = vld [vmem:[#allocation4 + $0xe4] sm:$0xf]
        %v3810 = vld [vmem:[#allocation4 + $0xe8] sm:$0xf]
        %v3811 = vld [vmem:[#allocation4 + $0xec] sm:$0xf]
        %v3812 = vld [vmem:[#allocation4 + $0xf0] sm:$0xf]
        %v3813 = vld [vmem:[#allocation4 + $0xf4] sm:$0xf]
        %v3814 = vld [vmem:[#allocation4 + $0xf8] sm:$0xf]
        %v3815 = vld [vmem:[#allocation4 + $0xfc] sm:$0xf]
        %v3848 = vunpack.c.l.b16 %v3752
        %v3849 = vunpack.c.l.b16 %v3753
        %v3850 = vunpack.c.l.b16 %v3754
        %v3851 = vunpack.c.l.b16 %v3755
        %v3852 = vunpack.c.l.b16 %v3756
        %v3853 = vunpack.c.l.b16 %v3757
        %v3854 = vunpack.c.l.b16 %v3758
        %v3855 = vunpack.c.l.b16 %v3759
        %v3856 = vunpack.c.l.b16 %v3760
        %v3857 = vunpack.c.l.b16 %v3761
        %v3858 = vunpack.c.l.b16 %v3762
        %v3859 = vunpack.c.l.b16 %v3763
        %v3860 = vunpack.c.l.b16 %v3764
        %v3861 = vunpack.c.l.b16 %v3765
        %v3862 = vunpack.c.l.b16 %v3766
        %v3863 = vunpack.c.l.b16 %v3767
        %v3864 = vunpack.c.l.b16 %v3768
        %v3865 = vunpack.c.l.b16 %v3769
        %v3866 = vunpack.c.l.b16 %v3770
        %v3867 = vunpack.c.l.b16 %v3771
        %v3868 = vunpack.c.l.b16 %v3772
        %v3869 = vunpack.c.l.b16 %v3773
        %v3870 = vunpack.c.l.b16 %v3774
        %v3871 = vunpack.c.l.b16 %v3775
        %v3872 = vunpack.c.l.b16 %v3776
        %v3873 = vunpack.c.l.b16 %v3777
        %v3874 = vunpack.c.l.b16 %v3778
        %v3875 = vunpack.c.l.b16 %v3779
        %v3876 = vunpack.c.l.b16 %v3780
        %v3877 = vunpack.c.l.b16 %v3781
        %v3878 = vunpack.c.l.b16 %v3782
        %v3879 = vunpack.c.l.b16 %v3783
        %v3880 = vpack.c.b16 %v3849, %v3848
        %v3881 = vpack.c.b16 %v3851, %v3850
        %v3882 = vpack.c.b16 %v3853, %v3852
        %v3883 = vpack.c.b16 %v3855, %v3854
        %v3884 = vpack.c.b16 %v3857, %v3856
        %v3885 = vpack.c.b16 %v3859, %v3858
        %v3886 = vpack.c.b16 %v3861, %v3860
        %v3887 = vpack.c.b16 %v3863, %v3862
        %v3888 = vpack.c.b16 %v3865, %v3864
        %v3889 = vpack.c.b16 %v3867, %v3866
        %v3890 = vpack.c.b16 %v3869, %v3868
        %v3891 = vpack.c.b16 %v3871, %v3870
        %v3892 = vpack.c.b16 %v3873, %v3872
        %v3893 = vpack.c.b16 %v3875, %v3874
        %v3894 = vpack.c.b16 %v3877, %v3876
        %v3895 = vpack.c.b16 %v3879, %v3878
        %3912 = vmatprep.subr.bf16.mxu0 0
        %3913 = vmatpush1.bf16.msra.mxu0 %v3887
        %3914 = vmatprep.subr.bf16.mxu0 0
        %3915 = vmatpush1.bf16.msra.mxu0 %v3886
        %3916 = vmatprep.subr.bf16.mxu0 0
        %3917 = vmatpush1.bf16.msra.mxu0 %v3885
        %3918 = vmatprep.subr.bf16.mxu0 0
        %3919 = vmatpush1.bf16.msra.mxu0 %v3884
        %3920 = vmatprep.subr.bf16.mxu0 0
        %3921 = vmatpush1.bf16.msra.mxu0 %v3883
        %3922 = vmatprep.subr.bf16.mxu0 0
        %3923 = vmatpush1.bf16.msra.mxu0 %v3882
        %3924 = vmatprep.subr.bf16.mxu0 0
        %3925 = vmatpush1.bf16.msra.mxu0 %v3881
        %3926 = vmatprep.subr.bf16.mxu0 0
        %3927 = vmatpush1.bf16.msra.mxu0 %v3880
        %3928 = vmatprep.subr.bf16.mxu0 0
        %3929 = vmatpush2.bf16.msra.mxu0 %v3895
        %3930 = vmatprep.subr.bf16.mxu0 0
        %3931 = vmatpush2.bf16.msra.mxu0 %v3894
        %3932 = vmatprep.subr.bf16.mxu0 0
        %3933 = vmatpush2.bf16.msra.mxu0 %v3893
        %3934 = vmatprep.subr.bf16.mxu0 0
        %3935 = vmatpush2.bf16.msra.mxu0 %v3892
        %3936 = vmatprep.subr.bf16.mxu0 0
        %3937 = vmatpush2.bf16.msra.mxu0 %v3891
        %3938 = vmatprep.subr.bf16.mxu0 0
        %3939 = vmatpush2.bf16.msra.mxu0 %v3890
        %3940 = vmatprep.subr.bf16.mxu0 0
        %3941 = vmatpush2.bf16.msra.mxu0 %v3889
        %3942 = vmatprep.subr.bf16.mxu0 0
        %3943 = vmatpush2.bf16.msra.mxu0 %v3888
        %3944 = vmatprep.mubr.bf16.mxu0 %v3721
        %3945 = vmatmul.mubr.bf16.gmra.mxu0 %v3720
        %v3946 = vpop.f32.mrf.mxu0
        %v3947 = vadd.f32 0.0, %v3946
        %v3948 = vpop.f32.mrf.mxu0
        %v3949 = vpop.f32.mrf.mxu0
        %v3950 = vadd.f32 0.0, %v3949
        %v3951 = vpop.f32.mrf.mxu0
        %3952 = vmatprep.mubr.bf16.mxu0 %v3723
        %3953 = vmatmul.mubr.bf16.gmra.mxu0 %v3722
        %v3954 = vpop.f32.mrf.mxu0
        %v3955 = vadd.f32 0.0, %v3954
        %v3956 = vpop.f32.mrf.mxu0
        %v3957 = vpop.f32.mrf.mxu0
        %v3958 = vadd.f32 0.0, %v3957
        %v3959 = vpop.f32.mrf.mxu0
        %3960 = vmatprep.mubr.bf16.mxu0 %v3725
        %3961 = vmatmul.mubr.bf16.gmra.mxu0 %v3724
        %v3962 = vpop.f32.mrf.mxu0
        %v3963 = vadd.f32 0.0, %v3962
        %v3964 = vpop.f32.mrf.mxu0
        %v3965 = vpop.f32.mrf.mxu0
        %v3966 = vadd.f32 0.0, %v3965
        %v3967 = vpop.f32.mrf.mxu0
        %3968 = vmatprep.mubr.bf16.mxu0 %v3727
        %3969 = vmatmul.mubr.bf16.gmra.mxu0 %v3726
        %v3970 = vpop.f32.mrf.mxu0
        %v3971 = vadd.f32 0.0, %v3970
        %v3972 = vpop.f32.mrf.mxu0
        %v3973 = vpop.f32.mrf.mxu0
        %v3974 = vadd.f32 0.0, %v3973
        %v3975 = vpop.f32.mrf.mxu0
        %3976 = vmatprep.mubr.bf16.mxu0 %v3729
        %3977 = vmatmul.mubr.bf16.gmra.mxu0 %v3728
        %v3978 = vpop.f32.mrf.mxu0
        %v3979 = vadd.f32 0.0, %v3978
        %v3980 = vpop.f32.mrf.mxu0
        %v3981 = vpop.f32.mrf.mxu0
        %v3982 = vadd.f32 0.0, %v3981
        %v3983 = vpop.f32.mrf.mxu0
        %3984 = vmatprep.mubr.bf16.mxu0 %v3731
        %3985 = vmatmul.mubr.bf16.gmra.mxu0 %v3730
        %v3986 = vpop.f32.mrf.mxu0
        %v3987 = vadd.f32 0.0, %v3986
        %v3988 = vpop.f32.mrf.mxu0
        %v3989 = vpop.f32.mrf.mxu0
        %v3990 = vadd.f32 0.0, %v3989
        %v3991 = vpop.f32.mrf.mxu0
        %3992 = vmatprep.mubr.bf16.mxu0 %v3733
        %3993 = vmatmul.mubr.bf16.gmra.mxu0 %v3732
        %v3994 = vpop.f32.mrf.mxu0
        %v3995 = vadd.f32 0.0, %v3994
        %v3996 = vpop.f32.mrf.mxu0
        %v3997 = vpop.f32.mrf.mxu0
        %v3998 = vadd.f32 0.0, %v3997
        %v3999 = vpop.f32.mrf.mxu0
        %4000 = vmatprep.mubr.bf16.mxu0 %v3735
        %4001 = vmatmul.mubr.bf16.gmra.mxu0 %v3734
        %v4002 = vpop.f32.mrf.mxu0
        %v4003 = vadd.f32 0.0, %v4002
        %v4004 = vpop.f32.mrf.mxu0
        %v4005 = vpop.f32.mrf.mxu0
        %v4006 = vadd.f32 0.0, %v4005
        %v4007 = vpop.f32.mrf.mxu0
        %4008 = vdwg.mxu0
        %v4041 = vunpack.c.l.b16 %v3784
        %v4042 = vunpack.c.l.b16 %v3785
        %v4043 = vunpack.c.l.b16 %v3786
        %v4044 = vunpack.c.l.b16 %v3787
        %v4045 = vunpack.c.l.b16 %v3788
        %v4046 = vunpack.c.l.b16 %v3789
        %v4047 = vunpack.c.l.b16 %v3790
        %v4048 = vunpack.c.l.b16 %v3791
        %v4049 = vunpack.c.l.b16 %v3792
        %v4050 = vunpack.c.l.b16 %v3793
        %v4051 = vunpack.c.l.b16 %v3794
        %v4052 = vunpack.c.l.b16 %v3795
        %v4053 = vunpack.c.l.b16 %v3796
        %v4054 = vunpack.c.l.b16 %v3797
        %v4055 = vunpack.c.l.b16 %v3798
        %v4056 = vunpack.c.l.b16 %v3799
        %v4057 = vunpack.c.l.b16 %v3800
        %v4058 = vunpack.c.l.b16 %v3801
        %v4059 = vunpack.c.l.b16 %v3802
        %v4060 = vunpack.c.l.b16 %v3803
        %v4061 = vunpack.c.l.b16 %v3804
        %v4062 = vunpack.c.l.b16 %v3805
        %v4063 = vunpack.c.l.b16 %v3806
        %v4064 = vunpack.c.l.b16 %v3807
        %v4065 = vunpack.c.l.b16 %v3808
        %v4066 = vunpack.c.l.b16 %v3809
        %v4067 = vunpack.c.l.b16 %v3810
        %v4068 = vunpack.c.l.b16 %v3811
        %v4069 = vunpack.c.l.b16 %v3812
        %v4070 = vunpack.c.l.b16 %v3813
        %v4071 = vunpack.c.l.b16 %v3814
        %v4072 = vunpack.c.l.b16 %v3815
        %v4073 = vpack.c.b16 %v4042, %v4041
        %v4074 = vpack.c.b16 %v4044, %v4043
        %v4075 = vpack.c.b16 %v4046, %v4045
        %v4076 = vpack.c.b16 %v4048, %v4047
        %v4077 = vpack.c.b16 %v4050, %v4049
        %v4078 = vpack.c.b16 %v4052, %v4051
        %v4079 = vpack.c.b16 %v4054, %v4053
        %v4080 = vpack.c.b16 %v4056, %v4055
        %v4081 = vpack.c.b16 %v4058, %v4057
        %v4082 = vpack.c.b16 %v4060, %v4059
        %v4083 = vpack.c.b16 %v4062, %v4061
        %v4084 = vpack.c.b16 %v4064, %v4063
        %v4085 = vpack.c.b16 %v4066, %v4065
        %v4086 = vpack.c.b16 %v4068, %v4067
        %v4087 = vpack.c.b16 %v4070, %v4069
        %v4088 = vpack.c.b16 %v4072, %v4071
        %4105 = vmatprep.subr.bf16.mxu0 0
        %4106 = vmatpush1.bf16.msra.mxu0 %v4080
        %4107 = vmatprep.subr.bf16.mxu0 0
        %4108 = vmatpush1.bf16.msra.mxu0 %v4079
        %4109 = vmatprep.subr.bf16.mxu0 0
        %4110 = vmatpush1.bf16.msra.mxu0 %v4078
        %4111 = vmatprep.subr.bf16.mxu0 0
        %4112 = vmatpush1.bf16.msra.mxu0 %v4077
        %4113 = vmatprep.subr.bf16.mxu0 0
        %4114 = vmatpush1.bf16.msra.mxu0 %v4076
        %4115 = vmatprep.subr.bf16.mxu0 0
        %4116 = vmatpush1.bf16.msra.mxu0 %v4075
        %4117 = vmatprep.subr.bf16.mxu0 0
        %4118 = vmatpush1.bf16.msra.mxu0 %v4074
        %4119 = vmatprep.subr.bf16.mxu0 0
        %4120 = vmatpush1.bf16.msra.mxu0 %v4073
        %4121 = vmatprep.subr.bf16.mxu0 0
        %4122 = vmatpush2.bf16.msra.mxu0 %v4088
        %4123 = vmatprep.subr.bf16.mxu0 0
        %4124 = vmatpush2.bf16.msra.mxu0 %v4087
        %4125 = vmatprep.subr.bf16.mxu0 0
        %4126 = vmatpush2.bf16.msra.mxu0 %v4086
        %4127 = vmatprep.subr.bf16.mxu0 0
        %4128 = vmatpush2.bf16.msra.mxu0 %v4085
        %4129 = vmatprep.subr.bf16.mxu0 0
        %4130 = vmatpush2.bf16.msra.mxu0 %v4084
        %4131 = vmatprep.subr.bf16.mxu0 0
        %4132 = vmatpush2.bf16.msra.mxu0 %v4083
        %4133 = vmatprep.subr.bf16.mxu0 0
        %4134 = vmatpush2.bf16.msra.mxu0 %v4082
        %4135 = vmatprep.subr.bf16.mxu0 0
        %4136 = vmatpush2.bf16.msra.mxu0 %v4081
        %4137 = vmatprep.mubr.bf16.mxu0 %v3737
        %4138 = vmatmul.mubr.bf16.gmra.mxu0 %v3736
        %v4139 = vpop.f32.mrf.mxu0
        %v4140 = vadd.f32 0.0, %v4139
        %v4141 = vpop.f32.mrf.mxu0
        %v4142 = vpop.f32.mrf.mxu0
        %v4143 = vadd.f32 0.0, %v4142
        %v4144 = vpop.f32.mrf.mxu0
        %4145 = vmatprep.mubr.bf16.mxu0 %v3739
        %4146 = vmatmul.mubr.bf16.gmra.mxu0 %v3738
        %v4147 = vpop.f32.mrf.mxu0
        %v4148 = vadd.f32 0.0, %v4147
        %v4149 = vpop.f32.mrf.mxu0
        %v4150 = vpop.f32.mrf.mxu0
        %v4151 = vadd.f32 0.0, %v4150
        %v4152 = vpop.f32.mrf.mxu0
        %4153 = vmatprep.mubr.bf16.mxu0 %v3741
        %4154 = vmatmul.mubr.bf16.gmra.mxu0 %v3740
        %v4155 = vpop.f32.mrf.mxu0
        %v4156 = vadd.f32 0.0, %v4155
        %v4157 = vpop.f32.mrf.mxu0
        %v4158 = vpop.f32.mrf.mxu0
        %v4159 = vadd.f32 0.0, %v4158
        %v4160 = vpop.f32.mrf.mxu0
        %4161 = vmatprep.mubr.bf16.mxu0 %v3743
        %4162 = vmatmul.mubr.bf16.gmra.mxu0 %v3742
        %v4163 = vpop.f32.mrf.mxu0
        %v4164 = vadd.f32 0.0, %v4163
        %v4165 = vpop.f32.mrf.mxu0
        %v4166 = vpop.f32.mrf.mxu0
        %v4167 = vadd.f32 0.0, %v4166
        %v4168 = vpop.f32.mrf.mxu0
        %4169 = vmatprep.mubr.bf16.mxu0 %v3745
        %4170 = vmatmul.mubr.bf16.gmra.mxu0 %v3744
        %v4171 = vpop.f32.mrf.mxu0
        %v4172 = vadd.f32 0.0, %v4171
        %v4173 = vpop.f32.mrf.mxu0
        %v4174 = vpop.f32.mrf.mxu0
        %v4175 = vadd.f32 0.0, %v4174
        %v4176 = vpop.f32.mrf.mxu0
        %4177 = vmatprep.mubr.bf16.mxu0 %v3747
        %4178 = vmatmul.mubr.bf16.gmra.mxu0 %v3746
        %v4179 = vpop.f32.mrf.mxu0
        %v4180 = vadd.f32 0.0, %v4179
        %v4181 = vpop.f32.mrf.mxu0
        %v4182 = vpop.f32.mrf.mxu0
        %v4183 = vadd.f32 0.0, %v4182
        %v4184 = vpop.f32.mrf.mxu0
        %4185 = vmatprep.mubr.bf16.mxu0 %v3749
        %4186 = vmatmul.mubr.bf16.gmra.mxu0 %v3748
        %v4187 = vpop.f32.mrf.mxu0
        %v4188 = vadd.f32 0.0, %v4187
        %v4189 = vpop.f32.mrf.mxu0
        %v4190 = vpop.f32.mrf.mxu0
        %v4191 = vadd.f32 0.0, %v4190
        %v4192 = vpop.f32.mrf.mxu0
        %4193 = vmatprep.mubr.bf16.mxu0 %v3751
        %4194 = vmatmul.mubr.bf16.gmra.mxu0 %v3750
        %v4195 = vpop.f32.mrf.mxu0
        %v4196 = vadd.f32 0.0, %v4195
        %v4197 = vpop.f32.mrf.mxu0
        %v4198 = vpop.f32.mrf.mxu0
        %v4199 = vadd.f32 0.0, %v4198
        %v4200 = vpop.f32.mrf.mxu0
        %4201 = vdwg.mxu0
        %v4202 = vpack.c.bf16 %v3950, %v3947
        %v4203 = vpack.c.bf16 %v3958, %v3955
        %v4204 = vpack.c.bf16 %v3966, %v3963
        %v4205 = vpack.c.bf16 %v3974, %v3971
        %v4206 = vpack.c.bf16 %v3982, %v3979
        %v4207 = vpack.c.bf16 %v3990, %v3987
        %v4208 = vpack.c.bf16 %v3998, %v3995
        %v4209 = vpack.c.bf16 %v4006, %v4003
        %v4218 = vunpack.c.l.b16 %v4202
        %v4219 = vunpack.c.h.b16 %v4202
        %v4220 = vunpack.c.l.b16 %v4203
        %v4221 = vunpack.c.h.b16 %v4203
        %v4222 = vunpack.c.l.b16 %v4204
        %v4223 = vunpack.c.h.b16 %v4204
        %v4224 = vunpack.c.l.b16 %v4205
        %v4225 = vunpack.c.h.b16 %v4205
        %v4226 = vunpack.c.l.b16 %v4206
        %v4227 = vunpack.c.h.b16 %v4206
        %v4228 = vunpack.c.l.b16 %v4207
        %v4229 = vunpack.c.h.b16 %v4207
        %v4230 = vunpack.c.l.b16 %v4208
        %v4231 = vunpack.c.h.b16 %v4208
        %v4232 = vunpack.c.l.b16 %v4209
        %v4233 = vunpack.c.h.b16 %v4209
        %v4234 = vpack.c.b16 %v4218, %v4218
        %v4235 = vpack.c.b16 %v4219, %v4219
        %v4236 = vpack.c.b16 %v4220, %v4220
        %v4237 = vpack.c.b16 %v4221, %v4221
        %v4238 = vpack.c.b16 %v4222, %v4222
        %v4239 = vpack.c.b16 %v4223, %v4223
        %v4240 = vpack.c.b16 %v4224, %v4224
        %v4241 = vpack.c.b16 %v4225, %v4225
        %v4242 = vpack.c.b16 %v4226, %v4226
        %v4243 = vpack.c.b16 %v4227, %v4227
        %v4244 = vpack.c.b16 %v4228, %v4228
        %v4245 = vpack.c.b16 %v4229, %v4229
        %v4246 = vpack.c.b16 %v4230, %v4230
        %v4247 = vpack.c.b16 %v4231, %v4231
        %v4248 = vpack.c.b16 %v4232, %v4232
        %v4249 = vpack.c.b16 %v4233, %v4233
        %4266 = vst [vmem:[#allocation5] sm:$0xf] %v4234
        %4267 = vst [vmem:[#allocation5 + $0x8] sm:$0xf] %v4235
        %4268 = vst [vmem:[#allocation5 + $0x10] sm:$0xf] %v4236
        %4269 = vst [vmem:[#allocation5 + $0x18] sm:$0xf] %v4237
        %4270 = vst [vmem:[#allocation5 + $0x20] sm:$0xf] %v4238
        %4271 = vst [vmem:[#allocation5 + $0x28] sm:$0xf] %v4239
        %4272 = vst [vmem:[#allocation5 + $0x30] sm:$0xf] %v4240
        %4273 = vst [vmem:[#allocation5 + $0x38] sm:$0xf] %v4241
        %4274 = vst [vmem:[#allocation5 + $0x40] sm:$0xf] %v4242
        %4275 = vst [vmem:[#allocation5 + $0x48] sm:$0xf] %v4243
        %4276 = vst [vmem:[#allocation5 + $0x50] sm:$0xf] %v4244
        %4277 = vst [vmem:[#allocation5 + $0x58] sm:$0xf] %v4245
        %4278 = vst [vmem:[#allocation5 + $0x60] sm:$0xf] %v4246
        %4279 = vst [vmem:[#allocation5 + $0x68] sm:$0xf] %v4247
        %4280 = vst [vmem:[#allocation5 + $0x70] sm:$0xf] %v4248
        %4281 = vst [vmem:[#allocation5 + $0x78] sm:$0xf] %v4249
        %v4282 = vpack.c.bf16 %v4143, %v4140
        %v4283 = vpack.c.bf16 %v4151, %v4148
        %v4284 = vpack.c.bf16 %v4159, %v4156
        %v4285 = vpack.c.bf16 %v4167, %v4164
        %v4286 = vpack.c.bf16 %v4175, %v4172
        %v4287 = vpack.c.bf16 %v4183, %v4180
        %v4288 = vpack.c.bf16 %v4191, %v4188
        %v4289 = vpack.c.bf16 %v4199, %v4196
        %v4298 = vunpack.c.l.b16 %v4282
        %v4299 = vunpack.c.h.b16 %v4282
        %v4300 = vunpack.c.l.b16 %v4283
        %v4301 = vunpack.c.h.b16 %v4283
        %v4302 = vunpack.c.l.b16 %v4284
        %v4303 = vunpack.c.h.b16 %v4284
        %v4304 = vunpack.c.l.b16 %v4285
        %v4305 = vunpack.c.h.b16 %v4285
        %v4306 = vunpack.c.l.b16 %v4286
        %v4307 = vunpack.c.h.b16 %v4286
        %v4308 = vunpack.c.l.b16 %v4287
        %v4309 = vunpack.c.h.b16 %v4287
        %v4310 = vunpack.c.l.b16 %v4288
        %v4311 = vunpack.c.h.b16 %v4288
        %v4312 = vunpack.c.l.b16 %v4289
        %v4313 = vunpack.c.h.b16 %v4289
        %v4314 = vpack.c.b16 %v4298, %v4298
        %v4315 = vpack.c.b16 %v4299, %v4299
        %v4316 = vpack.c.b16 %v4300, %v4300
        %v4317 = vpack.c.b16 %v4301, %v4301
        %v4318 = vpack.c.b16 %v4302, %v4302
        %v4319 = vpack.c.b16 %v4303, %v4303
        %v4320 = vpack.c.b16 %v4304, %v4304
        %v4321 = vpack.c.b16 %v4305, %v4305
        %v4322 = vpack.c.b16 %v4306, %v4306
        %v4323 = vpack.c.b16 %v4307, %v4307
        %v4324 = vpack.c.b16 %v4308, %v4308
        %v4325 = vpack.c.b16 %v4309, %v4309
        %v4326 = vpack.c.b16 %v4310, %v4310
        %v4327 = vpack.c.b16 %v4311, %v4311
        %v4328 = vpack.c.b16 %v4312, %v4312
        %v4329 = vpack.c.b16 %v4313, %v4313
        %4346 = vst [vmem:[#allocation5 + $0x4] sm:$0xf] %v4314
        %4347 = vst [vmem:[#allocation5 + $0xc] sm:$0xf] %v4315
        %4348 = vst [vmem:[#allocation5 + $0x14] sm:$0xf] %v4316
        %4349 = vst [vmem:[#allocation5 + $0x1c] sm:$0xf] %v4317
        %4350 = vst [vmem:[#allocation5 + $0x24] sm:$0xf] %v4318
        %4351 = vst [vmem:[#allocation5 + $0x2c] sm:$0xf] %v4319
        %4352 = vst [vmem:[#allocation5 + $0x34] sm:$0xf] %v4320
        %4353 = vst [vmem:[#allocation5 + $0x3c] sm:$0xf] %v4321
        %4354 = vst [vmem:[#allocation5 + $0x44] sm:$0xf] %v4322
        %4355 = vst [vmem:[#allocation5 + $0x4c] sm:$0xf] %v4323
        %4356 = vst [vmem:[#allocation5 + $0x54] sm:$0xf] %v4324
        %4357 = vst [vmem:[#allocation5 + $0x5c] sm:$0xf] %v4325
        %4358 = vst [vmem:[#allocation5 + $0x64] sm:$0xf] %v4326
        %4359 = vst [vmem:[#allocation5 + $0x6c] sm:$0xf] %v4327
        %4360 = vst [vmem:[#allocation5 + $0x74] sm:$0xf] %v4328
        %4361 = vst [vmem:[#allocation5 + $0x7c] sm:$0xf] %v4329
        %v4362 = vld [vmem:[#allocation5] sm:$0xff]
        %v4363 = vld [vmem:[#allocation5 + $0x8] sm:$0xff]
        %v4364 = vld [vmem:[#allocation5 + $0x10] sm:$0xff]
        %v4365 = vld [vmem:[#allocation5 + $0x18] sm:$0xff]
        %v4366 = vld [vmem:[#allocation5 + $0x20] sm:$0xff]
        %v4367 = vld [vmem:[#allocation5 + $0x28] sm:$0xff]
        %v4368 = vld [vmem:[#allocation5 + $0x30] sm:$0xff]
        %v4369 = vld [vmem:[#allocation5 + $0x38] sm:$0xff]
        %v4370 = vld [vmem:[#allocation5 + $0x40] sm:$0xff]
        %v4371 = vld [vmem:[#allocation5 + $0x48] sm:$0xff]
        %v4372 = vld [vmem:[#allocation5 + $0x50] sm:$0xff]
        %v4373 = vld [vmem:[#allocation5 + $0x58] sm:$0xff]
        %v4374 = vld [vmem:[#allocation5 + $0x60] sm:$0xff]
        %v4375 = vld [vmem:[#allocation5 + $0x68] sm:$0xff]
        %v4376 = vld [vmem:[#allocation5 + $0x70] sm:$0xff]
        %v4377 = vld [vmem:[#allocation5 + $0x78] sm:$0xff]
        %v4378 = vld [vmem:[#allocation15] sm:$0xff]
        %v4379 = vld [vmem:[#allocation15 + $0x8] sm:$0xff]
        %v4380 = vld [vmem:[#allocation15 + $0x10] sm:$0xff]
        %v4381 = vld [vmem:[#allocation15 + $0x18] sm:$0xff]
        %v4382 = vld [vmem:[#allocation15 + $0x20] sm:$0xff]
        %v4383 = vld [vmem:[#allocation15 + $0x28] sm:$0xff]
        %v4384 = vld [vmem:[#allocation15 + $0x30] sm:$0xff]
        %v4385 = vld [vmem:[#allocation15 + $0x38] sm:$0xff]
        %v4386 = vld [vmem:[#allocation15 + $0x40] sm:$0xff]
        %v4387 = vld [vmem:[#allocation15 + $0x48] sm:$0xff]
        %v4388 = vld [vmem:[#allocation15 + $0x50] sm:$0xff]
        %v4389 = vld [vmem:[#allocation15 + $0x58] sm:$0xff]
        %v4390 = vld [vmem:[#allocation15 + $0x60] sm:$0xff]
        %v4391 = vld [vmem:[#allocation15 + $0x68] sm:$0xff]
        %v4392 = vld [vmem:[#allocation15 + $0x70] sm:$0xff]
        %v4393 = vld [vmem:[#allocation15 + $0x78] sm:$0xff]
        %v4394 = vld [vmem:[#allocation15 + $0x80] sm:$0xff]
        %v4395 = vld [vmem:[#allocation15 + $0x88] sm:$0xff]
        %v4396 = vld [vmem:[#allocation15 + $0x90] sm:$0xff]
        %v4397 = vld [vmem:[#allocation15 + $0x98] sm:$0xff]
        %v4398 = vld [vmem:[#allocation15 + $0xa0] sm:$0xff]
        %v4399 = vld [vmem:[#allocation15 + $0xa8] sm:$0xff]
        %v4400 = vld [vmem:[#allocation15 + $0xb0] sm:$0xff]
        %v4401 = vld [vmem:[#allocation15 + $0xb8] sm:$0xff]
        %v4402 = vld [vmem:[#allocation15 + $0xc0] sm:$0xff]
        %v4403 = vld [vmem:[#allocation15 + $0xc8] sm:$0xff]
        %v4404 = vld [vmem:[#allocation15 + $0xd0] sm:$0xff]
        %v4405 = vld [vmem:[#allocation15 + $0xd8] sm:$0xff]
        %v4406 = vld [vmem:[#allocation15 + $0xe0] sm:$0xff]
        %v4407 = vld [vmem:[#allocation15 + $0xe8] sm:$0xff]
        %v4408 = vld [vmem:[#allocation15 + $0xf0] sm:$0xff]
        %v4409 = vld [vmem:[#allocation15 + $0xf8] sm:$0xff]
        %v4410 = vld [vmem:[%s6] sm:$0x3]
        %v4412 = vlaneseq
        %v4413 = vshrl.u32 %v4412, 7
        %v4414 = vsub.s32 0, %v4413
        %v4415 = vrot.slane %v4410, %v4414
        %v4416 = vlaneseq
        %v4417 = vshrl.u32 %v4416, 7
        %v4418 = vsub.s32 1, %v4417
        %v4419 = vrot.slane %v4410, %v4418
        %v4438 = vunpack.c.l.b16 %v4362
        %v4439 = vunpack.c.h.b16 %v4362
        %v4440 = vunpack.c.l.b16 %v4363
        %v4441 = vunpack.c.h.b16 %v4363
        %v4442 = vunpack.c.l.b16 %v4364
        %v4443 = vunpack.c.h.b16 %v4364
        %v4444 = vunpack.c.l.b16 %v4365
        %v4445 = vunpack.c.h.b16 %v4365
        %v4446 = vunpack.c.l.b16 %v4366
        %v4447 = vunpack.c.h.b16 %v4366
        %v4448 = vunpack.c.l.b16 %v4367
        %v4449 = vunpack.c.h.b16 %v4367
        %v4450 = vunpack.c.l.b16 %v4368
        %v4451 = vunpack.c.h.b16 %v4368
        %v4452 = vunpack.c.l.b16 %v4369
        %v4453 = vunpack.c.h.b16 %v4369
        %v4454 = vunpack.c.l.b16 %v4370
        %v4455 = vunpack.c.h.b16 %v4370
        %v4456 = vunpack.c.l.b16 %v4371
        %v4457 = vunpack.c.h.b16 %v4371
        %v4458 = vunpack.c.l.b16 %v4372
        %v4459 = vunpack.c.h.b16 %v4372
        %v4460 = vunpack.c.l.b16 %v4373
        %v4461 = vunpack.c.h.b16 %v4373
        %v4462 = vunpack.c.l.b16 %v4374
        %v4463 = vunpack.c.h.b16 %v4374
        %v4464 = vunpack.c.l.b16 %v4375
        %v4465 = vunpack.c.h.b16 %v4375
        %v4466 = vunpack.c.l.b16 %v4376
        %v4467 = vunpack.c.h.b16 %v4376
        %v4468 = vunpack.c.l.b16 %v4377
        %v4469 = vunpack.c.h.b16 %v4377
        %v4470 = vpack.c.b16 %v4440, %v4438
        %v4471 = vpack.c.b16 %v4441, %v4439
        %v4472 = vpack.c.b16 %v4444, %v4442
        %v4473 = vpack.c.b16 %v4445, %v4443
        %v4474 = vpack.c.b16 %v4448, %v4446
        %v4475 = vpack.c.b16 %v4449, %v4447
        %v4476 = vpack.c.b16 %v4452, %v4450
        %v4477 = vpack.c.b16 %v4453, %v4451
        %v4478 = vpack.c.b16 %v4456, %v4454
        %v4479 = vpack.c.b16 %v4457, %v4455
        %v4480 = vpack.c.b16 %v4460, %v4458
        %v4481 = vpack.c.b16 %v4461, %v4459
        %v4482 = vpack.c.b16 %v4464, %v4462
        %v4483 = vpack.c.b16 %v4465, %v4463
        %v4484 = vpack.c.b16 %v4468, %v4466
        %v4485 = vpack.c.b16 %v4469, %v4467
        %v4534 = vunpack.c.l.b16 %v4378
        %v4535 = vunpack.c.h.b16 %v4378
        %v4536 = vunpack.c.l.b16 %v4379
        %v4537 = vunpack.c.h.b16 %v4379
        %v4538 = vunpack.c.l.b16 %v4380
        %v4539 = vunpack.c.h.b16 %v4380
        %v4540 = vunpack.c.l.b16 %v4381
        %v4541 = vunpack.c.h.b16 %v4381
        %v4542 = vunpack.c.l.b16 %v4382
        %v4543 = vunpack.c.h.b16 %v4382
        %v4544 = vunpack.c.l.b16 %v4383
        %v4545 = vunpack.c.h.b16 %v4383
        %v4546 = vunpack.c.l.b16 %v4384
        %v4547 = vunpack.c.h.b16 %v4384
        %v4548 = vunpack.c.l.b16 %v4385
        %v4549 = vunpack.c.h.b16 %v4385
        %v4550 = vunpack.c.l.b16 %v4386
        %v4551 = vunpack.c.h.b16 %v4386
        %v4552 = vunpack.c.l.b16 %v4387
        %v4553 = vunpack.c.h.b16 %v4387
        %v4554 = vunpack.c.l.b16 %v4388
        %v4555 = vunpack.c.h.b16 %v4388
        %v4556 = vunpack.c.l.b16 %v4389
        %v4557 = vunpack.c.h.b16 %v4389
        %v4558 = vunpack.c.l.b16 %v4390
        %v4559 = vunpack.c.h.b16 %v4390
        %v4560 = vunpack.c.l.b16 %v4391
        %v4561 = vunpack.c.h.b16 %v4391
        %v4562 = vunpack.c.l.b16 %v4392
        %v4563 = vunpack.c.h.b16 %v4392
        %v4564 = vunpack.c.l.b16 %v4393
        %v4565 = vunpack.c.h.b16 %v4393
        %v4566 = vunpack.c.l.b16 %v4394
        %v4567 = vunpack.c.h.b16 %v4394
        %v4568 = vunpack.c.l.b16 %v4395
        %v4569 = vunpack.c.h.b16 %v4395
        %v4570 = vunpack.c.l.b16 %v4396
        %v4571 = vunpack.c.h.b16 %v4396
        %v4572 = vunpack.c.l.b16 %v4397
        %v4573 = vunpack.c.h.b16 %v4397
        %v4574 = vunpack.c.l.b16 %v4398
        %v4575 = vunpack.c.h.b16 %v4398
        %v4576 = vunpack.c.l.b16 %v4399
        %v4577 = vunpack.c.h.b16 %v4399
        %v4578 = vunpack.c.l.b16 %v4400
        %v4579 = vunpack.c.h.b16 %v4400
        %v4580 = vunpack.c.l.b16 %v4401
        %v4581 = vunpack.c.h.b16 %v4401
        %v4582 = vunpack.c.l.b16 %v4402
        %v4583 = vunpack.c.h.b16 %v4402
        %v4584 = vunpack.c.l.b16 %v4403
        %v4585 = vunpack.c.h.b16 %v4403
        %v4586 = vunpack.c.l.b16 %v4404
        %v4587 = vunpack.c.h.b16 %v4404
        %v4588 = vunpack.c.l.b16 %v4405
        %v4589 = vunpack.c.h.b16 %v4405
        %v4590 = vunpack.c.l.b16 %v4406
        %v4591 = vunpack.c.h.b16 %v4406
        %v4592 = vunpack.c.l.b16 %v4407
        %v4593 = vunpack.c.h.b16 %v4407
        %v4594 = vunpack.c.l.b16 %v4408
        %v4595 = vunpack.c.h.b16 %v4408
        %v4596 = vunpack.c.l.b16 %v4409
        %v4597 = vunpack.c.h.b16 %v4409
        %v4598 = vpack.c.b16 %v4536, %v4534
        %v4599 = vpack.c.b16 %v4537, %v4535
        %v4600 = vpack.c.b16 %v4540, %v4538
        %v4601 = vpack.c.b16 %v4541, %v4539
        %v4602 = vpack.c.b16 %v4544, %v4542
        %v4603 = vpack.c.b16 %v4545, %v4543
        %v4604 = vpack.c.b16 %v4548, %v4546
        %v4605 = vpack.c.b16 %v4549, %v4547
        %v4606 = vpack.c.b16 %v4552, %v4550
        %v4607 = vpack.c.b16 %v4553, %v4551
        %v4608 = vpack.c.b16 %v4556, %v4554
        %v4609 = vpack.c.b16 %v4557, %v4555
        %v4610 = vpack.c.b16 %v4560, %v4558
        %v4611 = vpack.c.b16 %v4561, %v4559
        %v4612 = vpack.c.b16 %v4564, %v4562
        %v4613 = vpack.c.b16 %v4565, %v4563
        %v4614 = vpack.c.b16 %v4568, %v4566
        %v4615 = vpack.c.b16 %v4569, %v4567
        %v4616 = vpack.c.b16 %v4572, %v4570
        %v4617 = vpack.c.b16 %v4573, %v4571
        %v4618 = vpack.c.b16 %v4576, %v4574
        %v4619 = vpack.c.b16 %v4577, %v4575
        %v4620 = vpack.c.b16 %v4580, %v4578
        %v4621 = vpack.c.b16 %v4581, %v4579
        %v4622 = vpack.c.b16 %v4584, %v4582
        %v4623 = vpack.c.b16 %v4585, %v4583
        %v4624 = vpack.c.b16 %v4588, %v4586
        %v4625 = vpack.c.b16 %v4589, %v4587
        %v4626 = vpack.c.b16 %v4592, %v4590
        %v4627 = vpack.c.b16 %v4593, %v4591
        %v4628 = vpack.c.b16 %v4596, %v4594
        %v4629 = vpack.c.b16 %v4597, %v4595
        %4662 = vmatprep.subr.bf16.mxu0 %v4613
        %4663 = vmatpush1.bf16.msra.mxu0 %v4612
        %4664 = vmatprep.subr.bf16.mxu0 %v4611
        %4665 = vmatpush1.bf16.msra.mxu0 %v4610
        %4666 = vmatprep.subr.bf16.mxu0 %v4609
        %4667 = vmatpush1.bf16.msra.mxu0 %v4608
        %4668 = vmatprep.subr.bf16.mxu0 %v4607
        %4669 = vmatpush1.bf16.msra.mxu0 %v4606
        %4670 = vmatprep.subr.bf16.mxu0 %v4605
        %4671 = vmatpush1.bf16.msra.mxu0 %v4604
        %4672 = vmatprep.subr.bf16.mxu0 %v4603
        %4673 = vmatpush1.bf16.msra.mxu0 %v4602
        %4674 = vmatprep.subr.bf16.mxu0 %v4601
        %4675 = vmatpush1.bf16.msra.mxu0 %v4600
        %4676 = vmatprep.subr.bf16.mxu0 %v4599
        %4677 = vmatpush1.bf16.msra.mxu0 %v4598
        %4678 = vmatprep.subr.bf16.mxu0 %v4629
        %4679 = vmatpush2.bf16.msra.mxu0 %v4628
        %4680 = vmatprep.subr.bf16.mxu0 %v4627
        %4681 = vmatpush2.bf16.msra.mxu0 %v4626
        %4682 = vmatprep.subr.bf16.mxu0 %v4625
        %4683 = vmatpush2.bf16.msra.mxu0 %v4624
        %4684 = vmatprep.subr.bf16.mxu0 %v4623
        %4685 = vmatpush2.bf16.msra.mxu0 %v4622
        %4686 = vmatprep.subr.bf16.mxu0 %v4621
        %4687 = vmatpush2.bf16.msra.mxu0 %v4620
        %4688 = vmatprep.subr.bf16.mxu0 %v4619
        %4689 = vmatpush2.bf16.msra.mxu0 %v4618
        %4690 = vmatprep.subr.bf16.mxu0 %v4617
        %4691 = vmatpush2.bf16.msra.mxu0 %v4616
        %4692 = vmatprep.subr.bf16.mxu0 %v4615
        %4693 = vmatpush2.bf16.msra.mxu0 %v4614
        %4694 = vmatprep.mubr.bf16.mxu0 %v4471
        %4695 = vmatmul.mubr.bf16.gmra.mxu0 %v4470
        %v4696 = vpop.f32.mrf.mxu0
        %v4697 = vadd.f32 %v4415, %v4696
        %v4698 = vpop.f32.mrf.mxu0
        %v4699 = vadd.f32 %v4419, %v4698
        %v4700 = vpop.f32.mrf.mxu0
        %v4701 = vadd.f32 %v4415, %v4700
        %v4702 = vpop.f32.mrf.mxu0
        %v4703 = vadd.f32 %v4419, %v4702
        %4704 = vmatprep.mubr.bf16.mxu0 %v4473
        %4705 = vmatmul.mubr.bf16.gmra.mxu0 %v4472
        %v4706 = vpop.f32.mrf.mxu0
        %v4707 = vadd.f32 %v4415, %v4706
        %v4708 = vpop.f32.mrf.mxu0
        %v4709 = vadd.f32 %v4419, %v4708
        %v4710 = vpop.f32.mrf.mxu0
        %v4711 = vadd.f32 %v4415, %v4710
        %v4712 = vpop.f32.mrf.mxu0
        %v4713 = vadd.f32 %v4419, %v4712
        %4714 = vmatprep.mubr.bf16.mxu0 %v4475
        %4715 = vmatmul.mubr.bf16.gmra.mxu0 %v4474
        %v4716 = vpop.f32.mrf.mxu0
        %v4717 = vadd.f32 %v4415, %v4716
        %v4718 = vpop.f32.mrf.mxu0
        %v4719 = vadd.f32 %v4419, %v4718
        %v4720 = vpop.f32.mrf.mxu0
        %v4721 = vadd.f32 %v4415, %v4720
        %v4722 = vpop.f32.mrf.mxu0
        %v4723 = vadd.f32 %v4419, %v4722
        %4724 = vmatprep.mubr.bf16.mxu0 %v4477
        %4725 = vmatmul.mubr.bf16.gmra.mxu0 %v4476
        %v4726 = vpop.f32.mrf.mxu0
        %v4727 = vadd.f32 %v4415, %v4726
        %v4728 = vpop.f32.mrf.mxu0
        %v4729 = vadd.f32 %v4419, %v4728
        %v4730 = vpop.f32.mrf.mxu0
        %v4731 = vadd.f32 %v4415, %v4730
        %v4732 = vpop.f32.mrf.mxu0
        %v4733 = vadd.f32 %v4419, %v4732
        %4734 = vmatprep.mubr.bf16.mxu0 %v4479
        %4735 = vmatmul.mubr.bf16.gmra.mxu0 %v4478
        %v4736 = vpop.f32.mrf.mxu0
        %v4737 = vadd.f32 %v4415, %v4736
        %v4738 = vpop.f32.mrf.mxu0
        %v4739 = vadd.f32 %v4419, %v4738
        %v4740 = vpop.f32.mrf.mxu0
        %v4741 = vadd.f32 %v4415, %v4740
        %v4742 = vpop.f32.mrf.mxu0
        %v4743 = vadd.f32 %v4419, %v4742
        %4744 = vmatprep.mubr.bf16.mxu0 %v4481
        %4745 = vmatmul.mubr.bf16.gmra.mxu0 %v4480
        %v4746 = vpop.f32.mrf.mxu0
        %v4747 = vadd.f32 %v4415, %v4746
        %v4748 = vpop.f32.mrf.mxu0
        %v4749 = vadd.f32 %v4419, %v4748
        %v4750 = vpop.f32.mrf.mxu0
        %v4751 = vadd.f32 %v4415, %v4750
        %v4752 = vpop.f32.mrf.mxu0
        %v4753 = vadd.f32 %v4419, %v4752
        %4754 = vmatprep.mubr.bf16.mxu0 %v4483
        %4755 = vmatmul.mubr.bf16.gmra.mxu0 %v4482
        %v4756 = vpop.f32.mrf.mxu0
        %v4757 = vadd.f32 %v4415, %v4756
        %v4758 = vpop.f32.mrf.mxu0
        %v4759 = vadd.f32 %v4419, %v4758
        %v4760 = vpop.f32.mrf.mxu0
        %v4761 = vadd.f32 %v4415, %v4760
        %v4762 = vpop.f32.mrf.mxu0
        %v4763 = vadd.f32 %v4419, %v4762
        %4764 = vmatprep.mubr.bf16.mxu0 %v4485
        %4765 = vmatmul.mubr.bf16.gmra.mxu0 %v4484
        %v4766 = vpop.f32.mrf.mxu0
        %v4767 = vadd.f32 %v4415, %v4766
        %v4768 = vpop.f32.mrf.mxu0
        %v4769 = vadd.f32 %v4419, %v4768
        %v4770 = vpop.f32.mrf.mxu0
        %v4771 = vadd.f32 %v4415, %v4770
        %v4772 = vpop.f32.mrf.mxu0
        %v4773 = vadd.f32 %v4419, %v4772
        %4774 = vdwg.mxu0
        %v4775 = vadd.f32 %v4697, %v4699
        %4776 = vadd.xlane.f32.xlu0 %v4775
        %v4777 = vpop.xlane.xlu0 %4776
        %v4778 = vadd.f32 %v4701, %v4703
        %4779 = vadd.xlane.f32.xlu0 %v4778
        %v4780 = vpop.xlane.xlu0 %4779
        %v4781 = vadd.f32 %v4707, %v4709
        %4782 = vadd.xlane.f32.xlu0 %v4781
        %v4783 = vpop.xlane.xlu0 %4782
        %v4784 = vadd.f32 %v4711, %v4713
        %4785 = vadd.xlane.f32.xlu0 %v4784
        %v4786 = vpop.xlane.xlu0 %4785
        %v4787 = vadd.f32 %v4717, %v4719
        %4788 = vadd.xlane.f32.xlu0 %v4787
        %v4789 = vpop.xlane.xlu0 %4788
        %v4790 = vadd.f32 %v4721, %v4723
        %4791 = vadd.xlane.f32.xlu0 %v4790
        %v4792 = vpop.xlane.xlu0 %4791
        %v4793 = vadd.f32 %v4727, %v4729
        %4794 = vadd.xlane.f32.xlu0 %v4793
        %v4795 = vpop.xlane.xlu0 %4794
        %v4796 = vadd.f32 %v4731, %v4733
        %4797 = vadd.xlane.f32.xlu0 %v4796
        %v4798 = vpop.xlane.xlu0 %4797
        %v4799 = vadd.f32 %v4737, %v4739
        %4800 = vadd.xlane.f32.xlu0 %v4799
        %v4801 = vpop.xlane.xlu0 %4800
        %v4802 = vadd.f32 %v4741, %v4743
        %4803 = vadd.xlane.f32.xlu0 %v4802
        %v4804 = vpop.xlane.xlu0 %4803
        %v4805 = vadd.f32 %v4747, %v4749
        %4806 = vadd.xlane.f32.xlu0 %v4805
        %v4807 = vpop.xlane.xlu0 %4806
        %v4808 = vadd.f32 %v4751, %v4753
        %4809 = vadd.xlane.f32.xlu0 %v4808
        %v4810 = vpop.xlane.xlu0 %4809
        %v4811 = vadd.f32 %v4757, %v4759
        %4812 = vadd.xlane.f32.xlu0 %v4811
        %v4813 = vpop.xlane.xlu0 %4812
        %v4814 = vadd.f32 %v4761, %v4763
        %4815 = vadd.xlane.f32.xlu0 %v4814
        %v4816 = vpop.xlane.xlu0 %4815
        %v4817 = vadd.f32 %v4767, %v4769
        %4818 = vadd.xlane.f32.xlu0 %v4817
        %v4819 = vpop.xlane.xlu0 %4818
        %v4820 = vadd.f32 %v4771, %v4773
        %4821 = vadd.xlane.f32.xlu0 %v4820
        %v4822 = vpop.xlane.xlu0 %4821
        %v4823 = vrcp.pop 256.0
        %v4824 = vmul.f32 %v4777, %v4823
        %v4825 = vmul.f32 %v4780, %v4823
        %v4826 = vmul.f32 %v4783, %v4823
        %v4827 = vmul.f32 %v4786, %v4823
        %v4828 = vmul.f32 %v4789, %v4823
        %v4829 = vmul.f32 %v4792, %v4823
        %v4830 = vmul.f32 %v4795, %v4823
        %v4831 = vmul.f32 %v4798, %v4823
        %v4832 = vmul.f32 %v4801, %v4823
        %v4833 = vmul.f32 %v4804, %v4823
        %v4834 = vmul.f32 %v4807, %v4823
        %v4835 = vmul.f32 %v4810, %v4823
        %v4836 = vmul.f32 %v4813, %v4823
        %v4837 = vmul.f32 %v4816, %v4823
        %v4838 = vmul.f32 %v4819, %v4823
        %v4839 = vmul.f32 %v4822, %v4823
        %v4840 = vsub.f32 %v4697, %v4824
        %v4841 = vsub.f32 %v4699, %v4824
        %v4842 = vsub.f32 %v4701, %v4825
        %v4843 = vsub.f32 %v4703, %v4825
        %v4844 = vsub.f32 %v4707, %v4826
        %v4845 = vsub.f32 %v4709, %v4826
        %v4846 = vsub.f32 %v4711, %v4827
        %v4847 = vsub.f32 %v4713, %v4827
        %v4848 = vsub.f32 %v4717, %v4828
        %v4849 = vsub.f32 %v4719, %v4828
        %v4850 = vsub.f32 %v4721, %v4829
        %v4851 = vsub.f32 %v4723, %v4829
        %v4852 = vsub.f32 %v4727, %v4830
        %v4853 = vsub.f32 %v4729, %v4830
        %v4854 = vsub.f32 %v4731, %v4831
        %v4855 = vsub.f32 %v4733, %v4831
        %v4856 = vsub.f32 %v4737, %v4832
        %v4857 = vsub.f32 %v4739, %v4832
        %v4858 = vsub.f32 %v4741, %v4833
        %v4859 = vsub.f32 %v4743, %v4833
        %v4860 = vsub.f32 %v4747, %v4834
        %v4861 = vsub.f32 %v4749, %v4834
        %v4862 = vsub.f32 %v4751, %v4835
        %v4863 = vsub.f32 %v4753, %v4835
        %v4864 = vsub.f32 %v4757, %v4836
        %v4865 = vsub.f32 %v4759, %v4836
        %v4866 = vsub.f32 %v4761, %v4837
        %v4867 = vsub.f32 %v4763, %v4837
        %v4868 = vsub.f32 %v4767, %v4838
        %v4869 = vsub.f32 %v4769, %v4838
        %v4870 = vsub.f32 %v4771, %v4839
        %v4871 = vsub.f32 %v4773, %v4839
        %v4872 = vmul.f32 %v4840, %v4840
        %v4873 = vmul.f32 %v4841, %v4841
        %v4874 = vmul.f32 %v4842, %v4842
        %v4875 = vmul.f32 %v4843, %v4843
        %v4876 = vmul.f32 %v4844, %v4844
        %v4877 = vmul.f32 %v4845, %v4845
        %v4878 = vmul.f32 %v4846, %v4846
        %v4879 = vmul.f32 %v4847, %v4847
        %v4880 = vmul.f32 %v4848, %v4848
        %v4881 = vmul.f32 %v4849, %v4849
        %v4882 = vmul.f32 %v4850, %v4850
        %v4883 = vmul.f32 %v4851, %v4851
        %v4884 = vmul.f32 %v4852, %v4852
        %v4885 = vmul.f32 %v4853, %v4853
        %v4886 = vmul.f32 %v4854, %v4854
        %v4887 = vmul.f32 %v4855, %v4855
        %v4888 = vmul.f32 %v4856, %v4856
        %v4889 = vmul.f32 %v4857, %v4857
        %v4890 = vmul.f32 %v4858, %v4858
        %v4891 = vmul.f32 %v4859, %v4859
        %v4892 = vmul.f32 %v4860, %v4860
        %v4893 = vmul.f32 %v4861, %v4861
        %v4894 = vmul.f32 %v4862, %v4862
        %v4895 = vmul.f32 %v4863, %v4863
        %v4896 = vmul.f32 %v4864, %v4864
        %v4897 = vmul.f32 %v4865, %v4865
        %v4898 = vmul.f32 %v4866, %v4866
        %v4899 = vmul.f32 %v4867, %v4867
        %v4900 = vmul.f32 %v4868, %v4868
        %v4901 = vmul.f32 %v4869, %v4869
        %v4902 = vmul.f32 %v4870, %v4870
        %v4903 = vmul.f32 %v4871, %v4871
        %v4904 = vadd.f32 %v4872, %v4873
        %4905 = vadd.xlane.f32.xlu0 %v4904
        %v4906 = vpop.xlane.xlu0 %4905
        %v4907 = vadd.f32 %v4874, %v4875
        %4908 = vadd.xlane.f32.xlu0 %v4907
        %v4909 = vpop.xlane.xlu0 %4908
        %v4910 = vadd.f32 %v4876, %v4877
        %4911 = vadd.xlane.f32.xlu0 %v4910
        %v4912 = vpop.xlane.xlu0 %4911
        %v4913 = vadd.f32 %v4878, %v4879
        %4914 = vadd.xlane.f32.xlu0 %v4913
        %v4915 = vpop.xlane.xlu0 %4914
        %v4916 = vadd.f32 %v4880, %v4881
        %4917 = vadd.xlane.f32.xlu0 %v4916
        %v4918 = vpop.xlane.xlu0 %4917
        %v4919 = vadd.f32 %v4882, %v4883
        %4920 = vadd.xlane.f32.xlu0 %v4919
        %v4921 = vpop.xlane.xlu0 %4920
        %v4922 = vadd.f32 %v4884, %v4885
        %4923 = vadd.xlane.f32.xlu0 %v4922
        %v4924 = vpop.xlane.xlu0 %4923
        %v4925 = vadd.f32 %v4886, %v4887
        %4926 = vadd.xlane.f32.xlu0 %v4925
        %v4927 = vpop.xlane.xlu0 %4926
        %v4928 = vadd.f32 %v4888, %v4889
        %4929 = vadd.xlane.f32.xlu0 %v4928
        %v4930 = vpop.xlane.xlu0 %4929
        %v4931 = vadd.f32 %v4890, %v4891
        %4932 = vadd.xlane.f32.xlu0 %v4931
        %v4933 = vpop.xlane.xlu0 %4932
        %v4934 = vadd.f32 %v4892, %v4893
        %4935 = vadd.xlane.f32.xlu0 %v4934
        %v4936 = vpop.xlane.xlu0 %4935
        %v4937 = vadd.f32 %v4894, %v4895
        %4938 = vadd.xlane.f32.xlu0 %v4937
        %v4939 = vpop.xlane.xlu0 %4938
        %v4940 = vadd.f32 %v4896, %v4897
        %4941 = vadd.xlane.f32.xlu0 %v4940
        %v4942 = vpop.xlane.xlu0 %4941
        %v4943 = vadd.f32 %v4898, %v4899
        %4944 = vadd.xlane.f32.xlu0 %v4943
        %v4945 = vpop.xlane.xlu0 %4944
        %v4946 = vadd.f32 %v4900, %v4901
        %4947 = vadd.xlane.f32.xlu0 %v4946
        %v4948 = vpop.xlane.xlu0 %4947
        %v4949 = vadd.f32 %v4902, %v4903
        %4950 = vadd.xlane.f32.xlu0 %v4949
        %v4951 = vpop.xlane.xlu0 %4950
        %v4952 = vmul.f32 %v4906, %v4823
        %v4953 = vmul.f32 %v4909, %v4823
        %v4954 = vmul.f32 %v4912, %v4823
        %v4955 = vmul.f32 %v4915, %v4823
        %v4956 = vmul.f32 %v4918, %v4823
        %v4957 = vmul.f32 %v4921, %v4823
        %v4958 = vmul.f32 %v4924, %v4823
        %v4959 = vmul.f32 %v4927, %v4823
        %v4960 = vmul.f32 %v4930, %v4823
        %v4961 = vmul.f32 %v4933, %v4823
        %v4962 = vmul.f32 %v4936, %v4823
        %v4963 = vmul.f32 %v4939, %v4823
        %v4964 = vmul.f32 %v4942, %v4823
        %v4965 = vmul.f32 %v4945, %v4823
        %v4966 = vmul.f32 %v4948, %v4823
        %v4967 = vmul.f32 %v4951, %v4823
        %v4968 = vadd.f32 %v4952, 1e-05
        %v4969 = vadd.f32 %v4953, 1e-05
        %v4970 = vadd.f32 %v4954, 1e-05
        %v4971 = vadd.f32 %v4955, 1e-05
        %v4972 = vadd.f32 %v4956, 1e-05
        %v4973 = vadd.f32 %v4957, 1e-05
        %v4974 = vadd.f32 %v4958, 1e-05
        %v4975 = vadd.f32 %v4959, 1e-05
        %v4976 = vadd.f32 %v4960, 1e-05
        %v4977 = vadd.f32 %v4961, 1e-05
        %v4978 = vadd.f32 %v4962, 1e-05
        %v4979 = vadd.f32 %v4963, 1e-05
        %v4980 = vadd.f32 %v4964, 1e-05
        %v4981 = vadd.f32 %v4965, 1e-05
        %v4982 = vadd.f32 %v4966, 1e-05
        %v4983 = vadd.f32 %v4967, 1e-05
        %v4984 = vrsqrt.pop %v4968
        %v4985 = vrsqrt.pop %v4969
        %v4986 = vrsqrt.pop %v4970
        %v4987 = vrsqrt.pop %v4971
        %v4988 = vrsqrt.pop %v4972
        %v4989 = vrsqrt.pop %v4973
        %v4990 = vrsqrt.pop %v4974
        %v4991 = vrsqrt.pop %v4975
        %v4992 = vrsqrt.pop %v4976
        %v4993 = vrsqrt.pop %v4977
        %v4994 = vrsqrt.pop %v4978
        %v4995 = vrsqrt.pop %v4979
        %v4996 = vrsqrt.pop %v4980
        %v4997 = vrsqrt.pop %v4981
        %v4998 = vrsqrt.pop %v4982
        %v4999 = vrsqrt.pop %v4983
        %v5000 = vmul.f32 %v4840, %v4984
        %v5001 = vmul.f32 %v4841, %v4984
        %v5002 = vmul.f32 %v4842, %v4985
        %v5003 = vmul.f32 %v4843, %v4985
        %v5004 = vmul.f32 %v4844, %v4986
        %v5005 = vmul.f32 %v4845, %v4986
        %v5006 = vmul.f32 %v4846, %v4987
        %v5007 = vmul.f32 %v4847, %v4987
        %v5008 = vmul.f32 %v4848, %v4988
        %v5009 = vmul.f32 %v4849, %v4988
        %v5010 = vmul.f32 %v4850, %v4989
        %v5011 = vmul.f32 %v4851, %v4989
        %v5012 = vmul.f32 %v4852, %v4990
        %v5013 = vmul.f32 %v4853, %v4990
        %v5014 = vmul.f32 %v4854, %v4991
        %v5015 = vmul.f32 %v4855, %v4991
        %v5016 = vmul.f32 %v4856, %v4992
        %v5017 = vmul.f32 %v4857, %v4992
        %v5018 = vmul.f32 %v4858, %v4993
        %v5019 = vmul.f32 %v4859, %v4993
        %v5020 = vmul.f32 %v4860, %v4994
        %v5021 = vmul.f32 %v4861, %v4994
        %v5022 = vmul.f32 %v4862, %v4995
        %v5023 = vmul.f32 %v4863, %v4995
        %v5024 = vmul.f32 %v4864, %v4996
        %v5025 = vmul.f32 %v4865, %v4996
        %v5026 = vmul.f32 %v4866, %v4997
        %v5027 = vmul.f32 %v4867, %v4997
        %v5028 = vmul.f32 %v4868, %v4998
        %v5029 = vmul.f32 %v4869, %v4998
        %v5030 = vmul.f32 %v4870, %v4999
        %v5031 = vmul.f32 %v4871, %v4999
        %v5032 = vld [vmem:[%s7] sm:$0x3]
        %v5034 = vlaneseq
        %v5035 = vshrl.u32 %v5034, 7
        %v5036 = vsub.s32 0, %v5035
        %v5037 = vrot.slane %v5032, %v5036
        %v5038 = vlaneseq
        %v5039 = vshrl.u32 %v5038, 7
        %v5040 = vsub.s32 1, %v5039
        %v5041 = vrot.slane %v5032, %v5040
        %v5044 = vmul.f32 %v5000, %v5037
        %v5045 = vmul.f32 %v5001, %v5041
        %v5046 = vmul.f32 %v5002, %v5037
        %v5047 = vmul.f32 %v5003, %v5041
        %v5048 = vmul.f32 %v5004, %v5037
        %v5049 = vmul.f32 %v5005, %v5041
        %v5050 = vmul.f32 %v5006, %v5037
        %v5051 = vmul.f32 %v5007, %v5041
        %v5052 = vmul.f32 %v5008, %v5037
        %v5053 = vmul.f32 %v5009, %v5041
        %v5054 = vmul.f32 %v5010, %v5037
        %v5055 = vmul.f32 %v5011, %v5041
        %v5056 = vmul.f32 %v5012, %v5037
        %v5057 = vmul.f32 %v5013, %v5041
        %v5058 = vmul.f32 %v5014, %v5037
        %v5059 = vmul.f32 %v5015, %v5041
        %v5060 = vmul.f32 %v5016, %v5037
        %v5061 = vmul.f32 %v5017, %v5041
        %v5062 = vmul.f32 %v5018, %v5037
        %v5063 = vmul.f32 %v5019, %v5041
        %v5064 = vmul.f32 %v5020, %v5037
        %v5065 = vmul.f32 %v5021, %v5041
        %v5066 = vmul.f32 %v5022, %v5037
        %v5067 = vmul.f32 %v5023, %v5041
        %v5068 = vmul.f32 %v5024, %v5037
        %v5069 = vmul.f32 %v5025, %v5041
        %v5070 = vmul.f32 %v5026, %v5037
        %v5071 = vmul.f32 %v5027, %v5041
        %v5072 = vmul.f32 %v5028, %v5037
        %v5073 = vmul.f32 %v5029, %v5041
        %v5074 = vmul.f32 %v5030, %v5037
        %v5075 = vmul.f32 %v5031, %v5041
        %v5076 = vld [vmem:[%s8] sm:$0x3]
        %v5078 = vlaneseq
        %v5079 = vshrl.u32 %v5078, 7
        %v5080 = vsub.s32 0, %v5079
        %v5081 = vrot.slane %v5076, %v5080
        %v5082 = vlaneseq
        %v5083 = vshrl.u32 %v5082, 7
        %v5084 = vsub.s32 1, %v5083
        %v5085 = vrot.slane %v5076, %v5084
        %v5088 = vadd.f32 %v5044, %v5081
        %v5089 = vadd.f32 %v5045, %v5085
        %v5090 = vadd.f32 %v5046, %v5081
        %v5091 = vadd.f32 %v5047, %v5085
        %v5092 = vadd.f32 %v5048, %v5081
        %v5093 = vadd.f32 %v5049, %v5085
        %v5094 = vadd.f32 %v5050, %v5081
        %v5095 = vadd.f32 %v5051, %v5085
        %v5096 = vadd.f32 %v5052, %v5081
        %v5097 = vadd.f32 %v5053, %v5085
        %v5098 = vadd.f32 %v5054, %v5081
        %v5099 = vadd.f32 %v5055, %v5085
        %v5100 = vadd.f32 %v5056, %v5081
        %v5101 = vadd.f32 %v5057, %v5085
        %v5102 = vadd.f32 %v5058, %v5081
        %v5103 = vadd.f32 %v5059, %v5085
        %v5104 = vadd.f32 %v5060, %v5081
        %v5105 = vadd.f32 %v5061, %v5085
        %v5106 = vadd.f32 %v5062, %v5081
        %v5107 = vadd.f32 %v5063, %v5085
        %v5108 = vadd.f32 %v5064, %v5081
        %v5109 = vadd.f32 %v5065, %v5085
        %v5110 = vadd.f32 %v5066, %v5081
        %v5111 = vadd.f32 %v5067, %v5085
        %v5112 = vadd.f32 %v5068, %v5081
        %v5113 = vadd.f32 %v5069, %v5085
        %v5114 = vadd.f32 %v5070, %v5081
        %v5115 = vadd.f32 %v5071, %v5085
        %v5116 = vadd.f32 %v5072, %v5081
        %v5117 = vadd.f32 %v5073, %v5085
        %v5118 = vadd.f32 %v5074, %v5081
        %v5119 = vadd.f32 %v5075, %v5085
        %v5120 = vpack.c.bf16 %v5090, %v5088
        %v5121 = vpack.c.bf16 %v5091, %v5089
        %v5122 = vpack.c.bf16 %v5094, %v5092
        %v5123 = vpack.c.bf16 %v5095, %v5093
        %v5124 = vpack.c.bf16 %v5098, %v5096
        %v5125 = vpack.c.bf16 %v5099, %v5097
        %v5126 = vpack.c.bf16 %v5102, %v5100
        %v5127 = vpack.c.bf16 %v5103, %v5101
        %v5128 = vpack.c.bf16 %v5106, %v5104
        %v5129 = vpack.c.bf16 %v5107, %v5105
        %v5130 = vpack.c.bf16 %v5110, %v5108
        %v5131 = vpack.c.bf16 %v5111, %v5109
        %v5132 = vpack.c.bf16 %v5114, %v5112
        %v5133 = vpack.c.bf16 %v5115, %v5113
        %v5134 = vpack.c.bf16 %v5118, %v5116
        %v5135 = vpack.c.bf16 %v5119, %v5117
        %v5136 = vld [vmem:[#allocation17] sm:$0xff]
        %v5137 = vld [vmem:[#allocation17 + $0x8] sm:$0xff]
        %v5138 = vld [vmem:[#allocation17 + $0x10] sm:$0xff]
        %v5139 = vld [vmem:[#allocation17 + $0x18] sm:$0xff]
        %v5140 = vld [vmem:[#allocation17 + $0x20] sm:$0xff]
        %v5141 = vld [vmem:[#allocation17 + $0x28] sm:$0xff]
        %v5142 = vld [vmem:[#allocation17 + $0x30] sm:$0xff]
        %v5143 = vld [vmem:[#allocation17 + $0x38] sm:$0xff]
        %v5144 = vld [vmem:[#allocation17 + $0x40] sm:$0xff]
        %v5145 = vld [vmem:[#allocation17 + $0x48] sm:$0xff]
        %v5146 = vld [vmem:[#allocation17 + $0x50] sm:$0xff]
        %v5147 = vld [vmem:[#allocation17 + $0x58] sm:$0xff]
        %v5148 = vld [vmem:[#allocation17 + $0x60] sm:$0xff]
        %v5149 = vld [vmem:[#allocation17 + $0x68] sm:$0xff]
        %v5150 = vld [vmem:[#allocation17 + $0x70] sm:$0xff]
        %v5151 = vld [vmem:[#allocation17 + $0x78] sm:$0xff]
        %v5152 = vld [vmem:[#allocation17 + $0x80] sm:$0xff]
        %v5153 = vld [vmem:[#allocation17 + $0x88] sm:$0xff]
        %v5154 = vld [vmem:[#allocation17 + $0x90] sm:$0xff]
        %v5155 = vld [vmem:[#allocation17 + $0x98] sm:$0xff]
        %v5156 = vld [vmem:[#allocation17 + $0xa0] sm:$0xff]
        %v5157 = vld [vmem:[#allocation17 + $0xa8] sm:$0xff]
        %v5158 = vld [vmem:[#allocation17 + $0xb0] sm:$0xff]
        %v5159 = vld [vmem:[#allocation17 + $0xb8] sm:$0xff]
        %v5160 = vld [vmem:[#allocation17 + $0xc0] sm:$0xff]
        %v5161 = vld [vmem:[#allocation17 + $0xc8] sm:$0xff]
        %v5162 = vld [vmem:[#allocation17 + $0xd0] sm:$0xff]
        %v5163 = vld [vmem:[#allocation17 + $0xd8] sm:$0xff]
        %v5164 = vld [vmem:[#allocation17 + $0xe0] sm:$0xff]
        %v5165 = vld [vmem:[#allocation17 + $0xe8] sm:$0xff]
        %v5166 = vld [vmem:[#allocation17 + $0xf0] sm:$0xff]
        %v5167 = vld [vmem:[#allocation17 + $0xf8] sm:$0xff]
        %v5168 = vld [vmem:[#allocation17 + $0x100] sm:$0xff]
        %v5169 = vld [vmem:[#allocation17 + $0x108] sm:$0xff]
        %v5170 = vld [vmem:[#allocation17 + $0x110] sm:$0xff]
        %v5171 = vld [vmem:[#allocation17 + $0x118] sm:$0xff]
        %v5172 = vld [vmem:[#allocation17 + $0x120] sm:$0xff]
        %v5173 = vld [vmem:[#allocation17 + $0x128] sm:$0xff]
        %v5174 = vld [vmem:[#allocation17 + $0x130] sm:$0xff]
        %v5175 = vld [vmem:[#allocation17 + $0x138] sm:$0xff]
        %v5176 = vld [vmem:[#allocation17 + $0x140] sm:$0xff]
        %v5177 = vld [vmem:[#allocation17 + $0x148] sm:$0xff]
        %v5178 = vld [vmem:[#allocation17 + $0x150] sm:$0xff]
        %v5179 = vld [vmem:[#allocation17 + $0x158] sm:$0xff]
        %v5180 = vld [vmem:[#allocation17 + $0x160] sm:$0xff]
        %v5181 = vld [vmem:[#allocation17 + $0x168] sm:$0xff]
        %v5182 = vld [vmem:[#allocation17 + $0x170] sm:$0xff]
        %v5183 = vld [vmem:[#allocation17 + $0x178] sm:$0xff]
        %v5184 = vld [vmem:[#allocation17 + $0x180] sm:$0xff]
        %v5185 = vld [vmem:[#allocation17 + $0x188] sm:$0xff]
        %v5186 = vld [vmem:[#allocation17 + $0x190] sm:$0xff]
        %v5187 = vld [vmem:[#allocation17 + $0x198] sm:$0xff]
        %v5188 = vld [vmem:[#allocation17 + $0x1a0] sm:$0xff]
        %v5189 = vld [vmem:[#allocation17 + $0x1a8] sm:$0xff]
        %v5190 = vld [vmem:[#allocation17 + $0x1b0] sm:$0xff]
        %v5191 = vld [vmem:[#allocation17 + $0x1b8] sm:$0xff]
        %v5192 = vld [vmem:[#allocation17 + $0x1c0] sm:$0xff]
        %v5193 = vld [vmem:[#allocation17 + $0x1c8] sm:$0xff]
        %v5194 = vld [vmem:[#allocation17 + $0x1d0] sm:$0xff]
        %v5195 = vld [vmem:[#allocation17 + $0x1d8] sm:$0xff]
        %v5196 = vld [vmem:[#allocation17 + $0x1e0] sm:$0xff]
        %v5197 = vld [vmem:[#allocation17 + $0x1e8] sm:$0xff]
        %v5198 = vld [vmem:[#allocation17 + $0x1f0] sm:$0xff]
        %v5199 = vld [vmem:[#allocation17 + $0x1f8] sm:$0xff]
        %v5200 = vld [vmem:[#allocation17 + $0x200] sm:$0xff]
        %v5201 = vld [vmem:[#allocation17 + $0x208] sm:$0xff]
        %v5202 = vld [vmem:[#allocation17 + $0x210] sm:$0xff]
        %v5203 = vld [vmem:[#allocation17 + $0x218] sm:$0xff]
        %v5204 = vld [vmem:[#allocation17 + $0x220] sm:$0xff]
        %v5205 = vld [vmem:[#allocation17 + $0x228] sm:$0xff]
        %v5206 = vld [vmem:[#allocation17 + $0x230] sm:$0xff]
        %v5207 = vld [vmem:[#allocation17 + $0x238] sm:$0xff]
        %v5208 = vld [vmem:[#allocation17 + $0x240] sm:$0xff]
        %v5209 = vld [vmem:[#allocation17 + $0x248] sm:$0xff]
        %v5210 = vld [vmem:[#allocation17 + $0x250] sm:$0xff]
        %v5211 = vld [vmem:[#allocation17 + $0x258] sm:$0xff]
        %v5212 = vld [vmem:[#allocation17 + $0x260] sm:$0xff]
        %v5213 = vld [vmem:[#allocation17 + $0x268] sm:$0xff]
        %v5214 = vld [vmem:[#allocation17 + $0x270] sm:$0xff]
        %v5215 = vld [vmem:[#allocation17 + $0x278] sm:$0xff]
        %v5216 = vld [vmem:[#allocation17 + $0x280] sm:$0xff]
        %v5217 = vld [vmem:[#allocation17 + $0x288] sm:$0xff]
        %v5218 = vld [vmem:[#allocation17 + $0x290] sm:$0xff]
        %v5219 = vld [vmem:[#allocation17 + $0x298] sm:$0xff]
        %v5220 = vld [vmem:[#allocation17 + $0x2a0] sm:$0xff]
        %v5221 = vld [vmem:[#allocation17 + $0x2a8] sm:$0xff]
        %v5222 = vld [vmem:[#allocation17 + $0x2b0] sm:$0xff]
        %v5223 = vld [vmem:[#allocation17 + $0x2b8] sm:$0xff]
        %v5224 = vld [vmem:[#allocation17 + $0x2c0] sm:$0xff]
        %v5225 = vld [vmem:[#allocation17 + $0x2c8] sm:$0xff]
        %v5226 = vld [vmem:[#allocation17 + $0x2d0] sm:$0xff]
        %v5227 = vld [vmem:[#allocation17 + $0x2d8] sm:$0xff]
        %v5228 = vld [vmem:[#allocation17 + $0x2e0] sm:$0xff]
        %v5229 = vld [vmem:[#allocation17 + $0x2e8] sm:$0xff]
        %v5230 = vld [vmem:[#allocation17 + $0x2f0] sm:$0xff]
        %v5231 = vld [vmem:[#allocation17 + $0x2f8] sm:$0xff]
        %v5232 = vld [vmem:[#allocation17 + $0x300] sm:$0xff]
        %v5233 = vld [vmem:[#allocation17 + $0x308] sm:$0xff]
        %v5234 = vld [vmem:[#allocation17 + $0x310] sm:$0xff]
        %v5235 = vld [vmem:[#allocation17 + $0x318] sm:$0xff]
        %v5236 = vld [vmem:[#allocation17 + $0x320] sm:$0xff]
        %v5237 = vld [vmem:[#allocation17 + $0x328] sm:$0xff]
        %v5238 = vld [vmem:[#allocation17 + $0x330] sm:$0xff]
        %v5239 = vld [vmem:[#allocation17 + $0x338] sm:$0xff]
        %v5240 = vld [vmem:[#allocation17 + $0x340] sm:$0xff]
        %v5241 = vld [vmem:[#allocation17 + $0x348] sm:$0xff]
        %v5242 = vld [vmem:[#allocation17 + $0x350] sm:$0xff]
        %v5243 = vld [vmem:[#allocation17 + $0x358] sm:$0xff]
        %v5244 = vld [vmem:[#allocation17 + $0x360] sm:$0xff]
        %v5245 = vld [vmem:[#allocation17 + $0x368] sm:$0xff]
        %v5246 = vld [vmem:[#allocation17 + $0x370] sm:$0xff]
        %v5247 = vld [vmem:[#allocation17 + $0x378] sm:$0xff]
        %v5248 = vld [vmem:[#allocation17 + $0x380] sm:$0xff]
        %v5249 = vld [vmem:[#allocation17 + $0x388] sm:$0xff]
        %v5250 = vld [vmem:[#allocation17 + $0x390] sm:$0xff]
        %v5251 = vld [vmem:[#allocation17 + $0x398] sm:$0xff]
        %v5252 = vld [vmem:[#allocation17 + $0x3a0] sm:$0xff]
        %v5253 = vld [vmem:[#allocation17 + $0x3a8] sm:$0xff]
        %v5254 = vld [vmem:[#allocation17 + $0x3b0] sm:$0xff]
        %v5255 = vld [vmem:[#allocation17 + $0x3b8] sm:$0xff]
        %v5256 = vld [vmem:[#allocation17 + $0x3c0] sm:$0xff]
        %v5257 = vld [vmem:[#allocation17 + $0x3c8] sm:$0xff]
        %v5258 = vld [vmem:[#allocation17 + $0x3d0] sm:$0xff]
        %v5259 = vld [vmem:[#allocation17 + $0x3d8] sm:$0xff]
        %v5260 = vld [vmem:[#allocation17 + $0x3e0] sm:$0xff]
        %v5261 = vld [vmem:[#allocation17 + $0x3e8] sm:$0xff]
        %v5262 = vld [vmem:[#allocation17 + $0x3f0] sm:$0xff]
        %v5263 = vld [vmem:[#allocation17 + $0x3f8] sm:$0xff]
        %v5264 = vld [vmem:[%s10] sm:$0xff]
        %v5266 = vlaneseq
        %v5267 = vshrl.u32 %v5266, 7
        %v5268 = vsub.s32 0, %v5267
        %v5269 = vrot.slane %v5264, %v5268
        %v5270 = vlaneseq
        %v5271 = vshrl.u32 %v5270, 7
        %v5272 = vsub.s32 1, %v5271
        %v5273 = vrot.slane %v5264, %v5272
        %v5274 = vlaneseq
        %v5275 = vshrl.u32 %v5274, 7
        %v5276 = vsub.s32 2, %v5275
        %v5277 = vrot.slane %v5264, %v5276
        %v5278 = vlaneseq
        %v5279 = vshrl.u32 %v5278, 7
        %v5280 = vsub.s32 3, %v5279
        %v5281 = vrot.slane %v5264, %v5280
        %v5282 = vlaneseq
        %v5283 = vshrl.u32 %v5282, 7
        %v5284 = vsub.s32 4, %v5283
        %v5285 = vrot.slane %v5264, %v5284
        %v5286 = vlaneseq
        %v5287 = vshrl.u32 %v5286, 7
        %v5288 = vsub.s32 5, %v5287
        %v5289 = vrot.slane %v5264, %v5288
        %v5290 = vlaneseq
        %v5291 = vshrl.u32 %v5290, 7
        %v5292 = vsub.s32 6, %v5291
        %v5293 = vrot.slane %v5264, %v5292
        %v5294 = vlaneseq
        %v5295 = vshrl.u32 %v5294, 7
        %v5296 = vsub.s32 7, %v5295
        %v5297 = vrot.slane %v5264, %v5296
        %v5434 = vunpack.c.l.b16 %v5136
        %v5435 = vunpack.c.h.b16 %v5136
        %v5436 = vunpack.c.l.b16 %v5137
        %v5437 = vunpack.c.h.b16 %v5137
        %v5438 = vunpack.c.l.b16 %v5138
        %v5439 = vunpack.c.h.b16 %v5138
        %v5440 = vunpack.c.l.b16 %v5139
        %v5441 = vunpack.c.h.b16 %v5139
        %v5442 = vunpack.c.l.b16 %v5140
        %v5443 = vunpack.c.h.b16 %v5140
        %v5444 = vunpack.c.l.b16 %v5141
        %v5445 = vunpack.c.h.b16 %v5141
        %v5446 = vunpack.c.l.b16 %v5142
        %v5447 = vunpack.c.h.b16 %v5142
        %v5448 = vunpack.c.l.b16 %v5143
        %v5449 = vunpack.c.h.b16 %v5143
        %v5450 = vunpack.c.l.b16 %v5144
        %v5451 = vunpack.c.h.b16 %v5144
        %v5452 = vunpack.c.l.b16 %v5145
        %v5453 = vunpack.c.h.b16 %v5145
        %v5454 = vunpack.c.l.b16 %v5146
        %v5455 = vunpack.c.h.b16 %v5146
        %v5456 = vunpack.c.l.b16 %v5147
        %v5457 = vunpack.c.h.b16 %v5147
        %v5458 = vunpack.c.l.b16 %v5148
        %v5459 = vunpack.c.h.b16 %v5148
        %v5460 = vunpack.c.l.b16 %v5149
        %v5461 = vunpack.c.h.b16 %v5149
        %v5462 = vunpack.c.l.b16 %v5150
        %v5463 = vunpack.c.h.b16 %v5150
        %v5464 = vunpack.c.l.b16 %v5151
        %v5465 = vunpack.c.h.b16 %v5151
        %v5466 = vunpack.c.l.b16 %v5152
        %v5467 = vunpack.c.h.b16 %v5152
        %v5468 = vunpack.c.l.b16 %v5153
        %v5469 = vunpack.c.h.b16 %v5153
        %v5470 = vunpack.c.l.b16 %v5154
        %v5471 = vunpack.c.h.b16 %v5154
        %v5472 = vunpack.c.l.b16 %v5155
        %v5473 = vunpack.c.h.b16 %v5155
        %v5474 = vunpack.c.l.b16 %v5156
        %v5475 = vunpack.c.h.b16 %v5156
        %v5476 = vunpack.c.l.b16 %v5157
        %v5477 = vunpack.c.h.b16 %v5157
        %v5478 = vunpack.c.l.b16 %v5158
        %v5479 = vunpack.c.h.b16 %v5158
        %v5480 = vunpack.c.l.b16 %v5159
        %v5481 = vunpack.c.h.b16 %v5159
        %v5482 = vunpack.c.l.b16 %v5160
        %v5483 = vunpack.c.h.b16 %v5160
        %v5484 = vunpack.c.l.b16 %v5161
        %v5485 = vunpack.c.h.b16 %v5161
        %v5486 = vunpack.c.l.b16 %v5162
        %v5487 = vunpack.c.h.b16 %v5162
        %v5488 = vunpack.c.l.b16 %v5163
        %v5489 = vunpack.c.h.b16 %v5163
        %v5490 = vunpack.c.l.b16 %v5164
        %v5491 = vunpack.c.h.b16 %v5164
        %v5492 = vunpack.c.l.b16 %v5165
        %v5493 = vunpack.c.h.b16 %v5165
        %v5494 = vunpack.c.l.b16 %v5166
        %v5495 = vunpack.c.h.b16 %v5166
        %v5496 = vunpack.c.l.b16 %v5167
        %v5497 = vunpack.c.h.b16 %v5167
        %v5498 = vunpack.c.l.b16 %v5168
        %v5499 = vunpack.c.h.b16 %v5168
        %v5500 = vunpack.c.l.b16 %v5169
        %v5501 = vunpack.c.h.b16 %v5169
        %v5502 = vunpack.c.l.b16 %v5170
        %v5503 = vunpack.c.h.b16 %v5170
        %v5504 = vunpack.c.l.b16 %v5171
        %v5505 = vunpack.c.h.b16 %v5171
        %v5506 = vunpack.c.l.b16 %v5172
        %v5507 = vunpack.c.h.b16 %v5172
        %v5508 = vunpack.c.l.b16 %v5173
        %v5509 = vunpack.c.h.b16 %v5173
        %v5510 = vunpack.c.l.b16 %v5174
        %v5511 = vunpack.c.h.b16 %v5174
        %v5512 = vunpack.c.l.b16 %v5175
        %v5513 = vunpack.c.h.b16 %v5175
        %v5514 = vunpack.c.l.b16 %v5176
        %v5515 = vunpack.c.h.b16 %v5176
        %v5516 = vunpack.c.l.b16 %v5177
        %v5517 = vunpack.c.h.b16 %v5177
        %v5518 = vunpack.c.l.b16 %v5178
        %v5519 = vunpack.c.h.b16 %v5178
        %v5520 = vunpack.c.l.b16 %v5179
        %v5521 = vunpack.c.h.b16 %v5179
        %v5522 = vunpack.c.l.b16 %v5180
        %v5523 = vunpack.c.h.b16 %v5180
        %v5524 = vunpack.c.l.b16 %v5181
        %v5525 = vunpack.c.h.b16 %v5181
        %v5526 = vunpack.c.l.b16 %v5182
        %v5527 = vunpack.c.h.b16 %v5182
        %v5528 = vunpack.c.l.b16 %v5183
        %v5529 = vunpack.c.h.b16 %v5183
        %v5530 = vunpack.c.l.b16 %v5184
        %v5531 = vunpack.c.h.b16 %v5184
        %v5532 = vunpack.c.l.b16 %v5185
        %v5533 = vunpack.c.h.b16 %v5185
        %v5534 = vunpack.c.l.b16 %v5186
        %v5535 = vunpack.c.h.b16 %v5186
        %v5536 = vunpack.c.l.b16 %v5187
        %v5537 = vunpack.c.h.b16 %v5187
        %v5538 = vunpack.c.l.b16 %v5188
        %v5539 = vunpack.c.h.b16 %v5188
        %v5540 = vunpack.c.l.b16 %v5189
        %v5541 = vunpack.c.h.b16 %v5189
        %v5542 = vunpack.c.l.b16 %v5190
        %v5543 = vunpack.c.h.b16 %v5190
        %v5544 = vunpack.c.l.b16 %v5191
        %v5545 = vunpack.c.h.b16 %v5191
        %v5546 = vunpack.c.l.b16 %v5192
        %v5547 = vunpack.c.h.b16 %v5192
        %v5548 = vunpack.c.l.b16 %v5193
        %v5549 = vunpack.c.h.b16 %v5193
        %v5550 = vunpack.c.l.b16 %v5194
        %v5551 = vunpack.c.h.b16 %v5194
        %v5552 = vunpack.c.l.b16 %v5195
        %v5553 = vunpack.c.h.b16 %v5195
        %v5554 = vunpack.c.l.b16 %v5196
        %v5555 = vunpack.c.h.b16 %v5196
        %v5556 = vunpack.c.l.b16 %v5197
        %v5557 = vunpack.c.h.b16 %v5197
        %v5558 = vunpack.c.l.b16 %v5198
        %v5559 = vunpack.c.h.b16 %v5198
        %v5560 = vunpack.c.l.b16 %v5199
        %v5561 = vunpack.c.h.b16 %v5199
        %v5562 = vunpack.c.l.b16 %v5200
        %v5563 = vunpack.c.h.b16 %v5200
        %v5564 = vunpack.c.l.b16 %v5201
        %v5565 = vunpack.c.h.b16 %v5201
        %v5566 = vunpack.c.l.b16 %v5202
        %v5567 = vunpack.c.h.b16 %v5202
        %v5568 = vunpack.c.l.b16 %v5203
        %v5569 = vunpack.c.h.b16 %v5203
        %v5570 = vunpack.c.l.b16 %v5204
        %v5571 = vunpack.c.h.b16 %v5204
        %v5572 = vunpack.c.l.b16 %v5205
        %v5573 = vunpack.c.h.b16 %v5205
        %v5574 = vunpack.c.l.b16 %v5206
        %v5575 = vunpack.c.h.b16 %v5206
        %v5576 = vunpack.c.l.b16 %v5207
        %v5577 = vunpack.c.h.b16 %v5207
        %v5578 = vunpack.c.l.b16 %v5208
        %v5579 = vunpack.c.h.b16 %v5208
        %v5580 = vunpack.c.l.b16 %v5209
        %v5581 = vunpack.c.h.b16 %v5209
        %v5582 = vunpack.c.l.b16 %v5210
        %v5583 = vunpack.c.h.b16 %v5210
        %v5584 = vunpack.c.l.b16 %v5211
        %v5585 = vunpack.c.h.b16 %v5211
        %v5586 = vunpack.c.l.b16 %v5212
        %v5587 = vunpack.c.h.b16 %v5212
        %v5588 = vunpack.c.l.b16 %v5213
        %v5589 = vunpack.c.h.b16 %v5213
        %v5590 = vunpack.c.l.b16 %v5214
        %v5591 = vunpack.c.h.b16 %v5214
        %v5592 = vunpack.c.l.b16 %v5215
        %v5593 = vunpack.c.h.b16 %v5215
        %v5594 = vunpack.c.l.b16 %v5216
        %v5595 = vunpack.c.h.b16 %v5216
        %v5596 = vunpack.c.l.b16 %v5217
        %v5597 = vunpack.c.h.b16 %v5217
        %v5598 = vunpack.c.l.b16 %v5218
        %v5599 = vunpack.c.h.b16 %v5218
        %v5600 = vunpack.c.l.b16 %v5219
        %v5601 = vunpack.c.h.b16 %v5219
        %v5602 = vunpack.c.l.b16 %v5220
        %v5603 = vunpack.c.h.b16 %v5220
        %v5604 = vunpack.c.l.b16 %v5221
        %v5605 = vunpack.c.h.b16 %v5221
        %v5606 = vunpack.c.l.b16 %v5222
        %v5607 = vunpack.c.h.b16 %v5222
        %v5608 = vunpack.c.l.b16 %v5223
        %v5609 = vunpack.c.h.b16 %v5223
        %v5610 = vunpack.c.l.b16 %v5224
        %v5611 = vunpack.c.h.b16 %v5224
        %v5612 = vunpack.c.l.b16 %v5225
        %v5613 = vunpack.c.h.b16 %v5225
        %v5614 = vunpack.c.l.b16 %v5226
        %v5615 = vunpack.c.h.b16 %v5226
        %v5616 = vunpack.c.l.b16 %v5227
        %v5617 = vunpack.c.h.b16 %v5227
        %v5618 = vunpack.c.l.b16 %v5228
        %v5619 = vunpack.c.h.b16 %v5228
        %v5620 = vunpack.c.l.b16 %v5229
        %v5621 = vunpack.c.h.b16 %v5229
        %v5622 = vunpack.c.l.b16 %v5230
        %v5623 = vunpack.c.h.b16 %v5230
        %v5624 = vunpack.c.l.b16 %v5231
        %v5625 = vunpack.c.h.b16 %v5231
        %v5626 = vunpack.c.l.b16 %v5232
        %v5627 = vunpack.c.h.b16 %v5232
        %v5628 = vunpack.c.l.b16 %v5233
        %v5629 = vunpack.c.h.b16 %v5233
        %v5630 = vunpack.c.l.b16 %v5234
        %v5631 = vunpack.c.h.b16 %v5234
        %v5632 = vunpack.c.l.b16 %v5235
        %v5633 = vunpack.c.h.b16 %v5235
        %v5634 = vunpack.c.l.b16 %v5236
        %v5635 = vunpack.c.h.b16 %v5236
        %v5636 = vunpack.c.l.b16 %v5237
        %v5637 = vunpack.c.h.b16 %v5237
        %v5638 = vunpack.c.l.b16 %v5238
        %v5639 = vunpack.c.h.b16 %v5238
        %v5640 = vunpack.c.l.b16 %v5239
        %v5641 = vunpack.c.h.b16 %v5239
        %v5642 = vunpack.c.l.b16 %v5240
        %v5643 = vunpack.c.h.b16 %v5240
        %v5644 = vunpack.c.l.b16 %v5241
        %v5645 = vunpack.c.h.b16 %v5241
        %v5646 = vunpack.c.l.b16 %v5242
        %v5647 = vunpack.c.h.b16 %v5242
        %v5648 = vunpack.c.l.b16 %v5243
        %v5649 = vunpack.c.h.b16 %v5243
        %v5650 = vunpack.c.l.b16 %v5244
        %v5651 = vunpack.c.h.b16 %v5244
        %v5652 = vunpack.c.l.b16 %v5245
        %v5653 = vunpack.c.h.b16 %v5245
        %v5654 = vunpack.c.l.b16 %v5246
        %v5655 = vunpack.c.h.b16 %v5246
        %v5656 = vunpack.c.l.b16 %v5247
        %v5657 = vunpack.c.h.b16 %v5247
        %v5658 = vunpack.c.l.b16 %v5248
        %v5659 = vunpack.c.h.b16 %v5248
        %v5660 = vunpack.c.l.b16 %v5249
        %v5661 = vunpack.c.h.b16 %v5249
        %v5662 = vunpack.c.l.b16 %v5250
        %v5663 = vunpack.c.h.b16 %v5250
        %v5664 = vunpack.c.l.b16 %v5251
        %v5665 = vunpack.c.h.b16 %v5251
        %v5666 = vunpack.c.l.b16 %v5252
        %v5667 = vunpack.c.h.b16 %v5252
        %v5668 = vunpack.c.l.b16 %v5253
        %v5669 = vunpack.c.h.b16 %v5253
        %v5670 = vunpack.c.l.b16 %v5254
        %v5671 = vunpack.c.h.b16 %v5254
        %v5672 = vunpack.c.l.b16 %v5255
        %v5673 = vunpack.c.h.b16 %v5255
        %v5674 = vunpack.c.l.b16 %v5256
        %v5675 = vunpack.c.h.b16 %v5256
        %v5676 = vunpack.c.l.b16 %v5257
        %v5677 = vunpack.c.h.b16 %v5257
        %v5678 = vunpack.c.l.b16 %v5258
        %v5679 = vunpack.c.h.b16 %v5258
        %v5680 = vunpack.c.l.b16 %v5259
        %v5681 = vunpack.c.h.b16 %v5259
        %v5682 = vunpack.c.l.b16 %v5260
        %v5683 = vunpack.c.h.b16 %v5260
        %v5684 = vunpack.c.l.b16 %v5261
        %v5685 = vunpack.c.h.b16 %v5261
        %v5686 = vunpack.c.l.b16 %v5262
        %v5687 = vunpack.c.h.b16 %v5262
        %v5688 = vunpack.c.l.b16 %v5263
        %v5689 = vunpack.c.h.b16 %v5263
        %v5690 = vpack.c.b16 %v5442, %v5434
        %v5691 = vpack.c.b16 %v5443, %v5435
        %v5692 = vpack.c.b16 %v5444, %v5436
        %v5693 = vpack.c.b16 %v5445, %v5437
        %v5694 = vpack.c.b16 %v5446, %v5438
        %v5695 = vpack.c.b16 %v5447, %v5439
        %v5696 = vpack.c.b16 %v5448, %v5440
        %v5697 = vpack.c.b16 %v5449, %v5441
        %v5698 = vpack.c.b16 %v5458, %v5450
        %v5699 = vpack.c.b16 %v5459, %v5451
        %v5700 = vpack.c.b16 %v5460, %v5452
        %v5701 = vpack.c.b16 %v5461, %v5453
        %v5702 = vpack.c.b16 %v5462, %v5454
        %v5703 = vpack.c.b16 %v5463, %v5455
        %v5704 = vpack.c.b16 %v5464, %v5456
        %v5705 = vpack.c.b16 %v5465, %v5457
        %v5706 = vpack.c.b16 %v5474, %v5466
        %v5707 = vpack.c.b16 %v5475, %v5467
        %v5708 = vpack.c.b16 %v5476, %v5468
        %v5709 = vpack.c.b16 %v5477, %v5469
        %v5710 = vpack.c.b16 %v5478, %v5470
        %v5711 = vpack.c.b16 %v5479, %v5471
        %v5712 = vpack.c.b16 %v5480, %v5472
        %v5713 = vpack.c.b16 %v5481, %v5473
        %v5714 = vpack.c.b16 %v5490, %v5482
        %v5715 = vpack.c.b16 %v5491, %v5483
        %v5716 = vpack.c.b16 %v5492, %v5484
        %v5717 = vpack.c.b16 %v5493, %v5485
        %v5718 = vpack.c.b16 %v5494, %v5486
        %v5719 = vpack.c.b16 %v5495, %v5487
        %v5720 = vpack.c.b16 %v5496, %v5488
        %v5721 = vpack.c.b16 %v5497, %v5489
        %v5722 = vpack.c.b16 %v5506, %v5498
        %v5723 = vpack.c.b16 %v5507, %v5499
        %v5724 = vpack.c.b16 %v5508, %v5500
        %v5725 = vpack.c.b16 %v5509, %v5501
        %v5726 = vpack.c.b16 %v5510, %v5502
        %v5727 = vpack.c.b16 %v5511, %v5503
        %v5728 = vpack.c.b16 %v5512, %v5504
        %v5729 = vpack.c.b16 %v5513, %v5505
        %v5730 = vpack.c.b16 %v5522, %v5514
        %v5731 = vpack.c.b16 %v5523, %v5515
        %v5732 = vpack.c.b16 %v5524, %v5516
        %v5733 = vpack.c.b16 %v5525, %v5517
        %v5734 = vpack.c.b16 %v5526, %v5518
        %v5735 = vpack.c.b16 %v5527, %v5519
        %v5736 = vpack.c.b16 %v5528, %v5520
        %v5737 = vpack.c.b16 %v5529, %v5521
        %v5738 = vpack.c.b16 %v5538, %v5530
        %v5739 = vpack.c.b16 %v5539, %v5531
        %v5740 = vpack.c.b16 %v5540, %v5532
        %v5741 = vpack.c.b16 %v5541, %v5533
        %v5742 = vpack.c.b16 %v5542, %v5534
        %v5743 = vpack.c.b16 %v5543, %v5535
        %v5744 = vpack.c.b16 %v5544, %v5536
        %v5745 = vpack.c.b16 %v5545, %v5537
        %v5746 = vpack.c.b16 %v5554, %v5546
        %v5747 = vpack.c.b16 %v5555, %v5547
        %v5748 = vpack.c.b16 %v5556, %v5548
        %v5749 = vpack.c.b16 %v5557, %v5549
        %v5750 = vpack.c.b16 %v5558, %v5550
        %v5751 = vpack.c.b16 %v5559, %v5551
        %v5752 = vpack.c.b16 %v5560, %v5552
        %v5753 = vpack.c.b16 %v5561, %v5553
        %v5754 = vpack.c.b16 %v5570, %v5562
        %v5755 = vpack.c.b16 %v5571, %v5563
        %v5756 = vpack.c.b16 %v5572, %v5564
        %v5757 = vpack.c.b16 %v5573, %v5565
        %v5758 = vpack.c.b16 %v5574, %v5566
        %v5759 = vpack.c.b16 %v5575, %v5567
        %v5760 = vpack.c.b16 %v5576, %v5568
        %v5761 = vpack.c.b16 %v5577, %v5569
        %v5762 = vpack.c.b16 %v5586, %v5578
        %v5763 = vpack.c.b16 %v5587, %v5579
        %v5764 = vpack.c.b16 %v5588, %v5580
        %v5765 = vpack.c.b16 %v5589, %v5581
        %v5766 = vpack.c.b16 %v5590, %v5582
        %v5767 = vpack.c.b16 %v5591, %v5583
        %v5768 = vpack.c.b16 %v5592, %v5584
        %v5769 = vpack.c.b16 %v5593, %v5585
        %v5770 = vpack.c.b16 %v5602, %v5594
        %v5771 = vpack.c.b16 %v5603, %v5595
        %v5772 = vpack.c.b16 %v5604, %v5596
        %v5773 = vpack.c.b16 %v5605, %v5597
        %v5774 = vpack.c.b16 %v5606, %v5598
        %v5775 = vpack.c.b16 %v5607, %v5599
        %v5776 = vpack.c.b16 %v5608, %v5600
        %v5777 = vpack.c.b16 %v5609, %v5601
        %v5778 = vpack.c.b16 %v5618, %v5610
        %v5779 = vpack.c.b16 %v5619, %v5611
        %v5780 = vpack.c.b16 %v5620, %v5612
        %v5781 = vpack.c.b16 %v5621, %v5613
        %v5782 = vpack.c.b16 %v5622, %v5614
        %v5783 = vpack.c.b16 %v5623, %v5615
        %v5784 = vpack.c.b16 %v5624, %v5616
        %v5785 = vpack.c.b16 %v5625, %v5617
        %v5786 = vpack.c.b16 %v5634, %v5626
        %v5787 = vpack.c.b16 %v5635, %v5627
        %v5788 = vpack.c.b16 %v5636, %v5628
        %v5789 = vpack.c.b16 %v5637, %v5629
        %v5790 = vpack.c.b16 %v5638, %v5630
        %v5791 = vpack.c.b16 %v5639, %v5631
        %v5792 = vpack.c.b16 %v5640, %v5632
        %v5793 = vpack.c.b16 %v5641, %v5633
        %v5794 = vpack.c.b16 %v5650, %v5642
        %v5795 = vpack.c.b16 %v5651, %v5643
        %v5796 = vpack.c.b16 %v5652, %v5644
        %v5797 = vpack.c.b16 %v5653, %v5645
        %v5798 = vpack.c.b16 %v5654, %v5646
        %v5799 = vpack.c.b16 %v5655, %v5647
        %v5800 = vpack.c.b16 %v5656, %v5648
        %v5801 = vpack.c.b16 %v5657, %v5649
        %v5802 = vpack.c.b16 %v5666, %v5658
        %v5803 = vpack.c.b16 %v5667, %v5659
        %v5804 = vpack.c.b16 %v5668, %v5660
        %v5805 = vpack.c.b16 %v5669, %v5661
        %v5806 = vpack.c.b16 %v5670, %v5662
        %v5807 = vpack.c.b16 %v5671, %v5663
        %v5808 = vpack.c.b16 %v5672, %v5664
        %v5809 = vpack.c.b16 %v5673, %v5665
        %v5810 = vpack.c.b16 %v5682, %v5674
        %v5811 = vpack.c.b16 %v5683, %v5675
        %v5812 = vpack.c.b16 %v5684, %v5676
        %v5813 = vpack.c.b16 %v5685, %v5677
        %v5814 = vpack.c.b16 %v5686, %v5678
        %v5815 = vpack.c.b16 %v5687, %v5679
        %v5816 = vpack.c.b16 %v5688, %v5680
        %v5817 = vpack.c.b16 %v5689, %v5681
        %5946 = vmatprep.subr.bf16.mxu0 %v5747
        %5947 = vmatpush1.bf16.msra.mxu0 %v5746
        %5948 = vmatprep.subr.bf16.mxu0 %v5739
        %5949 = vmatpush1.bf16.msra.mxu0 %v5738
        %5950 = vmatprep.subr.bf16.mxu0 %v5731
        %5951 = vmatpush1.bf16.msra.mxu0 %v5730
        %5952 = vmatprep.subr.bf16.mxu0 %v5723
        %5953 = vmatpush1.bf16.msra.mxu0 %v5722
        %5954 = vmatprep.subr.bf16.mxu0 %v5715
        %5955 = vmatpush1.bf16.msra.mxu0 %v5714
        %5956 = vmatprep.subr.bf16.mxu0 %v5707
        %5957 = vmatpush1.bf16.msra.mxu0 %v5706
        %5958 = vmatprep.subr.bf16.mxu0 %v5699
        %5959 = vmatpush1.bf16.msra.mxu0 %v5698
        %5960 = vmatprep.subr.bf16.mxu0 %v5691
        %5961 = vmatpush1.bf16.msra.mxu0 %v5690
        %5962 = vmatprep.subr.bf16.mxu0 %v5811
        %5963 = vmatpush2.bf16.msra.mxu0 %v5810
        %5964 = vmatprep.subr.bf16.mxu0 %v5803
        %5965 = vmatpush2.bf16.msra.mxu0 %v5802
        %5966 = vmatprep.subr.bf16.mxu0 %v5795
        %5967 = vmatpush2.bf16.msra.mxu0 %v5794
        %5968 = vmatprep.subr.bf16.mxu0 %v5787
        %5969 = vmatpush2.bf16.msra.mxu0 %v5786
        %5970 = vmatprep.subr.bf16.mxu0 %v5779
        %5971 = vmatpush2.bf16.msra.mxu0 %v5778
        %5972 = vmatprep.subr.bf16.mxu0 %v5771
        %5973 = vmatpush2.bf16.msra.mxu0 %v5770
        %5974 = vmatprep.subr.bf16.mxu0 %v5763
        %5975 = vmatpush2.bf16.msra.mxu0 %v5762
        %5976 = vmatprep.subr.bf16.mxu0 %v5755
        %5977 = vmatpush2.bf16.msra.mxu0 %v5754
        %5978 = vmatprep.mubr.bf16.mxu0 %v5121
        %5979 = vmatmul.mubr.bf16.gmra.mxu0 %v5120
        %v5980 = vpop.f32.mrf.mxu0
        %v5981 = vadd.f32 %v5269, %v5980
        %v5982 = vpop.f32.mrf.mxu0
        %v5983 = vadd.f32 %v5273, %v5982
        %v5984 = vpop.f32.mrf.mxu0
        %v5985 = vadd.f32 %v5269, %v5984
        %v5986 = vpop.f32.mrf.mxu0
        %v5987 = vadd.f32 %v5273, %v5986
        %5988 = vmatprep.mubr.bf16.mxu0 %v5123
        %5989 = vmatmul.mubr.bf16.gmra.mxu0 %v5122
        %v5990 = vpop.f32.mrf.mxu0
        %v5991 = vadd.f32 %v5269, %v5990
        %v5992 = vpop.f32.mrf.mxu0
        %v5993 = vadd.f32 %v5273, %v5992
        %v5994 = vpop.f32.mrf.mxu0
        %v5995 = vadd.f32 %v5269, %v5994
        %v5996 = vpop.f32.mrf.mxu0
        %v5997 = vadd.f32 %v5273, %v5996
        %5998 = vmatprep.mubr.bf16.mxu0 %v5125
        %5999 = vmatmul.mubr.bf16.gmra.mxu0 %v5124
        %v6000 = vpop.f32.mrf.mxu0
        %v6001 = vadd.f32 %v5269, %v6000
        %v6002 = vpop.f32.mrf.mxu0
        %v6003 = vadd.f32 %v5273, %v6002
        %v6004 = vpop.f32.mrf.mxu0
        %v6005 = vadd.f32 %v5269, %v6004
        %v6006 = vpop.f32.mrf.mxu0
        %v6007 = vadd.f32 %v5273, %v6006
        %6008 = vmatprep.mubr.bf16.mxu0 %v5127
        %6009 = vmatmul.mubr.bf16.gmra.mxu0 %v5126
        %v6010 = vpop.f32.mrf.mxu0
        %v6011 = vadd.f32 %v5269, %v6010
        %v6012 = vpop.f32.mrf.mxu0
        %v6013 = vadd.f32 %v5273, %v6012
        %v6014 = vpop.f32.mrf.mxu0
        %v6015 = vadd.f32 %v5269, %v6014
        %v6016 = vpop.f32.mrf.mxu0
        %v6017 = vadd.f32 %v5273, %v6016
        %6018 = vmatprep.mubr.bf16.mxu0 %v5129
        %6019 = vmatmul.mubr.bf16.gmra.mxu0 %v5128
        %v6020 = vpop.f32.mrf.mxu0
        %v6021 = vadd.f32 %v5269, %v6020
        %v6022 = vpop.f32.mrf.mxu0
        %v6023 = vadd.f32 %v5273, %v6022
        %v6024 = vpop.f32.mrf.mxu0
        %v6025 = vadd.f32 %v5269, %v6024
        %v6026 = vpop.f32.mrf.mxu0
        %v6027 = vadd.f32 %v5273, %v6026
        %6028 = vmatprep.mubr.bf16.mxu0 %v5131
        %6029 = vmatmul.mubr.bf16.gmra.mxu0 %v5130
        %v6030 = vpop.f32.mrf.mxu0
        %v6031 = vadd.f32 %v5269, %v6030
        %v6032 = vpop.f32.mrf.mxu0
        %v6033 = vadd.f32 %v5273, %v6032
        %v6034 = vpop.f32.mrf.mxu0
        %v6035 = vadd.f32 %v5269, %v6034
        %v6036 = vpop.f32.mrf.mxu0
        %v6037 = vadd.f32 %v5273, %v6036
        %6038 = vmatprep.mubr.bf16.mxu0 %v5133
        %6039 = vmatmul.mubr.bf16.gmra.mxu0 %v5132
        %v6040 = vpop.f32.mrf.mxu0
        %v6041 = vadd.f32 %v5269, %v6040
        %v6042 = vpop.f32.mrf.mxu0
        %v6043 = vadd.f32 %v5273, %v6042
        %v6044 = vpop.f32.mrf.mxu0
        %v6045 = vadd.f32 %v5269, %v6044
        %v6046 = vpop.f32.mrf.mxu0
        %v6047 = vadd.f32 %v5273, %v6046
        %6048 = vmatprep.mubr.bf16.mxu0 %v5135
        %6049 = vmatmul.mubr.bf16.gmra.mxu0 %v5134
        %v6050 = vpop.f32.mrf.mxu0
        %v6051 = vadd.f32 %v5269, %v6050
        %v6052 = vpop.f32.mrf.mxu0
        %v6053 = vadd.f32 %v5273, %v6052
        %v6054 = vpop.f32.mrf.mxu0
        %v6055 = vadd.f32 %v5269, %v6054
        %v6056 = vpop.f32.mrf.mxu0
        %v6057 = vadd.f32 %v5273, %v6056
        %6058 = vdwg.mxu0
        %6059 = vmatprep.subr.bf16.mxu0 %v5749
        %6060 = vmatpush1.bf16.msra.mxu0 %v5748
        %6061 = vmatprep.subr.bf16.mxu0 %v5741
        %6062 = vmatpush1.bf16.msra.mxu0 %v5740
        %6063 = vmatprep.subr.bf16.mxu0 %v5733
        %6064 = vmatpush1.bf16.msra.mxu0 %v5732
        %6065 = vmatprep.subr.bf16.mxu0 %v5725
        %6066 = vmatpush1.bf16.msra.mxu0 %v5724
        %6067 = vmatprep.subr.bf16.mxu0 %v5717
        %6068 = vmatpush1.bf16.msra.mxu0 %v5716
        %6069 = vmatprep.subr.bf16.mxu0 %v5709
        %6070 = vmatpush1.bf16.msra.mxu0 %v5708
        %6071 = vmatprep.subr.bf16.mxu0 %v5701
        %6072 = vmatpush1.bf16.msra.mxu0 %v5700
        %6073 = vmatprep.subr.bf16.mxu0 %v5693
        %6074 = vmatpush1.bf16.msra.mxu0 %v5692
        %6075 = vmatprep.subr.bf16.mxu0 %v5813
        %6076 = vmatpush2.bf16.msra.mxu0 %v5812
        %6077 = vmatprep.subr.bf16.mxu0 %v5805
        %6078 = vmatpush2.bf16.msra.mxu0 %v5804
        %6079 = vmatprep.subr.bf16.mxu0 %v5797
        %6080 = vmatpush2.bf16.msra.mxu0 %v5796
        %6081 = vmatprep.subr.bf16.mxu0 %v5789
        %6082 = vmatpush2.bf16.msra.mxu0 %v5788
        %6083 = vmatprep.subr.bf16.mxu0 %v5781
        %6084 = vmatpush2.bf16.msra.mxu0 %v5780
        %6085 = vmatprep.subr.bf16.mxu0 %v5773
        %6086 = vmatpush2.bf16.msra.mxu0 %v5772
        %6087 = vmatprep.subr.bf16.mxu0 %v5765
        %6088 = vmatpush2.bf16.msra.mxu0 %v5764
        %6089 = vmatprep.subr.bf16.mxu0 %v5757
        %6090 = vmatpush2.bf16.msra.mxu0 %v5756
        %6091 = vmatprep.mubr.bf16.mxu0 %v5121
        %6092 = vmatmul.mubr.bf16.gmra.mxu0 %v5120
        %v6093 = vpop.f32.mrf.mxu0
        %v6094 = vadd.f32 %v5277, %v6093
        %v6095 = vpop.f32.mrf.mxu0
        %v6096 = vadd.f32 %v5281, %v6095
        %v6097 = vpop.f32.mrf.mxu0
        %v6098 = vadd.f32 %v5277, %v6097
        %v6099 = vpop.f32.mrf.mxu0
        %v6100 = vadd.f32 %v5281, %v6099
        %6101 = vmatprep.mubr.bf16.mxu0 %v5123
        %6102 = vmatmul.mubr.bf16.gmra.mxu0 %v5122
        %v6103 = vpop.f32.mrf.mxu0
        %v6104 = vadd.f32 %v5277, %v6103
        %v6105 = vpop.f32.mrf.mxu0
        %v6106 = vadd.f32 %v5281, %v6105
        %v6107 = vpop.f32.mrf.mxu0
        %v6108 = vadd.f32 %v5277, %v6107
        %v6109 = vpop.f32.mrf.mxu0
        %v6110 = vadd.f32 %v5281, %v6109
        %6111 = vmatprep.mubr.bf16.mxu0 %v5125
        %6112 = vmatmul.mubr.bf16.gmra.mxu0 %v5124
        %v6113 = vpop.f32.mrf.mxu0
        %v6114 = vadd.f32 %v5277, %v6113
        %v6115 = vpop.f32.mrf.mxu0
        %v6116 = vadd.f32 %v5281, %v6115
        %v6117 = vpop.f32.mrf.mxu0
        %v6118 = vadd.f32 %v5277, %v6117
        %v6119 = vpop.f32.mrf.mxu0
        %v6120 = vadd.f32 %v5281, %v6119
        %6121 = vmatprep.mubr.bf16.mxu0 %v5127
        %6122 = vmatmul.mubr.bf16.gmra.mxu0 %v5126
        %v6123 = vpop.f32.mrf.mxu0
        %v6124 = vadd.f32 %v5277, %v6123
        %v6125 = vpop.f32.mrf.mxu0
        %v6126 = vadd.f32 %v5281, %v6125
        %v6127 = vpop.f32.mrf.mxu0
        %v6128 = vadd.f32 %v5277, %v6127
        %v6129 = vpop.f32.mrf.mxu0
        %v6130 = vadd.f32 %v5281, %v6129
        %6131 = vmatprep.mubr.bf16.mxu0 %v5129
        %6132 = vmatmul.mubr.bf16.gmra.mxu0 %v5128
        %v6133 = vpop.f32.mrf.mxu0
        %v6134 = vadd.f32 %v5277, %v6133
        %v6135 = vpop.f32.mrf.mxu0
        %v6136 = vadd.f32 %v5281, %v6135
        %v6137 = vpop.f32.mrf.mxu0
        %v6138 = vadd.f32 %v5277, %v6137
        %v6139 = vpop.f32.mrf.mxu0
        %v6140 = vadd.f32 %v5281, %v6139
        %6141 = vmatprep.mubr.bf16.mxu0 %v5131
        %6142 = vmatmul.mubr.bf16.gmra.mxu0 %v5130
        %v6143 = vpop.f32.mrf.mxu0
        %v6144 = vadd.f32 %v5277, %v6143
        %v6145 = vpop.f32.mrf.mxu0
        %v6146 = vadd.f32 %v5281, %v6145
        %v6147 = vpop.f32.mrf.mxu0
        %v6148 = vadd.f32 %v5277, %v6147
        %v6149 = vpop.f32.mrf.mxu0
        %v6150 = vadd.f32 %v5281, %v6149
        %6151 = vmatprep.mubr.bf16.mxu0 %v5133
        %6152 = vmatmul.mubr.bf16.gmra.mxu0 %v5132
        %v6153 = vpop.f32.mrf.mxu0
        %v6154 = vadd.f32 %v5277, %v6153
        %v6155 = vpop.f32.mrf.mxu0
        %v6156 = vadd.f32 %v5281, %v6155
        %v6157 = vpop.f32.mrf.mxu0
        %v6158 = vadd.f32 %v5277, %v6157
        %v6159 = vpop.f32.mrf.mxu0
        %v6160 = vadd.f32 %v5281, %v6159
        %6161 = vmatprep.mubr.bf16.mxu0 %v5135
        %6162 = vmatmul.mubr.bf16.gmra.mxu0 %v5134
        %v6163 = vpop.f32.mrf.mxu0
        %v6164 = vadd.f32 %v5277, %v6163
        %v6165 = vpop.f32.mrf.mxu0
        %v6166 = vadd.f32 %v5281, %v6165
        %v6167 = vpop.f32.mrf.mxu0
        %v6168 = vadd.f32 %v5277, %v6167
        %v6169 = vpop.f32.mrf.mxu0
        %v6170 = vadd.f32 %v5281, %v6169
        %6171 = vdwg.mxu0
        %6172 = vmatprep.subr.bf16.mxu0 %v5751
        %6173 = vmatpush1.bf16.msra.mxu0 %v5750
        %6174 = vmatprep.subr.bf16.mxu0 %v5743
        %6175 = vmatpush1.bf16.msra.mxu0 %v5742
        %6176 = vmatprep.subr.bf16.mxu0 %v5735
        %6177 = vmatpush1.bf16.msra.mxu0 %v5734
        %6178 = vmatprep.subr.bf16.mxu0 %v5727
        %6179 = vmatpush1.bf16.msra.mxu0 %v5726
        %6180 = vmatprep.subr.bf16.mxu0 %v5719
        %6181 = vmatpush1.bf16.msra.mxu0 %v5718
        %6182 = vmatprep.subr.bf16.mxu0 %v5711
        %6183 = vmatpush1.bf16.msra.mxu0 %v5710
        %6184 = vmatprep.subr.bf16.mxu0 %v5703
        %6185 = vmatpush1.bf16.msra.mxu0 %v5702
        %6186 = vmatprep.subr.bf16.mxu0 %v5695
        %6187 = vmatpush1.bf16.msra.mxu0 %v5694
        %6188 = vmatprep.subr.bf16.mxu0 %v5815
        %6189 = vmatpush2.bf16.msra.mxu0 %v5814
        %6190 = vmatprep.subr.bf16.mxu0 %v5807
        %6191 = vmatpush2.bf16.msra.mxu0 %v5806
        %6192 = vmatprep.subr.bf16.mxu0 %v5799
        %6193 = vmatpush2.bf16.msra.mxu0 %v5798
        %6194 = vmatprep.subr.bf16.mxu0 %v5791
        %6195 = vmatpush2.bf16.msra.mxu0 %v5790
        %6196 = vmatprep.subr.bf16.mxu0 %v5783
        %6197 = vmatpush2.bf16.msra.mxu0 %v5782
        %6198 = vmatprep.subr.bf16.mxu0 %v5775
        %6199 = vmatpush2.bf16.msra.mxu0 %v5774
        %6200 = vmatprep.subr.bf16.mxu0 %v5767
        %6201 = vmatpush2.bf16.msra.mxu0 %v5766
        %6202 = vmatprep.subr.bf16.mxu0 %v5759
        %6203 = vmatpush2.bf16.msra.mxu0 %v5758
        %6204 = vmatprep.mubr.bf16.mxu0 %v5121
        %6205 = vmatmul.mubr.bf16.gmra.mxu0 %v5120
        %v6206 = vpop.f32.mrf.mxu0
        %v6207 = vadd.f32 %v5285, %v6206
        %v6208 = vpop.f32.mrf.mxu0
        %v6209 = vadd.f32 %v5289, %v6208
        %v6210 = vpop.f32.mrf.mxu0
        %v6211 = vadd.f32 %v5285, %v6210
        %v6212 = vpop.f32.mrf.mxu0
        %v6213 = vadd.f32 %v5289, %v6212
        %6214 = vmatprep.mubr.bf16.mxu0 %v5123
        %6215 = vmatmul.mubr.bf16.gmra.mxu0 %v5122
        %v6216 = vpop.f32.mrf.mxu0
        %v6217 = vadd.f32 %v5285, %v6216
        %v6218 = vpop.f32.mrf.mxu0
        %v6219 = vadd.f32 %v5289, %v6218
        %v6220 = vpop.f32.mrf.mxu0
        %v6221 = vadd.f32 %v5285, %v6220
        %v6222 = vpop.f32.mrf.mxu0
        %v6223 = vadd.f32 %v5289, %v6222
        %6224 = vmatprep.mubr.bf16.mxu0 %v5125
        %6225 = vmatmul.mubr.bf16.gmra.mxu0 %v5124
        %v6226 = vpop.f32.mrf.mxu0
        %v6227 = vadd.f32 %v5285, %v6226
        %v6228 = vpop.f32.mrf.mxu0
        %v6229 = vadd.f32 %v5289, %v6228
        %v6230 = vpop.f32.mrf.mxu0
        %v6231 = vadd.f32 %v5285, %v6230
        %v6232 = vpop.f32.mrf.mxu0
        %v6233 = vadd.f32 %v5289, %v6232
        %6234 = vmatprep.mubr.bf16.mxu0 %v5127
        %6235 = vmatmul.mubr.bf16.gmra.mxu0 %v5126
        %v6236 = vpop.f32.mrf.mxu0
        %v6237 = vadd.f32 %v5285, %v6236
        %v6238 = vpop.f32.mrf.mxu0
        %v6239 = vadd.f32 %v5289, %v6238
        %v6240 = vpop.f32.mrf.mxu0
        %v6241 = vadd.f32 %v5285, %v6240
        %v6242 = vpop.f32.mrf.mxu0
        %v6243 = vadd.f32 %v5289, %v6242
        %6244 = vmatprep.mubr.bf16.mxu0 %v5129
        %6245 = vmatmul.mubr.bf16.gmra.mxu0 %v5128
        %v6246 = vpop.f32.mrf.mxu0
        %v6247 = vadd.f32 %v5285, %v6246
        %v6248 = vpop.f32.mrf.mxu0
        %v6249 = vadd.f32 %v5289, %v6248
        %v6250 = vpop.f32.mrf.mxu0
        %v6251 = vadd.f32 %v5285, %v6250
        %v6252 = vpop.f32.mrf.mxu0
        %v6253 = vadd.f32 %v5289, %v6252
        %6254 = vmatprep.mubr.bf16.mxu0 %v5131
        %6255 = vmatmul.mubr.bf16.gmra.mxu0 %v5130
        %v6256 = vpop.f32.mrf.mxu0
        %v6257 = vadd.f32 %v5285, %v6256
        %v6258 = vpop.f32.mrf.mxu0
        %v6259 = vadd.f32 %v5289, %v6258
        %v6260 = vpop.f32.mrf.mxu0
        %v6261 = vadd.f32 %v5285, %v6260
        %v6262 = vpop.f32.mrf.mxu0
        %v6263 = vadd.f32 %v5289, %v6262
        %6264 = vmatprep.mubr.bf16.mxu0 %v5133
        %6265 = vmatmul.mubr.bf16.gmra.mxu0 %v5132
        %v6266 = vpop.f32.mrf.mxu0
        %v6267 = vadd.f32 %v5285, %v6266
        %v6268 = vpop.f32.mrf.mxu0
        %v6269 = vadd.f32 %v5289, %v6268
        %v6270 = vpop.f32.mrf.mxu0
        %v6271 = vadd.f32 %v5285, %v6270
        %v6272 = vpop.f32.mrf.mxu0
        %v6273 = vadd.f32 %v5289, %v6272
        %6274 = vmatprep.mubr.bf16.mxu0 %v5135
        %6275 = vmatmul.mubr.bf16.gmra.mxu0 %v5134
        %v6276 = vpop.f32.mrf.mxu0
        %v6277 = vadd.f32 %v5285, %v6276
        %v6278 = vpop.f32.mrf.mxu0
        %v6279 = vadd.f32 %v5289, %v6278
        %v6280 = vpop.f32.mrf.mxu0
        %v6281 = vadd.f32 %v5285, %v6280
        %v6282 = vpop.f32.mrf.mxu0
        %v6283 = vadd.f32 %v5289, %v6282
        %6284 = vdwg.mxu0
        %6285 = vmatprep.subr.bf16.mxu0 %v5753
        %6286 = vmatpush1.bf16.msra.mxu0 %v5752
        %6287 = vmatprep.subr.bf16.mxu0 %v5745
        %6288 = vmatpush1.bf16.msra.mxu0 %v5744
        %6289 = vmatprep.subr.bf16.mxu0 %v5737
        %6290 = vmatpush1.bf16.msra.mxu0 %v5736
        %6291 = vmatprep.subr.bf16.mxu0 %v5729
        %6292 = vmatpush1.bf16.msra.mxu0 %v5728
        %6293 = vmatprep.subr.bf16.mxu0 %v5721
        %6294 = vmatpush1.bf16.msra.mxu0 %v5720
        %6295 = vmatprep.subr.bf16.mxu0 %v5713
        %6296 = vmatpush1.bf16.msra.mxu0 %v5712
        %6297 = vmatprep.subr.bf16.mxu0 %v5705
        %6298 = vmatpush1.bf16.msra.mxu0 %v5704
        %6299 = vmatprep.subr.bf16.mxu0 %v5697
        %6300 = vmatpush1.bf16.msra.mxu0 %v5696
        %6301 = vmatprep.subr.bf16.mxu0 %v5817
        %6302 = vmatpush2.bf16.msra.mxu0 %v5816
        %6303 = vmatprep.subr.bf16.mxu0 %v5809
        %6304 = vmatpush2.bf16.msra.mxu0 %v5808
        %6305 = vmatprep.subr.bf16.mxu0 %v5801
        %6306 = vmatpush2.bf16.msra.mxu0 %v5800
        %6307 = vmatprep.subr.bf16.mxu0 %v5793
        %6308 = vmatpush2.bf16.msra.mxu0 %v5792
        %6309 = vmatprep.subr.bf16.mxu0 %v5785
        %6310 = vmatpush2.bf16.msra.mxu0 %v5784
        %6311 = vmatprep.subr.bf16.mxu0 %v5777
        %6312 = vmatpush2.bf16.msra.mxu0 %v5776
        %6313 = vmatprep.subr.bf16.mxu0 %v5769
        %6314 = vmatpush2.bf16.msra.mxu0 %v5768
        %6315 = vmatprep.subr.bf16.mxu0 %v5761
        %6316 = vmatpush2.bf16.msra.mxu0 %v5760
        %6317 = vmatprep.mubr.bf16.mxu0 %v5121
        %6318 = vmatmul.mubr.bf16.gmra.mxu0 %v5120
        %v6319 = vpop.f32.mrf.mxu0
        %v6320 = vadd.f32 %v5293, %v6319
        %v6321 = vpop.f32.mrf.mxu0
        %v6322 = vadd.f32 %v5297, %v6321
        %v6323 = vpop.f32.mrf.mxu0
        %v6324 = vadd.f32 %v5293, %v6323
        %v6325 = vpop.f32.mrf.mxu0
        %v6326 = vadd.f32 %v5297, %v6325
        %6327 = vmatprep.mubr.bf16.mxu0 %v5123
        %6328 = vmatmul.mubr.bf16.gmra.mxu0 %v5122
        %v6329 = vpop.f32.mrf.mxu0
        %v6330 = vadd.f32 %v5293, %v6329
        %v6331 = vpop.f32.mrf.mxu0
        %v6332 = vadd.f32 %v5297, %v6331
        %v6333 = vpop.f32.mrf.mxu0
        %v6334 = vadd.f32 %v5293, %v6333
        %v6335 = vpop.f32.mrf.mxu0
        %v6336 = vadd.f32 %v5297, %v6335
        %6337 = vmatprep.mubr.bf16.mxu0 %v5125
        %6338 = vmatmul.mubr.bf16.gmra.mxu0 %v5124
        %v6339 = vpop.f32.mrf.mxu0
        %v6340 = vadd.f32 %v5293, %v6339
        %v6341 = vpop.f32.mrf.mxu0
        %v6342 = vadd.f32 %v5297, %v6341
        %v6343 = vpop.f32.mrf.mxu0
        %v6344 = vadd.f32 %v5293, %v6343
        %v6345 = vpop.f32.mrf.mxu0
        %v6346 = vadd.f32 %v5297, %v6345
        %6347 = vmatprep.mubr.bf16.mxu0 %v5127
        %6348 = vmatmul.mubr.bf16.gmra.mxu0 %v5126
        %v6349 = vpop.f32.mrf.mxu0
        %v6350 = vadd.f32 %v5293, %v6349
        %v6351 = vpop.f32.mrf.mxu0
        %v6352 = vadd.f32 %v5297, %v6351
        %v6353 = vpop.f32.mrf.mxu0
        %v6354 = vadd.f32 %v5293, %v6353
        %v6355 = vpop.f32.mrf.mxu0
        %v6356 = vadd.f32 %v5297, %v6355
        %6357 = vmatprep.mubr.bf16.mxu0 %v5129
        %6358 = vmatmul.mubr.bf16.gmra.mxu0 %v5128
        %v6359 = vpop.f32.mrf.mxu0
        %v6360 = vadd.f32 %v5293, %v6359
        %v6361 = vpop.f32.mrf.mxu0
        %v6362 = vadd.f32 %v5297, %v6361
        %v6363 = vpop.f32.mrf.mxu0
        %v6364 = vadd.f32 %v5293, %v6363
        %v6365 = vpop.f32.mrf.mxu0
        %v6366 = vadd.f32 %v5297, %v6365
        %6367 = vmatprep.mubr.bf16.mxu0 %v5131
        %6368 = vmatmul.mubr.bf16.gmra.mxu0 %v5130
        %v6369 = vpop.f32.mrf.mxu0
        %v6370 = vadd.f32 %v5293, %v6369
        %v6371 = vpop.f32.mrf.mxu0
        %v6372 = vadd.f32 %v5297, %v6371
        %v6373 = vpop.f32.mrf.mxu0
        %v6374 = vadd.f32 %v5293, %v6373
        %v6375 = vpop.f32.mrf.mxu0
        %v6376 = vadd.f32 %v5297, %v6375
        %6377 = vmatprep.mubr.bf16.mxu0 %v5133
        %6378 = vmatmul.mubr.bf16.gmra.mxu0 %v5132
        %v6379 = vpop.f32.mrf.mxu0
        %v6380 = vadd.f32 %v5293, %v6379
        %v6381 = vpop.f32.mrf.mxu0
        %v6382 = vadd.f32 %v5297, %v6381
        %v6383 = vpop.f32.mrf.mxu0
        %v6384 = vadd.f32 %v5293, %v6383
        %v6385 = vpop.f32.mrf.mxu0
        %v6386 = vadd.f32 %v5297, %v6385
        %6387 = vmatprep.mubr.bf16.mxu0 %v5135
        %6388 = vmatmul.mubr.bf16.gmra.mxu0 %v5134
        %v6389 = vpop.f32.mrf.mxu0
        %v6390 = vadd.f32 %v5293, %v6389
        %v6391 = vpop.f32.mrf.mxu0
        %v6392 = vadd.f32 %v5297, %v6391
        %v6393 = vpop.f32.mrf.mxu0
        %v6394 = vadd.f32 %v5293, %v6393
        %v6395 = vpop.f32.mrf.mxu0
        %v6396 = vadd.f32 %v5297, %v6395
        %6397 = vdwg.mxu0
        %v6398 = vmul.f32 %v5981, 0.5
        %v6399 = vmul.f32 %v5983, 0.5
        %v6400 = vmul.f32 %v6094, 0.5
        %v6401 = vmul.f32 %v6096, 0.5
        %v6402 = vmul.f32 %v6207, 0.5
        %v6403 = vmul.f32 %v6209, 0.5
        %v6404 = vmul.f32 %v6320, 0.5
        %v6405 = vmul.f32 %v6322, 0.5
        %v6406 = vmul.f32 %v5985, 0.5
        %v6407 = vmul.f32 %v5987, 0.5
        %v6408 = vmul.f32 %v6098, 0.5
        %v6409 = vmul.f32 %v6100, 0.5
        %v6410 = vmul.f32 %v6211, 0.5
        %v6411 = vmul.f32 %v6213, 0.5
        %v6412 = vmul.f32 %v6324, 0.5
        %v6413 = vmul.f32 %v6326, 0.5
        %v6414 = vmul.f32 %v5991, 0.5
        %v6415 = vmul.f32 %v5993, 0.5
        %v6416 = vmul.f32 %v6104, 0.5
        %v6417 = vmul.f32 %v6106, 0.5
        %v6418 = vmul.f32 %v6217, 0.5
        %v6419 = vmul.f32 %v6219, 0.5
        %v6420 = vmul.f32 %v6330, 0.5
        %v6421 = vmul.f32 %v6332, 0.5
        %v6422 = vmul.f32 %v5995, 0.5
        %v6423 = vmul.f32 %v5997, 0.5
        %v6424 = vmul.f32 %v6108, 0.5
        %v6425 = vmul.f32 %v6110, 0.5
        %v6426 = vmul.f32 %v6221, 0.5
        %v6427 = vmul.f32 %v6223, 0.5
        %v6428 = vmul.f32 %v6334, 0.5
        %v6429 = vmul.f32 %v6336, 0.5
        %v6430 = vmul.f32 %v6001, 0.5
        %v6431 = vmul.f32 %v6003, 0.5
        %v6432 = vmul.f32 %v6114, 0.5
        %v6433 = vmul.f32 %v6116, 0.5
        %v6434 = vmul.f32 %v6227, 0.5
        %v6435 = vmul.f32 %v6229, 0.5
        %v6436 = vmul.f32 %v6340, 0.5
        %v6437 = vmul.f32 %v6342, 0.5
        %v6438 = vmul.f32 %v6005, 0.5
        %v6439 = vmul.f32 %v6007, 0.5
        %v6440 = vmul.f32 %v6118, 0.5
        %v6441 = vmul.f32 %v6120, 0.5
        %v6442 = vmul.f32 %v6231, 0.5
        %v6443 = vmul.f32 %v6233, 0.5
        %v6444 = vmul.f32 %v6344, 0.5
        %v6445 = vmul.f32 %v6346, 0.5
        %v6446 = vmul.f32 %v6011, 0.5
        %v6447 = vmul.f32 %v6013, 0.5
        %v6448 = vmul.f32 %v6124, 0.5
        %v6449 = vmul.f32 %v6126, 0.5
        %v6450 = vmul.f32 %v6237, 0.5
        %v6451 = vmul.f32 %v6239, 0.5
        %v6452 = vmul.f32 %v6350, 0.5
        %v6453 = vmul.f32 %v6352, 0.5
        %v6454 = vmul.f32 %v6015, 0.5
        %v6455 = vmul.f32 %v6017, 0.5
        %v6456 = vmul.f32 %v6128, 0.5
        %v6457 = vmul.f32 %v6130, 0.5
        %v6458 = vmul.f32 %v6241, 0.5
        %v6459 = vmul.f32 %v6243, 0.5
        %v6460 = vmul.f32 %v6354, 0.5
        %v6461 = vmul.f32 %v6356, 0.5
        %v6462 = vmul.f32 %v6021, 0.5
        %v6463 = vmul.f32 %v6023, 0.5
        %v6464 = vmul.f32 %v6134, 0.5
        %v6465 = vmul.f32 %v6136, 0.5
        %v6466 = vmul.f32 %v6247, 0.5
        %v6467 = vmul.f32 %v6249, 0.5
        %v6468 = vmul.f32 %v6360, 0.5
        %v6469 = vmul.f32 %v6362, 0.5
        %v6470 = vmul.f32 %v6025, 0.5
        %v6471 = vmul.f32 %v6027, 0.5
        %v6472 = vmul.f32 %v6138, 0.5
        %v6473 = vmul.f32 %v6140, 0.5
        %v6474 = vmul.f32 %v6251, 0.5
        %v6475 = vmul.f32 %v6253, 0.5
        %v6476 = vmul.f32 %v6364, 0.5
        %v6477 = vmul.f32 %v6366, 0.5
        %v6478 = vmul.f32 %v6031, 0.5
        %v6479 = vmul.f32 %v6033, 0.5
        %v6480 = vmul.f32 %v6144, 0.5
        %v6481 = vmul.f32 %v6146, 0.5
        %v6482 = vmul.f32 %v6257, 0.5
        %v6483 = vmul.f32 %v6259, 0.5
        %v6484 = vmul.f32 %v6370, 0.5
        %v6485 = vmul.f32 %v6372, 0.5
        %v6486 = vmul.f32 %v6035, 0.5
        %v6487 = vmul.f32 %v6037, 0.5
        %v6488 = vmul.f32 %v6148, 0.5
        %v6489 = vmul.f32 %v6150, 0.5
        %v6490 = vmul.f32 %v6261, 0.5
        %v6491 = vmul.f32 %v6263, 0.5
        %v6492 = vmul.f32 %v6374, 0.5
        %v6493 = vmul.f32 %v6376, 0.5
        %v6494 = vmul.f32 %v6041, 0.5
        %v6495 = vmul.f32 %v6043, 0.5
        %v6496 = vmul.f32 %v6154, 0.5
        %v6497 = vmul.f32 %v6156, 0.5
        %v6498 = vmul.f32 %v6267, 0.5
        %v6499 = vmul.f32 %v6269, 0.5
        %v6500 = vmul.f32 %v6380, 0.5
        %v6501 = vmul.f32 %v6382, 0.5
        %v6502 = vmul.f32 %v6045, 0.5
        %v6503 = vmul.f32 %v6047, 0.5
        %v6504 = vmul.f32 %v6158, 0.5
        %v6505 = vmul.f32 %v6160, 0.5
        %v6506 = vmul.f32 %v6271, 0.5
        %v6507 = vmul.f32 %v6273, 0.5
        %v6508 = vmul.f32 %v6384, 0.5
        %v6509 = vmul.f32 %v6386, 0.5
        %v6510 = vmul.f32 %v6051, 0.5
        %v6511 = vmul.f32 %v6053, 0.5
        %v6512 = vmul.f32 %v6164, 0.5
        %v6513 = vmul.f32 %v6166, 0.5
        %v6514 = vmul.f32 %v6277, 0.5
        %v6515 = vmul.f32 %v6279, 0.5
        %v6516 = vmul.f32 %v6390, 0.5
        %v6517 = vmul.f32 %v6392, 0.5
        %v6518 = vmul.f32 %v6055, 0.5
        %v6519 = vmul.f32 %v6057, 0.5
        %v6520 = vmul.f32 %v6168, 0.5
        %v6521 = vmul.f32 %v6170, 0.5
        %v6522 = vmul.f32 %v6281, 0.5
        %v6523 = vmul.f32 %v6283, 0.5
        %v6524 = vmul.f32 %v6394, 0.5
        %v6525 = vmul.f32 %v6396, 0.5
        %v6526 = vmul.f32 %v5981, 0.70710677
        %v6527 = vmul.f32 %v5983, 0.70710677
        %v6528 = vmul.f32 %v6094, 0.70710677
        %v6529 = vmul.f32 %v6096, 0.70710677
        %v6530 = vmul.f32 %v6207, 0.70710677
        %v6531 = vmul.f32 %v6209, 0.70710677
        %v6532 = vmul.f32 %v6320, 0.70710677
        %v6533 = vmul.f32 %v6322, 0.70710677
        %v6534 = vmul.f32 %v5985, 0.70710677
        %v6535 = vmul.f32 %v5987, 0.70710677
        %v6536 = vmul.f32 %v6098, 0.70710677
        %v6537 = vmul.f32 %v6100, 0.70710677
        %v6538 = vmul.f32 %v6211, 0.70710677
        %v6539 = vmul.f32 %v6213, 0.70710677
        %v6540 = vmul.f32 %v6324, 0.70710677
        %v6541 = vmul.f32 %v6326, 0.70710677
        %v6542 = vmul.f32 %v5991, 0.70710677
        %v6543 = vmul.f32 %v5993, 0.70710677
        %v6544 = vmul.f32 %v6104, 0.70710677
        %v6545 = vmul.f32 %v6106, 0.70710677
        %v6546 = vmul.f32 %v6217, 0.70710677
        %v6547 = vmul.f32 %v6219, 0.70710677
        %v6548 = vmul.f32 %v6330, 0.70710677
        %v6549 = vmul.f32 %v6332, 0.70710677
        %v6550 = vmul.f32 %v5995, 0.70710677
        %v6551 = vmul.f32 %v5997, 0.70710677
        %v6552 = vmul.f32 %v6108, 0.70710677
        %v6553 = vmul.f32 %v6110, 0.70710677
        %v6554 = vmul.f32 %v6221, 0.70710677
        %v6555 = vmul.f32 %v6223, 0.70710677
        %v6556 = vmul.f32 %v6334, 0.70710677
        %v6557 = vmul.f32 %v6336, 0.70710677
        %v6558 = vmul.f32 %v6001, 0.70710677
        %v6559 = vmul.f32 %v6003, 0.70710677
        %v6560 = vmul.f32 %v6114, 0.70710677
        %v6561 = vmul.f32 %v6116, 0.70710677
        %v6562 = vmul.f32 %v6227, 0.70710677
        %v6563 = vmul.f32 %v6229, 0.70710677
        %v6564 = vmul.f32 %v6340, 0.70710677
        %v6565 = vmul.f32 %v6342, 0.70710677
        %v6566 = vmul.f32 %v6005, 0.70710677
        %v6567 = vmul.f32 %v6007, 0.70710677
        %v6568 = vmul.f32 %v6118, 0.70710677
        %v6569 = vmul.f32 %v6120, 0.70710677
        %v6570 = vmul.f32 %v6231, 0.70710677
        %v6571 = vmul.f32 %v6233, 0.70710677
        %v6572 = vmul.f32 %v6344, 0.70710677
        %v6573 = vmul.f32 %v6346, 0.70710677
        %v6574 = vmul.f32 %v6011, 0.70710677
        %v6575 = vmul.f32 %v6013, 0.70710677
        %v6576 = vmul.f32 %v6124, 0.70710677
        %v6577 = vmul.f32 %v6126, 0.70710677
        %v6578 = vmul.f32 %v6237, 0.70710677
        %v6579 = vmul.f32 %v6239, 0.70710677
        %v6580 = vmul.f32 %v6350, 0.70710677
        %v6581 = vmul.f32 %v6352, 0.70710677
        %v6582 = vmul.f32 %v6015, 0.70710677
        %v6583 = vmul.f32 %v6017, 0.70710677
        %v6584 = vmul.f32 %v6128, 0.70710677
        %v6585 = vmul.f32 %v6130, 0.70710677
        %v6586 = vmul.f32 %v6241, 0.70710677
        %v6587 = vmul.f32 %v6243, 0.70710677
        %v6588 = vmul.f32 %v6354, 0.70710677
        %v6589 = vmul.f32 %v6356, 0.70710677
        %v6590 = vmul.f32 %v6021, 0.70710677
        %v6591 = vmul.f32 %v6023, 0.70710677
        %v6592 = vmul.f32 %v6134, 0.70710677
        %v6593 = vmul.f32 %v6136, 0.70710677
        %v6594 = vmul.f32 %v6247, 0.70710677
        %v6595 = vmul.f32 %v6249, 0.70710677
        %v6596 = vmul.f32 %v6360, 0.70710677
        %v6597 = vmul.f32 %v6362, 0.70710677
        %v6598 = vmul.f32 %v6025, 0.70710677
        %v6599 = vmul.f32 %v6027, 0.70710677
        %v6600 = vmul.f32 %v6138, 0.70710677
        %v6601 = vmul.f32 %v6140, 0.70710677
        %v6602 = vmul.f32 %v6251, 0.70710677
        %v6603 = vmul.f32 %v6253, 0.70710677
        %v6604 = vmul.f32 %v6364, 0.70710677
        %v6605 = vmul.f32 %v6366, 0.70710677
        %v6606 = vmul.f32 %v6031, 0.70710677
        %v6607 = vmul.f32 %v6033, 0.70710677
        %v6608 = vmul.f32 %v6144, 0.70710677
        %v6609 = vmul.f32 %v6146, 0.70710677
        %v6610 = vmul.f32 %v6257, 0.70710677
        %v6611 = vmul.f32 %v6259, 0.70710677
        %v6612 = vmul.f32 %v6370, 0.70710677
        %v6613 = vmul.f32 %v6372, 0.70710677
        %v6614 = vmul.f32 %v6035, 0.70710677
        %v6615 = vmul.f32 %v6037, 0.70710677
        %v6616 = vmul.f32 %v6148, 0.70710677
        %v6617 = vmul.f32 %v6150, 0.70710677
        %v6618 = vmul.f32 %v6261, 0.70710677
        %v6619 = vmul.f32 %v6263, 0.70710677
        %v6620 = vmul.f32 %v6374, 0.70710677
        %v6621 = vmul.f32 %v6376, 0.70710677
        %v6622 = vmul.f32 %v6041, 0.70710677
        %v6623 = vmul.f32 %v6043, 0.70710677
        %v6624 = vmul.f32 %v6154, 0.70710677
        %v6625 = vmul.f32 %v6156, 0.70710677
        %v6626 = vmul.f32 %v6267, 0.70710677
        %v6627 = vmul.f32 %v6269, 0.70710677
        %v6628 = vmul.f32 %v6380, 0.70710677
        %v6629 = vmul.f32 %v6382, 0.70710677
        %v6630 = vmul.f32 %v6045, 0.70710677
        %v6631 = vmul.f32 %v6047, 0.70710677
        %v6632 = vmul.f32 %v6158, 0.70710677
        %v6633 = vmul.f32 %v6160, 0.70710677
        %v6634 = vmul.f32 %v6271, 0.70710677
        %v6635 = vmul.f32 %v6273, 0.70710677
        %v6636 = vmul.f32 %v6384, 0.70710677
        %v6637 = vmul.f32 %v6386, 0.70710677
        %v6638 = vmul.f32 %v6051, 0.70710677
        %v6639 = vmul.f32 %v6053, 0.70710677
        %v6640 = vmul.f32 %v6164, 0.70710677
        %v6641 = vmul.f32 %v6166, 0.70710677
        %v6642 = vmul.f32 %v6277, 0.70710677
        %v6643 = vmul.f32 %v6279, 0.70710677
        %v6644 = vmul.f32 %v6390, 0.70710677
        %v6645 = vmul.f32 %v6392, 0.70710677
        %v6646 = vmul.f32 %v6055, 0.70710677
        %v6647 = vmul.f32 %v6057, 0.70710677
        %v6648 = vmul.f32 %v6168, 0.70710677
        %v6649 = vmul.f32 %v6170, 0.70710677
        %v6650 = vmul.f32 %v6281, 0.70710677
        %v6651 = vmul.f32 %v6283, 0.70710677
        %v6652 = vmul.f32 %v6394, 0.70710677
        %v6653 = vmul.f32 %v6396, 0.70710677
        %vm6654 = vcmp.lt.f32.partialorder %v6526, 0.0
        %vm6655 = vcmp.lt.f32.partialorder %v6527, 0.0
        %vm6656 = vcmp.lt.f32.partialorder %v6528, 0.0
        %vm6657 = vcmp.lt.f32.partialorder %v6529, 0.0
        %vm6658 = vcmp.lt.f32.partialorder %v6530, 0.0
        %vm6659 = vcmp.lt.f32.partialorder %v6531, 0.0
        %vm6660 = vcmp.lt.f32.partialorder %v6532, 0.0
        %vm6661 = vcmp.lt.f32.partialorder %v6533, 0.0
        %vm6662 = vcmp.lt.f32.partialorder %v6534, 0.0
        %vm6663 = vcmp.lt.f32.partialorder %v6535, 0.0
        %vm6664 = vcmp.lt.f32.partialorder %v6536, 0.0
        %vm6665 = vcmp.lt.f32.partialorder %v6537, 0.0
        %vm6666 = vcmp.lt.f32.partialorder %v6538, 0.0
        %vm6667 = vcmp.lt.f32.partialorder %v6539, 0.0
        %vm6668 = vcmp.lt.f32.partialorder %v6540, 0.0
        %vm6669 = vcmp.lt.f32.partialorder %v6541, 0.0
        %vm6670 = vcmp.lt.f32.partialorder %v6542, 0.0
        %vm6671 = vcmp.lt.f32.partialorder %v6543, 0.0
        %vm6672 = vcmp.lt.f32.partialorder %v6544, 0.0
        %vm6673 = vcmp.lt.f32.partialorder %v6545, 0.0
        %vm6674 = vcmp.lt.f32.partialorder %v6546, 0.0
        %vm6675 = vcmp.lt.f32.partialorder %v6547, 0.0
        %vm6676 = vcmp.lt.f32.partialorder %v6548, 0.0
        %vm6677 = vcmp.lt.f32.partialorder %v6549, 0.0
        %vm6678 = vcmp.lt.f32.partialorder %v6550, 0.0
        %vm6679 = vcmp.lt.f32.partialorder %v6551, 0.0
        %vm6680 = vcmp.lt.f32.partialorder %v6552, 0.0
        %vm6681 = vcmp.lt.f32.partialorder %v6553, 0.0
        %vm6682 = vcmp.lt.f32.partialorder %v6554, 0.0
        %vm6683 = vcmp.lt.f32.partialorder %v6555, 0.0
        %vm6684 = vcmp.lt.f32.partialorder %v6556, 0.0
        %vm6685 = vcmp.lt.f32.partialorder %v6557, 0.0
        %vm6686 = vcmp.lt.f32.partialorder %v6558, 0.0
        %vm6687 = vcmp.lt.f32.partialorder %v6559, 0.0
        %vm6688 = vcmp.lt.f32.partialorder %v6560, 0.0
        %vm6689 = vcmp.lt.f32.partialorder %v6561, 0.0
        %vm6690 = vcmp.lt.f32.partialorder %v6562, 0.0
        %vm6691 = vcmp.lt.f32.partialorder %v6563, 0.0
        %vm6692 = vcmp.lt.f32.partialorder %v6564, 0.0
        %vm6693 = vcmp.lt.f32.partialorder %v6565, 0.0
        %vm6694 = vcmp.lt.f32.partialorder %v6566, 0.0
        %vm6695 = vcmp.lt.f32.partialorder %v6567, 0.0
        %vm6696 = vcmp.lt.f32.partialorder %v6568, 0.0
        %vm6697 = vcmp.lt.f32.partialorder %v6569, 0.0
        %vm6698 = vcmp.lt.f32.partialorder %v6570, 0.0
        %vm6699 = vcmp.lt.f32.partialorder %v6571, 0.0
        %vm6700 = vcmp.lt.f32.partialorder %v6572, 0.0
        %vm6701 = vcmp.lt.f32.partialorder %v6573, 0.0
        %vm6702 = vcmp.lt.f32.partialorder %v6574, 0.0
        %vm6703 = vcmp.lt.f32.partialorder %v6575, 0.0
        %vm6704 = vcmp.lt.f32.partialorder %v6576, 0.0
        %vm6705 = vcmp.lt.f32.partialorder %v6577, 0.0
        %vm6706 = vcmp.lt.f32.partialorder %v6578, 0.0
        %vm6707 = vcmp.lt.f32.partialorder %v6579, 0.0
        %vm6708 = vcmp.lt.f32.partialorder %v6580, 0.0
        %vm6709 = vcmp.lt.f32.partialorder %v6581, 0.0
        %vm6710 = vcmp.lt.f32.partialorder %v6582, 0.0
        %vm6711 = vcmp.lt.f32.partialorder %v6583, 0.0
        %vm6712 = vcmp.lt.f32.partialorder %v6584, 0.0
        %vm6713 = vcmp.lt.f32.partialorder %v6585, 0.0
        %vm6714 = vcmp.lt.f32.partialorder %v6586, 0.0
        %vm6715 = vcmp.lt.f32.partialorder %v6587, 0.0
        %vm6716 = vcmp.lt.f32.partialorder %v6588, 0.0
        %vm6717 = vcmp.lt.f32.partialorder %v6589, 0.0
        %vm6718 = vcmp.lt.f32.partialorder %v6590, 0.0
        %vm6719 = vcmp.lt.f32.partialorder %v6591, 0.0
        %vm6720 = vcmp.lt.f32.partialorder %v6592, 0.0
        %vm6721 = vcmp.lt.f32.partialorder %v6593, 0.0
        %vm6722 = vcmp.lt.f32.partialorder %v6594, 0.0
        %vm6723 = vcmp.lt.f32.partialorder %v6595, 0.0
        %vm6724 = vcmp.lt.f32.partialorder %v6596, 0.0
        %vm6725 = vcmp.lt.f32.partialorder %v6597, 0.0
        %vm6726 = vcmp.lt.f32.partialorder %v6598, 0.0
        %vm6727 = vcmp.lt.f32.partialorder %v6599, 0.0
        %vm6728 = vcmp.lt.f32.partialorder %v6600, 0.0
        %vm6729 = vcmp.lt.f32.partialorder %v6601, 0.0
        %vm6730 = vcmp.lt.f32.partialorder %v6602, 0.0
        %vm6731 = vcmp.lt.f32.partialorder %v6603, 0.0
        %vm6732 = vcmp.lt.f32.partialorder %v6604, 0.0
        %vm6733 = vcmp.lt.f32.partialorder %v6605, 0.0
        %vm6734 = vcmp.lt.f32.partialorder %v6606, 0.0
        %vm6735 = vcmp.lt.f32.partialorder %v6607, 0.0
        %vm6736 = vcmp.lt.f32.partialorder %v6608, 0.0
        %vm6737 = vcmp.lt.f32.partialorder %v6609, 0.0
        %vm6738 = vcmp.lt.f32.partialorder %v6610, 0.0
        %vm6739 = vcmp.lt.f32.partialorder %v6611, 0.0
        %vm6740 = vcmp.lt.f32.partialorder %v6612, 0.0
        %vm6741 = vcmp.lt.f32.partialorder %v6613, 0.0
        %vm6742 = vcmp.lt.f32.partialorder %v6614, 0.0
        %vm6743 = vcmp.lt.f32.partialorder %v6615, 0.0
        %vm6744 = vcmp.lt.f32.partialorder %v6616, 0.0
        %vm6745 = vcmp.lt.f32.partialorder %v6617, 0.0
        %vm6746 = vcmp.lt.f32.partialorder %v6618, 0.0
        %vm6747 = vcmp.lt.f32.partialorder %v6619, 0.0
        %vm6748 = vcmp.lt.f32.partialorder %v6620, 0.0
        %vm6749 = vcmp.lt.f32.partialorder %v6621, 0.0
        %vm6750 = vcmp.lt.f32.partialorder %v6622, 0.0
        %vm6751 = vcmp.lt.f32.partialorder %v6623, 0.0
        %vm6752 = vcmp.lt.f32.partialorder %v6624, 0.0
        %vm6753 = vcmp.lt.f32.partialorder %v6625, 0.0
        %vm6754 = vcmp.lt.f32.partialorder %v6626, 0.0
        %vm6755 = vcmp.lt.f32.partialorder %v6627, 0.0
        %vm6756 = vcmp.lt.f32.partialorder %v6628, 0.0
        %vm6757 = vcmp.lt.f32.partialorder %v6629, 0.0
        %vm6758 = vcmp.lt.f32.partialorder %v6630, 0.0
        %vm6759 = vcmp.lt.f32.partialorder %v6631, 0.0
        %vm6760 = vcmp.lt.f32.partialorder %v6632, 0.0
        %vm6761 = vcmp.lt.f32.partialorder %v6633, 0.0
        %vm6762 = vcmp.lt.f32.partialorder %v6634, 0.0
        %vm6763 = vcmp.lt.f32.partialorder %v6635, 0.0
        %vm6764 = vcmp.lt.f32.partialorder %v6636, 0.0
        %vm6765 = vcmp.lt.f32.partialorder %v6637, 0.0
        %vm6766 = vcmp.lt.f32.partialorder %v6638, 0.0
        %vm6767 = vcmp.lt.f32.partialorder %v6639, 0.0
        %vm6768 = vcmp.lt.f32.partialorder %v6640, 0.0
        %vm6769 = vcmp.lt.f32.partialorder %v6641, 0.0
        %vm6770 = vcmp.lt.f32.partialorder %v6642, 0.0
        %vm6771 = vcmp.lt.f32.partialorder %v6643, 0.0
        %vm6772 = vcmp.lt.f32.partialorder %v6644, 0.0
        %vm6773 = vcmp.lt.f32.partialorder %v6645, 0.0
        %vm6774 = vcmp.lt.f32.partialorder %v6646, 0.0
        %vm6775 = vcmp.lt.f32.partialorder %v6647, 0.0
        %vm6776 = vcmp.lt.f32.partialorder %v6648, 0.0
        %vm6777 = vcmp.lt.f32.partialorder %v6649, 0.0
        %vm6778 = vcmp.lt.f32.partialorder %v6650, 0.0
        %vm6779 = vcmp.lt.f32.partialorder %v6651, 0.0
        %vm6780 = vcmp.lt.f32.partialorder %v6652, 0.0
        %vm6781 = vcmp.lt.f32.partialorder %v6653, 0.0
        %v6782 = vsel %vm6654, -1.0, 1.0
        %v6783 = vsel %vm6655, -1.0, 1.0
        %v6784 = vsel %vm6656, -1.0, 1.0
        %v6785 = vsel %vm6657, -1.0, 1.0
        %v6786 = vsel %vm6658, -1.0, 1.0
        %v6787 = vsel %vm6659, -1.0, 1.0
        %v6788 = vsel %vm6660, -1.0, 1.0
        %v6789 = vsel %vm6661, -1.0, 1.0
        %v6790 = vsel %vm6662, -1.0, 1.0
        %v6791 = vsel %vm6663, -1.0, 1.0
        %v6792 = vsel %vm6664, -1.0, 1.0
        %v6793 = vsel %vm6665, -1.0, 1.0
        %v6794 = vsel %vm6666, -1.0, 1.0
        %v6795 = vsel %vm6667, -1.0, 1.0
        %v6796 = vsel %vm6668, -1.0, 1.0
        %v6797 = vsel %vm6669, -1.0, 1.0
        %v6798 = vsel %vm6670, -1.0, 1.0
        %v6799 = vsel %vm6671, -1.0, 1.0
        %v6800 = vsel %vm6672, -1.0, 1.0
        %v6801 = vsel %vm6673, -1.0, 1.0
        %v6802 = vsel %vm6674, -1.0, 1.0
        %v6803 = vsel %vm6675, -1.0, 1.0
        %v6804 = vsel %vm6676, -1.0, 1.0
        %v6805 = vsel %vm6677, -1.0, 1.0
        %v6806 = vsel %vm6678, -1.0, 1.0
        %v6807 = vsel %vm6679, -1.0, 1.0
        %v6808 = vsel %vm6680, -1.0, 1.0
        %v6809 = vsel %vm6681, -1.0, 1.0
        %v6810 = vsel %vm6682, -1.0, 1.0
        %v6811 = vsel %vm6683, -1.0, 1.0
        %v6812 = vsel %vm6684, -1.0, 1.0
        %v6813 = vsel %vm6685, -1.0, 1.0
        %v6814 = vsel %vm6686, -1.0, 1.0
        %v6815 = vsel %vm6687, -1.0, 1.0
        %v6816 = vsel %vm6688, -1.0, 1.0
        %v6817 = vsel %vm6689, -1.0, 1.0
        %v6818 = vsel %vm6690, -1.0, 1.0
        %v6819 = vsel %vm6691, -1.0, 1.0
        %v6820 = vsel %vm6692, -1.0, 1.0
        %v6821 = vsel %vm6693, -1.0, 1.0
        %v6822 = vsel %vm6694, -1.0, 1.0
        %v6823 = vsel %vm6695, -1.0, 1.0
        %v6824 = vsel %vm6696, -1.0, 1.0
        %v6825 = vsel %vm6697, -1.0, 1.0
        %v6826 = vsel %vm6698, -1.0, 1.0
        %v6827 = vsel %vm6699, -1.0, 1.0
        %v6828 = vsel %vm6700, -1.0, 1.0
        %v6829 = vsel %vm6701, -1.0, 1.0
        %v6830 = vsel %vm6702, -1.0, 1.0
        %v6831 = vsel %vm6703, -1.0, 1.0
        %v6832 = vsel %vm6704, -1.0, 1.0
        %v6833 = vsel %vm6705, -1.0, 1.0
        %v6834 = vsel %vm6706, -1.0, 1.0
        %v6835 = vsel %vm6707, -1.0, 1.0
        %v6836 = vsel %vm6708, -1.0, 1.0
        %v6837 = vsel %vm6709, -1.0, 1.0
        %v6838 = vsel %vm6710, -1.0, 1.0
        %v6839 = vsel %vm6711, -1.0, 1.0
        %v6840 = vsel %vm6712, -1.0, 1.0
        %v6841 = vsel %vm6713, -1.0, 1.0
        %v6842 = vsel %vm6714, -1.0, 1.0
        %v6843 = vsel %vm6715, -1.0, 1.0
        %v6844 = vsel %vm6716, -1.0, 1.0
        %v6845 = vsel %vm6717, -1.0, 1.0
        %v6846 = vsel %vm6718, -1.0, 1.0
        %v6847 = vsel %vm6719, -1.0, 1.0
        %v6848 = vsel %vm6720, -1.0, 1.0
        %v6849 = vsel %vm6721, -1.0, 1.0
        %v6850 = vsel %vm6722, -1.0, 1.0
        %v6851 = vsel %vm6723, -1.0, 1.0
        %v6852 = vsel %vm6724, -1.0, 1.0
        %v6853 = vsel %vm6725, -1.0, 1.0
        %v6854 = vsel %vm6726, -1.0, 1.0
        %v6855 = vsel %vm6727, -1.0, 1.0
        %v6856 = vsel %vm6728, -1.0, 1.0
        %v6857 = vsel %vm6729, -1.0, 1.0
        %v6858 = vsel %vm6730, -1.0, 1.0
        %v6859 = vsel %vm6731, -1.0, 1.0
        %v6860 = vsel %vm6732, -1.0, 1.0
        %v6861 = vsel %vm6733, -1.0, 1.0
        %v6862 = vsel %vm6734, -1.0, 1.0
        %v6863 = vsel %vm6735, -1.0, 1.0
        %v6864 = vsel %vm6736, -1.0, 1.0
        %v6865 = vsel %vm6737, -1.0, 1.0
        %v6866 = vsel %vm6738, -1.0, 1.0
        %v6867 = vsel %vm6739, -1.0, 1.0
        %v6868 = vsel %vm6740, -1.0, 1.0
        %v6869 = vsel %vm6741, -1.0, 1.0
        %v6870 = vsel %vm6742, -1.0, 1.0
        %v6871 = vsel %vm6743, -1.0, 1.0
        %v6872 = vsel %vm6744, -1.0, 1.0
        %v6873 = vsel %vm6745, -1.0, 1.0
        %v6874 = vsel %vm6746, -1.0, 1.0
        %v6875 = vsel %vm6747, -1.0, 1.0
        %v6876 = vsel %vm6748, -1.0, 1.0
        %v6877 = vsel %vm6749, -1.0, 1.0
        %v6878 = vsel %vm6750, -1.0, 1.0
        %v6879 = vsel %vm6751, -1.0, 1.0
        %v6880 = vsel %vm6752, -1.0, 1.0
        %v6881 = vsel %vm6753, -1.0, 1.0
        %v6882 = vsel %vm6754, -1.0, 1.0
        %v6883 = vsel %vm6755, -1.0, 1.0
        %v6884 = vsel %vm6756, -1.0, 1.0
        %v6885 = vsel %vm6757, -1.0, 1.0
        %v6886 = vsel %vm6758, -1.0, 1.0
        %v6887 = vsel %vm6759, -1.0, 1.0
        %v6888 = vsel %vm6760, -1.0, 1.0
        %v6889 = vsel %vm6761, -1.0, 1.0
        %v6890 = vsel %vm6762, -1.0, 1.0
        %v6891 = vsel %vm6763, -1.0, 1.0
        %v6892 = vsel %vm6764, -1.0, 1.0
        %v6893 = vsel %vm6765, -1.0, 1.0
        %v6894 = vsel %vm6766, -1.0, 1.0
        %v6895 = vsel %vm6767, -1.0, 1.0
        %v6896 = vsel %vm6768, -1.0, 1.0
        %v6897 = vsel %vm6769, -1.0, 1.0
        %v6898 = vsel %vm6770, -1.0, 1.0
        %v6899 = vsel %vm6771, -1.0, 1.0
        %v6900 = vsel %vm6772, -1.0, 1.0
        %v6901 = vsel %vm6773, -1.0, 1.0
        %v6902 = vsel %vm6774, -1.0, 1.0
        %v6903 = vsel %vm6775, -1.0, 1.0
        %v6904 = vsel %vm6776, -1.0, 1.0
        %v6905 = vsel %vm6777, -1.0, 1.0
        %v6906 = vsel %vm6778, -1.0, 1.0
        %v6907 = vsel %vm6779, -1.0, 1.0
        %v6908 = vsel %vm6780, -1.0, 1.0
        %v6909 = vsel %vm6781, -1.0, 1.0
        %v6910 = vmul.f32 %v6526, %v6782
        %v6911 = vmul.f32 %v6527, %v6783
        %v6912 = vmul.f32 %v6528, %v6784
        %v6913 = vmul.f32 %v6529, %v6785
        %v6914 = vmul.f32 %v6530, %v6786
        %v6915 = vmul.f32 %v6531, %v6787
        %v6916 = vmul.f32 %v6532, %v6788
        %v6917 = vmul.f32 %v6533, %v6789
        %v6918 = vmul.f32 %v6534, %v6790
        %v6919 = vmul.f32 %v6535, %v6791
        %v6920 = vmul.f32 %v6536, %v6792
        %v6921 = vmul.f32 %v6537, %v6793
        %v6922 = vmul.f32 %v6538, %v6794
        %v6923 = vmul.f32 %v6539, %v6795
        %v6924 = vmul.f32 %v6540, %v6796
        %v6925 = vmul.f32 %v6541, %v6797
        %v6926 = vmul.f32 %v6542, %v6798
        %v6927 = vmul.f32 %v6543, %v6799
        %v6928 = vmul.f32 %v6544, %v6800
        %v6929 = vmul.f32 %v6545, %v6801
        %v6930 = vmul.f32 %v6546, %v6802
        %v6931 = vmul.f32 %v6547, %v6803
        %v6932 = vmul.f32 %v6548, %v6804
        %v6933 = vmul.f32 %v6549, %v6805
        %v6934 = vmul.f32 %v6550, %v6806
        %v6935 = vmul.f32 %v6551, %v6807
        %v6936 = vmul.f32 %v6552, %v6808
        %v6937 = vmul.f32 %v6553, %v6809
        %v6938 = vmul.f32 %v6554, %v6810
        %v6939 = vmul.f32 %v6555, %v6811
        %v6940 = vmul.f32 %v6556, %v6812
        %v6941 = vmul.f32 %v6557, %v6813
        %v6942 = vmul.f32 %v6558, %v6814
        %v6943 = vmul.f32 %v6559, %v6815
        %v6944 = vmul.f32 %v6560, %v6816
        %v6945 = vmul.f32 %v6561, %v6817
        %v6946 = vmul.f32 %v6562, %v6818
        %v6947 = vmul.f32 %v6563, %v6819
        %v6948 = vmul.f32 %v6564, %v6820
        %v6949 = vmul.f32 %v6565, %v6821
        %v6950 = vmul.f32 %v6566, %v6822
        %v6951 = vmul.f32 %v6567, %v6823
        %v6952 = vmul.f32 %v6568, %v6824
        %v6953 = vmul.f32 %v6569, %v6825
        %v6954 = vmul.f32 %v6570, %v6826
        %v6955 = vmul.f32 %v6571, %v6827
        %v6956 = vmul.f32 %v6572, %v6828
        %v6957 = vmul.f32 %v6573, %v6829
        %v6958 = vmul.f32 %v6574, %v6830
        %v6959 = vmul.f32 %v6575, %v6831
        %v6960 = vmul.f32 %v6576, %v6832
        %v6961 = vmul.f32 %v6577, %v6833
        %v6962 = vmul.f32 %v6578, %v6834
        %v6963 = vmul.f32 %v6579, %v6835
        %v6964 = vmul.f32 %v6580, %v6836
        %v6965 = vmul.f32 %v6581, %v6837
        %v6966 = vmul.f32 %v6582, %v6838
        %v6967 = vmul.f32 %v6583, %v6839
        %v6968 = vmul.f32 %v6584, %v6840
        %v6969 = vmul.f32 %v6585, %v6841
        %v6970 = vmul.f32 %v6586, %v6842
        %v6971 = vmul.f32 %v6587, %v6843
        %v6972 = vmul.f32 %v6588, %v6844
        %v6973 = vmul.f32 %v6589, %v6845
        %v6974 = vmul.f32 %v6590, %v6846
        %v6975 = vmul.f32 %v6591, %v6847
        %v6976 = vmul.f32 %v6592, %v6848
        %v6977 = vmul.f32 %v6593, %v6849
        %v6978 = vmul.f32 %v6594, %v6850
        %v6979 = vmul.f32 %v6595, %v6851
        %v6980 = vmul.f32 %v6596, %v6852
        %v6981 = vmul.f32 %v6597, %v6853
        %v6982 = vmul.f32 %v6598, %v6854
        %v6983 = vmul.f32 %v6599, %v6855
        %v6984 = vmul.f32 %v6600, %v6856
        %v6985 = vmul.f32 %v6601, %v6857
        %v6986 = vmul.f32 %v6602, %v6858
        %v6987 = vmul.f32 %v6603, %v6859
        %v6988 = vmul.f32 %v6604, %v6860
        %v6989 = vmul.f32 %v6605, %v6861
        %v6990 = vmul.f32 %v6606, %v6862
        %v6991 = vmul.f32 %v6607, %v6863
        %v6992 = vmul.f32 %v6608, %v6864
        %v6993 = vmul.f32 %v6609, %v6865
        %v6994 = vmul.f32 %v6610, %v6866
        %v6995 = vmul.f32 %v6611, %v6867
        %v6996 = vmul.f32 %v6612, %v6868
        %v6997 = vmul.f32 %v6613, %v6869
        %v6998 = vmul.f32 %v6614, %v6870
        %v6999 = vmul.f32 %v6615, %v6871
        %v7000 = vmul.f32 %v6616, %v6872
        %v7001 = vmul.f32 %v6617, %v6873
        %v7002 = vmul.f32 %v6618, %v6874
        %v7003 = vmul.f32 %v6619, %v6875
        %v7004 = vmul.f32 %v6620, %v6876
        %v7005 = vmul.f32 %v6621, %v6877
        %v7006 = vmul.f32 %v6622, %v6878
        %v7007 = vmul.f32 %v6623, %v6879
        %v7008 = vmul.f32 %v6624, %v6880
        %v7009 = vmul.f32 %v6625, %v6881
        %v7010 = vmul.f32 %v6626, %v6882
        %v7011 = vmul.f32 %v6627, %v6883
        %v7012 = vmul.f32 %v6628, %v6884
        %v7013 = vmul.f32 %v6629, %v6885
        %v7014 = vmul.f32 %v6630, %v6886
        %v7015 = vmul.f32 %v6631, %v6887
        %v7016 = vmul.f32 %v6632, %v6888
        %v7017 = vmul.f32 %v6633, %v6889
        %v7018 = vmul.f32 %v6634, %v6890
        %v7019 = vmul.f32 %v6635, %v6891
        %v7020 = vmul.f32 %v6636, %v6892
        %v7021 = vmul.f32 %v6637, %v6893
        %v7022 = vmul.f32 %v6638, %v6894
        %v7023 = vmul.f32 %v6639, %v6895
        %v7024 = vmul.f32 %v6640, %v6896
        %v7025 = vmul.f32 %v6641, %v6897
        %v7026 = vmul.f32 %v6642, %v6898
        %v7027 = vmul.f32 %v6643, %v6899
        %v7028 = vmul.f32 %v6644, %v6900
        %v7029 = vmul.f32 %v6645, %v6901
        %v7030 = vmul.f32 %v6646, %v6902
        %v7031 = vmul.f32 %v6647, %v6903
        %v7032 = vmul.f32 %v6648, %v6904
        %v7033 = vmul.f32 %v6649, %v6905
        %v7034 = vmul.f32 %v6650, %v6906
        %v7035 = vmul.f32 %v6651, %v6907
        %v7036 = vmul.f32 %v6652, %v6908
        %v7037 = vmul.f32 %v6653, %v6909
        %v7038 = vmul.f32 %v6910, 0.3275911
        %v7039 = vmul.f32 %v6911, 0.3275911
        %v7040 = vmul.f32 %v6912, 0.3275911
        %v7041 = vmul.f32 %v6913, 0.3275911
        %v7042 = vmul.f32 %v6914, 0.3275911
        %v7043 = vmul.f32 %v6915, 0.3275911
        %v7044 = vmul.f32 %v6916, 0.3275911
        %v7045 = vmul.f32 %v6917, 0.3275911
        %v7046 = vmul.f32 %v6918, 0.3275911
        %v7047 = vmul.f32 %v6919, 0.3275911
        %v7048 = vmul.f32 %v6920, 0.3275911
        %v7049 = vmul.f32 %v6921, 0.3275911
        %v7050 = vmul.f32 %v6922, 0.3275911
        %v7051 = vmul.f32 %v6923, 0.3275911
        %v7052 = vmul.f32 %v6924, 0.3275911
        %v7053 = vmul.f32 %v6925, 0.3275911
        %v7054 = vmul.f32 %v6926, 0.3275911
        %v7055 = vmul.f32 %v6927, 0.3275911
        %v7056 = vmul.f32 %v6928, 0.3275911
        %v7057 = vmul.f32 %v6929, 0.3275911
        %v7058 = vmul.f32 %v6930, 0.3275911
        %v7059 = vmul.f32 %v6931, 0.3275911
        %v7060 = vmul.f32 %v6932, 0.3275911
        %v7061 = vmul.f32 %v6933, 0.3275911
        %v7062 = vmul.f32 %v6934, 0.3275911
        %v7063 = vmul.f32 %v6935, 0.3275911
        %v7064 = vmul.f32 %v6936, 0.3275911
        %v7065 = vmul.f32 %v6937, 0.3275911
        %v7066 = vmul.f32 %v6938, 0.3275911
        %v7067 = vmul.f32 %v6939, 0.3275911
        %v7068 = vmul.f32 %v6940, 0.3275911
        %v7069 = vmul.f32 %v6941, 0.3275911
        %v7070 = vmul.f32 %v6942, 0.3275911
        %v7071 = vmul.f32 %v6943, 0.3275911
        %v7072 = vmul.f32 %v6944, 0.3275911
        %v7073 = vmul.f32 %v6945, 0.3275911
        %v7074 = vmul.f32 %v6946, 0.3275911
        %v7075 = vmul.f32 %v6947, 0.3275911
        %v7076 = vmul.f32 %v6948, 0.3275911
        %v7077 = vmul.f32 %v6949, 0.3275911
        %v7078 = vmul.f32 %v6950, 0.3275911
        %v7079 = vmul.f32 %v6951, 0.3275911
        %v7080 = vmul.f32 %v6952, 0.3275911
        %v7081 = vmul.f32 %v6953, 0.3275911
        %v7082 = vmul.f32 %v6954, 0.3275911
        %v7083 = vmul.f32 %v6955, 0.3275911
        %v7084 = vmul.f32 %v6956, 0.3275911
        %v7085 = vmul.f32 %v6957, 0.3275911
        %v7086 = vmul.f32 %v6958, 0.3275911
        %v7087 = vmul.f32 %v6959, 0.3275911
        %v7088 = vmul.f32 %v6960, 0.3275911
        %v7089 = vmul.f32 %v6961, 0.3275911
        %v7090 = vmul.f32 %v6962, 0.3275911
        %v7091 = vmul.f32 %v6963, 0.3275911
        %v7092 = vmul.f32 %v6964, 0.3275911
        %v7093 = vmul.f32 %v6965, 0.3275911
        %v7094 = vmul.f32 %v6966, 0.3275911
        %v7095 = vmul.f32 %v6967, 0.3275911
        %v7096 = vmul.f32 %v6968, 0.3275911
        %v7097 = vmul.f32 %v6969, 0.3275911
        %v7098 = vmul.f32 %v6970, 0.3275911
        %v7099 = vmul.f32 %v6971, 0.3275911
        %v7100 = vmul.f32 %v6972, 0.3275911
        %v7101 = vmul.f32 %v6973, 0.3275911
        %v7102 = vmul.f32 %v6974, 0.3275911
        %v7103 = vmul.f32 %v6975, 0.3275911
        %v7104 = vmul.f32 %v6976, 0.3275911
        %v7105 = vmul.f32 %v6977, 0.3275911
        %v7106 = vmul.f32 %v6978, 0.3275911
        %v7107 = vmul.f32 %v6979, 0.3275911
        %v7108 = vmul.f32 %v6980, 0.3275911
        %v7109 = vmul.f32 %v6981, 0.3275911
        %v7110 = vmul.f32 %v6982, 0.3275911
        %v7111 = vmul.f32 %v6983, 0.3275911
        %v7112 = vmul.f32 %v6984, 0.3275911
        %v7113 = vmul.f32 %v6985, 0.3275911
        %v7114 = vmul.f32 %v6986, 0.3275911
        %v7115 = vmul.f32 %v6987, 0.3275911
        %v7116 = vmul.f32 %v6988, 0.3275911
        %v7117 = vmul.f32 %v6989, 0.3275911
        %v7118 = vmul.f32 %v6990, 0.3275911
        %v7119 = vmul.f32 %v6991, 0.3275911
        %v7120 = vmul.f32 %v6992, 0.3275911
        %v7121 = vmul.f32 %v6993, 0.3275911
        %v7122 = vmul.f32 %v6994, 0.3275911
        %v7123 = vmul.f32 %v6995, 0.3275911
        %v7124 = vmul.f32 %v6996, 0.3275911
        %v7125 = vmul.f32 %v6997, 0.3275911
        %v7126 = vmul.f32 %v6998, 0.3275911
        %v7127 = vmul.f32 %v6999, 0.3275911
        %v7128 = vmul.f32 %v7000, 0.3275911
        %v7129 = vmul.f32 %v7001, 0.3275911
        %v7130 = vmul.f32 %v7002, 0.3275911
        %v7131 = vmul.f32 %v7003, 0.3275911
        %v7132 = vmul.f32 %v7004, 0.3275911
        %v7133 = vmul.f32 %v7005, 0.3275911
        %v7134 = vmul.f32 %v7006, 0.3275911
        %v7135 = vmul.f32 %v7007, 0.3275911
        %v7136 = vmul.f32 %v7008, 0.3275911
        %v7137 = vmul.f32 %v7009, 0.3275911
        %v7138 = vmul.f32 %v7010, 0.3275911
        %v7139 = vmul.f32 %v7011, 0.3275911
        %v7140 = vmul.f32 %v7012, 0.3275911
        %v7141 = vmul.f32 %v7013, 0.3275911
        %v7142 = vmul.f32 %v7014, 0.3275911
        %v7143 = vmul.f32 %v7015, 0.3275911
        %v7144 = vmul.f32 %v7016, 0.3275911
        %v7145 = vmul.f32 %v7017, 0.3275911
        %v7146 = vmul.f32 %v7018, 0.3275911
        %v7147 = vmul.f32 %v7019, 0.3275911
        %v7148 = vmul.f32 %v7020, 0.3275911
        %v7149 = vmul.f32 %v7021, 0.3275911
        %v7150 = vmul.f32 %v7022, 0.3275911
        %v7151 = vmul.f32 %v7023, 0.3275911
        %v7152 = vmul.f32 %v7024, 0.3275911
        %v7153 = vmul.f32 %v7025, 0.3275911
        %v7154 = vmul.f32 %v7026, 0.3275911
        %v7155 = vmul.f32 %v7027, 0.3275911
        %v7156 = vmul.f32 %v7028, 0.3275911
        %v7157 = vmul.f32 %v7029, 0.3275911
        %v7158 = vmul.f32 %v7030, 0.3275911
        %v7159 = vmul.f32 %v7031, 0.3275911
        %v7160 = vmul.f32 %v7032, 0.3275911
        %v7161 = vmul.f32 %v7033, 0.3275911
        %v7162 = vmul.f32 %v7034, 0.3275911
        %v7163 = vmul.f32 %v7035, 0.3275911
        %v7164 = vmul.f32 %v7036, 0.3275911
        %v7165 = vmul.f32 %v7037, 0.3275911
        %v7166 = vadd.f32 %v7038, 1.0
        %v7167 = vadd.f32 %v7039, 1.0
        %v7168 = vadd.f32 %v7040, 1.0
        %v7169 = vadd.f32 %v7041, 1.0
        %v7170 = vadd.f32 %v7042, 1.0
        %v7171 = vadd.f32 %v7043, 1.0
        %v7172 = vadd.f32 %v7044, 1.0
        %v7173 = vadd.f32 %v7045, 1.0
        %v7174 = vadd.f32 %v7046, 1.0
        %v7175 = vadd.f32 %v7047, 1.0
        %v7176 = vadd.f32 %v7048, 1.0
        %v7177 = vadd.f32 %v7049, 1.0
        %v7178 = vadd.f32 %v7050, 1.0
        %v7179 = vadd.f32 %v7051, 1.0
        %v7180 = vadd.f32 %v7052, 1.0
        %v7181 = vadd.f32 %v7053, 1.0
        %v7182 = vadd.f32 %v7054, 1.0
        %v7183 = vadd.f32 %v7055, 1.0
        %v7184 = vadd.f32 %v7056, 1.0
        %v7185 = vadd.f32 %v7057, 1.0
        %v7186 = vadd.f32 %v7058, 1.0
        %v7187 = vadd.f32 %v7059, 1.0
        %v7188 = vadd.f32 %v7060, 1.0
        %v7189 = vadd.f32 %v7061, 1.0
        %v7190 = vadd.f32 %v7062, 1.0
        %v7191 = vadd.f32 %v7063, 1.0
        %v7192 = vadd.f32 %v7064, 1.0
        %v7193 = vadd.f32 %v7065, 1.0
        %v7194 = vadd.f32 %v7066, 1.0
        %v7195 = vadd.f32 %v7067, 1.0
        %v7196 = vadd.f32 %v7068, 1.0
        %v7197 = vadd.f32 %v7069, 1.0
        %v7198 = vadd.f32 %v7070, 1.0
        %v7199 = vadd.f32 %v7071, 1.0
        %v7200 = vadd.f32 %v7072, 1.0
        %v7201 = vadd.f32 %v7073, 1.0
        %v7202 = vadd.f32 %v7074, 1.0
        %v7203 = vadd.f32 %v7075, 1.0
        %v7204 = vadd.f32 %v7076, 1.0
        %v7205 = vadd.f32 %v7077, 1.0
        %v7206 = vadd.f32 %v7078, 1.0
        %v7207 = vadd.f32 %v7079, 1.0
        %v7208 = vadd.f32 %v7080, 1.0
        %v7209 = vadd.f32 %v7081, 1.0
        %v7210 = vadd.f32 %v7082, 1.0
        %v7211 = vadd.f32 %v7083, 1.0
        %v7212 = vadd.f32 %v7084, 1.0
        %v7213 = vadd.f32 %v7085, 1.0
        %v7214 = vadd.f32 %v7086, 1.0
        %v7215 = vadd.f32 %v7087, 1.0
        %v7216 = vadd.f32 %v7088, 1.0
        %v7217 = vadd.f32 %v7089, 1.0
        %v7218 = vadd.f32 %v7090, 1.0
        %v7219 = vadd.f32 %v7091, 1.0
        %v7220 = vadd.f32 %v7092, 1.0
        %v7221 = vadd.f32 %v7093, 1.0
        %v7222 = vadd.f32 %v7094, 1.0
        %v7223 = vadd.f32 %v7095, 1.0
        %v7224 = vadd.f32 %v7096, 1.0
        %v7225 = vadd.f32 %v7097, 1.0
        %v7226 = vadd.f32 %v7098, 1.0
        %v7227 = vadd.f32 %v7099, 1.0
        %v7228 = vadd.f32 %v7100, 1.0
        %v7229 = vadd.f32 %v7101, 1.0
        %v7230 = vadd.f32 %v7102, 1.0
        %v7231 = vadd.f32 %v7103, 1.0
        %v7232 = vadd.f32 %v7104, 1.0
        %v7233 = vadd.f32 %v7105, 1.0
        %v7234 = vadd.f32 %v7106, 1.0
        %v7235 = vadd.f32 %v7107, 1.0
        %v7236 = vadd.f32 %v7108, 1.0
        %v7237 = vadd.f32 %v7109, 1.0
        %v7238 = vadd.f32 %v7110, 1.0
        %v7239 = vadd.f32 %v7111, 1.0
        %v7240 = vadd.f32 %v7112, 1.0
        %v7241 = vadd.f32 %v7113, 1.0
        %v7242 = vadd.f32 %v7114, 1.0
        %v7243 = vadd.f32 %v7115, 1.0
        %v7244 = vadd.f32 %v7116, 1.0
        %v7245 = vadd.f32 %v7117, 1.0
        %v7246 = vadd.f32 %v7118, 1.0
        %v7247 = vadd.f32 %v7119, 1.0
        %v7248 = vadd.f32 %v7120, 1.0
        %v7249 = vadd.f32 %v7121, 1.0
        %v7250 = vadd.f32 %v7122, 1.0
        %v7251 = vadd.f32 %v7123, 1.0
        %v7252 = vadd.f32 %v7124, 1.0
        %v7253 = vadd.f32 %v7125, 1.0
        %v7254 = vadd.f32 %v7126, 1.0
        %v7255 = vadd.f32 %v7127, 1.0
        %v7256 = vadd.f32 %v7128, 1.0
        %v7257 = vadd.f32 %v7129, 1.0
        %v7258 = vadd.f32 %v7130, 1.0
        %v7259 = vadd.f32 %v7131, 1.0
        %v7260 = vadd.f32 %v7132, 1.0
        %v7261 = vadd.f32 %v7133, 1.0
        %v7262 = vadd.f32 %v7134, 1.0
        %v7263 = vadd.f32 %v7135, 1.0
        %v7264 = vadd.f32 %v7136, 1.0
        %v7265 = vadd.f32 %v7137, 1.0
        %v7266 = vadd.f32 %v7138, 1.0
        %v7267 = vadd.f32 %v7139, 1.0
        %v7268 = vadd.f32 %v7140, 1.0
        %v7269 = vadd.f32 %v7141, 1.0
        %v7270 = vadd.f32 %v7142, 1.0
        %v7271 = vadd.f32 %v7143, 1.0
        %v7272 = vadd.f32 %v7144, 1.0
        %v7273 = vadd.f32 %v7145, 1.0
        %v7274 = vadd.f32 %v7146, 1.0
        %v7275 = vadd.f32 %v7147, 1.0
        %v7276 = vadd.f32 %v7148, 1.0
        %v7277 = vadd.f32 %v7149, 1.0
        %v7278 = vadd.f32 %v7150, 1.0
        %v7279 = vadd.f32 %v7151, 1.0
        %v7280 = vadd.f32 %v7152, 1.0
        %v7281 = vadd.f32 %v7153, 1.0
        %v7282 = vadd.f32 %v7154, 1.0
        %v7283 = vadd.f32 %v7155, 1.0
        %v7284 = vadd.f32 %v7156, 1.0
        %v7285 = vadd.f32 %v7157, 1.0
        %v7286 = vadd.f32 %v7158, 1.0
        %v7287 = vadd.f32 %v7159, 1.0
        %v7288 = vadd.f32 %v7160, 1.0
        %v7289 = vadd.f32 %v7161, 1.0
        %v7290 = vadd.f32 %v7162, 1.0
        %v7291 = vadd.f32 %v7163, 1.0
        %v7292 = vadd.f32 %v7164, 1.0
        %v7293 = vadd.f32 %v7165, 1.0
        %v7294 = vrcp.pop %v7166
        %v7295 = vmul.f32 1.0, %v7294
        %v7296 = vrcp.pop %v7167
        %v7297 = vmul.f32 1.0, %v7296
        %v7298 = vrcp.pop %v7168
        %v7299 = vmul.f32 1.0, %v7298
        %v7300 = vrcp.pop %v7169
        %v7301 = vmul.f32 1.0, %v7300
        %v7302 = vrcp.pop %v7170
        %v7303 = vmul.f32 1.0, %v7302
        %v7304 = vrcp.pop %v7171
        %v7305 = vmul.f32 1.0, %v7304
        %v7306 = vrcp.pop %v7172
        %v7307 = vmul.f32 1.0, %v7306
        %v7308 = vrcp.pop %v7173
        %v7309 = vmul.f32 1.0, %v7308
        %v7310 = vrcp.pop %v7174
        %v7311 = vmul.f32 1.0, %v7310
        %v7312 = vrcp.pop %v7175
        %v7313 = vmul.f32 1.0, %v7312
        %v7314 = vrcp.pop %v7176
        %v7315 = vmul.f32 1.0, %v7314
        %v7316 = vrcp.pop %v7177
        %v7317 = vmul.f32 1.0, %v7316
        %v7318 = vrcp.pop %v7178
        %v7319 = vmul.f32 1.0, %v7318
        %v7320 = vrcp.pop %v7179
        %v7321 = vmul.f32 1.0, %v7320
        %v7322 = vrcp.pop %v7180
        %v7323 = vmul.f32 1.0, %v7322
        %v7324 = vrcp.pop %v7181
        %v7325 = vmul.f32 1.0, %v7324
        %v7326 = vrcp.pop %v7182
        %v7327 = vmul.f32 1.0, %v7326
        %v7328 = vrcp.pop %v7183
        %v7329 = vmul.f32 1.0, %v7328
        %v7330 = vrcp.pop %v7184
        %v7331 = vmul.f32 1.0, %v7330
        %v7332 = vrcp.pop %v7185
        %v7333 = vmul.f32 1.0, %v7332
        %v7334 = vrcp.pop %v7186
        %v7335 = vmul.f32 1.0, %v7334
        %v7336 = vrcp.pop %v7187
        %v7337 = vmul.f32 1.0, %v7336
        %v7338 = vrcp.pop %v7188
        %v7339 = vmul.f32 1.0, %v7338
        %v7340 = vrcp.pop %v7189
        %v7341 = vmul.f32 1.0, %v7340
        %v7342 = vrcp.pop %v7190
        %v7343 = vmul.f32 1.0, %v7342
        %v7344 = vrcp.pop %v7191
        %v7345 = vmul.f32 1.0, %v7344
        %v7346 = vrcp.pop %v7192
        %v7347 = vmul.f32 1.0, %v7346
        %v7348 = vrcp.pop %v7193
        %v7349 = vmul.f32 1.0, %v7348
        %v7350 = vrcp.pop %v7194
        %v7351 = vmul.f32 1.0, %v7350
        %v7352 = vrcp.pop %v7195
        %v7353 = vmul.f32 1.0, %v7352
        %v7354 = vrcp.pop %v7196
        %v7355 = vmul.f32 1.0, %v7354
        %v7356 = vrcp.pop %v7197
        %v7357 = vmul.f32 1.0, %v7356
        %v7358 = vrcp.pop %v7198
        %v7359 = vmul.f32 1.0, %v7358
        %v7360 = vrcp.pop %v7199
        %v7361 = vmul.f32 1.0, %v7360
        %v7362 = vrcp.pop %v7200
        %v7363 = vmul.f32 1.0, %v7362
        %v7364 = vrcp.pop %v7201
        %v7365 = vmul.f32 1.0, %v7364
        %v7366 = vrcp.pop %v7202
        %v7367 = vmul.f32 1.0, %v7366
        %v7368 = vrcp.pop %v7203
        %v7369 = vmul.f32 1.0, %v7368
        %v7370 = vrcp.pop %v7204
        %v7371 = vmul.f32 1.0, %v7370
        %v7372 = vrcp.pop %v7205
        %v7373 = vmul.f32 1.0, %v7372
        %v7374 = vrcp.pop %v7206
        %v7375 = vmul.f32 1.0, %v7374
        %v7376 = vrcp.pop %v7207
        %v7377 = vmul.f32 1.0, %v7376
        %v7378 = vrcp.pop %v7208
        %v7379 = vmul.f32 1.0, %v7378
        %v7380 = vrcp.pop %v7209
        %v7381 = vmul.f32 1.0, %v7380
        %v7382 = vrcp.pop %v7210
        %v7383 = vmul.f32 1.0, %v7382
        %v7384 = vrcp.pop %v7211
        %v7385 = vmul.f32 1.0, %v7384
        %v7386 = vrcp.pop %v7212
        %v7387 = vmul.f32 1.0, %v7386
        %v7388 = vrcp.pop %v7213
        %v7389 = vmul.f32 1.0, %v7388
        %v7390 = vrcp.pop %v7214
        %v7391 = vmul.f32 1.0, %v7390
        %v7392 = vrcp.pop %v7215
        %v7393 = vmul.f32 1.0, %v7392
        %v7394 = vrcp.pop %v7216
        %v7395 = vmul.f32 1.0, %v7394
        %v7396 = vrcp.pop %v7217
        %v7397 = vmul.f32 1.0, %v7396
        %v7398 = vrcp.pop %v7218
        %v7399 = vmul.f32 1.0, %v7398
        %v7400 = vrcp.pop %v7219
        %v7401 = vmul.f32 1.0, %v7400
        %v7402 = vrcp.pop %v7220
        %v7403 = vmul.f32 1.0, %v7402
        %v7404 = vrcp.pop %v7221
        %v7405 = vmul.f32 1.0, %v7404
        %v7406 = vrcp.pop %v7222
        %v7407 = vmul.f32 1.0, %v7406
        %v7408 = vrcp.pop %v7223
        %v7409 = vmul.f32 1.0, %v7408
        %v7410 = vrcp.pop %v7224
        %v7411 = vmul.f32 1.0, %v7410
        %v7412 = vrcp.pop %v7225
        %v7413 = vmul.f32 1.0, %v7412
        %v7414 = vrcp.pop %v7226
        %v7415 = vmul.f32 1.0, %v7414
        %v7416 = vrcp.pop %v7227
        %v7417 = vmul.f32 1.0, %v7416
        %v7418 = vrcp.pop %v7228
        %v7419 = vmul.f32 1.0, %v7418
        %v7420 = vrcp.pop %v7229
        %v7421 = vmul.f32 1.0, %v7420
        %v7422 = vrcp.pop %v7230
        %v7423 = vmul.f32 1.0, %v7422
        %v7424 = vrcp.pop %v7231
        %v7425 = vmul.f32 1.0, %v7424
        %v7426 = vrcp.pop %v7232
        %v7427 = vmul.f32 1.0, %v7426
        %v7428 = vrcp.pop %v7233
        %v7429 = vmul.f32 1.0, %v7428
        %v7430 = vrcp.pop %v7234
        %v7431 = vmul.f32 1.0, %v7430
        %v7432 = vrcp.pop %v7235
        %v7433 = vmul.f32 1.0, %v7432
        %v7434 = vrcp.pop %v7236
        %v7435 = vmul.f32 1.0, %v7434
        %v7436 = vrcp.pop %v7237
        %v7437 = vmul.f32 1.0, %v7436
        %v7438 = vrcp.pop %v7238
        %v7439 = vmul.f32 1.0, %v7438
        %v7440 = vrcp.pop %v7239
        %v7441 = vmul.f32 1.0, %v7440
        %v7442 = vrcp.pop %v7240
        %v7443 = vmul.f32 1.0, %v7442
        %v7444 = vrcp.pop %v7241
        %v7445 = vmul.f32 1.0, %v7444
        %v7446 = vrcp.pop %v7242
        %v7447 = vmul.f32 1.0, %v7446
        %v7448 = vrcp.pop %v7243
        %v7449 = vmul.f32 1.0, %v7448
        %v7450 = vrcp.pop %v7244
        %v7451 = vmul.f32 1.0, %v7450
        %v7452 = vrcp.pop %v7245
        %v7453 = vmul.f32 1.0, %v7452
        %v7454 = vrcp.pop %v7246
        %v7455 = vmul.f32 1.0, %v7454
        %v7456 = vrcp.pop %v7247
        %v7457 = vmul.f32 1.0, %v7456
        %v7458 = vrcp.pop %v7248
        %v7459 = vmul.f32 1.0, %v7458
        %v7460 = vrcp.pop %v7249
        %v7461 = vmul.f32 1.0, %v7460
        %v7462 = vrcp.pop %v7250
        %v7463 = vmul.f32 1.0, %v7462
        %v7464 = vrcp.pop %v7251
        %v7465 = vmul.f32 1.0, %v7464
        %v7466 = vrcp.pop %v7252
        %v7467 = vmul.f32 1.0, %v7466
        %v7468 = vrcp.pop %v7253
        %v7469 = vmul.f32 1.0, %v7468
        %v7470 = vrcp.pop %v7254
        %v7471 = vmul.f32 1.0, %v7470
        %v7472 = vrcp.pop %v7255
        %v7473 = vmul.f32 1.0, %v7472
        %v7474 = vrcp.pop %v7256
        %v7475 = vmul.f32 1.0, %v7474
        %v7476 = vrcp.pop %v7257
        %v7477 = vmul.f32 1.0, %v7476
        %v7478 = vrcp.pop %v7258
        %v7479 = vmul.f32 1.0, %v7478
        %v7480 = vrcp.pop %v7259
        %v7481 = vmul.f32 1.0, %v7480
        %v7482 = vrcp.pop %v7260
        %v7483 = vmul.f32 1.0, %v7482
        %v7484 = vrcp.pop %v7261
        %v7485 = vmul.f32 1.0, %v7484
        %v7486 = vrcp.pop %v7262
        %v7487 = vmul.f32 1.0, %v7486
        %v7488 = vrcp.pop %v7263
        %v7489 = vmul.f32 1.0, %v7488
        %v7490 = vrcp.pop %v7264
        %v7491 = vmul.f32 1.0, %v7490
        %v7492 = vrcp.pop %v7265
        %v7493 = vmul.f32 1.0, %v7492
        %v7494 = vrcp.pop %v7266
        %v7495 = vmul.f32 1.0, %v7494
        %v7496 = vrcp.pop %v7267
        %v7497 = vmul.f32 1.0, %v7496
        %v7498 = vrcp.pop %v7268
        %v7499 = vmul.f32 1.0, %v7498
        %v7500 = vrcp.pop %v7269
        %v7501 = vmul.f32 1.0, %v7500
        %v7502 = vrcp.pop %v7270
        %v7503 = vmul.f32 1.0, %v7502
        %v7504 = vrcp.pop %v7271
        %v7505 = vmul.f32 1.0, %v7504
        %v7506 = vrcp.pop %v7272
        %v7507 = vmul.f32 1.0, %v7506
        %v7508 = vrcp.pop %v7273
        %v7509 = vmul.f32 1.0, %v7508
        %v7510 = vrcp.pop %v7274
        %v7511 = vmul.f32 1.0, %v7510
        %v7512 = vrcp.pop %v7275
        %v7513 = vmul.f32 1.0, %v7512
        %v7514 = vrcp.pop %v7276
        %v7515 = vmul.f32 1.0, %v7514
        %v7516 = vrcp.pop %v7277
        %v7517 = vmul.f32 1.0, %v7516
        %v7518 = vrcp.pop %v7278
        %v7519 = vmul.f32 1.0, %v7518
        %v7520 = vrcp.pop %v7279
        %v7521 = vmul.f32 1.0, %v7520
        %v7522 = vrcp.pop %v7280
        %v7523 = vmul.f32 1.0, %v7522
        %v7524 = vrcp.pop %v7281
        %v7525 = vmul.f32 1.0, %v7524
        %v7526 = vrcp.pop %v7282
        %v7527 = vmul.f32 1.0, %v7526
        %v7528 = vrcp.pop %v7283
        %v7529 = vmul.f32 1.0, %v7528
        %v7530 = vrcp.pop %v7284
        %v7531 = vmul.f32 1.0, %v7530
        %v7532 = vrcp.pop %v7285
        %v7533 = vmul.f32 1.0, %v7532
        %v7534 = vrcp.pop %v7286
        %v7535 = vmul.f32 1.0, %v7534
        %v7536 = vrcp.pop %v7287
        %v7537 = vmul.f32 1.0, %v7536
        %v7538 = vrcp.pop %v7288
        %v7539 = vmul.f32 1.0, %v7538
        %v7540 = vrcp.pop %v7289
        %v7541 = vmul.f32 1.0, %v7540
        %v7542 = vrcp.pop %v7290
        %v7543 = vmul.f32 1.0, %v7542
        %v7544 = vrcp.pop %v7291
        %v7545 = vmul.f32 1.0, %v7544
        %v7546 = vrcp.pop %v7292
        %v7547 = vmul.f32 1.0, %v7546
        %v7548 = vrcp.pop %v7293
        %v7549 = vmul.f32 1.0, %v7548
        %v7550 = vmul.f32 %v7295, 1.0614054
        %v7551 = vmul.f32 %v7297, 1.0614054
        %v7552 = vmul.f32 %v7299, 1.0614054
        %v7553 = vmul.f32 %v7301, 1.0614054
        %v7554 = vmul.f32 %v7303, 1.0614054
        %v7555 = vmul.f32 %v7305, 1.0614054
        %v7556 = vmul.f32 %v7307, 1.0614054
        %v7557 = vmul.f32 %v7309, 1.0614054
        %v7558 = vmul.f32 %v7311, 1.0614054
        %v7559 = vmul.f32 %v7313, 1.0614054
        %v7560 = vmul.f32 %v7315, 1.0614054
        %v7561 = vmul.f32 %v7317, 1.0614054
        %v7562 = vmul.f32 %v7319, 1.0614054
        %v7563 = vmul.f32 %v7321, 1.0614054
        %v7564 = vmul.f32 %v7323, 1.0614054
        %v7565 = vmul.f32 %v7325, 1.0614054
        %v7566 = vmul.f32 %v7327, 1.0614054
        %v7567 = vmul.f32 %v7329, 1.0614054
        %v7568 = vmul.f32 %v7331, 1.0614054
        %v7569 = vmul.f32 %v7333, 1.0614054
        %v7570 = vmul.f32 %v7335, 1.0614054
        %v7571 = vmul.f32 %v7337, 1.0614054
        %v7572 = vmul.f32 %v7339, 1.0614054
        %v7573 = vmul.f32 %v7341, 1.0614054
        %v7574 = vmul.f32 %v7343, 1.0614054
        %v7575 = vmul.f32 %v7345, 1.0614054
        %v7576 = vmul.f32 %v7347, 1.0614054
        %v7577 = vmul.f32 %v7349, 1.0614054
        %v7578 = vmul.f32 %v7351, 1.0614054
        %v7579 = vmul.f32 %v7353, 1.0614054
        %v7580 = vmul.f32 %v7355, 1.0614054
        %v7581 = vmul.f32 %v7357, 1.0614054
        %v7582 = vmul.f32 %v7359, 1.0614054
        %v7583 = vmul.f32 %v7361, 1.0614054
        %v7584 = vmul.f32 %v7363, 1.0614054
        %v7585 = vmul.f32 %v7365, 1.0614054
        %v7586 = vmul.f32 %v7367, 1.0614054
        %v7587 = vmul.f32 %v7369, 1.0614054
        %v7588 = vmul.f32 %v7371, 1.0614054
        %v7589 = vmul.f32 %v7373, 1.0614054
        %v7590 = vmul.f32 %v7375, 1.0614054
        %v7591 = vmul.f32 %v7377, 1.0614054
        %v7592 = vmul.f32 %v7379, 1.0614054
        %v7593 = vmul.f32 %v7381, 1.0614054
        %v7594 = vmul.f32 %v7383, 1.0614054
        %v7595 = vmul.f32 %v7385, 1.0614054
        %v7596 = vmul.f32 %v7387, 1.0614054
        %v7597 = vmul.f32 %v7389, 1.0614054
        %v7598 = vmul.f32 %v7391, 1.0614054
        %v7599 = vmul.f32 %v7393, 1.0614054
        %v7600 = vmul.f32 %v7395, 1.0614054
        %v7601 = vmul.f32 %v7397, 1.0614054
        %v7602 = vmul.f32 %v7399, 1.0614054
        %v7603 = vmul.f32 %v7401, 1.0614054
        %v7604 = vmul.f32 %v7403, 1.0614054
        %v7605 = vmul.f32 %v7405, 1.0614054
        %v7606 = vmul.f32 %v7407, 1.0614054
        %v7607 = vmul.f32 %v7409, 1.0614054
        %v7608 = vmul.f32 %v7411, 1.0614054
        %v7609 = vmul.f32 %v7413, 1.0614054
        %v7610 = vmul.f32 %v7415, 1.0614054
        %v7611 = vmul.f32 %v7417, 1.0614054
        %v7612 = vmul.f32 %v7419, 1.0614054
        %v7613 = vmul.f32 %v7421, 1.0614054
        %v7614 = vmul.f32 %v7423, 1.0614054
        %v7615 = vmul.f32 %v7425, 1.0614054
        %v7616 = vmul.f32 %v7427, 1.0614054
        %v7617 = vmul.f32 %v7429, 1.0614054
        %v7618 = vmul.f32 %v7431, 1.0614054
        %v7619 = vmul.f32 %v7433, 1.0614054
        %v7620 = vmul.f32 %v7435, 1.0614054
        %v7621 = vmul.f32 %v7437, 1.0614054
        %v7622 = vmul.f32 %v7439, 1.0614054
        %v7623 = vmul.f32 %v7441, 1.0614054
        %v7624 = vmul.f32 %v7443, 1.0614054
        %v7625 = vmul.f32 %v7445, 1.0614054
        %v7626 = vmul.f32 %v7447, 1.0614054
        %v7627 = vmul.f32 %v7449, 1.0614054
        %v7628 = vmul.f32 %v7451, 1.0614054
        %v7629 = vmul.f32 %v7453, 1.0614054
        %v7630 = vmul.f32 %v7455, 1.0614054
        %v7631 = vmul.f32 %v7457, 1.0614054
        %v7632 = vmul.f32 %v7459, 1.0614054
        %v7633 = vmul.f32 %v7461, 1.0614054
        %v7634 = vmul.f32 %v7463, 1.0614054
        %v7635 = vmul.f32 %v7465, 1.0614054
        %v7636 = vmul.f32 %v7467, 1.0614054
        %v7637 = vmul.f32 %v7469, 1.0614054
        %v7638 = vmul.f32 %v7471, 1.0614054
        %v7639 = vmul.f32 %v7473, 1.0614054
        %v7640 = vmul.f32 %v7475, 1.0614054
        %v7641 = vmul.f32 %v7477, 1.0614054
        %v7642 = vmul.f32 %v7479, 1.0614054
        %v7643 = vmul.f32 %v7481, 1.0614054
        %v7644 = vmul.f32 %v7483, 1.0614054
        %v7645 = vmul.f32 %v7485, 1.0614054
        %v7646 = vmul.f32 %v7487, 1.0614054
        %v7647 = vmul.f32 %v7489, 1.0614054
        %v7648 = vmul.f32 %v7491, 1.0614054
        %v7649 = vmul.f32 %v7493, 1.0614054
        %v7650 = vmul.f32 %v7495, 1.0614054
        %v7651 = vmul.f32 %v7497, 1.0614054
        %v7652 = vmul.f32 %v7499, 1.0614054
        %v7653 = vmul.f32 %v7501, 1.0614054
        %v7654 = vmul.f32 %v7503, 1.0614054
        %v7655 = vmul.f32 %v7505, 1.0614054
        %v7656 = vmul.f32 %v7507, 1.0614054
        %v7657 = vmul.f32 %v7509, 1.0614054
        %v7658 = vmul.f32 %v7511, 1.0614054
        %v7659 = vmul.f32 %v7513, 1.0614054
        %v7660 = vmul.f32 %v7515, 1.0614054
        %v7661 = vmul.f32 %v7517, 1.0614054
        %v7662 = vmul.f32 %v7519, 1.0614054
        %v7663 = vmul.f32 %v7521, 1.0614054
        %v7664 = vmul.f32 %v7523, 1.0614054
        %v7665 = vmul.f32 %v7525, 1.0614054
        %v7666 = vmul.f32 %v7527, 1.0614054
        %v7667 = vmul.f32 %v7529, 1.0614054
        %v7668 = vmul.f32 %v7531, 1.0614054
        %v7669 = vmul.f32 %v7533, 1.0614054
        %v7670 = vmul.f32 %v7535, 1.0614054
        %v7671 = vmul.f32 %v7537, 1.0614054
        %v7672 = vmul.f32 %v7539, 1.0614054
        %v7673 = vmul.f32 %v7541, 1.0614054
        %v7674 = vmul.f32 %v7543, 1.0614054
        %v7675 = vmul.f32 %v7545, 1.0614054
        %v7676 = vmul.f32 %v7547, 1.0614054
        %v7677 = vmul.f32 %v7549, 1.0614054
        %v7678 = vadd.f32 %v7550, -1.4531521
        %v7679 = vadd.f32 %v7551, -1.4531521
        %v7680 = vadd.f32 %v7552, -1.4531521
        %v7681 = vadd.f32 %v7553, -1.4531521
        %v7682 = vadd.f32 %v7554, -1.4531521
        %v7683 = vadd.f32 %v7555, -1.4531521
        %v7684 = vadd.f32 %v7556, -1.4531521
        %v7685 = vadd.f32 %v7557, -1.4531521
        %v7686 = vadd.f32 %v7558, -1.4531521
        %v7687 = vadd.f32 %v7559, -1.4531521
        %v7688 = vadd.f32 %v7560, -1.4531521
        %v7689 = vadd.f32 %v7561, -1.4531521
        %v7690 = vadd.f32 %v7562, -1.4531521
        %v7691 = vadd.f32 %v7563, -1.4531521
        %v7692 = vadd.f32 %v7564, -1.4531521
        %v7693 = vadd.f32 %v7565, -1.4531521
        %v7694 = vadd.f32 %v7566, -1.4531521
        %v7695 = vadd.f32 %v7567, -1.4531521
        %v7696 = vadd.f32 %v7568, -1.4531521
        %v7697 = vadd.f32 %v7569, -1.4531521
        %v7698 = vadd.f32 %v7570, -1.4531521
        %v7699 = vadd.f32 %v7571, -1.4531521
        %v7700 = vadd.f32 %v7572, -1.4531521
        %v7701 = vadd.f32 %v7573, -1.4531521
        %v7702 = vadd.f32 %v7574, -1.4531521
        %v7703 = vadd.f32 %v7575, -1.4531521
        %v7704 = vadd.f32 %v7576, -1.4531521
        %v7705 = vadd.f32 %v7577, -1.4531521
        %v7706 = vadd.f32 %v7578, -1.4531521
        %v7707 = vadd.f32 %v7579, -1.4531521
        %v7708 = vadd.f32 %v7580, -1.4531521
        %v7709 = vadd.f32 %v7581, -1.4531521
        %v7710 = vadd.f32 %v7582, -1.4531521
        %v7711 = vadd.f32 %v7583, -1.4531521
        %v7712 = vadd.f32 %v7584, -1.4531521
        %v7713 = vadd.f32 %v7585, -1.4531521
        %v7714 = vadd.f32 %v7586, -1.4531521
        %v7715 = vadd.f32 %v7587, -1.4531521
        %v7716 = vadd.f32 %v7588, -1.4531521
        %v7717 = vadd.f32 %v7589, -1.4531521
        %v7718 = vadd.f32 %v7590, -1.4531521
        %v7719 = vadd.f32 %v7591, -1.4531521
        %v7720 = vadd.f32 %v7592, -1.4531521
        %v7721 = vadd.f32 %v7593, -1.4531521
        %v7722 = vadd.f32 %v7594, -1.4531521
        %v7723 = vadd.f32 %v7595, -1.4531521
        %v7724 = vadd.f32 %v7596, -1.4531521
        %v7725 = vadd.f32 %v7597, -1.4531521
        %v7726 = vadd.f32 %v7598, -1.4531521
        %v7727 = vadd.f32 %v7599, -1.4531521
        %v7728 = vadd.f32 %v7600, -1.4531521
        %v7729 = vadd.f32 %v7601, -1.4531521
        %v7730 = vadd.f32 %v7602, -1.4531521
        %v7731 = vadd.f32 %v7603, -1.4531521
        %v7732 = vadd.f32 %v7604, -1.4531521
        %v7733 = vadd.f32 %v7605, -1.4531521
        %v7734 = vadd.f32 %v7606, -1.4531521
        %v7735 = vadd.f32 %v7607, -1.4531521
        %v7736 = vadd.f32 %v7608, -1.4531521
        %v7737 = vadd.f32 %v7609, -1.4531521
        %v7738 = vadd.f32 %v7610, -1.4531521
        %v7739 = vadd.f32 %v7611, -1.4531521
        %v7740 = vadd.f32 %v7612, -1.4531521
        %v7741 = vadd.f32 %v7613, -1.4531521
        %v7742 = vadd.f32 %v7614, -1.4531521
        %v7743 = vadd.f32 %v7615, -1.4531521
        %v7744 = vadd.f32 %v7616, -1.4531521
        %v7745 = vadd.f32 %v7617, -1.4531521
        %v7746 = vadd.f32 %v7618, -1.4531521
        %v7747 = vadd.f32 %v7619, -1.4531521
        %v7748 = vadd.f32 %v7620, -1.4531521
        %v7749 = vadd.f32 %v7621, -1.4531521
        %v7750 = vadd.f32 %v7622, -1.4531521
        %v7751 = vadd.f32 %v7623, -1.4531521
        %v7752 = vadd.f32 %v7624, -1.4531521
        %v7753 = vadd.f32 %v7625, -1.4531521
        %v7754 = vadd.f32 %v7626, -1.4531521
        %v7755 = vadd.f32 %v7627, -1.4531521
        %v7756 = vadd.f32 %v7628, -1.4531521
        %v7757 = vadd.f32 %v7629, -1.4531521
        %v7758 = vadd.f32 %v7630, -1.4531521
        %v7759 = vadd.f32 %v7631, -1.4531521
        %v7760 = vadd.f32 %v7632, -1.4531521
        %v7761 = vadd.f32 %v7633, -1.4531521
        %v7762 = vadd.f32 %v7634, -1.4531521
        %v7763 = vadd.f32 %v7635, -1.4531521
        %v7764 = vadd.f32 %v7636, -1.4531521
        %v7765 = vadd.f32 %v7637, -1.4531521
        %v7766 = vadd.f32 %v7638, -1.4531521
        %v7767 = vadd.f32 %v7639, -1.4531521
        %v7768 = vadd.f32 %v7640, -1.4531521
        %v7769 = vadd.f32 %v7641, -1.4531521
        %v7770 = vadd.f32 %v7642, -1.4531521
        %v7771 = vadd.f32 %v7643, -1.4531521
        %v7772 = vadd.f32 %v7644, -1.4531521
        %v7773 = vadd.f32 %v7645, -1.4531521
        %v7774 = vadd.f32 %v7646, -1.4531521
        %v7775 = vadd.f32 %v7647, -1.4531521
        %v7776 = vadd.f32 %v7648, -1.4531521
        %v7777 = vadd.f32 %v7649, -1.4531521
        %v7778 = vadd.f32 %v7650, -1.4531521
        %v7779 = vadd.f32 %v7651, -1.4531521
        %v7780 = vadd.f32 %v7652, -1.4531521
        %v7781 = vadd.f32 %v7653, -1.4531521
        %v7782 = vadd.f32 %v7654, -1.4531521
        %v7783 = vadd.f32 %v7655, -1.4531521
        %v7784 = vadd.f32 %v7656, -1.4531521
        %v7785 = vadd.f32 %v7657, -1.4531521
        %v7786 = vadd.f32 %v7658, -1.4531521
        %v7787 = vadd.f32 %v7659, -1.4531521
        %v7788 = vadd.f32 %v7660, -1.4531521
        %v7789 = vadd.f32 %v7661, -1.4531521
        %v7790 = vadd.f32 %v7662, -1.4531521
        %v7791 = vadd.f32 %v7663, -1.4531521
        %v7792 = vadd.f32 %v7664, -1.4531521
        %v7793 = vadd.f32 %v7665, -1.4531521
        %v7794 = vadd.f32 %v7666, -1.4531521
        %v7795 = vadd.f32 %v7667, -1.4531521
        %v7796 = vadd.f32 %v7668, -1.4531521
        %v7797 = vadd.f32 %v7669, -1.4531521
        %v7798 = vadd.f32 %v7670, -1.4531521
        %v7799 = vadd.f32 %v7671, -1.4531521
        %v7800 = vadd.f32 %v7672, -1.4531521
        %v7801 = vadd.f32 %v7673, -1.4531521
        %v7802 = vadd.f32 %v7674, -1.4531521
        %v7803 = vadd.f32 %v7675, -1.4531521
        %v7804 = vadd.f32 %v7676, -1.4531521
        %v7805 = vadd.f32 %v7677, -1.4531521
        %v7806 = vmul.f32 %v7295, %v7678
        %v7807 = vmul.f32 %v7297, %v7679
        %v7808 = vmul.f32 %v7299, %v7680
        %v7809 = vmul.f32 %v7301, %v7681
        %v7810 = vmul.f32 %v7303, %v7682
        %v7811 = vmul.f32 %v7305, %v7683
        %v7812 = vmul.f32 %v7307, %v7684
        %v7813 = vmul.f32 %v7309, %v7685
        %v7814 = vmul.f32 %v7311, %v7686
        %v7815 = vmul.f32 %v7313, %v7687
        %v7816 = vmul.f32 %v7315, %v7688
        %v7817 = vmul.f32 %v7317, %v7689
        %v7818 = vmul.f32 %v7319, %v7690
        %v7819 = vmul.f32 %v7321, %v7691
        %v7820 = vmul.f32 %v7323, %v7692
        %v7821 = vmul.f32 %v7325, %v7693
        %v7822 = vmul.f32 %v7327, %v7694
        %v7823 = vmul.f32 %v7329, %v7695
        %v7824 = vmul.f32 %v7331, %v7696
        %v7825 = vmul.f32 %v7333, %v7697
        %v7826 = vmul.f32 %v7335, %v7698
        %v7827 = vmul.f32 %v7337, %v7699
        %v7828 = vmul.f32 %v7339, %v7700
        %v7829 = vmul.f32 %v7341, %v7701
        %v7830 = vmul.f32 %v7343, %v7702
        %v7831 = vmul.f32 %v7345, %v7703
        %v7832 = vmul.f32 %v7347, %v7704
        %v7833 = vmul.f32 %v7349, %v7705
        %v7834 = vmul.f32 %v7351, %v7706
        %v7835 = vmul.f32 %v7353, %v7707
        %v7836 = vmul.f32 %v7355, %v7708
        %v7837 = vmul.f32 %v7357, %v7709
        %v7838 = vmul.f32 %v7359, %v7710
        %v7839 = vmul.f32 %v7361, %v7711
        %v7840 = vmul.f32 %v7363, %v7712
        %v7841 = vmul.f32 %v7365, %v7713
        %v7842 = vmul.f32 %v7367, %v7714
        %v7843 = vmul.f32 %v7369, %v7715
        %v7844 = vmul.f32 %v7371, %v7716
        %v7845 = vmul.f32 %v7373, %v7717
        %v7846 = vmul.f32 %v7375, %v7718
        %v7847 = vmul.f32 %v7377, %v7719
        %v7848 = vmul.f32 %v7379, %v7720
        %v7849 = vmul.f32 %v7381, %v7721
        %v7850 = vmul.f32 %v7383, %v7722
        %v7851 = vmul.f32 %v7385, %v7723
        %v7852 = vmul.f32 %v7387, %v7724
        %v7853 = vmul.f32 %v7389, %v7725
        %v7854 = vmul.f32 %v7391, %v7726
        %v7855 = vmul.f32 %v7393, %v7727
        %v7856 = vmul.f32 %v7395, %v7728
        %v7857 = vmul.f32 %v7397, %v7729
        %v7858 = vmul.f32 %v7399, %v7730
        %v7859 = vmul.f32 %v7401, %v7731
        %v7860 = vmul.f32 %v7403, %v7732
        %v7861 = vmul.f32 %v7405, %v7733
        %v7862 = vmul.f32 %v7407, %v7734
        %v7863 = vmul.f32 %v7409, %v7735
        %v7864 = vmul.f32 %v7411, %v7736
        %v7865 = vmul.f32 %v7413, %v7737
        %v7866 = vmul.f32 %v7415, %v7738
        %v7867 = vmul.f32 %v7417, %v7739
        %v7868 = vmul.f32 %v7419, %v7740
        %v7869 = vmul.f32 %v7421, %v7741
        %v7870 = vmul.f32 %v7423, %v7742
        %v7871 = vmul.f32 %v7425, %v7743
        %v7872 = vmul.f32 %v7427, %v7744
        %v7873 = vmul.f32 %v7429, %v7745
        %v7874 = vmul.f32 %v7431, %v7746
        %v7875 = vmul.f32 %v7433, %v7747
        %v7876 = vmul.f32 %v7435, %v7748
        %v7877 = vmul.f32 %v7437, %v7749
        %v7878 = vmul.f32 %v7439, %v7750
        %v7879 = vmul.f32 %v7441, %v7751
        %v7880 = vmul.f32 %v7443, %v7752
        %v7881 = vmul.f32 %v7445, %v7753
        %v7882 = vmul.f32 %v7447, %v7754
        %v7883 = vmul.f32 %v7449, %v7755
        %v7884 = vmul.f32 %v7451, %v7756
        %v7885 = vmul.f32 %v7453, %v7757
        %v7886 = vmul.f32 %v7455, %v7758
        %v7887 = vmul.f32 %v7457, %v7759
        %v7888 = vmul.f32 %v7459, %v7760
        %v7889 = vmul.f32 %v7461, %v7761
        %v7890 = vmul.f32 %v7463, %v7762
        %v7891 = vmul.f32 %v7465, %v7763
        %v7892 = vmul.f32 %v7467, %v7764
        %v7893 = vmul.f32 %v7469, %v7765
        %v7894 = vmul.f32 %v7471, %v7766
        %v7895 = vmul.f32 %v7473, %v7767
        %v7896 = vmul.f32 %v7475, %v7768
        %v7897 = vmul.f32 %v7477, %v7769
        %v7898 = vmul.f32 %v7479, %v7770
        %v7899 = vmul.f32 %v7481, %v7771
        %v7900 = vmul.f32 %v7483, %v7772
        %v7901 = vmul.f32 %v7485, %v7773
        %v7902 = vmul.f32 %v7487, %v7774
        %v7903 = vmul.f32 %v7489, %v7775
        %v7904 = vmul.f32 %v7491, %v7776
        %v7905 = vmul.f32 %v7493, %v7777
        %v7906 = vmul.f32 %v7495, %v7778
        %v7907 = vmul.f32 %v7497, %v7779
        %v7908 = vmul.f32 %v7499, %v7780
        %v7909 = vmul.f32 %v7501, %v7781
        %v7910 = vmul.f32 %v7503, %v7782
        %v7911 = vmul.f32 %v7505, %v7783
        %v7912 = vmul.f32 %v7507, %v7784
        %v7913 = vmul.f32 %v7509, %v7785
        %v7914 = vmul.f32 %v7511, %v7786
        %v7915 = vmul.f32 %v7513, %v7787
        %v7916 = vmul.f32 %v7515, %v7788
        %v7917 = vmul.f32 %v7517, %v7789
        %v7918 = vmul.f32 %v7519, %v7790
        %v7919 = vmul.f32 %v7521, %v7791
        %v7920 = vmul.f32 %v7523, %v7792
        %v7921 = vmul.f32 %v7525, %v7793
        %v7922 = vmul.f32 %v7527, %v7794
        %v7923 = vmul.f32 %v7529, %v7795
        %v7924 = vmul.f32 %v7531, %v7796
        %v7925 = vmul.f32 %v7533, %v7797
        %v7926 = vmul.f32 %v7535, %v7798
        %v7927 = vmul.f32 %v7537, %v7799
        %v7928 = vmul.f32 %v7539, %v7800
        %v7929 = vmul.f32 %v7541, %v7801
        %v7930 = vmul.f32 %v7543, %v7802
        %v7931 = vmul.f32 %v7545, %v7803
        %v7932 = vmul.f32 %v7547, %v7804
        %v7933 = vmul.f32 %v7549, %v7805
        %v7934 = vadd.f32 %v7806, 1.4214138
        %v7935 = vadd.f32 %v7807, 1.4214138
        %v7936 = vadd.f32 %v7808, 1.4214138
        %v7937 = vadd.f32 %v7809, 1.4214138
        %v7938 = vadd.f32 %v7810, 1.4214138
        %v7939 = vadd.f32 %v7811, 1.4214138
        %v7940 = vadd.f32 %v7812, 1.4214138
        %v7941 = vadd.f32 %v7813, 1.4214138
        %v7942 = vadd.f32 %v7814, 1.4214138
        %v7943 = vadd.f32 %v7815, 1.4214138
        %v7944 = vadd.f32 %v7816, 1.4214138
        %v7945 = vadd.f32 %v7817, 1.4214138
        %v7946 = vadd.f32 %v7818, 1.4214138
        %v7947 = vadd.f32 %v7819, 1.4214138
        %v7948 = vadd.f32 %v7820, 1.4214138
        %v7949 = vadd.f32 %v7821, 1.4214138
        %v7950 = vadd.f32 %v7822, 1.4214138
        %v7951 = vadd.f32 %v7823, 1.4214138
        %v7952 = vadd.f32 %v7824, 1.4214138
        %v7953 = vadd.f32 %v7825, 1.4214138
        %v7954 = vadd.f32 %v7826, 1.4214138
        %v7955 = vadd.f32 %v7827, 1.4214138
        %v7956 = vadd.f32 %v7828, 1.4214138
        %v7957 = vadd.f32 %v7829, 1.4214138
        %v7958 = vadd.f32 %v7830, 1.4214138
        %v7959 = vadd.f32 %v7831, 1.4214138
        %v7960 = vadd.f32 %v7832, 1.4214138
        %v7961 = vadd.f32 %v7833, 1.4214138
        %v7962 = vadd.f32 %v7834, 1.4214138
        %v7963 = vadd.f32 %v7835, 1.4214138
        %v7964 = vadd.f32 %v7836, 1.4214138
        %v7965 = vadd.f32 %v7837, 1.4214138
        %v7966 = vadd.f32 %v7838, 1.4214138
        %v7967 = vadd.f32 %v7839, 1.4214138
        %v7968 = vadd.f32 %v7840, 1.4214138
        %v7969 = vadd.f32 %v7841, 1.4214138
        %v7970 = vadd.f32 %v7842, 1.4214138
        %v7971 = vadd.f32 %v7843, 1.4214138
        %v7972 = vadd.f32 %v7844, 1.4214138
        %v7973 = vadd.f32 %v7845, 1.4214138
        %v7974 = vadd.f32 %v7846, 1.4214138
        %v7975 = vadd.f32 %v7847, 1.4214138
        %v7976 = vadd.f32 %v7848, 1.4214138
        %v7977 = vadd.f32 %v7849, 1.4214138
        %v7978 = vadd.f32 %v7850, 1.4214138
        %v7979 = vadd.f32 %v7851, 1.4214138
        %v7980 = vadd.f32 %v7852, 1.4214138
        %v7981 = vadd.f32 %v7853, 1.4214138
        %v7982 = vadd.f32 %v7854, 1.4214138
        %v7983 = vadd.f32 %v7855, 1.4214138
        %v7984 = vadd.f32 %v7856, 1.4214138
        %v7985 = vadd.f32 %v7857, 1.4214138
        %v7986 = vadd.f32 %v7858, 1.4214138
        %v7987 = vadd.f32 %v7859, 1.4214138
        %v7988 = vadd.f32 %v7860, 1.4214138
        %v7989 = vadd.f32 %v7861, 1.4214138
        %v7990 = vadd.f32 %v7862, 1.4214138
        %v7991 = vadd.f32 %v7863, 1.4214138
        %v7992 = vadd.f32 %v7864, 1.4214138
        %v7993 = vadd.f32 %v7865, 1.4214138
        %v7994 = vadd.f32 %v7866, 1.4214138
        %v7995 = vadd.f32 %v7867, 1.4214138
        %v7996 = vadd.f32 %v7868, 1.4214138
        %v7997 = vadd.f32 %v7869, 1.4214138
        %v7998 = vadd.f32 %v7870, 1.4214138
        %v7999 = vadd.f32 %v7871, 1.4214138
        %v8000 = vadd.f32 %v7872, 1.4214138
        %v8001 = vadd.f32 %v7873, 1.4214138
        %v8002 = vadd.f32 %v7874, 1.4214138
        %v8003 = vadd.f32 %v7875, 1.4214138
        %v8004 = vadd.f32 %v7876, 1.4214138
        %v8005 = vadd.f32 %v7877, 1.4214138
        %v8006 = vadd.f32 %v7878, 1.4214138
        %v8007 = vadd.f32 %v7879, 1.4214138
        %v8008 = vadd.f32 %v7880, 1.4214138
        %v8009 = vadd.f32 %v7881, 1.4214138
        %v8010 = vadd.f32 %v7882, 1.4214138
        %v8011 = vadd.f32 %v7883, 1.4214138
        %v8012 = vadd.f32 %v7884, 1.4214138
        %v8013 = vadd.f32 %v7885, 1.4214138
        %v8014 = vadd.f32 %v7886, 1.4214138
        %v8015 = vadd.f32 %v7887, 1.4214138
        %v8016 = vadd.f32 %v7888, 1.4214138
        %v8017 = vadd.f32 %v7889, 1.4214138
        %v8018 = vadd.f32 %v7890, 1.4214138
        %v8019 = vadd.f32 %v7891, 1.4214138
        %v8020 = vadd.f32 %v7892, 1.4214138
        %v8021 = vadd.f32 %v7893, 1.4214138
        %v8022 = vadd.f32 %v7894, 1.4214138
        %v8023 = vadd.f32 %v7895, 1.4214138
        %v8024 = vadd.f32 %v7896, 1.4214138
        %v8025 = vadd.f32 %v7897, 1.4214138
        %v8026 = vadd.f32 %v7898, 1.4214138
        %v8027 = vadd.f32 %v7899, 1.4214138
        %v8028 = vadd.f32 %v7900, 1.4214138
        %v8029 = vadd.f32 %v7901, 1.4214138
        %v8030 = vadd.f32 %v7902, 1.4214138
        %v8031 = vadd.f32 %v7903, 1.4214138
        %v8032 = vadd.f32 %v7904, 1.4214138
        %v8033 = vadd.f32 %v7905, 1.4214138
        %v8034 = vadd.f32 %v7906, 1.4214138
        %v8035 = vadd.f32 %v7907, 1.4214138
        %v8036 = vadd.f32 %v7908, 1.4214138
        %v8037 = vadd.f32 %v7909, 1.4214138
        %v8038 = vadd.f32 %v7910, 1.4214138
        %v8039 = vadd.f32 %v7911, 1.4214138
        %v8040 = vadd.f32 %v7912, 1.4214138
        %v8041 = vadd.f32 %v7913, 1.4214138
        %v8042 = vadd.f32 %v7914, 1.4214138
        %v8043 = vadd.f32 %v7915, 1.4214138
        %v8044 = vadd.f32 %v7916, 1.4214138
        %v8045 = vadd.f32 %v7917, 1.4214138
        %v8046 = vadd.f32 %v7918, 1.4214138
        %v8047 = vadd.f32 %v7919, 1.4214138
        %v8048 = vadd.f32 %v7920, 1.4214138
        %v8049 = vadd.f32 %v7921, 1.4214138
        %v8050 = vadd.f32 %v7922, 1.4214138
        %v8051 = vadd.f32 %v7923, 1.4214138
        %v8052 = vadd.f32 %v7924, 1.4214138
        %v8053 = vadd.f32 %v7925, 1.4214138
        %v8054 = vadd.f32 %v7926, 1.4214138
        %v8055 = vadd.f32 %v7927, 1.4214138
        %v8056 = vadd.f32 %v7928, 1.4214138
        %v8057 = vadd.f32 %v7929, 1.4214138
        %v8058 = vadd.f32 %v7930, 1.4214138
        %v8059 = vadd.f32 %v7931, 1.4214138
        %v8060 = vadd.f32 %v7932, 1.4214138
        %v8061 = vadd.f32 %v7933, 1.4214138
        %v8062 = vmul.f32 %v7295, %v7934
        %v8063 = vmul.f32 %v7297, %v7935
        %v8064 = vmul.f32 %v7299, %v7936
        %v8065 = vmul.f32 %v7301, %v7937
        %v8066 = vmul.f32 %v7303, %v7938
        %v8067 = vmul.f32 %v7305, %v7939
        %v8068 = vmul.f32 %v7307, %v7940
        %v8069 = vmul.f32 %v7309, %v7941
        %v8070 = vmul.f32 %v7311, %v7942
        %v8071 = vmul.f32 %v7313, %v7943
        %v8072 = vmul.f32 %v7315, %v7944
        %v8073 = vmul.f32 %v7317, %v7945
        %v8074 = vmul.f32 %v7319, %v7946
        %v8075 = vmul.f32 %v7321, %v7947
        %v8076 = vmul.f32 %v7323, %v7948
        %v8077 = vmul.f32 %v7325, %v7949
        %v8078 = vmul.f32 %v7327, %v7950
        %v8079 = vmul.f32 %v7329, %v7951
        %v8080 = vmul.f32 %v7331, %v7952
        %v8081 = vmul.f32 %v7333, %v7953
        %v8082 = vmul.f32 %v7335, %v7954
        %v8083 = vmul.f32 %v7337, %v7955
        %v8084 = vmul.f32 %v7339, %v7956
        %v8085 = vmul.f32 %v7341, %v7957
        %v8086 = vmul.f32 %v7343, %v7958
        %v8087 = vmul.f32 %v7345, %v7959
        %v8088 = vmul.f32 %v7347, %v7960
        %v8089 = vmul.f32 %v7349, %v7961
        %v8090 = vmul.f32 %v7351, %v7962
        %v8091 = vmul.f32 %v7353, %v7963
        %v8092 = vmul.f32 %v7355, %v7964
        %v8093 = vmul.f32 %v7357, %v7965
        %v8094 = vmul.f32 %v7359, %v7966
        %v8095 = vmul.f32 %v7361, %v7967
        %v8096 = vmul.f32 %v7363, %v7968
        %v8097 = vmul.f32 %v7365, %v7969
        %v8098 = vmul.f32 %v7367, %v7970
        %v8099 = vmul.f32 %v7369, %v7971
        %v8100 = vmul.f32 %v7371, %v7972
        %v8101 = vmul.f32 %v7373, %v7973
        %v8102 = vmul.f32 %v7375, %v7974
        %v8103 = vmul.f32 %v7377, %v7975
        %v8104 = vmul.f32 %v7379, %v7976
        %v8105 = vmul.f32 %v7381, %v7977
        %v8106 = vmul.f32 %v7383, %v7978
        %v8107 = vmul.f32 %v7385, %v7979
        %v8108 = vmul.f32 %v7387, %v7980
        %v8109 = vmul.f32 %v7389, %v7981
        %v8110 = vmul.f32 %v7391, %v7982
        %v8111 = vmul.f32 %v7393, %v7983
        %v8112 = vmul.f32 %v7395, %v7984
        %v8113 = vmul.f32 %v7397, %v7985
        %v8114 = vmul.f32 %v7399, %v7986
        %v8115 = vmul.f32 %v7401, %v7987
        %v8116 = vmul.f32 %v7403, %v7988
        %v8117 = vmul.f32 %v7405, %v7989
        %v8118 = vmul.f32 %v7407, %v7990
        %v8119 = vmul.f32 %v7409, %v7991
        %v8120 = vmul.f32 %v7411, %v7992
        %v8121 = vmul.f32 %v7413, %v7993
        %v8122 = vmul.f32 %v7415, %v7994
        %v8123 = vmul.f32 %v7417, %v7995
        %v8124 = vmul.f32 %v7419, %v7996
        %v8125 = vmul.f32 %v7421, %v7997
        %v8126 = vmul.f32 %v7423, %v7998
        %v8127 = vmul.f32 %v7425, %v7999
        %v8128 = vmul.f32 %v7427, %v8000
        %v8129 = vmul.f32 %v7429, %v8001
        %v8130 = vmul.f32 %v7431, %v8002
        %v8131 = vmul.f32 %v7433, %v8003
        %v8132 = vmul.f32 %v7435, %v8004
        %v8133 = vmul.f32 %v7437, %v8005
        %v8134 = vmul.f32 %v7439, %v8006
        %v8135 = vmul.f32 %v7441, %v8007
        %v8136 = vmul.f32 %v7443, %v8008
        %v8137 = vmul.f32 %v7445, %v8009
        %v8138 = vmul.f32 %v7447, %v8010
        %v8139 = vmul.f32 %v7449, %v8011
        %v8140 = vmul.f32 %v7451, %v8012
        %v8141 = vmul.f32 %v7453, %v8013
        %v8142 = vmul.f32 %v7455, %v8014
        %v8143 = vmul.f32 %v7457, %v8015
        %v8144 = vmul.f32 %v7459, %v8016
        %v8145 = vmul.f32 %v7461, %v8017
        %v8146 = vmul.f32 %v7463, %v8018
        %v8147 = vmul.f32 %v7465, %v8019
        %v8148 = vmul.f32 %v7467, %v8020
        %v8149 = vmul.f32 %v7469, %v8021
        %v8150 = vmul.f32 %v7471, %v8022
        %v8151 = vmul.f32 %v7473, %v8023
        %v8152 = vmul.f32 %v7475, %v8024
        %v8153 = vmul.f32 %v7477, %v8025
        %v8154 = vmul.f32 %v7479, %v8026
        %v8155 = vmul.f32 %v7481, %v8027
        %v8156 = vmul.f32 %v7483, %v8028
        %v8157 = vmul.f32 %v7485, %v8029
        %v8158 = vmul.f32 %v7487, %v8030
        %v8159 = vmul.f32 %v7489, %v8031
        %v8160 = vmul.f32 %v7491, %v8032
        %v8161 = vmul.f32 %v7493, %v8033
        %v8162 = vmul.f32 %v7495, %v8034
        %v8163 = vmul.f32 %v7497, %v8035
        %v8164 = vmul.f32 %v7499, %v8036
        %v8165 = vmul.f32 %v7501, %v8037
        %v8166 = vmul.f32 %v7503, %v8038
        %v8167 = vmul.f32 %v7505, %v8039
        %v8168 = vmul.f32 %v7507, %v8040
        %v8169 = vmul.f32 %v7509, %v8041
        %v8170 = vmul.f32 %v7511, %v8042
        %v8171 = vmul.f32 %v7513, %v8043
        %v8172 = vmul.f32 %v7515, %v8044
        %v8173 = vmul.f32 %v7517, %v8045
        %v8174 = vmul.f32 %v7519, %v8046
        %v8175 = vmul.f32 %v7521, %v8047
        %v8176 = vmul.f32 %v7523, %v8048
        %v8177 = vmul.f32 %v7525, %v8049
        %v8178 = vmul.f32 %v7527, %v8050
        %v8179 = vmul.f32 %v7529, %v8051
        %v8180 = vmul.f32 %v7531, %v8052
        %v8181 = vmul.f32 %v7533, %v8053
        %v8182 = vmul.f32 %v7535, %v8054
        %v8183 = vmul.f32 %v7537, %v8055
        %v8184 = vmul.f32 %v7539, %v8056
        %v8185 = vmul.f32 %v7541, %v8057
        %v8186 = vmul.f32 %v7543, %v8058
        %v8187 = vmul.f32 %v7545, %v8059
        %v8188 = vmul.f32 %v7547, %v8060
        %v8189 = vmul.f32 %v7549, %v8061
        %v8190 = vadd.f32 %v8062, -0.28449672
        %v8191 = vadd.f32 %v8063, -0.28449672
        %v8192 = vadd.f32 %v8064, -0.28449672
        %v8193 = vadd.f32 %v8065, -0.28449672
        %v8194 = vadd.f32 %v8066, -0.28449672
        %v8195 = vadd.f32 %v8067, -0.28449672
        %v8196 = vadd.f32 %v8068, -0.28449672
        %v8197 = vadd.f32 %v8069, -0.28449672
        %v8198 = vadd.f32 %v8070, -0.28449672
        %v8199 = vadd.f32 %v8071, -0.28449672
        %v8200 = vadd.f32 %v8072, -0.28449672
        %v8201 = vadd.f32 %v8073, -0.28449672
        %v8202 = vadd.f32 %v8074, -0.28449672
        %v8203 = vadd.f32 %v8075, -0.28449672
        %v8204 = vadd.f32 %v8076, -0.28449672
        %v8205 = vadd.f32 %v8077, -0.28449672
        %v8206 = vadd.f32 %v8078, -0.28449672
        %v8207 = vadd.f32 %v8079, -0.28449672
        %v8208 = vadd.f32 %v8080, -0.28449672
        %v8209 = vadd.f32 %v8081, -0.28449672
        %v8210 = vadd.f32 %v8082, -0.28449672
        %v8211 = vadd.f32 %v8083, -0.28449672
        %v8212 = vadd.f32 %v8084, -0.28449672
        %v8213 = vadd.f32 %v8085, -0.28449672
        %v8214 = vadd.f32 %v8086, -0.28449672
        %v8215 = vadd.f32 %v8087, -0.28449672
        %v8216 = vadd.f32 %v8088, -0.28449672
        %v8217 = vadd.f32 %v8089, -0.28449672
        %v8218 = vadd.f32 %v8090, -0.28449672
        %v8219 = vadd.f32 %v8091, -0.28449672
        %v8220 = vadd.f32 %v8092, -0.28449672
        %v8221 = vadd.f32 %v8093, -0.28449672
        %v8222 = vadd.f32 %v8094, -0.28449672
        %v8223 = vadd.f32 %v8095, -0.28449672
        %v8224 = vadd.f32 %v8096, -0.28449672
        %v8225 = vadd.f32 %v8097, -0.28449672
        %v8226 = vadd.f32 %v8098, -0.28449672
        %v8227 = vadd.f32 %v8099, -0.28449672
        %v8228 = vadd.f32 %v8100, -0.28449672
        %v8229 = vadd.f32 %v8101, -0.28449672
        %v8230 = vadd.f32 %v8102, -0.28449672
        %v8231 = vadd.f32 %v8103, -0.28449672
        %v8232 = vadd.f32 %v8104, -0.28449672
        %v8233 = vadd.f32 %v8105, -0.28449672
        %v8234 = vadd.f32 %v8106, -0.28449672
        %v8235 = vadd.f32 %v8107, -0.28449672
        %v8236 = vadd.f32 %v8108, -0.28449672
        %v8237 = vadd.f32 %v8109, -0.28449672
        %v8238 = vadd.f32 %v8110, -0.28449672
        %v8239 = vadd.f32 %v8111, -0.28449672
        %v8240 = vadd.f32 %v8112, -0.28449672
        %v8241 = vadd.f32 %v8113, -0.28449672
        %v8242 = vadd.f32 %v8114, -0.28449672
        %v8243 = vadd.f32 %v8115, -0.28449672
        %v8244 = vadd.f32 %v8116, -0.28449672
        %v8245 = vadd.f32 %v8117, -0.28449672
        %v8246 = vadd.f32 %v8118, -0.28449672
        %v8247 = vadd.f32 %v8119, -0.28449672
        %v8248 = vadd.f32 %v8120, -0.28449672
        %v8249 = vadd.f32 %v8121, -0.28449672
        %v8250 = vadd.f32 %v8122, -0.28449672
        %v8251 = vadd.f32 %v8123, -0.28449672
        %v8252 = vadd.f32 %v8124, -0.28449672
        %v8253 = vadd.f32 %v8125, -0.28449672
        %v8254 = vadd.f32 %v8126, -0.28449672
        %v8255 = vadd.f32 %v8127, -0.28449672
        %v8256 = vadd.f32 %v8128, -0.28449672
        %v8257 = vadd.f32 %v8129, -0.28449672
        %v8258 = vadd.f32 %v8130, -0.28449672
        %v8259 = vadd.f32 %v8131, -0.28449672
        %v8260 = vadd.f32 %v8132, -0.28449672
        %v8261 = vadd.f32 %v8133, -0.28449672
        %v8262 = vadd.f32 %v8134, -0.28449672
        %v8263 = vadd.f32 %v8135, -0.28449672
        %v8264 = vadd.f32 %v8136, -0.28449672
        %v8265 = vadd.f32 %v8137, -0.28449672
        %v8266 = vadd.f32 %v8138, -0.28449672
        %v8267 = vadd.f32 %v8139, -0.28449672
        %v8268 = vadd.f32 %v8140, -0.28449672
        %v8269 = vadd.f32 %v8141, -0.28449672
        %v8270 = vadd.f32 %v8142, -0.28449672
        %v8271 = vadd.f32 %v8143, -0.28449672
        %v8272 = vadd.f32 %v8144, -0.28449672
        %v8273 = vadd.f32 %v8145, -0.28449672
        %v8274 = vadd.f32 %v8146, -0.28449672
        %v8275 = vadd.f32 %v8147, -0.28449672
        %v8276 = vadd.f32 %v8148, -0.28449672
        %v8277 = vadd.f32 %v8149, -0.28449672
        %v8278 = vadd.f32 %v8150, -0.28449672
        %v8279 = vadd.f32 %v8151, -0.28449672
        %v8280 = vadd.f32 %v8152, -0.28449672
        %v8281 = vadd.f32 %v8153, -0.28449672
        %v8282 = vadd.f32 %v8154, -0.28449672
        %v8283 = vadd.f32 %v8155, -0.28449672
        %v8284 = vadd.f32 %v8156, -0.28449672
        %v8285 = vadd.f32 %v8157, -0.28449672
        %v8286 = vadd.f32 %v8158, -0.28449672
        %v8287 = vadd.f32 %v8159, -0.28449672
        %v8288 = vadd.f32 %v8160, -0.28449672
        %v8289 = vadd.f32 %v8161, -0.28449672
        %v8290 = vadd.f32 %v8162, -0.28449672
        %v8291 = vadd.f32 %v8163, -0.28449672
        %v8292 = vadd.f32 %v8164, -0.28449672
        %v8293 = vadd.f32 %v8165, -0.28449672
        %v8294 = vadd.f32 %v8166, -0.28449672
        %v8295 = vadd.f32 %v8167, -0.28449672
        %v8296 = vadd.f32 %v8168, -0.28449672
        %v8297 = vadd.f32 %v8169, -0.28449672
        %v8298 = vadd.f32 %v8170, -0.28449672
        %v8299 = vadd.f32 %v8171, -0.28449672
        %v8300 = vadd.f32 %v8172, -0.28449672
        %v8301 = vadd.f32 %v8173, -0.28449672
        %v8302 = vadd.f32 %v8174, -0.28449672
        %v8303 = vadd.f32 %v8175, -0.28449672
        %v8304 = vadd.f32 %v8176, -0.28449672
        %v8305 = vadd.f32 %v8177, -0.28449672
        %v8306 = vadd.f32 %v8178, -0.28449672
        %v8307 = vadd.f32 %v8179, -0.28449672
        %v8308 = vadd.f32 %v8180, -0.28449672
        %v8309 = vadd.f32 %v8181, -0.28449672
        %v8310 = vadd.f32 %v8182, -0.28449672
        %v8311 = vadd.f32 %v8183, -0.28449672
        %v8312 = vadd.f32 %v8184, -0.28449672
        %v8313 = vadd.f32 %v8185, -0.28449672
        %v8314 = vadd.f32 %v8186, -0.28449672
        %v8315 = vadd.f32 %v8187, -0.28449672
        %v8316 = vadd.f32 %v8188, -0.28449672
        %v8317 = vadd.f32 %v8189, -0.28449672
        %v8318 = vmul.f32 %v7295, %v8190
        %v8319 = vmul.f32 %v7297, %v8191
        %v8320 = vmul.f32 %v7299, %v8192
        %v8321 = vmul.f32 %v7301, %v8193
        %v8322 = vmul.f32 %v7303, %v8194
        %v8323 = vmul.f32 %v7305, %v8195
        %v8324 = vmul.f32 %v7307, %v8196
        %v8325 = vmul.f32 %v7309, %v8197
        %v8326 = vmul.f32 %v7311, %v8198
        %v8327 = vmul.f32 %v7313, %v8199
        %v8328 = vmul.f32 %v7315, %v8200
        %v8329 = vmul.f32 %v7317, %v8201
        %v8330 = vmul.f32 %v7319, %v8202
        %v8331 = vmul.f32 %v7321, %v8203
        %v8332 = vmul.f32 %v7323, %v8204
        %v8333 = vmul.f32 %v7325, %v8205
        %v8334 = vmul.f32 %v7327, %v8206
        %v8335 = vmul.f32 %v7329, %v8207
        %v8336 = vmul.f32 %v7331, %v8208
        %v8337 = vmul.f32 %v7333, %v8209
        %v8338 = vmul.f32 %v7335, %v8210
        %v8339 = vmul.f32 %v7337, %v8211
        %v8340 = vmul.f32 %v7339, %v8212
        %v8341 = vmul.f32 %v7341, %v8213
        %v8342 = vmul.f32 %v7343, %v8214
        %v8343 = vmul.f32 %v7345, %v8215
        %v8344 = vmul.f32 %v7347, %v8216
        %v8345 = vmul.f32 %v7349, %v8217
        %v8346 = vmul.f32 %v7351, %v8218
        %v8347 = vmul.f32 %v7353, %v8219
        %v8348 = vmul.f32 %v7355, %v8220
        %v8349 = vmul.f32 %v7357, %v8221
        %v8350 = vmul.f32 %v7359, %v8222
        %v8351 = vmul.f32 %v7361, %v8223
        %v8352 = vmul.f32 %v7363, %v8224
        %v8353 = vmul.f32 %v7365, %v8225
        %v8354 = vmul.f32 %v7367, %v8226
        %v8355 = vmul.f32 %v7369, %v8227
        %v8356 = vmul.f32 %v7371, %v8228
        %v8357 = vmul.f32 %v7373, %v8229
        %v8358 = vmul.f32 %v7375, %v8230
        %v8359 = vmul.f32 %v7377, %v8231
        %v8360 = vmul.f32 %v7379, %v8232
        %v8361 = vmul.f32 %v7381, %v8233
        %v8362 = vmul.f32 %v7383, %v8234
        %v8363 = vmul.f32 %v7385, %v8235
        %v8364 = vmul.f32 %v7387, %v8236
        %v8365 = vmul.f32 %v7389, %v8237
        %v8366 = vmul.f32 %v7391, %v8238
        %v8367 = vmul.f32 %v7393, %v8239
        %v8368 = vmul.f32 %v7395, %v8240
        %v8369 = vmul.f32 %v7397, %v8241
        %v8370 = vmul.f32 %v7399, %v8242
        %v8371 = vmul.f32 %v7401, %v8243
        %v8372 = vmul.f32 %v7403, %v8244
        %v8373 = vmul.f32 %v7405, %v8245
        %v8374 = vmul.f32 %v7407, %v8246
        %v8375 = vmul.f32 %v7409, %v8247
        %v8376 = vmul.f32 %v7411, %v8248
        %v8377 = vmul.f32 %v7413, %v8249
        %v8378 = vmul.f32 %v7415, %v8250
        %v8379 = vmul.f32 %v7417, %v8251
        %v8380 = vmul.f32 %v7419, %v8252
        %v8381 = vmul.f32 %v7421, %v8253
        %v8382 = vmul.f32 %v7423, %v8254
        %v8383 = vmul.f32 %v7425, %v8255
        %v8384 = vmul.f32 %v7427, %v8256
        %v8385 = vmul.f32 %v7429, %v8257
        %v8386 = vmul.f32 %v7431, %v8258
        %v8387 = vmul.f32 %v7433, %v8259
        %v8388 = vmul.f32 %v7435, %v8260
        %v8389 = vmul.f32 %v7437, %v8261
        %v8390 = vmul.f32 %v7439, %v8262
        %v8391 = vmul.f32 %v7441, %v8263
        %v8392 = vmul.f32 %v7443, %v8264
        %v8393 = vmul.f32 %v7445, %v8265
        %v8394 = vmul.f32 %v7447, %v8266
        %v8395 = vmul.f32 %v7449, %v8267
        %v8396 = vmul.f32 %v7451, %v8268
        %v8397 = vmul.f32 %v7453, %v8269
        %v8398 = vmul.f32 %v7455, %v8270
        %v8399 = vmul.f32 %v7457, %v8271
        %v8400 = vmul.f32 %v7459, %v8272
        %v8401 = vmul.f32 %v7461, %v8273
        %v8402 = vmul.f32 %v7463, %v8274
        %v8403 = vmul.f32 %v7465, %v8275
        %v8404 = vmul.f32 %v7467, %v8276
        %v8405 = vmul.f32 %v7469, %v8277
        %v8406 = vmul.f32 %v7471, %v8278
        %v8407 = vmul.f32 %v7473, %v8279
        %v8408 = vmul.f32 %v7475, %v8280
        %v8409 = vmul.f32 %v7477, %v8281
        %v8410 = vmul.f32 %v7479, %v8282
        %v8411 = vmul.f32 %v7481, %v8283
        %v8412 = vmul.f32 %v7483, %v8284
        %v8413 = vmul.f32 %v7485, %v8285
        %v8414 = vmul.f32 %v7487, %v8286
        %v8415 = vmul.f32 %v7489, %v8287
        %v8416 = vmul.f32 %v7491, %v8288
        %v8417 = vmul.f32 %v7493, %v8289
        %v8418 = vmul.f32 %v7495, %v8290
        %v8419 = vmul.f32 %v7497, %v8291
        %v8420 = vmul.f32 %v7499, %v8292
        %v8421 = vmul.f32 %v7501, %v8293
        %v8422 = vmul.f32 %v7503, %v8294
        %v8423 = vmul.f32 %v7505, %v8295
        %v8424 = vmul.f32 %v7507, %v8296
        %v8425 = vmul.f32 %v7509, %v8297
        %v8426 = vmul.f32 %v7511, %v8298
        %v8427 = vmul.f32 %v7513, %v8299
        %v8428 = vmul.f32 %v7515, %v8300
        %v8429 = vmul.f32 %v7517, %v8301
        %v8430 = vmul.f32 %v7519, %v8302
        %v8431 = vmul.f32 %v7521, %v8303
        %v8432 = vmul.f32 %v7523, %v8304
        %v8433 = vmul.f32 %v7525, %v8305
        %v8434 = vmul.f32 %v7527, %v8306
        %v8435 = vmul.f32 %v7529, %v8307
        %v8436 = vmul.f32 %v7531, %v8308
        %v8437 = vmul.f32 %v7533, %v8309
        %v8438 = vmul.f32 %v7535, %v8310
        %v8439 = vmul.f32 %v7537, %v8311
        %v8440 = vmul.f32 %v7539, %v8312
        %v8441 = vmul.f32 %v7541, %v8313
        %v8442 = vmul.f32 %v7543, %v8314
        %v8443 = vmul.f32 %v7545, %v8315
        %v8444 = vmul.f32 %v7547, %v8316
        %v8445 = vmul.f32 %v7549, %v8317
        %v8446 = vadd.f32 %v8318, 0.2548296
        %v8447 = vadd.f32 %v8319, 0.2548296
        %v8448 = vadd.f32 %v8320, 0.2548296
        %v8449 = vadd.f32 %v8321, 0.2548296
        %v8450 = vadd.f32 %v8322, 0.2548296
        %v8451 = vadd.f32 %v8323, 0.2548296
        %v8452 = vadd.f32 %v8324, 0.2548296
        %v8453 = vadd.f32 %v8325, 0.2548296
        %v8454 = vadd.f32 %v8326, 0.2548296
        %v8455 = vadd.f32 %v8327, 0.2548296
        %v8456 = vadd.f32 %v8328, 0.2548296
        %v8457 = vadd.f32 %v8329, 0.2548296
        %v8458 = vadd.f32 %v8330, 0.2548296
        %v8459 = vadd.f32 %v8331, 0.2548296
        %v8460 = vadd.f32 %v8332, 0.2548296
        %v8461 = vadd.f32 %v8333, 0.2548296
        %v8462 = vadd.f32 %v8334, 0.2548296
        %v8463 = vadd.f32 %v8335, 0.2548296
        %v8464 = vadd.f32 %v8336, 0.2548296
        %v8465 = vadd.f32 %v8337, 0.2548296
        %v8466 = vadd.f32 %v8338, 0.2548296
        %v8467 = vadd.f32 %v8339, 0.2548296
        %v8468 = vadd.f32 %v8340, 0.2548296
        %v8469 = vadd.f32 %v8341, 0.2548296
        %v8470 = vadd.f32 %v8342, 0.2548296
        %v8471 = vadd.f32 %v8343, 0.2548296
        %v8472 = vadd.f32 %v8344, 0.2548296
        %v8473 = vadd.f32 %v8345, 0.2548296
        %v8474 = vadd.f32 %v8346, 0.2548296
        %v8475 = vadd.f32 %v8347, 0.2548296
        %v8476 = vadd.f32 %v8348, 0.2548296
        %v8477 = vadd.f32 %v8349, 0.2548296
        %v8478 = vadd.f32 %v8350, 0.2548296
        %v8479 = vadd.f32 %v8351, 0.2548296
        %v8480 = vadd.f32 %v8352, 0.2548296
        %v8481 = vadd.f32 %v8353, 0.2548296
        %v8482 = vadd.f32 %v8354, 0.2548296
        %v8483 = vadd.f32 %v8355, 0.2548296
        %v8484 = vadd.f32 %v8356, 0.2548296
        %v8485 = vadd.f32 %v8357, 0.2548296
        %v8486 = vadd.f32 %v8358, 0.2548296
        %v8487 = vadd.f32 %v8359, 0.2548296
        %v8488 = vadd.f32 %v8360, 0.2548296
        %v8489 = vadd.f32 %v8361, 0.2548296
        %v8490 = vadd.f32 %v8362, 0.2548296
        %v8491 = vadd.f32 %v8363, 0.2548296
        %v8492 = vadd.f32 %v8364, 0.2548296
        %v8493 = vadd.f32 %v8365, 0.2548296
        %v8494 = vadd.f32 %v8366, 0.2548296
        %v8495 = vadd.f32 %v8367, 0.2548296
        %v8496 = vadd.f32 %v8368, 0.2548296
        %v8497 = vadd.f32 %v8369, 0.2548296
        %v8498 = vadd.f32 %v8370, 0.2548296
        %v8499 = vadd.f32 %v8371, 0.2548296
        %v8500 = vadd.f32 %v8372, 0.2548296
        %v8501 = vadd.f32 %v8373, 0.2548296
        %v8502 = vadd.f32 %v8374, 0.2548296
        %v8503 = vadd.f32 %v8375, 0.2548296
        %v8504 = vadd.f32 %v8376, 0.2548296
        %v8505 = vadd.f32 %v8377, 0.2548296
        %v8506 = vadd.f32 %v8378, 0.2548296
        %v8507 = vadd.f32 %v8379, 0.2548296
        %v8508 = vadd.f32 %v8380, 0.2548296
        %v8509 = vadd.f32 %v8381, 0.2548296
        %v8510 = vadd.f32 %v8382, 0.2548296
        %v8511 = vadd.f32 %v8383, 0.2548296
        %v8512 = vadd.f32 %v8384, 0.2548296
        %v8513 = vadd.f32 %v8385, 0.2548296
        %v8514 = vadd.f32 %v8386, 0.2548296
        %v8515 = vadd.f32 %v8387, 0.2548296
        %v8516 = vadd.f32 %v8388, 0.2548296
        %v8517 = vadd.f32 %v8389, 0.2548296
        %v8518 = vadd.f32 %v8390, 0.2548296
        %v8519 = vadd.f32 %v8391, 0.2548296
        %v8520 = vadd.f32 %v8392, 0.2548296
        %v8521 = vadd.f32 %v8393, 0.2548296
        %v8522 = vadd.f32 %v8394, 0.2548296
        %v8523 = vadd.f32 %v8395, 0.2548296
        %v8524 = vadd.f32 %v8396, 0.2548296
        %v8525 = vadd.f32 %v8397, 0.2548296
        %v8526 = vadd.f32 %v8398, 0.2548296
        %v8527 = vadd.f32 %v8399, 0.2548296
        %v8528 = vadd.f32 %v8400, 0.2548296
        %v8529 = vadd.f32 %v8401, 0.2548296
        %v8530 = vadd.f32 %v8402, 0.2548296
        %v8531 = vadd.f32 %v8403, 0.2548296
        %v8532 = vadd.f32 %v8404, 0.2548296
        %v8533 = vadd.f32 %v8405, 0.2548296
        %v8534 = vadd.f32 %v8406, 0.2548296
        %v8535 = vadd.f32 %v8407, 0.2548296
        %v8536 = vadd.f32 %v8408, 0.2548296
        %v8537 = vadd.f32 %v8409, 0.2548296
        %v8538 = vadd.f32 %v8410, 0.2548296
        %v8539 = vadd.f32 %v8411, 0.2548296
        %v8540 = vadd.f32 %v8412, 0.2548296
        %v8541 = vadd.f32 %v8413, 0.2548296
        %v8542 = vadd.f32 %v8414, 0.2548296
        %v8543 = vadd.f32 %v8415, 0.2548296
        %v8544 = vadd.f32 %v8416, 0.2548296
        %v8545 = vadd.f32 %v8417, 0.2548296
        %v8546 = vadd.f32 %v8418, 0.2548296
        %v8547 = vadd.f32 %v8419, 0.2548296
        %v8548 = vadd.f32 %v8420, 0.2548296
        %v8549 = vadd.f32 %v8421, 0.2548296
        %v8550 = vadd.f32 %v8422, 0.2548296
        %v8551 = vadd.f32 %v8423, 0.2548296
        %v8552 = vadd.f32 %v8424, 0.2548296
        %v8553 = vadd.f32 %v8425, 0.2548296
        %v8554 = vadd.f32 %v8426, 0.2548296
        %v8555 = vadd.f32 %v8427, 0.2548296
        %v8556 = vadd.f32 %v8428, 0.2548296
        %v8557 = vadd.f32 %v8429, 0.2548296
        %v8558 = vadd.f32 %v8430, 0.2548296
        %v8559 = vadd.f32 %v8431, 0.2548296
        %v8560 = vadd.f32 %v8432, 0.2548296
        %v8561 = vadd.f32 %v8433, 0.2548296
        %v8562 = vadd.f32 %v8434, 0.2548296
        %v8563 = vadd.f32 %v8435, 0.2548296
        %v8564 = vadd.f32 %v8436, 0.2548296
        %v8565 = vadd.f32 %v8437, 0.2548296
        %v8566 = vadd.f32 %v8438, 0.2548296
        %v8567 = vadd.f32 %v8439, 0.2548296
        %v8568 = vadd.f32 %v8440, 0.2548296
        %v8569 = vadd.f32 %v8441, 0.2548296
        %v8570 = vadd.f32 %v8442, 0.2548296
        %v8571 = vadd.f32 %v8443, 0.2548296
        %v8572 = vadd.f32 %v8444, 0.2548296
        %v8573 = vadd.f32 %v8445, 0.2548296
        %v8574 = vmul.f32 %v7295, %v8446
        %v8575 = vmul.f32 %v7297, %v8447
        %v8576 = vmul.f32 %v7299, %v8448
        %v8577 = vmul.f32 %v7301, %v8449
        %v8578 = vmul.f32 %v7303, %v8450
        %v8579 = vmul.f32 %v7305, %v8451
        %v8580 = vmul.f32 %v7307, %v8452
        %v8581 = vmul.f32 %v7309, %v8453
        %v8582 = vmul.f32 %v7311, %v8454
        %v8583 = vmul.f32 %v7313, %v8455
        %v8584 = vmul.f32 %v7315, %v8456
        %v8585 = vmul.f32 %v7317, %v8457
        %v8586 = vmul.f32 %v7319, %v8458
        %v8587 = vmul.f32 %v7321, %v8459
        %v8588 = vmul.f32 %v7323, %v8460
        %v8589 = vmul.f32 %v7325, %v8461
        %v8590 = vmul.f32 %v7327, %v8462
        %v8591 = vmul.f32 %v7329, %v8463
        %v8592 = vmul.f32 %v7331, %v8464
        %v8593 = vmul.f32 %v7333, %v8465
        %v8594 = vmul.f32 %v7335, %v8466
        %v8595 = vmul.f32 %v7337, %v8467
        %v8596 = vmul.f32 %v7339, %v8468
        %v8597 = vmul.f32 %v7341, %v8469
        %v8598 = vmul.f32 %v7343, %v8470
        %v8599 = vmul.f32 %v7345, %v8471
        %v8600 = vmul.f32 %v7347, %v8472
        %v8601 = vmul.f32 %v7349, %v8473
        %v8602 = vmul.f32 %v7351, %v8474
        %v8603 = vmul.f32 %v7353, %v8475
        %v8604 = vmul.f32 %v7355, %v8476
        %v8605 = vmul.f32 %v7357, %v8477
        %v8606 = vmul.f32 %v7359, %v8478
        %v8607 = vmul.f32 %v7361, %v8479
        %v8608 = vmul.f32 %v7363, %v8480
        %v8609 = vmul.f32 %v7365, %v8481
        %v8610 = vmul.f32 %v7367, %v8482
        %v8611 = vmul.f32 %v7369, %v8483
        %v8612 = vmul.f32 %v7371, %v8484
        %v8613 = vmul.f32 %v7373, %v8485
        %v8614 = vmul.f32 %v7375, %v8486
        %v8615 = vmul.f32 %v7377, %v8487
        %v8616 = vmul.f32 %v7379, %v8488
        %v8617 = vmul.f32 %v7381, %v8489
        %v8618 = vmul.f32 %v7383, %v8490
        %v8619 = vmul.f32 %v7385, %v8491
        %v8620 = vmul.f32 %v7387, %v8492
        %v8621 = vmul.f32 %v7389, %v8493
        %v8622 = vmul.f32 %v7391, %v8494
        %v8623 = vmul.f32 %v7393, %v8495
        %v8624 = vmul.f32 %v7395, %v8496
        %v8625 = vmul.f32 %v7397, %v8497
        %v8626 = vmul.f32 %v7399, %v8498
        %v8627 = vmul.f32 %v7401, %v8499
        %v8628 = vmul.f32 %v7403, %v8500
        %v8629 = vmul.f32 %v7405, %v8501
        %v8630 = vmul.f32 %v7407, %v8502
        %v8631 = vmul.f32 %v7409, %v8503
        %v8632 = vmul.f32 %v7411, %v8504
        %v8633 = vmul.f32 %v7413, %v8505
        %v8634 = vmul.f32 %v7415, %v8506
        %v8635 = vmul.f32 %v7417, %v8507
        %v8636 = vmul.f32 %v7419, %v8508
        %v8637 = vmul.f32 %v7421, %v8509
        %v8638 = vmul.f32 %v7423, %v8510
        %v8639 = vmul.f32 %v7425, %v8511
        %v8640 = vmul.f32 %v7427, %v8512
        %v8641 = vmul.f32 %v7429, %v8513
        %v8642 = vmul.f32 %v7431, %v8514
        %v8643 = vmul.f32 %v7433, %v8515
        %v8644 = vmul.f32 %v7435, %v8516
        %v8645 = vmul.f32 %v7437, %v8517
        %v8646 = vmul.f32 %v7439, %v8518
        %v8647 = vmul.f32 %v7441, %v8519
        %v8648 = vmul.f32 %v7443, %v8520
        %v8649 = vmul.f32 %v7445, %v8521
        %v8650 = vmul.f32 %v7447, %v8522
        %v8651 = vmul.f32 %v7449, %v8523
        %v8652 = vmul.f32 %v7451, %v8524
        %v8653 = vmul.f32 %v7453, %v8525
        %v8654 = vmul.f32 %v7455, %v8526
        %v8655 = vmul.f32 %v7457, %v8527
        %v8656 = vmul.f32 %v7459, %v8528
        %v8657 = vmul.f32 %v7461, %v8529
        %v8658 = vmul.f32 %v7463, %v8530
        %v8659 = vmul.f32 %v7465, %v8531
        %v8660 = vmul.f32 %v7467, %v8532
        %v8661 = vmul.f32 %v7469, %v8533
        %v8662 = vmul.f32 %v7471, %v8534
        %v8663 = vmul.f32 %v7473, %v8535
        %v8664 = vmul.f32 %v7475, %v8536
        %v8665 = vmul.f32 %v7477, %v8537
        %v8666 = vmul.f32 %v7479, %v8538
        %v8667 = vmul.f32 %v7481, %v8539
        %v8668 = vmul.f32 %v7483, %v8540
        %v8669 = vmul.f32 %v7485, %v8541
        %v8670 = vmul.f32 %v7487, %v8542
        %v8671 = vmul.f32 %v7489, %v8543
        %v8672 = vmul.f32 %v7491, %v8544
        %v8673 = vmul.f32 %v7493, %v8545
        %v8674 = vmul.f32 %v7495, %v8546
        %v8675 = vmul.f32 %v7497, %v8547
        %v8676 = vmul.f32 %v7499, %v8548
        %v8677 = vmul.f32 %v7501, %v8549
        %v8678 = vmul.f32 %v7503, %v8550
        %v8679 = vmul.f32 %v7505, %v8551
        %v8680 = vmul.f32 %v7507, %v8552
        %v8681 = vmul.f32 %v7509, %v8553
        %v8682 = vmul.f32 %v7511, %v8554
        %v8683 = vmul.f32 %v7513, %v8555
        %v8684 = vmul.f32 %v7515, %v8556
        %v8685 = vmul.f32 %v7517, %v8557
        %v8686 = vmul.f32 %v7519, %v8558
        %v8687 = vmul.f32 %v7521, %v8559
        %v8688 = vmul.f32 %v7523, %v8560
        %v8689 = vmul.f32 %v7525, %v8561
        %v8690 = vmul.f32 %v7527, %v8562
        %v8691 = vmul.f32 %v7529, %v8563
        %v8692 = vmul.f32 %v7531, %v8564
        %v8693 = vmul.f32 %v7533, %v8565
        %v8694 = vmul.f32 %v7535, %v8566
        %v8695 = vmul.f32 %v7537, %v8567
        %v8696 = vmul.f32 %v7539, %v8568
        %v8697 = vmul.f32 %v7541, %v8569
        %v8698 = vmul.f32 %v7543, %v8570
        %v8699 = vmul.f32 %v7545, %v8571
        %v8700 = vmul.f32 %v7547, %v8572
        %v8701 = vmul.f32 %v7549, %v8573
        %v8702 = vsub.f32 0.0, %v6910
        %v8703 = vsub.f32 0.0, %v6911
        %v8704 = vsub.f32 0.0, %v6912
        %v8705 = vsub.f32 0.0, %v6913
        %v8706 = vsub.f32 0.0, %v6914
        %v8707 = vsub.f32 0.0, %v6915
        %v8708 = vsub.f32 0.0, %v6916
        %v8709 = vsub.f32 0.0, %v6917
        %v8710 = vsub.f32 0.0, %v6918
        %v8711 = vsub.f32 0.0, %v6919
        %v8712 = vsub.f32 0.0, %v6920
        %v8713 = vsub.f32 0.0, %v6921
        %v8714 = vsub.f32 0.0, %v6922
        %v8715 = vsub.f32 0.0, %v6923
        %v8716 = vsub.f32 0.0, %v6924
        %v8717 = vsub.f32 0.0, %v6925
        %v8718 = vsub.f32 0.0, %v6926
        %v8719 = vsub.f32 0.0, %v6927
        %v8720 = vsub.f32 0.0, %v6928
        %v8721 = vsub.f32 0.0, %v6929
        %v8722 = vsub.f32 0.0, %v6930
        %v8723 = vsub.f32 0.0, %v6931
        %v8724 = vsub.f32 0.0, %v6932
        %v8725 = vsub.f32 0.0, %v6933
        %v8726 = vsub.f32 0.0, %v6934
        %v8727 = vsub.f32 0.0, %v6935
        %v8728 = vsub.f32 0.0, %v6936
        %v8729 = vsub.f32 0.0, %v6937
        %v8730 = vsub.f32 0.0, %v6938
        %v8731 = vsub.f32 0.0, %v6939
        %v8732 = vsub.f32 0.0, %v6940
        %v8733 = vsub.f32 0.0, %v6941
        %v8734 = vsub.f32 0.0, %v6942
        %v8735 = vsub.f32 0.0, %v6943
        %v8736 = vsub.f32 0.0, %v6944
        %v8737 = vsub.f32 0.0, %v6945
        %v8738 = vsub.f32 0.0, %v6946
        %v8739 = vsub.f32 0.0, %v6947
        %v8740 = vsub.f32 0.0, %v6948
        %v8741 = vsub.f32 0.0, %v6949
        %v8742 = vsub.f32 0.0, %v6950
        %v8743 = vsub.f32 0.0, %v6951
        %v8744 = vsub.f32 0.0, %v6952
        %v8745 = vsub.f32 0.0, %v6953
        %v8746 = vsub.f32 0.0, %v6954
        %v8747 = vsub.f32 0.0, %v6955
        %v8748 = vsub.f32 0.0, %v6956
        %v8749 = vsub.f32 0.0, %v6957
        %v8750 = vsub.f32 0.0, %v6958
        %v8751 = vsub.f32 0.0, %v6959
        %v8752 = vsub.f32 0.0, %v6960
        %v8753 = vsub.f32 0.0, %v6961
        %v8754 = vsub.f32 0.0, %v6962
        %v8755 = vsub.f32 0.0, %v6963
        %v8756 = vsub.f32 0.0, %v6964
        %v8757 = vsub.f32 0.0, %v6965
        %v8758 = vsub.f32 0.0, %v6966
        %v8759 = vsub.f32 0.0, %v6967
        %v8760 = vsub.f32 0.0, %v6968
        %v8761 = vsub.f32 0.0, %v6969
        %v8762 = vsub.f32 0.0, %v6970
        %v8763 = vsub.f32 0.0, %v6971
        %v8764 = vsub.f32 0.0, %v6972
        %v8765 = vsub.f32 0.0, %v6973
        %v8766 = vsub.f32 0.0, %v6974
        %v8767 = vsub.f32 0.0, %v6975
        %v8768 = vsub.f32 0.0, %v6976
        %v8769 = vsub.f32 0.0, %v6977
        %v8770 = vsub.f32 0.0, %v6978
        %v8771 = vsub.f32 0.0, %v6979
        %v8772 = vsub.f32 0.0, %v6980
        %v8773 = vsub.f32 0.0, %v6981
        %v8774 = vsub.f32 0.0, %v6982
        %v8775 = vsub.f32 0.0, %v6983
        %v8776 = vsub.f32 0.0, %v6984
        %v8777 = vsub.f32 0.0, %v6985
        %v8778 = vsub.f32 0.0, %v6986
        %v8779 = vsub.f32 0.0, %v6987
        %v8780 = vsub.f32 0.0, %v6988
        %v8781 = vsub.f32 0.0, %v6989
        %v8782 = vsub.f32 0.0, %v6990
        %v8783 = vsub.f32 0.0, %v6991
        %v8784 = vsub.f32 0.0, %v6992
        %v8785 = vsub.f32 0.0, %v6993
        %v8786 = vsub.f32 0.0, %v6994
        %v8787 = vsub.f32 0.0, %v6995
        %v8788 = vsub.f32 0.0, %v6996
        %v8789 = vsub.f32 0.0, %v6997
        %v8790 = vsub.f32 0.0, %v6998
        %v8791 = vsub.f32 0.0, %v6999
        %v8792 = vsub.f32 0.0, %v7000
        %v8793 = vsub.f32 0.0, %v7001
        %v8794 = vsub.f32 0.0, %v7002
        %v8795 = vsub.f32 0.0, %v7003
        %v8796 = vsub.f32 0.0, %v7004
        %v8797 = vsub.f32 0.0, %v7005
        %v8798 = vsub.f32 0.0, %v7006
        %v8799 = vsub.f32 0.0, %v7007
        %v8800 = vsub.f32 0.0, %v7008
        %v8801 = vsub.f32 0.0, %v7009
        %v8802 = vsub.f32 0.0, %v7010
        %v8803 = vsub.f32 0.0, %v7011
        %v8804 = vsub.f32 0.0, %v7012
        %v8805 = vsub.f32 0.0, %v7013
        %v8806 = vsub.f32 0.0, %v7014
        %v8807 = vsub.f32 0.0, %v7015
        %v8808 = vsub.f32 0.0, %v7016
        %v8809 = vsub.f32 0.0, %v7017
        %v8810 = vsub.f32 0.0, %v7018
        %v8811 = vsub.f32 0.0, %v7019
        %v8812 = vsub.f32 0.0, %v7020
        %v8813 = vsub.f32 0.0, %v7021
        %v8814 = vsub.f32 0.0, %v7022
        %v8815 = vsub.f32 0.0, %v7023
        %v8816 = vsub.f32 0.0, %v7024
        %v8817 = vsub.f32 0.0, %v7025
        %v8818 = vsub.f32 0.0, %v7026
        %v8819 = vsub.f32 0.0, %v7027
        %v8820 = vsub.f32 0.0, %v7028
        %v8821 = vsub.f32 0.0, %v7029
        %v8822 = vsub.f32 0.0, %v7030
        %v8823 = vsub.f32 0.0, %v7031
        %v8824 = vsub.f32 0.0, %v7032
        %v8825 = vsub.f32 0.0, %v7033
        %v8826 = vsub.f32 0.0, %v7034
        %v8827 = vsub.f32 0.0, %v7035
        %v8828 = vsub.f32 0.0, %v7036
        %v8829 = vsub.f32 0.0, %v7037
        %v8830 = vmul.f32 %v8702, %v6910
        %v8831 = vmul.f32 %v8703, %v6911
        %v8832 = vmul.f32 %v8704, %v6912
        %v8833 = vmul.f32 %v8705, %v6913
        %v8834 = vmul.f32 %v8706, %v6914
        %v8835 = vmul.f32 %v8707, %v6915
        %v8836 = vmul.f32 %v8708, %v6916
        %v8837 = vmul.f32 %v8709, %v6917
        %v8838 = vmul.f32 %v8710, %v6918
        %v8839 = vmul.f32 %v8711, %v6919
        %v8840 = vmul.f32 %v8712, %v6920
        %v8841 = vmul.f32 %v8713, %v6921
        %v8842 = vmul.f32 %v8714, %v6922
        %v8843 = vmul.f32 %v8715, %v6923
        %v8844 = vmul.f32 %v8716, %v6924
        %v8845 = vmul.f32 %v8717, %v6925
        %v8846 = vmul.f32 %v8718, %v6926
        %v8847 = vmul.f32 %v8719, %v6927
        %v8848 = vmul.f32 %v8720, %v6928
        %v8849 = vmul.f32 %v8721, %v6929
        %v8850 = vmul.f32 %v8722, %v6930
        %v8851 = vmul.f32 %v8723, %v6931
        %v8852 = vmul.f32 %v8724, %v6932
        %v8853 = vmul.f32 %v8725, %v6933
        %v8854 = vmul.f32 %v8726, %v6934
        %v8855 = vmul.f32 %v8727, %v6935
        %v8856 = vmul.f32 %v8728, %v6936
        %v8857 = vmul.f32 %v8729, %v6937
        %v8858 = vmul.f32 %v8730, %v6938
        %v8859 = vmul.f32 %v8731, %v6939
        %v8860 = vmul.f32 %v8732, %v6940
        %v8861 = vmul.f32 %v8733, %v6941
        %v8862 = vmul.f32 %v8734, %v6942
        %v8863 = vmul.f32 %v8735, %v6943
        %v8864 = vmul.f32 %v8736, %v6944
        %v8865 = vmul.f32 %v8737, %v6945
        %v8866 = vmul.f32 %v8738, %v6946
        %v8867 = vmul.f32 %v8739, %v6947
        %v8868 = vmul.f32 %v8740, %v6948
        %v8869 = vmul.f32 %v8741, %v6949
        %v8870 = vmul.f32 %v8742, %v6950
        %v8871 = vmul.f32 %v8743, %v6951
        %v8872 = vmul.f32 %v8744, %v6952
        %v8873 = vmul.f32 %v8745, %v6953
        %v8874 = vmul.f32 %v8746, %v6954
        %v8875 = vmul.f32 %v8747, %v6955
        %v8876 = vmul.f32 %v8748, %v6956
        %v8877 = vmul.f32 %v8749, %v6957
        %v8878 = vmul.f32 %v8750, %v6958
        %v8879 = vmul.f32 %v8751, %v6959
        %v8880 = vmul.f32 %v8752, %v6960
        %v8881 = vmul.f32 %v8753, %v6961
        %v8882 = vmul.f32 %v8754, %v6962
        %v8883 = vmul.f32 %v8755, %v6963
        %v8884 = vmul.f32 %v8756, %v6964
        %v8885 = vmul.f32 %v8757, %v6965
        %v8886 = vmul.f32 %v8758, %v6966
        %v8887 = vmul.f32 %v8759, %v6967
        %v8888 = vmul.f32 %v8760, %v6968
        %v8889 = vmul.f32 %v8761, %v6969
        %v8890 = vmul.f32 %v8762, %v6970
        %v8891 = vmul.f32 %v8763, %v6971
        %v8892 = vmul.f32 %v8764, %v6972
        %v8893 = vmul.f32 %v8765, %v6973
        %v8894 = vmul.f32 %v8766, %v6974
        %v8895 = vmul.f32 %v8767, %v6975
        %v8896 = vmul.f32 %v8768, %v6976
        %v8897 = vmul.f32 %v8769, %v6977
        %v8898 = vmul.f32 %v8770, %v6978
        %v8899 = vmul.f32 %v8771, %v6979
        %v8900 = vmul.f32 %v8772, %v6980
        %v8901 = vmul.f32 %v8773, %v6981
        %v8902 = vmul.f32 %v8774, %v6982
        %v8903 = vmul.f32 %v8775, %v6983
        %v8904 = vmul.f32 %v8776, %v6984
        %v8905 = vmul.f32 %v8777, %v6985
        %v8906 = vmul.f32 %v8778, %v6986
        %v8907 = vmul.f32 %v8779, %v6987
        %v8908 = vmul.f32 %v8780, %v6988
        %v8909 = vmul.f32 %v8781, %v6989
        %v8910 = vmul.f32 %v8782, %v6990
        %v8911 = vmul.f32 %v8783, %v6991
        %v8912 = vmul.f32 %v8784, %v6992
        %v8913 = vmul.f32 %v8785, %v6993
        %v8914 = vmul.f32 %v8786, %v6994
        %v8915 = vmul.f32 %v8787, %v6995
        %v8916 = vmul.f32 %v8788, %v6996
        %v8917 = vmul.f32 %v8789, %v6997
        %v8918 = vmul.f32 %v8790, %v6998
        %v8919 = vmul.f32 %v8791, %v6999
        %v8920 = vmul.f32 %v8792, %v7000
        %v8921 = vmul.f32 %v8793, %v7001
        %v8922 = vmul.f32 %v8794, %v7002
        %v8923 = vmul.f32 %v8795, %v7003
        %v8924 = vmul.f32 %v8796, %v7004
        %v8925 = vmul.f32 %v8797, %v7005
        %v8926 = vmul.f32 %v8798, %v7006
        %v8927 = vmul.f32 %v8799, %v7007
        %v8928 = vmul.f32 %v8800, %v7008
        %v8929 = vmul.f32 %v8801, %v7009
        %v8930 = vmul.f32 %v8802, %v7010
        %v8931 = vmul.f32 %v8803, %v7011
        %v8932 = vmul.f32 %v8804, %v7012
        %v8933 = vmul.f32 %v8805, %v7013
        %v8934 = vmul.f32 %v8806, %v7014
        %v8935 = vmul.f32 %v8807, %v7015
        %v8936 = vmul.f32 %v8808, %v7016
        %v8937 = vmul.f32 %v8809, %v7017
        %v8938 = vmul.f32 %v8810, %v7018
        %v8939 = vmul.f32 %v8811, %v7019
        %v8940 = vmul.f32 %v8812, %v7020
        %v8941 = vmul.f32 %v8813, %v7021
        %v8942 = vmul.f32 %v8814, %v7022
        %v8943 = vmul.f32 %v8815, %v7023
        %v8944 = vmul.f32 %v8816, %v7024
        %v8945 = vmul.f32 %v8817, %v7025
        %v8946 = vmul.f32 %v8818, %v7026
        %v8947 = vmul.f32 %v8819, %v7027
        %v8948 = vmul.f32 %v8820, %v7028
        %v8949 = vmul.f32 %v8821, %v7029
        %v8950 = vmul.f32 %v8822, %v7030
        %v8951 = vmul.f32 %v8823, %v7031
        %v8952 = vmul.f32 %v8824, %v7032
        %v8953 = vmul.f32 %v8825, %v7033
        %v8954 = vmul.f32 %v8826, %v7034
        %v8955 = vmul.f32 %v8827, %v7035
        %v8956 = vmul.f32 %v8828, %v7036
        %v8957 = vmul.f32 %v8829, %v7037
        %v8958 = vmul.f32 %v8830, 1.442695
        %v8959 = vpow.pop %v8958
        %v8960 = vmul.f32 %v8831, 1.442695
        %v8961 = vpow.pop %v8960
        %v8962 = vmul.f32 %v8832, 1.442695
        %v8963 = vpow.pop %v8962
        %v8964 = vmul.f32 %v8833, 1.442695
        %v8965 = vpow.pop %v8964
        %v8966 = vmul.f32 %v8834, 1.442695
        %v8967 = vpow.pop %v8966
        %v8968 = vmul.f32 %v8835, 1.442695
        %v8969 = vpow.pop %v8968
        %v8970 = vmul.f32 %v8836, 1.442695
        %v8971 = vpow.pop %v8970
        %v8972 = vmul.f32 %v8837, 1.442695
        %v8973 = vpow.pop %v8972
        %v8974 = vmul.f32 %v8838, 1.442695
        %v8975 = vpow.pop %v8974
        %v8976 = vmul.f32 %v8839, 1.442695
        %v8977 = vpow.pop %v8976
        %v8978 = vmul.f32 %v8840, 1.442695
        %v8979 = vpow.pop %v8978
        %v8980 = vmul.f32 %v8841, 1.442695
        %v8981 = vpow.pop %v8980
        %v8982 = vmul.f32 %v8842, 1.442695
        %v8983 = vpow.pop %v8982
        %v8984 = vmul.f32 %v8843, 1.442695
        %v8985 = vpow.pop %v8984
        %v8986 = vmul.f32 %v8844, 1.442695
        %v8987 = vpow.pop %v8986
        %v8988 = vmul.f32 %v8845, 1.442695
        %v8989 = vpow.pop %v8988
        %v8990 = vmul.f32 %v8846, 1.442695
        %v8991 = vpow.pop %v8990
        %v8992 = vmul.f32 %v8847, 1.442695
        %v8993 = vpow.pop %v8992
        %v8994 = vmul.f32 %v8848, 1.442695
        %v8995 = vpow.pop %v8994
        %v8996 = vmul.f32 %v8849, 1.442695
        %v8997 = vpow.pop %v8996
        %v8998 = vmul.f32 %v8850, 1.442695
        %v8999 = vpow.pop %v8998
        %v9000 = vmul.f32 %v8851, 1.442695
        %v9001 = vpow.pop %v9000
        %v9002 = vmul.f32 %v8852, 1.442695
        %v9003 = vpow.pop %v9002
        %v9004 = vmul.f32 %v8853, 1.442695
        %v9005 = vpow.pop %v9004
        %v9006 = vmul.f32 %v8854, 1.442695
        %v9007 = vpow.pop %v9006
        %v9008 = vmul.f32 %v8855, 1.442695
        %v9009 = vpow.pop %v9008
        %v9010 = vmul.f32 %v8856, 1.442695
        %v9011 = vpow.pop %v9010
        %v9012 = vmul.f32 %v8857, 1.442695
        %v9013 = vpow.pop %v9012
        %v9014 = vmul.f32 %v8858, 1.442695
        %v9015 = vpow.pop %v9014
        %v9016 = vmul.f32 %v8859, 1.442695
        %v9017 = vpow.pop %v9016
        %v9018 = vmul.f32 %v8860, 1.442695
        %v9019 = vpow.pop %v9018
        %v9020 = vmul.f32 %v8861, 1.442695
        %v9021 = vpow.pop %v9020
        %v9022 = vmul.f32 %v8862, 1.442695
        %v9023 = vpow.pop %v9022
        %v9024 = vmul.f32 %v8863, 1.442695
        %v9025 = vpow.pop %v9024
        %v9026 = vmul.f32 %v8864, 1.442695
        %v9027 = vpow.pop %v9026
        %v9028 = vmul.f32 %v8865, 1.442695
        %v9029 = vpow.pop %v9028
        %v9030 = vmul.f32 %v8866, 1.442695
        %v9031 = vpow.pop %v9030
        %v9032 = vmul.f32 %v8867, 1.442695
        %v9033 = vpow.pop %v9032
        %v9034 = vmul.f32 %v8868, 1.442695
        %v9035 = vpow.pop %v9034
        %v9036 = vmul.f32 %v8869, 1.442695
        %v9037 = vpow.pop %v9036
        %v9038 = vmul.f32 %v8870, 1.442695
        %v9039 = vpow.pop %v9038
        %v9040 = vmul.f32 %v8871, 1.442695
        %v9041 = vpow.pop %v9040
        %v9042 = vmul.f32 %v8872, 1.442695
        %v9043 = vpow.pop %v9042
        %v9044 = vmul.f32 %v8873, 1.442695
        %v9045 = vpow.pop %v9044
        %v9046 = vmul.f32 %v8874, 1.442695
        %v9047 = vpow.pop %v9046
        %v9048 = vmul.f32 %v8875, 1.442695
        %v9049 = vpow.pop %v9048
        %v9050 = vmul.f32 %v8876, 1.442695
        %v9051 = vpow.pop %v9050
        %v9052 = vmul.f32 %v8877, 1.442695
        %v9053 = vpow.pop %v9052
        %v9054 = vmul.f32 %v8878, 1.442695
        %v9055 = vpow.pop %v9054
        %v9056 = vmul.f32 %v8879, 1.442695
        %v9057 = vpow.pop %v9056
        %v9058 = vmul.f32 %v8880, 1.442695
        %v9059 = vpow.pop %v9058
        %v9060 = vmul.f32 %v8881, 1.442695
        %v9061 = vpow.pop %v9060
        %v9062 = vmul.f32 %v8882, 1.442695
        %v9063 = vpow.pop %v9062
        %v9064 = vmul.f32 %v8883, 1.442695
        %v9065 = vpow.pop %v9064
        %v9066 = vmul.f32 %v8884, 1.442695
        %v9067 = vpow.pop %v9066
        %v9068 = vmul.f32 %v8885, 1.442695
        %v9069 = vpow.pop %v9068
        %v9070 = vmul.f32 %v8886, 1.442695
        %v9071 = vpow.pop %v9070
        %v9072 = vmul.f32 %v8887, 1.442695
        %v9073 = vpow.pop %v9072
        %v9074 = vmul.f32 %v8888, 1.442695
        %v9075 = vpow.pop %v9074
        %v9076 = vmul.f32 %v8889, 1.442695
        %v9077 = vpow.pop %v9076
        %v9078 = vmul.f32 %v8890, 1.442695
        %v9079 = vpow.pop %v9078
        %v9080 = vmul.f32 %v8891, 1.442695
        %v9081 = vpow.pop %v9080
        %v9082 = vmul.f32 %v8892, 1.442695
        %v9083 = vpow.pop %v9082
        %v9084 = vmul.f32 %v8893, 1.442695
        %v9085 = vpow.pop %v9084
        %v9086 = vmul.f32 %v8894, 1.442695
        %v9087 = vpow.pop %v9086
        %v9088 = vmul.f32 %v8895, 1.442695
        %v9089 = vpow.pop %v9088
        %v9090 = vmul.f32 %v8896, 1.442695
        %v9091 = vpow.pop %v9090
        %v9092 = vmul.f32 %v8897, 1.442695
        %v9093 = vpow.pop %v9092
        %v9094 = vmul.f32 %v8898, 1.442695
        %v9095 = vpow.pop %v9094
        %v9096 = vmul.f32 %v8899, 1.442695
        %v9097 = vpow.pop %v9096
        %v9098 = vmul.f32 %v8900, 1.442695
        %v9099 = vpow.pop %v9098
        %v9100 = vmul.f32 %v8901, 1.442695
        %v9101 = vpow.pop %v9100
        %v9102 = vmul.f32 %v8902, 1.442695
        %v9103 = vpow.pop %v9102
        %v9104 = vmul.f32 %v8903, 1.442695
        %v9105 = vpow.pop %v9104
        %v9106 = vmul.f32 %v8904, 1.442695
        %v9107 = vpow.pop %v9106
        %v9108 = vmul.f32 %v8905, 1.442695
        %v9109 = vpow.pop %v9108
        %v9110 = vmul.f32 %v8906, 1.442695
        %v9111 = vpow.pop %v9110
        %v9112 = vmul.f32 %v8907, 1.442695
        %v9113 = vpow.pop %v9112
        %v9114 = vmul.f32 %v8908, 1.442695
        %v9115 = vpow.pop %v9114
        %v9116 = vmul.f32 %v8909, 1.442695
        %v9117 = vpow.pop %v9116
        %v9118 = vmul.f32 %v8910, 1.442695
        %v9119 = vpow.pop %v9118
        %v9120 = vmul.f32 %v8911, 1.442695
        %v9121 = vpow.pop %v9120
        %v9122 = vmul.f32 %v8912, 1.442695
        %v9123 = vpow.pop %v9122
        %v9124 = vmul.f32 %v8913, 1.442695
        %v9125 = vpow.pop %v9124
        %v9126 = vmul.f32 %v8914, 1.442695
        %v9127 = vpow.pop %v9126
        %v9128 = vmul.f32 %v8915, 1.442695
        %v9129 = vpow.pop %v9128
        %v9130 = vmul.f32 %v8916, 1.442695
        %v9131 = vpow.pop %v9130
        %v9132 = vmul.f32 %v8917, 1.442695
        %v9133 = vpow.pop %v9132
        %v9134 = vmul.f32 %v8918, 1.442695
        %v9135 = vpow.pop %v9134
        %v9136 = vmul.f32 %v8919, 1.442695
        %v9137 = vpow.pop %v9136
        %v9138 = vmul.f32 %v8920, 1.442695
        %v9139 = vpow.pop %v9138
        %v9140 = vmul.f32 %v8921, 1.442695
        %v9141 = vpow.pop %v9140
        %v9142 = vmul.f32 %v8922, 1.442695
        %v9143 = vpow.pop %v9142
        %v9144 = vmul.f32 %v8923, 1.442695
        %v9145 = vpow.pop %v9144
        %v9146 = vmul.f32 %v8924, 1.442695
        %v9147 = vpow.pop %v9146
        %v9148 = vmul.f32 %v8925, 1.442695
        %v9149 = vpow.pop %v9148
        %v9150 = vmul.f32 %v8926, 1.442695
        %v9151 = vpow.pop %v9150
        %v9152 = vmul.f32 %v8927, 1.442695
        %v9153 = vpow.pop %v9152
        %v9154 = vmul.f32 %v8928, 1.442695
        %v9155 = vpow.pop %v9154
        %v9156 = vmul.f32 %v8929, 1.442695
        %v9157 = vpow.pop %v9156
        %v9158 = vmul.f32 %v8930, 1.442695
        %v9159 = vpow.pop %v9158
        %v9160 = vmul.f32 %v8931, 1.442695
        %v9161 = vpow.pop %v9160
        %v9162 = vmul.f32 %v8932, 1.442695
        %v9163 = vpow.pop %v9162
        %v9164 = vmul.f32 %v8933, 1.442695
        %v9165 = vpow.pop %v9164
        %v9166 = vmul.f32 %v8934, 1.442695
        %v9167 = vpow.pop %v9166
        %v9168 = vmul.f32 %v8935, 1.442695
        %v9169 = vpow.pop %v9168
        %v9170 = vmul.f32 %v8936, 1.442695
        %v9171 = vpow.pop %v9170
        %v9172 = vmul.f32 %v8937, 1.442695
        %v9173 = vpow.pop %v9172
        %v9174 = vmul.f32 %v8938, 1.442695
        %v9175 = vpow.pop %v9174
        %v9176 = vmul.f32 %v8939, 1.442695
        %v9177 = vpow.pop %v9176
        %v9178 = vmul.f32 %v8940, 1.442695
        %v9179 = vpow.pop %v9178
        %v9180 = vmul.f32 %v8941, 1.442695
        %v9181 = vpow.pop %v9180
        %v9182 = vmul.f32 %v8942, 1.442695
        %v9183 = vpow.pop %v9182
        %v9184 = vmul.f32 %v8943, 1.442695
        %v9185 = vpow.pop %v9184
        %v9186 = vmul.f32 %v8944, 1.442695
        %v9187 = vpow.pop %v9186
        %v9188 = vmul.f32 %v8945, 1.442695
        %v9189 = vpow.pop %v9188
        %v9190 = vmul.f32 %v8946, 1.442695
        %v9191 = vpow.pop %v9190
        %v9192 = vmul.f32 %v8947, 1.442695
        %v9193 = vpow.pop %v9192
        %v9194 = vmul.f32 %v8948, 1.442695
        %v9195 = vpow.pop %v9194
        %v9196 = vmul.f32 %v8949, 1.442695
        %v9197 = vpow.pop %v9196
        %v9198 = vmul.f32 %v8950, 1.442695
        %v9199 = vpow.pop %v9198
        %v9200 = vmul.f32 %v8951, 1.442695
        %v9201 = vpow.pop %v9200
        %v9202 = vmul.f32 %v8952, 1.442695
        %v9203 = vpow.pop %v9202
        %v9204 = vmul.f32 %v8953, 1.442695
        %v9205 = vpow.pop %v9204
        %v9206 = vmul.f32 %v8954, 1.442695
        %v9207 = vpow.pop %v9206
        %v9208 = vmul.f32 %v8955, 1.442695
        %v9209 = vpow.pop %v9208
        %v9210 = vmul.f32 %v8956, 1.442695
        %v9211 = vpow.pop %v9210
        %v9212 = vmul.f32 %v8957, 1.442695
        %v9213 = vpow.pop %v9212
        %v9214 = vmul.f32 %v8574, %v8959
        %v9215 = vmul.f32 %v8575, %v8961
        %v9216 = vmul.f32 %v8576, %v8963
        %v9217 = vmul.f32 %v8577, %v8965
        %v9218 = vmul.f32 %v8578, %v8967
        %v9219 = vmul.f32 %v8579, %v8969
        %v9220 = vmul.f32 %v8580, %v8971
        %v9221 = vmul.f32 %v8581, %v8973
        %v9222 = vmul.f32 %v8582, %v8975
        %v9223 = vmul.f32 %v8583, %v8977
        %v9224 = vmul.f32 %v8584, %v8979
        %v9225 = vmul.f32 %v8585, %v8981
        %v9226 = vmul.f32 %v8586, %v8983
        %v9227 = vmul.f32 %v8587, %v8985
        %v9228 = vmul.f32 %v8588, %v8987
        %v9229 = vmul.f32 %v8589, %v8989
        %v9230 = vmul.f32 %v8590, %v8991
        %v9231 = vmul.f32 %v8591, %v8993
        %v9232 = vmul.f32 %v8592, %v8995
        %v9233 = vmul.f32 %v8593, %v8997
        %v9234 = vmul.f32 %v8594, %v8999
        %v9235 = vmul.f32 %v8595, %v9001
        %v9236 = vmul.f32 %v8596, %v9003
        %v9237 = vmul.f32 %v8597, %v9005
        %v9238 = vmul.f32 %v8598, %v9007
        %v9239 = vmul.f32 %v8599, %v9009
        %v9240 = vmul.f32 %v8600, %v9011
        %v9241 = vmul.f32 %v8601, %v9013
        %v9242 = vmul.f32 %v8602, %v9015
        %v9243 = vmul.f32 %v8603, %v9017
        %v9244 = vmul.f32 %v8604, %v9019
        %v9245 = vmul.f32 %v8605, %v9021
        %v9246 = vmul.f32 %v8606, %v9023
        %v9247 = vmul.f32 %v8607, %v9025
        %v9248 = vmul.f32 %v8608, %v9027
        %v9249 = vmul.f32 %v8609, %v9029
        %v9250 = vmul.f32 %v8610, %v9031
        %v9251 = vmul.f32 %v8611, %v9033
        %v9252 = vmul.f32 %v8612, %v9035
        %v9253 = vmul.f32 %v8613, %v9037
        %v9254 = vmul.f32 %v8614, %v9039
        %v9255 = vmul.f32 %v8615, %v9041
        %v9256 = vmul.f32 %v8616, %v9043
        %v9257 = vmul.f32 %v8617, %v9045
        %v9258 = vmul.f32 %v8618, %v9047
        %v9259 = vmul.f32 %v8619, %v9049
        %v9260 = vmul.f32 %v8620, %v9051
        %v9261 = vmul.f32 %v8621, %v9053
        %v9262 = vmul.f32 %v8622, %v9055
        %v9263 = vmul.f32 %v8623, %v9057
        %v9264 = vmul.f32 %v8624, %v9059
        %v9265 = vmul.f32 %v8625, %v9061
        %v9266 = vmul.f32 %v8626, %v9063
        %v9267 = vmul.f32 %v8627, %v9065
        %v9268 = vmul.f32 %v8628, %v9067
        %v9269 = vmul.f32 %v8629, %v9069
        %v9270 = vmul.f32 %v8630, %v9071
        %v9271 = vmul.f32 %v8631, %v9073
        %v9272 = vmul.f32 %v8632, %v9075
        %v9273 = vmul.f32 %v8633, %v9077
        %v9274 = vmul.f32 %v8634, %v9079
        %v9275 = vmul.f32 %v8635, %v9081
        %v9276 = vmul.f32 %v8636, %v9083
        %v9277 = vmul.f32 %v8637, %v9085
        %v9278 = vmul.f32 %v8638, %v9087
        %v9279 = vmul.f32 %v8639, %v9089
        %v9280 = vmul.f32 %v8640, %v9091
        %v9281 = vmul.f32 %v8641, %v9093
        %v9282 = vmul.f32 %v8642, %v9095
        %v9283 = vmul.f32 %v8643, %v9097
        %v9284 = vmul.f32 %v8644, %v9099
        %v9285 = vmul.f32 %v8645, %v9101
        %v9286 = vmul.f32 %v8646, %v9103
        %v9287 = vmul.f32 %v8647, %v9105
        %v9288 = vmul.f32 %v8648, %v9107
        %v9289 = vmul.f32 %v8649, %v9109
        %v9290 = vmul.f32 %v8650, %v9111
        %v9291 = vmul.f32 %v8651, %v9113
        %v9292 = vmul.f32 %v8652, %v9115
        %v9293 = vmul.f32 %v8653, %v9117
        %v9294 = vmul.f32 %v8654, %v9119
        %v9295 = vmul.f32 %v8655, %v9121
        %v9296 = vmul.f32 %v8656, %v9123
        %v9297 = vmul.f32 %v8657, %v9125
        %v9298 = vmul.f32 %v8658, %v9127
        %v9299 = vmul.f32 %v8659, %v9129
        %v9300 = vmul.f32 %v8660, %v9131
        %v9301 = vmul.f32 %v8661, %v9133
        %v9302 = vmul.f32 %v8662, %v9135
        %v9303 = vmul.f32 %v8663, %v9137
        %v9304 = vmul.f32 %v8664, %v9139
        %v9305 = vmul.f32 %v8665, %v9141
        %v9306 = vmul.f32 %v8666, %v9143
        %v9307 = vmul.f32 %v8667, %v9145
        %v9308 = vmul.f32 %v8668, %v9147
        %v9309 = vmul.f32 %v8669, %v9149
        %v9310 = vmul.f32 %v8670, %v9151
        %v9311 = vmul.f32 %v8671, %v9153
        %v9312 = vmul.f32 %v8672, %v9155
        %v9313 = vmul.f32 %v8673, %v9157
        %v9314 = vmul.f32 %v8674, %v9159
        %v9315 = vmul.f32 %v8675, %v9161
        %v9316 = vmul.f32 %v8676, %v9163
        %v9317 = vmul.f32 %v8677, %v9165
        %v9318 = vmul.f32 %v8678, %v9167
        %v9319 = vmul.f32 %v8679, %v9169
        %v9320 = vmul.f32 %v8680, %v9171
        %v9321 = vmul.f32 %v8681, %v9173
        %v9322 = vmul.f32 %v8682, %v9175
        %v9323 = vmul.f32 %v8683, %v9177
        %v9324 = vmul.f32 %v8684, %v9179
        %v9325 = vmul.f32 %v8685, %v9181
        %v9326 = vmul.f32 %v8686, %v9183
        %v9327 = vmul.f32 %v8687, %v9185
        %v9328 = vmul.f32 %v8688, %v9187
        %v9329 = vmul.f32 %v8689, %v9189
        %v9330 = vmul.f32 %v8690, %v9191
        %v9331 = vmul.f32 %v8691, %v9193
        %v9332 = vmul.f32 %v8692, %v9195
        %v9333 = vmul.f32 %v8693, %v9197
        %v9334 = vmul.f32 %v8694, %v9199
        %v9335 = vmul.f32 %v8695, %v9201
        %v9336 = vmul.f32 %v8696, %v9203
        %v9337 = vmul.f32 %v8697, %v9205
        %v9338 = vmul.f32 %v8698, %v9207
        %v9339 = vmul.f32 %v8699, %v9209
        %v9340 = vmul.f32 %v8700, %v9211
        %v9341 = vmul.f32 %v8701, %v9213
        %v9342 = vsub.f32 1.0, %v9214
        %v9343 = vsub.f32 1.0, %v9215
        %v9344 = vsub.f32 1.0, %v9216
        %v9345 = vsub.f32 1.0, %v9217
        %v9346 = vsub.f32 1.0, %v9218
        %v9347 = vsub.f32 1.0, %v9219
        %v9348 = vsub.f32 1.0, %v9220
        %v9349 = vsub.f32 1.0, %v9221
        %v9350 = vsub.f32 1.0, %v9222
        %v9351 = vsub.f32 1.0, %v9223
        %v9352 = vsub.f32 1.0, %v9224
        %v9353 = vsub.f32 1.0, %v9225
        %v9354 = vsub.f32 1.0, %v9226
        %v9355 = vsub.f32 1.0, %v9227
        %v9356 = vsub.f32 1.0, %v9228
        %v9357 = vsub.f32 1.0, %v9229
        %v9358 = vsub.f32 1.0, %v9230
        %v9359 = vsub.f32 1.0, %v9231
        %v9360 = vsub.f32 1.0, %v9232
        %v9361 = vsub.f32 1.0, %v9233
        %v9362 = vsub.f32 1.0, %v9234
        %v9363 = vsub.f32 1.0, %v9235
        %v9364 = vsub.f32 1.0, %v9236
        %v9365 = vsub.f32 1.0, %v9237
        %v9366 = vsub.f32 1.0, %v9238
        %v9367 = vsub.f32 1.0, %v9239
        %v9368 = vsub.f32 1.0, %v9240
        %v9369 = vsub.f32 1.0, %v9241
        %v9370 = vsub.f32 1.0, %v9242
        %v9371 = vsub.f32 1.0, %v9243
        %v9372 = vsub.f32 1.0, %v9244
        %v9373 = vsub.f32 1.0, %v9245
        %v9374 = vsub.f32 1.0, %v9246
        %v9375 = vsub.f32 1.0, %v9247
        %v9376 = vsub.f32 1.0, %v9248
        %v9377 = vsub.f32 1.0, %v9249
        %v9378 = vsub.f32 1.0, %v9250
        %v9379 = vsub.f32 1.0, %v9251
        %v9380 = vsub.f32 1.0, %v9252
        %v9381 = vsub.f32 1.0, %v9253
        %v9382 = vsub.f32 1.0, %v9254
        %v9383 = vsub.f32 1.0, %v9255
        %v9384 = vsub.f32 1.0, %v9256
        %v9385 = vsub.f32 1.0, %v9257
        %v9386 = vsub.f32 1.0, %v9258
        %v9387 = vsub.f32 1.0, %v9259
        %v9388 = vsub.f32 1.0, %v9260
        %v9389 = vsub.f32 1.0, %v9261
        %v9390 = vsub.f32 1.0, %v9262
        %v9391 = vsub.f32 1.0, %v9263
        %v9392 = vsub.f32 1.0, %v9264
        %v9393 = vsub.f32 1.0, %v9265
        %v9394 = vsub.f32 1.0, %v9266
        %v9395 = vsub.f32 1.0, %v9267
        %v9396 = vsub.f32 1.0, %v9268
        %v9397 = vsub.f32 1.0, %v9269
        %v9398 = vsub.f32 1.0, %v9270
        %v9399 = vsub.f32 1.0, %v9271
        %v9400 = vsub.f32 1.0, %v9272
        %v9401 = vsub.f32 1.0, %v9273
        %v9402 = vsub.f32 1.0, %v9274
        %v9403 = vsub.f32 1.0, %v9275
        %v9404 = vsub.f32 1.0, %v9276
        %v9405 = vsub.f32 1.0, %v9277
        %v9406 = vsub.f32 1.0, %v9278
        %v9407 = vsub.f32 1.0, %v9279
        %v9408 = vsub.f32 1.0, %v9280
        %v9409 = vsub.f32 1.0, %v9281
        %v9410 = vsub.f32 1.0, %v9282
        %v9411 = vsub.f32 1.0, %v9283
        %v9412 = vsub.f32 1.0, %v9284
        %v9413 = vsub.f32 1.0, %v9285
        %v9414 = vsub.f32 1.0, %v9286
        %v9415 = vsub.f32 1.0, %v9287
        %v9416 = vsub.f32 1.0, %v9288
        %v9417 = vsub.f32 1.0, %v9289
        %v9418 = vsub.f32 1.0, %v9290
        %v9419 = vsub.f32 1.0, %v9291
        %v9420 = vsub.f32 1.0, %v9292
        %v9421 = vsub.f32 1.0, %v9293
        %v9422 = vsub.f32 1.0, %v9294
        %v9423 = vsub.f32 1.0, %v9295
        %v9424 = vsub.f32 1.0, %v9296
        %v9425 = vsub.f32 1.0, %v9297
        %v9426 = vsub.f32 1.0, %v9298
        %v9427 = vsub.f32 1.0, %v9299
        %v9428 = vsub.f32 1.0, %v9300
        %v9429 = vsub.f32 1.0, %v9301
        %v9430 = vsub.f32 1.0, %v9302
        %v9431 = vsub.f32 1.0, %v9303
        %v9432 = vsub.f32 1.0, %v9304
        %v9433 = vsub.f32 1.0, %v9305
        %v9434 = vsub.f32 1.0, %v9306
        %v9435 = vsub.f32 1.0, %v9307
        %v9436 = vsub.f32 1.0, %v9308
        %v9437 = vsub.f32 1.0, %v9309
        %v9438 = vsub.f32 1.0, %v9310
        %v9439 = vsub.f32 1.0, %v9311
        %v9440 = vsub.f32 1.0, %v9312
        %v9441 = vsub.f32 1.0, %v9313
        %v9442 = vsub.f32 1.0, %v9314
        %v9443 = vsub.f32 1.0, %v9315
        %v9444 = vsub.f32 1.0, %v9316
        %v9445 = vsub.f32 1.0, %v9317
        %v9446 = vsub.f32 1.0, %v9318
        %v9447 = vsub.f32 1.0, %v9319
        %v9448 = vsub.f32 1.0, %v9320
        %v9449 = vsub.f32 1.0, %v9321
        %v9450 = vsub.f32 1.0, %v9322
        %v9451 = vsub.f32 1.0, %v9323
        %v9452 = vsub.f32 1.0, %v9324
        %v9453 = vsub.f32 1.0, %v9325
        %v9454 = vsub.f32 1.0, %v9326
        %v9455 = vsub.f32 1.0, %v9327
        %v9456 = vsub.f32 1.0, %v9328
        %v9457 = vsub.f32 1.0, %v9329
        %v9458 = vsub.f32 1.0, %v9330
        %v9459 = vsub.f32 1.0, %v9331
        %v9460 = vsub.f32 1.0, %v9332
        %v9461 = vsub.f32 1.0, %v9333
        %v9462 = vsub.f32 1.0, %v9334
        %v9463 = vsub.f32 1.0, %v9335
        %v9464 = vsub.f32 1.0, %v9336
        %v9465 = vsub.f32 1.0, %v9337
        %v9466 = vsub.f32 1.0, %v9338
        %v9467 = vsub.f32 1.0, %v9339
        %v9468 = vsub.f32 1.0, %v9340
        %v9469 = vsub.f32 1.0, %v9341
        %v9470 = vmul.f32 %v6782, %v9342
        %v9471 = vmul.f32 %v6783, %v9343
        %v9472 = vmul.f32 %v6784, %v9344
        %v9473 = vmul.f32 %v6785, %v9345
        %v9474 = vmul.f32 %v6786, %v9346
        %v9475 = vmul.f32 %v6787, %v9347
        %v9476 = vmul.f32 %v6788, %v9348
        %v9477 = vmul.f32 %v6789, %v9349
        %v9478 = vmul.f32 %v6790, %v9350
        %v9479 = vmul.f32 %v6791, %v9351
        %v9480 = vmul.f32 %v6792, %v9352
        %v9481 = vmul.f32 %v6793, %v9353
        %v9482 = vmul.f32 %v6794, %v9354
        %v9483 = vmul.f32 %v6795, %v9355
        %v9484 = vmul.f32 %v6796, %v9356
        %v9485 = vmul.f32 %v6797, %v9357
        %v9486 = vmul.f32 %v6798, %v9358
        %v9487 = vmul.f32 %v6799, %v9359
        %v9488 = vmul.f32 %v6800, %v9360
        %v9489 = vmul.f32 %v6801, %v9361
        %v9490 = vmul.f32 %v6802, %v9362
        %v9491 = vmul.f32 %v6803, %v9363
        %v9492 = vmul.f32 %v6804, %v9364
        %v9493 = vmul.f32 %v6805, %v9365
        %v9494 = vmul.f32 %v6806, %v9366
        %v9495 = vmul.f32 %v6807, %v9367
        %v9496 = vmul.f32 %v6808, %v9368
        %v9497 = vmul.f32 %v6809, %v9369
        %v9498 = vmul.f32 %v6810, %v9370
        %v9499 = vmul.f32 %v6811, %v9371
        %v9500 = vmul.f32 %v6812, %v9372
        %v9501 = vmul.f32 %v6813, %v9373
        %v9502 = vmul.f32 %v6814, %v9374
        %v9503 = vmul.f32 %v6815, %v9375
        %v9504 = vmul.f32 %v6816, %v9376
        %v9505 = vmul.f32 %v6817, %v9377
        %v9506 = vmul.f32 %v6818, %v9378
        %v9507 = vmul.f32 %v6819, %v9379
        %v9508 = vmul.f32 %v6820, %v9380
        %v9509 = vmul.f32 %v6821, %v9381
        %v9510 = vmul.f32 %v6822, %v9382
        %v9511 = vmul.f32 %v6823, %v9383
        %v9512 = vmul.f32 %v6824, %v9384
        %v9513 = vmul.f32 %v6825, %v9385
        %v9514 = vmul.f32 %v6826, %v9386
        %v9515 = vmul.f32 %v6827, %v9387
        %v9516 = vmul.f32 %v6828, %v9388
        %v9517 = vmul.f32 %v6829, %v9389
        %v9518 = vmul.f32 %v6830, %v9390
        %v9519 = vmul.f32 %v6831, %v9391
        %v9520 = vmul.f32 %v6832, %v9392
        %v9521 = vmul.f32 %v6833, %v9393
        %v9522 = vmul.f32 %v6834, %v9394
        %v9523 = vmul.f32 %v6835, %v9395
        %v9524 = vmul.f32 %v6836, %v9396
        %v9525 = vmul.f32 %v6837, %v9397
        %v9526 = vmul.f32 %v6838, %v9398
        %v9527 = vmul.f32 %v6839, %v9399
        %v9528 = vmul.f32 %v6840, %v9400
        %v9529 = vmul.f32 %v6841, %v9401
        %v9530 = vmul.f32 %v6842, %v9402
        %v9531 = vmul.f32 %v6843, %v9403
        %v9532 = vmul.f32 %v6844, %v9404
        %v9533 = vmul.f32 %v6845, %v9405
        %v9534 = vmul.f32 %v6846, %v9406
        %v9535 = vmul.f32 %v6847, %v9407
        %v9536 = vmul.f32 %v6848, %v9408
        %v9537 = vmul.f32 %v6849, %v9409
        %v9538 = vmul.f32 %v6850, %v9410
        %v9539 = vmul.f32 %v6851, %v9411
        %v9540 = vmul.f32 %v6852, %v9412
        %v9541 = vmul.f32 %v6853, %v9413
        %v9542 = vmul.f32 %v6854, %v9414
        %v9543 = vmul.f32 %v6855, %v9415
        %v9544 = vmul.f32 %v6856, %v9416
        %v9545 = vmul.f32 %v6857, %v9417
        %v9546 = vmul.f32 %v6858, %v9418
        %v9547 = vmul.f32 %v6859, %v9419
        %v9548 = vmul.f32 %v6860, %v9420
        %v9549 = vmul.f32 %v6861, %v9421
        %v9550 = vmul.f32 %v6862, %v9422
        %v9551 = vmul.f32 %v6863, %v9423
        %v9552 = vmul.f32 %v6864, %v9424
        %v9553 = vmul.f32 %v6865, %v9425
        %v9554 = vmul.f32 %v6866, %v9426
        %v9555 = vmul.f32 %v6867, %v9427
        %v9556 = vmul.f32 %v6868, %v9428
        %v9557 = vmul.f32 %v6869, %v9429
        %v9558 = vmul.f32 %v6870, %v9430
        %v9559 = vmul.f32 %v6871, %v9431
        %v9560 = vmul.f32 %v6872, %v9432
        %v9561 = vmul.f32 %v6873, %v9433
        %v9562 = vmul.f32 %v6874, %v9434
        %v9563 = vmul.f32 %v6875, %v9435
        %v9564 = vmul.f32 %v6876, %v9436
        %v9565 = vmul.f32 %v6877, %v9437
        %v9566 = vmul.f32 %v6878, %v9438
        %v9567 = vmul.f32 %v6879, %v9439
        %v9568 = vmul.f32 %v6880, %v9440
        %v9569 = vmul.f32 %v6881, %v9441
        %v9570 = vmul.f32 %v6882, %v9442
        %v9571 = vmul.f32 %v6883, %v9443
        %v9572 = vmul.f32 %v6884, %v9444
        %v9573 = vmul.f32 %v6885, %v9445
        %v9574 = vmul.f32 %v6886, %v9446
        %v9575 = vmul.f32 %v6887, %v9447
        %v9576 = vmul.f32 %v6888, %v9448
        %v9577 = vmul.f32 %v6889, %v9449
        %v9578 = vmul.f32 %v6890, %v9450
        %v9579 = vmul.f32 %v6891, %v9451
        %v9580 = vmul.f32 %v6892, %v9452
        %v9581 = vmul.f32 %v6893, %v9453
        %v9582 = vmul.f32 %v6894, %v9454
        %v9583 = vmul.f32 %v6895, %v9455
        %v9584 = vmul.f32 %v6896, %v9456
        %v9585 = vmul.f32 %v6897, %v9457
        %v9586 = vmul.f32 %v6898, %v9458
        %v9587 = vmul.f32 %v6899, %v9459
        %v9588 = vmul.f32 %v6900, %v9460
        %v9589 = vmul.f32 %v6901, %v9461
        %v9590 = vmul.f32 %v6902, %v9462
        %v9591 = vmul.f32 %v6903, %v9463
        %v9592 = vmul.f32 %v6904, %v9464
        %v9593 = vmul.f32 %v6905, %v9465
        %v9594 = vmul.f32 %v6906, %v9466
        %v9595 = vmul.f32 %v6907, %v9467
        %v9596 = vmul.f32 %v6908, %v9468
        %v9597 = vmul.f32 %v6909, %v9469
        %v9598 = vadd.f32 %v9470, 1.0
        %v9599 = vadd.f32 %v9471, 1.0
        %v9600 = vadd.f32 %v9472, 1.0
        %v9601 = vadd.f32 %v9473, 1.0
        %v9602 = vadd.f32 %v9474, 1.0
        %v9603 = vadd.f32 %v9475, 1.0
        %v9604 = vadd.f32 %v9476, 1.0
        %v9605 = vadd.f32 %v9477, 1.0
        %v9606 = vadd.f32 %v9478, 1.0
        %v9607 = vadd.f32 %v9479, 1.0
        %v9608 = vadd.f32 %v9480, 1.0
        %v9609 = vadd.f32 %v9481, 1.0
        %v9610 = vadd.f32 %v9482, 1.0
        %v9611 = vadd.f32 %v9483, 1.0
        %v9612 = vadd.f32 %v9484, 1.0
        %v9613 = vadd.f32 %v9485, 1.0
        %v9614 = vadd.f32 %v9486, 1.0
        %v9615 = vadd.f32 %v9487, 1.0
        %v9616 = vadd.f32 %v9488, 1.0
        %v9617 = vadd.f32 %v9489, 1.0
        %v9618 = vadd.f32 %v9490, 1.0
        %v9619 = vadd.f32 %v9491, 1.0
        %v9620 = vadd.f32 %v9492, 1.0
        %v9621 = vadd.f32 %v9493, 1.0
        %v9622 = vadd.f32 %v9494, 1.0
        %v9623 = vadd.f32 %v9495, 1.0
        %v9624 = vadd.f32 %v9496, 1.0
        %v9625 = vadd.f32 %v9497, 1.0
        %v9626 = vadd.f32 %v9498, 1.0
        %v9627 = vadd.f32 %v9499, 1.0
        %v9628 = vadd.f32 %v9500, 1.0
        %v9629 = vadd.f32 %v9501, 1.0
        %v9630 = vadd.f32 %v9502, 1.0
        %v9631 = vadd.f32 %v9503, 1.0
        %v9632 = vadd.f32 %v9504, 1.0
        %v9633 = vadd.f32 %v9505, 1.0
        %v9634 = vadd.f32 %v9506, 1.0
        %v9635 = vadd.f32 %v9507, 1.0
        %v9636 = vadd.f32 %v9508, 1.0
        %v9637 = vadd.f32 %v9509, 1.0
        %v9638 = vadd.f32 %v9510, 1.0
        %v9639 = vadd.f32 %v9511, 1.0
        %v9640 = vadd.f32 %v9512, 1.0
        %v9641 = vadd.f32 %v9513, 1.0
        %v9642 = vadd.f32 %v9514, 1.0
        %v9643 = vadd.f32 %v9515, 1.0
        %v9644 = vadd.f32 %v9516, 1.0
        %v9645 = vadd.f32 %v9517, 1.0
        %v9646 = vadd.f32 %v9518, 1.0
        %v9647 = vadd.f32 %v9519, 1.0
        %v9648 = vadd.f32 %v9520, 1.0
        %v9649 = vadd.f32 %v9521, 1.0
        %v9650 = vadd.f32 %v9522, 1.0
        %v9651 = vadd.f32 %v9523, 1.0
        %v9652 = vadd.f32 %v9524, 1.0
        %v9653 = vadd.f32 %v9525, 1.0
        %v9654 = vadd.f32 %v9526, 1.0
        %v9655 = vadd.f32 %v9527, 1.0
        %v9656 = vadd.f32 %v9528, 1.0
        %v9657 = vadd.f32 %v9529, 1.0
        %v9658 = vadd.f32 %v9530, 1.0
        %v9659 = vadd.f32 %v9531, 1.0
        %v9660 = vadd.f32 %v9532, 1.0
        %v9661 = vadd.f32 %v9533, 1.0
        %v9662 = vadd.f32 %v9534, 1.0
        %v9663 = vadd.f32 %v9535, 1.0
        %v9664 = vadd.f32 %v9536, 1.0
        %v9665 = vadd.f32 %v9537, 1.0
        %v9666 = vadd.f32 %v9538, 1.0
        %v9667 = vadd.f32 %v9539, 1.0
        %v9668 = vadd.f32 %v9540, 1.0
        %v9669 = vadd.f32 %v9541, 1.0
        %v9670 = vadd.f32 %v9542, 1.0
        %v9671 = vadd.f32 %v9543, 1.0
        %v9672 = vadd.f32 %v9544, 1.0
        %v9673 = vadd.f32 %v9545, 1.0
        %v9674 = vadd.f32 %v9546, 1.0
        %v9675 = vadd.f32 %v9547, 1.0
        %v9676 = vadd.f32 %v9548, 1.0
        %v9677 = vadd.f32 %v9549, 1.0
        %v9678 = vadd.f32 %v9550, 1.0
        %v9679 = vadd.f32 %v9551, 1.0
        %v9680 = vadd.f32 %v9552, 1.0
        %v9681 = vadd.f32 %v9553, 1.0
        %v9682 = vadd.f32 %v9554, 1.0
        %v9683 = vadd.f32 %v9555, 1.0
        %v9684 = vadd.f32 %v9556, 1.0
        %v9685 = vadd.f32 %v9557, 1.0
        %v9686 = vadd.f32 %v9558, 1.0
        %v9687 = vadd.f32 %v9559, 1.0
        %v9688 = vadd.f32 %v9560, 1.0
        %v9689 = vadd.f32 %v9561, 1.0
        %v9690 = vadd.f32 %v9562, 1.0
        %v9691 = vadd.f32 %v9563, 1.0
        %v9692 = vadd.f32 %v9564, 1.0
        %v9693 = vadd.f32 %v9565, 1.0
        %v9694 = vadd.f32 %v9566, 1.0
        %v9695 = vadd.f32 %v9567, 1.0
        %v9696 = vadd.f32 %v9568, 1.0
        %v9697 = vadd.f32 %v9569, 1.0
        %v9698 = vadd.f32 %v9570, 1.0
        %v9699 = vadd.f32 %v9571, 1.0
        %v9700 = vadd.f32 %v9572, 1.0
        %v9701 = vadd.f32 %v9573, 1.0
        %v9702 = vadd.f32 %v9574, 1.0
        %v9703 = vadd.f32 %v9575, 1.0
        %v9704 = vadd.f32 %v9576, 1.0
        %v9705 = vadd.f32 %v9577, 1.0
        %v9706 = vadd.f32 %v9578, 1.0
        %v9707 = vadd.f32 %v9579, 1.0
        %v9708 = vadd.f32 %v9580, 1.0
        %v9709 = vadd.f32 %v9581, 1.0
        %v9710 = vadd.f32 %v9582, 1.0
        %v9711 = vadd.f32 %v9583, 1.0
        %v9712 = vadd.f32 %v9584, 1.0
        %v9713 = vadd.f32 %v9585, 1.0
        %v9714 = vadd.f32 %v9586, 1.0
        %v9715 = vadd.f32 %v9587, 1.0
        %v9716 = vadd.f32 %v9588, 1.0
        %v9717 = vadd.f32 %v9589, 1.0
        %v9718 = vadd.f32 %v9590, 1.0
        %v9719 = vadd.f32 %v9591, 1.0
        %v9720 = vadd.f32 %v9592, 1.0
        %v9721 = vadd.f32 %v9593, 1.0
        %v9722 = vadd.f32 %v9594, 1.0
        %v9723 = vadd.f32 %v9595, 1.0
        %v9724 = vadd.f32 %v9596, 1.0
        %v9725 = vadd.f32 %v9597, 1.0
        %v9726 = vmul.f32 %v6398, %v9598
        %v9727 = vmul.f32 %v6399, %v9599
        %v9728 = vmul.f32 %v6400, %v9600
        %v9729 = vmul.f32 %v6401, %v9601
        %v9730 = vmul.f32 %v6402, %v9602
        %v9731 = vmul.f32 %v6403, %v9603
        %v9732 = vmul.f32 %v6404, %v9604
        %v9733 = vmul.f32 %v6405, %v9605
        %v9734 = vmul.f32 %v6406, %v9606
        %v9735 = vmul.f32 %v6407, %v9607
        %v9736 = vmul.f32 %v6408, %v9608
        %v9737 = vmul.f32 %v6409, %v9609
        %v9738 = vmul.f32 %v6410, %v9610
        %v9739 = vmul.f32 %v6411, %v9611
        %v9740 = vmul.f32 %v6412, %v9612
        %v9741 = vmul.f32 %v6413, %v9613
        %v9742 = vmul.f32 %v6414, %v9614
        %v9743 = vmul.f32 %v6415, %v9615
        %v9744 = vmul.f32 %v6416, %v9616
        %v9745 = vmul.f32 %v6417, %v9617
        %v9746 = vmul.f32 %v6418, %v9618
        %v9747 = vmul.f32 %v6419, %v9619
        %v9748 = vmul.f32 %v6420, %v9620
        %v9749 = vmul.f32 %v6421, %v9621
        %v9750 = vmul.f32 %v6422, %v9622
        %v9751 = vmul.f32 %v6423, %v9623
        %v9752 = vmul.f32 %v6424, %v9624
        %v9753 = vmul.f32 %v6425, %v9625
        %v9754 = vmul.f32 %v6426, %v9626
        %v9755 = vmul.f32 %v6427, %v9627
        %v9756 = vmul.f32 %v6428, %v9628
        %v9757 = vmul.f32 %v6429, %v9629
        %v9758 = vmul.f32 %v6430, %v9630
        %v9759 = vmul.f32 %v6431, %v9631
        %v9760 = vmul.f32 %v6432, %v9632
        %v9761 = vmul.f32 %v6433, %v9633
        %v9762 = vmul.f32 %v6434, %v9634
        %v9763 = vmul.f32 %v6435, %v9635
        %v9764 = vmul.f32 %v6436, %v9636
        %v9765 = vmul.f32 %v6437, %v9637
        %v9766 = vmul.f32 %v6438, %v9638
        %v9767 = vmul.f32 %v6439, %v9639
        %v9768 = vmul.f32 %v6440, %v9640
        %v9769 = vmul.f32 %v6441, %v9641
        %v9770 = vmul.f32 %v6442, %v9642
        %v9771 = vmul.f32 %v6443, %v9643
        %v9772 = vmul.f32 %v6444, %v9644
        %v9773 = vmul.f32 %v6445, %v9645
        %v9774 = vmul.f32 %v6446, %v9646
        %v9775 = vmul.f32 %v6447, %v9647
        %v9776 = vmul.f32 %v6448, %v9648
        %v9777 = vmul.f32 %v6449, %v9649
        %v9778 = vmul.f32 %v6450, %v9650
        %v9779 = vmul.f32 %v6451, %v9651
        %v9780 = vmul.f32 %v6452, %v9652
        %v9781 = vmul.f32 %v6453, %v9653
        %v9782 = vmul.f32 %v6454, %v9654
        %v9783 = vmul.f32 %v6455, %v9655
        %v9784 = vmul.f32 %v6456, %v9656
        %v9785 = vmul.f32 %v6457, %v9657
        %v9786 = vmul.f32 %v6458, %v9658
        %v9787 = vmul.f32 %v6459, %v9659
        %v9788 = vmul.f32 %v6460, %v9660
        %v9789 = vmul.f32 %v6461, %v9661
        %v9790 = vmul.f32 %v6462, %v9662
        %v9791 = vmul.f32 %v6463, %v9663
        %v9792 = vmul.f32 %v6464, %v9664
        %v9793 = vmul.f32 %v6465, %v9665
        %v9794 = vmul.f32 %v6466, %v9666
        %v9795 = vmul.f32 %v6467, %v9667
        %v9796 = vmul.f32 %v6468, %v9668
        %v9797 = vmul.f32 %v6469, %v9669
        %v9798 = vmul.f32 %v6470, %v9670
        %v9799 = vmul.f32 %v6471, %v9671
        %v9800 = vmul.f32 %v6472, %v9672
        %v9801 = vmul.f32 %v6473, %v9673
        %v9802 = vmul.f32 %v6474, %v9674
        %v9803 = vmul.f32 %v6475, %v9675
        %v9804 = vmul.f32 %v6476, %v9676
        %v9805 = vmul.f32 %v6477, %v9677
        %v9806 = vmul.f32 %v6478, %v9678
        %v9807 = vmul.f32 %v6479, %v9679
        %v9808 = vmul.f32 %v6480, %v9680
        %v9809 = vmul.f32 %v6481, %v9681
        %v9810 = vmul.f32 %v6482, %v9682
        %v9811 = vmul.f32 %v6483, %v9683
        %v9812 = vmul.f32 %v6484, %v9684
        %v9813 = vmul.f32 %v6485, %v9685
        %v9814 = vmul.f32 %v6486, %v9686
        %v9815 = vmul.f32 %v6487, %v9687
        %v9816 = vmul.f32 %v6488, %v9688
        %v9817 = vmul.f32 %v6489, %v9689
        %v9818 = vmul.f32 %v6490, %v9690
        %v9819 = vmul.f32 %v6491, %v9691
        %v9820 = vmul.f32 %v6492, %v9692
        %v9821 = vmul.f32 %v6493, %v9693
        %v9822 = vmul.f32 %v6494, %v9694
        %v9823 = vmul.f32 %v6495, %v9695
        %v9824 = vmul.f32 %v6496, %v9696
        %v9825 = vmul.f32 %v6497, %v9697
        %v9826 = vmul.f32 %v6498, %v9698
        %v9827 = vmul.f32 %v6499, %v9699
        %v9828 = vmul.f32 %v6500, %v9700
        %v9829 = vmul.f32 %v6501, %v9701
        %v9830 = vmul.f32 %v6502, %v9702
        %v9831 = vmul.f32 %v6503, %v9703
        %v9832 = vmul.f32 %v6504, %v9704
        %v9833 = vmul.f32 %v6505, %v9705
        %v9834 = vmul.f32 %v6506, %v9706
        %v9835 = vmul.f32 %v6507, %v9707
        %v9836 = vmul.f32 %v6508, %v9708
        %v9837 = vmul.f32 %v6509, %v9709
        %v9838 = vmul.f32 %v6510, %v9710
        %v9839 = vmul.f32 %v6511, %v9711
        %v9840 = vmul.f32 %v6512, %v9712
        %v9841 = vmul.f32 %v6513, %v9713
        %v9842 = vmul.f32 %v6514, %v9714
        %v9843 = vmul.f32 %v6515, %v9715
        %v9844 = vmul.f32 %v6516, %v9716
        %v9845 = vmul.f32 %v6517, %v9717
        %v9846 = vmul.f32 %v6518, %v9718
        %v9847 = vmul.f32 %v6519, %v9719
        %v9848 = vmul.f32 %v6520, %v9720
        %v9849 = vmul.f32 %v6521, %v9721
        %v9850 = vmul.f32 %v6522, %v9722
        %v9851 = vmul.f32 %v6523, %v9723
        %v9852 = vmul.f32 %v6524, %v9724
        %v9853 = vmul.f32 %v6525, %v9725
        %v9854 = vpack.c.bf16 %v9734, %v9726
        %v9855 = vpack.c.bf16 %v9735, %v9727
        %v9856 = vpack.c.bf16 %v9736, %v9728
        %v9857 = vpack.c.bf16 %v9737, %v9729
        %v9858 = vpack.c.bf16 %v9738, %v9730
        %v9859 = vpack.c.bf16 %v9739, %v9731
        %v9860 = vpack.c.bf16 %v9740, %v9732
        %v9861 = vpack.c.bf16 %v9741, %v9733
        %v9862 = vpack.c.bf16 %v9750, %v9742
        %v9863 = vpack.c.bf16 %v9751, %v9743
        %v9864 = vpack.c.bf16 %v9752, %v9744
        %v9865 = vpack.c.bf16 %v9753, %v9745
        %v9866 = vpack.c.bf16 %v9754, %v9746
        %v9867 = vpack.c.bf16 %v9755, %v9747
        %v9868 = vpack.c.bf16 %v9756, %v9748
        %v9869 = vpack.c.bf16 %v9757, %v9749
        %v9870 = vpack.c.bf16 %v9766, %v9758
        %v9871 = vpack.c.bf16 %v9767, %v9759
        %v9872 = vpack.c.bf16 %v9768, %v9760
        %v9873 = vpack.c.bf16 %v9769, %v9761
        %v9874 = vpack.c.bf16 %v9770, %v9762
        %v9875 = vpack.c.bf16 %v9771, %v9763
        %v9876 = vpack.c.bf16 %v9772, %v9764
        %v9877 = vpack.c.bf16 %v9773, %v9765
        %v9878 = vpack.c.bf16 %v9782, %v9774
        %v9879 = vpack.c.bf16 %v9783, %v9775
        %v9880 = vpack.c.bf16 %v9784, %v9776
        %v9881 = vpack.c.bf16 %v9785, %v9777
        %v9882 = vpack.c.bf16 %v9786, %v9778
        %v9883 = vpack.c.bf16 %v9787, %v9779
        %v9884 = vpack.c.bf16 %v9788, %v9780
        %v9885 = vpack.c.bf16 %v9789, %v9781
        %v9886 = vpack.c.bf16 %v9798, %v9790
        %v9887 = vpack.c.bf16 %v9799, %v9791
        %v9888 = vpack.c.bf16 %v9800, %v9792
        %v9889 = vpack.c.bf16 %v9801, %v9793
        %v9890 = vpack.c.bf16 %v9802, %v9794
        %v9891 = vpack.c.bf16 %v9803, %v9795
        %v9892 = vpack.c.bf16 %v9804, %v9796
        %v9893 = vpack.c.bf16 %v9805, %v9797
        %v9894 = vpack.c.bf16 %v9814, %v9806
        %v9895 = vpack.c.bf16 %v9815, %v9807
        %v9896 = vpack.c.bf16 %v9816, %v9808
        %v9897 = vpack.c.bf16 %v9817, %v9809
        %v9898 = vpack.c.bf16 %v9818, %v9810
        %v9899 = vpack.c.bf16 %v9819, %v9811
        %v9900 = vpack.c.bf16 %v9820, %v9812
        %v9901 = vpack.c.bf16 %v9821, %v9813
        %v9902 = vpack.c.bf16 %v9830, %v9822
        %v9903 = vpack.c.bf16 %v9831, %v9823
        %v9904 = vpack.c.bf16 %v9832, %v9824
        %v9905 = vpack.c.bf16 %v9833, %v9825
        %v9906 = vpack.c.bf16 %v9834, %v9826
        %v9907 = vpack.c.bf16 %v9835, %v9827
        %v9908 = vpack.c.bf16 %v9836, %v9828
        %v9909 = vpack.c.bf16 %v9837, %v9829
        %v9910 = vpack.c.bf16 %v9846, %v9838
        %v9911 = vpack.c.bf16 %v9847, %v9839
        %v9912 = vpack.c.bf16 %v9848, %v9840
        %v9913 = vpack.c.bf16 %v9849, %v9841
        %v9914 = vpack.c.bf16 %v9850, %v9842
        %v9915 = vpack.c.bf16 %v9851, %v9843
        %v9916 = vpack.c.bf16 %v9852, %v9844
        %v9917 = vpack.c.bf16 %v9853, %v9845
        %v9918 = vld [vmem:[#allocation18] sm:$0xff]
        %v9919 = vld [vmem:[#allocation18 + $0x8] sm:$0xff]
        %v9920 = vld [vmem:[#allocation18 + $0x10] sm:$0xff]
        %v9921 = vld [vmem:[#allocation18 + $0x18] sm:$0xff]
        %v9922 = vld [vmem:[#allocation18 + $0x20] sm:$0xff]
        %v9923 = vld [vmem:[#allocation18 + $0x28] sm:$0xff]
        %v9924 = vld [vmem:[#allocation18 + $0x30] sm:$0xff]
        %v9925 = vld [vmem:[#allocation18 + $0x38] sm:$0xff]
        %v9926 = vld [vmem:[#allocation18 + $0x40] sm:$0xff]
        %v9927 = vld [vmem:[#allocation18 + $0x48] sm:$0xff]
        %v9928 = vld [vmem:[#allocation18 + $0x50] sm:$0xff]
        %v9929 = vld [vmem:[#allocation18 + $0x58] sm:$0xff]
        %v9930 = vld [vmem:[#allocation18 + $0x60] sm:$0xff]
        %v9931 = vld [vmem:[#allocation18 + $0x68] sm:$0xff]
        %v9932 = vld [vmem:[#allocation18 + $0x70] sm:$0xff]
        %v9933 = vld [vmem:[#allocation18 + $0x78] sm:$0xff]
        %v9934 = vld [vmem:[#allocation18 + $0x80] sm:$0xff]
        %v9935 = vld [vmem:[#allocation18 + $0x88] sm:$0xff]
        %v9936 = vld [vmem:[#allocation18 + $0x90] sm:$0xff]
        %v9937 = vld [vmem:[#allocation18 + $0x98] sm:$0xff]
        %v9938 = vld [vmem:[#allocation18 + $0xa0] sm:$0xff]
        %v9939 = vld [vmem:[#allocation18 + $0xa8] sm:$0xff]
        %v9940 = vld [vmem:[#allocation18 + $0xb0] sm:$0xff]
        %v9941 = vld [vmem:[#allocation18 + $0xb8] sm:$0xff]
        %v9942 = vld [vmem:[#allocation18 + $0xc0] sm:$0xff]
        %v9943 = vld [vmem:[#allocation18 + $0xc8] sm:$0xff]
        %v9944 = vld [vmem:[#allocation18 + $0xd0] sm:$0xff]
        %v9945 = vld [vmem:[#allocation18 + $0xd8] sm:$0xff]
        %v9946 = vld [vmem:[#allocation18 + $0xe0] sm:$0xff]
        %v9947 = vld [vmem:[#allocation18 + $0xe8] sm:$0xff]
        %v9948 = vld [vmem:[#allocation18 + $0xf0] sm:$0xff]
        %v9949 = vld [vmem:[#allocation18 + $0xf8] sm:$0xff]
        %v9950 = vld [vmem:[#allocation18 + $0x100] sm:$0xff]
        %v9951 = vld [vmem:[#allocation18 + $0x108] sm:$0xff]
        %v9952 = vld [vmem:[#allocation18 + $0x110] sm:$0xff]
        %v9953 = vld [vmem:[#allocation18 + $0x118] sm:$0xff]
        %v9954 = vld [vmem:[#allocation18 + $0x120] sm:$0xff]
        %v9955 = vld [vmem:[#allocation18 + $0x128] sm:$0xff]
        %v9956 = vld [vmem:[#allocation18 + $0x130] sm:$0xff]
        %v9957 = vld [vmem:[#allocation18 + $0x138] sm:$0xff]
        %v9958 = vld [vmem:[#allocation18 + $0x140] sm:$0xff]
        %v9959 = vld [vmem:[#allocation18 + $0x148] sm:$0xff]
        %v9960 = vld [vmem:[#allocation18 + $0x150] sm:$0xff]
        %v9961 = vld [vmem:[#allocation18 + $0x158] sm:$0xff]
        %v9962 = vld [vmem:[#allocation18 + $0x160] sm:$0xff]
        %v9963 = vld [vmem:[#allocation18 + $0x168] sm:$0xff]
        %v9964 = vld [vmem:[#allocation18 + $0x170] sm:$0xff]
        %v9965 = vld [vmem:[#allocation18 + $0x178] sm:$0xff]
        %v9966 = vld [vmem:[#allocation18 + $0x180] sm:$0xff]
        %v9967 = vld [vmem:[#allocation18 + $0x188] sm:$0xff]
        %v9968 = vld [vmem:[#allocation18 + $0x190] sm:$0xff]
        %v9969 = vld [vmem:[#allocation18 + $0x198] sm:$0xff]
        %v9970 = vld [vmem:[#allocation18 + $0x1a0] sm:$0xff]
        %v9971 = vld [vmem:[#allocation18 + $0x1a8] sm:$0xff]
        %v9972 = vld [vmem:[#allocation18 + $0x1b0] sm:$0xff]
        %v9973 = vld [vmem:[#allocation18 + $0x1b8] sm:$0xff]
        %v9974 = vld [vmem:[#allocation18 + $0x1c0] sm:$0xff]
        %v9975 = vld [vmem:[#allocation18 + $0x1c8] sm:$0xff]
        %v9976 = vld [vmem:[#allocation18 + $0x1d0] sm:$0xff]
        %v9977 = vld [vmem:[#allocation18 + $0x1d8] sm:$0xff]
        %v9978 = vld [vmem:[#allocation18 + $0x1e0] sm:$0xff]
        %v9979 = vld [vmem:[#allocation18 + $0x1e8] sm:$0xff]
        %v9980 = vld [vmem:[#allocation18 + $0x1f0] sm:$0xff]
        %v9981 = vld [vmem:[#allocation18 + $0x1f8] sm:$0xff]
        %v9982 = vld [vmem:[#allocation18 + $0x200] sm:$0xff]
        %v9983 = vld [vmem:[#allocation18 + $0x208] sm:$0xff]
        %v9984 = vld [vmem:[#allocation18 + $0x210] sm:$0xff]
        %v9985 = vld [vmem:[#allocation18 + $0x218] sm:$0xff]
        %v9986 = vld [vmem:[#allocation18 + $0x220] sm:$0xff]
        %v9987 = vld [vmem:[#allocation18 + $0x228] sm:$0xff]
        %v9988 = vld [vmem:[#allocation18 + $0x230] sm:$0xff]
        %v9989 = vld [vmem:[#allocation18 + $0x238] sm:$0xff]
        %v9990 = vld [vmem:[#allocation18 + $0x240] sm:$0xff]
        %v9991 = vld [vmem:[#allocation18 + $0x248] sm:$0xff]
        %v9992 = vld [vmem:[#allocation18 + $0x250] sm:$0xff]
        %v9993 = vld [vmem:[#allocation18 + $0x258] sm:$0xff]
        %v9994 = vld [vmem:[#allocation18 + $0x260] sm:$0xff]
        %v9995 = vld [vmem:[#allocation18 + $0x268] sm:$0xff]
        %v9996 = vld [vmem:[#allocation18 + $0x270] sm:$0xff]
        %v9997 = vld [vmem:[#allocation18 + $0x278] sm:$0xff]
        %v9998 = vld [vmem:[#allocation18 + $0x280] sm:$0xff]
        %v9999 = vld [vmem:[#allocation18 + $0x288] sm:$0xff]
        %v10000 = vld [vmem:[#allocation18 + $0x290] sm:$0xff]
        %v10001 = vld [vmem:[#allocation18 + $0x298] sm:$0xff]
        %v10002 = vld [vmem:[#allocation18 + $0x2a0] sm:$0xff]
        %v10003 = vld [vmem:[#allocation18 + $0x2a8] sm:$0xff]
        %v10004 = vld [vmem:[#allocation18 + $0x2b0] sm:$0xff]
        %v10005 = vld [vmem:[#allocation18 + $0x2b8] sm:$0xff]
        %v10006 = vld [vmem:[#allocation18 + $0x2c0] sm:$0xff]
        %v10007 = vld [vmem:[#allocation18 + $0x2c8] sm:$0xff]
        %v10008 = vld [vmem:[#allocation18 + $0x2d0] sm:$0xff]
        %v10009 = vld [vmem:[#allocation18 + $0x2d8] sm:$0xff]
        %v10010 = vld [vmem:[#allocation18 + $0x2e0] sm:$0xff]
        %v10011 = vld [vmem:[#allocation18 + $0x2e8] sm:$0xff]
        %v10012 = vld [vmem:[#allocation18 + $0x2f0] sm:$0xff]
        %v10013 = vld [vmem:[#allocation18 + $0x2f8] sm:$0xff]
        %v10014 = vld [vmem:[#allocation18 + $0x300] sm:$0xff]
        %v10015 = vld [vmem:[#allocation18 + $0x308] sm:$0xff]
        %v10016 = vld [vmem:[#allocation18 + $0x310] sm:$0xff]
        %v10017 = vld [vmem:[#allocation18 + $0x318] sm:$0xff]
        %v10018 = vld [vmem:[#allocation18 + $0x320] sm:$0xff]
        %v10019 = vld [vmem:[#allocation18 + $0x328] sm:$0xff]
        %v10020 = vld [vmem:[#allocation18 + $0x330] sm:$0xff]
        %v10021 = vld [vmem:[#allocation18 + $0x338] sm:$0xff]
        %v10022 = vld [vmem:[#allocation18 + $0x340] sm:$0xff]
        %v10023 = vld [vmem:[#allocation18 + $0x348] sm:$0xff]
        %v10024 = vld [vmem:[#allocation18 + $0x350] sm:$0xff]
        %v10025 = vld [vmem:[#allocation18 + $0x358] sm:$0xff]
        %v10026 = vld [vmem:[#allocation18 + $0x360] sm:$0xff]
        %v10027 = vld [vmem:[#allocation18 + $0x368] sm:$0xff]
        %v10028 = vld [vmem:[#allocation18 + $0x370] sm:$0xff]
        %v10029 = vld [vmem:[#allocation18 + $0x378] sm:$0xff]
        %v10030 = vld [vmem:[#allocation18 + $0x380] sm:$0xff]
        %v10031 = vld [vmem:[#allocation18 + $0x388] sm:$0xff]
        %v10032 = vld [vmem:[#allocation18 + $0x390] sm:$0xff]
        %v10033 = vld [vmem:[#allocation18 + $0x398] sm:$0xff]
        %v10034 = vld [vmem:[#allocation18 + $0x3a0] sm:$0xff]
        %v10035 = vld [vmem:[#allocation18 + $0x3a8] sm:$0xff]
        %v10036 = vld [vmem:[#allocation18 + $0x3b0] sm:$0xff]
        %v10037 = vld [vmem:[#allocation18 + $0x3b8] sm:$0xff]
        %v10038 = vld [vmem:[#allocation18 + $0x3c0] sm:$0xff]
        %v10039 = vld [vmem:[#allocation18 + $0x3c8] sm:$0xff]
        %v10040 = vld [vmem:[#allocation18 + $0x3d0] sm:$0xff]
        %v10041 = vld [vmem:[#allocation18 + $0x3d8] sm:$0xff]
        %v10042 = vld [vmem:[#allocation18 + $0x3e0] sm:$0xff]
        %v10043 = vld [vmem:[#allocation18 + $0x3e8] sm:$0xff]
        %v10044 = vld [vmem:[#allocation18 + $0x3f0] sm:$0xff]
        %v10045 = vld [vmem:[#allocation18 + $0x3f8] sm:$0xff]
        %v10046 = vld [vmem:[%s12] sm:$0x3]
        %v10048 = vlaneseq
        %v10049 = vshrl.u32 %v10048, 7
        %v10050 = vsub.s32 0, %v10049
        %v10051 = vrot.slane %v10046, %v10050
        %v10052 = vlaneseq
        %v10053 = vshrl.u32 %v10052, 7
        %v10054 = vsub.s32 1, %v10053
        %v10055 = vrot.slane %v10046, %v10054
        %v10186 = vunpack.c.l.b16 %v9918
        %v10187 = vunpack.c.h.b16 %v9918
        %v10188 = vunpack.c.l.b16 %v9919
        %v10189 = vunpack.c.h.b16 %v9919
        %v10190 = vunpack.c.l.b16 %v9920
        %v10191 = vunpack.c.h.b16 %v9920
        %v10192 = vunpack.c.l.b16 %v9921
        %v10193 = vunpack.c.h.b16 %v9921
        %v10194 = vunpack.c.l.b16 %v9922
        %v10195 = vunpack.c.h.b16 %v9922
        %v10196 = vunpack.c.l.b16 %v9923
        %v10197 = vunpack.c.h.b16 %v9923
        %v10198 = vunpack.c.l.b16 %v9924
        %v10199 = vunpack.c.h.b16 %v9924
        %v10200 = vunpack.c.l.b16 %v9925
        %v10201 = vunpack.c.h.b16 %v9925
        %v10202 = vunpack.c.l.b16 %v9926
        %v10203 = vunpack.c.h.b16 %v9926
        %v10204 = vunpack.c.l.b16 %v9927
        %v10205 = vunpack.c.h.b16 %v9927
        %v10206 = vunpack.c.l.b16 %v9928
        %v10207 = vunpack.c.h.b16 %v9928
        %v10208 = vunpack.c.l.b16 %v9929
        %v10209 = vunpack.c.h.b16 %v9929
        %v10210 = vunpack.c.l.b16 %v9930
        %v10211 = vunpack.c.h.b16 %v9930
        %v10212 = vunpack.c.l.b16 %v9931
        %v10213 = vunpack.c.h.b16 %v9931
        %v10214 = vunpack.c.l.b16 %v9932
        %v10215 = vunpack.c.h.b16 %v9932
        %v10216 = vunpack.c.l.b16 %v9933
        %v10217 = vunpack.c.h.b16 %v9933
        %v10218 = vunpack.c.l.b16 %v9934
        %v10219 = vunpack.c.h.b16 %v9934
        %v10220 = vunpack.c.l.b16 %v9935
        %v10221 = vunpack.c.h.b16 %v9935
        %v10222 = vunpack.c.l.b16 %v9936
        %v10223 = vunpack.c.h.b16 %v9936
        %v10224 = vunpack.c.l.b16 %v9937
        %v10225 = vunpack.c.h.b16 %v9937
        %v10226 = vunpack.c.l.b16 %v9938
        %v10227 = vunpack.c.h.b16 %v9938
        %v10228 = vunpack.c.l.b16 %v9939
        %v10229 = vunpack.c.h.b16 %v9939
        %v10230 = vunpack.c.l.b16 %v9940
        %v10231 = vunpack.c.h.b16 %v9940
        %v10232 = vunpack.c.l.b16 %v9941
        %v10233 = vunpack.c.h.b16 %v9941
        %v10234 = vunpack.c.l.b16 %v9942
        %v10235 = vunpack.c.h.b16 %v9942
        %v10236 = vunpack.c.l.b16 %v9943
        %v10237 = vunpack.c.h.b16 %v9943
        %v10238 = vunpack.c.l.b16 %v9944
        %v10239 = vunpack.c.h.b16 %v9944
        %v10240 = vunpack.c.l.b16 %v9945
        %v10241 = vunpack.c.h.b16 %v9945
        %v10242 = vunpack.c.l.b16 %v9946
        %v10243 = vunpack.c.h.b16 %v9946
        %v10244 = vunpack.c.l.b16 %v9947
        %v10245 = vunpack.c.h.b16 %v9947
        %v10246 = vunpack.c.l.b16 %v9948
        %v10247 = vunpack.c.h.b16 %v9948
        %v10248 = vunpack.c.l.b16 %v9949
        %v10249 = vunpack.c.h.b16 %v9949
        %v10250 = vunpack.c.l.b16 %v9950
        %v10251 = vunpack.c.h.b16 %v9950
        %v10252 = vunpack.c.l.b16 %v9951
        %v10253 = vunpack.c.h.b16 %v9951
        %v10254 = vunpack.c.l.b16 %v9952
        %v10255 = vunpack.c.h.b16 %v9952
        %v10256 = vunpack.c.l.b16 %v9953
        %v10257 = vunpack.c.h.b16 %v9953
        %v10258 = vunpack.c.l.b16 %v9954
        %v10259 = vunpack.c.h.b16 %v9954
        %v10260 = vunpack.c.l.b16 %v9955
        %v10261 = vunpack.c.h.b16 %v9955
        %v10262 = vunpack.c.l.b16 %v9956
        %v10263 = vunpack.c.h.b16 %v9956
        %v10264 = vunpack.c.l.b16 %v9957
        %v10265 = vunpack.c.h.b16 %v9957
        %v10266 = vunpack.c.l.b16 %v9958
        %v10267 = vunpack.c.h.b16 %v9958
        %v10268 = vunpack.c.l.b16 %v9959
        %v10269 = vunpack.c.h.b16 %v9959
        %v10270 = vunpack.c.l.b16 %v9960
        %v10271 = vunpack.c.h.b16 %v9960
        %v10272 = vunpack.c.l.b16 %v9961
        %v10273 = vunpack.c.h.b16 %v9961
        %v10274 = vunpack.c.l.b16 %v9962
        %v10275 = vunpack.c.h.b16 %v9962
        %v10276 = vunpack.c.l.b16 %v9963
        %v10277 = vunpack.c.h.b16 %v9963
        %v10278 = vunpack.c.l.b16 %v9964
        %v10279 = vunpack.c.h.b16 %v9964
        %v10280 = vunpack.c.l.b16 %v9965
        %v10281 = vunpack.c.h.b16 %v9965
        %v10282 = vunpack.c.l.b16 %v9966
        %v10283 = vunpack.c.h.b16 %v9966
        %v10284 = vunpack.c.l.b16 %v9967
        %v10285 = vunpack.c.h.b16 %v9967
        %v10286 = vunpack.c.l.b16 %v9968
        %v10287 = vunpack.c.h.b16 %v9968
        %v10288 = vunpack.c.l.b16 %v9969
        %v10289 = vunpack.c.h.b16 %v9969
        %v10290 = vunpack.c.l.b16 %v9970
        %v10291 = vunpack.c.h.b16 %v9970
        %v10292 = vunpack.c.l.b16 %v9971
        %v10293 = vunpack.c.h.b16 %v9971
        %v10294 = vunpack.c.l.b16 %v9972
        %v10295 = vunpack.c.h.b16 %v9972
        %v10296 = vunpack.c.l.b16 %v9973
        %v10297 = vunpack.c.h.b16 %v9973
        %v10298 = vunpack.c.l.b16 %v9974
        %v10299 = vunpack.c.h.b16 %v9974
        %v10300 = vunpack.c.l.b16 %v9975
        %v10301 = vunpack.c.h.b16 %v9975
        %v10302 = vunpack.c.l.b16 %v9976
        %v10303 = vunpack.c.h.b16 %v9976
        %v10304 = vunpack.c.l.b16 %v9977
        %v10305 = vunpack.c.h.b16 %v9977
        %v10306 = vunpack.c.l.b16 %v9978
        %v10307 = vunpack.c.h.b16 %v9978
        %v10308 = vunpack.c.l.b16 %v9979
        %v10309 = vunpack.c.h.b16 %v9979
        %v10310 = vunpack.c.l.b16 %v9980
        %v10311 = vunpack.c.h.b16 %v9980
        %v10312 = vunpack.c.l.b16 %v9981
        %v10313 = vunpack.c.h.b16 %v9981
        %v10314 = vunpack.c.l.b16 %v9982
        %v10315 = vunpack.c.h.b16 %v9982
        %v10316 = vunpack.c.l.b16 %v9983
        %v10317 = vunpack.c.h.b16 %v9983
        %v10318 = vunpack.c.l.b16 %v9984
        %v10319 = vunpack.c.h.b16 %v9984
        %v10320 = vunpack.c.l.b16 %v9985
        %v10321 = vunpack.c.h.b16 %v9985
        %v10322 = vunpack.c.l.b16 %v9986
        %v10323 = vunpack.c.h.b16 %v9986
        %v10324 = vunpack.c.l.b16 %v9987
        %v10325 = vunpack.c.h.b16 %v9987
        %v10326 = vunpack.c.l.b16 %v9988
        %v10327 = vunpack.c.h.b16 %v9988
        %v10328 = vunpack.c.l.b16 %v9989
        %v10329 = vunpack.c.h.b16 %v9989
        %v10330 = vunpack.c.l.b16 %v9990
        %v10331 = vunpack.c.h.b16 %v9990
        %v10332 = vunpack.c.l.b16 %v9991
        %v10333 = vunpack.c.h.b16 %v9991
        %v10334 = vunpack.c.l.b16 %v9992
        %v10335 = vunpack.c.h.b16 %v9992
        %v10336 = vunpack.c.l.b16 %v9993
        %v10337 = vunpack.c.h.b16 %v9993
        %v10338 = vunpack.c.l.b16 %v9994
        %v10339 = vunpack.c.h.b16 %v9994
        %v10340 = vunpack.c.l.b16 %v9995
        %v10341 = vunpack.c.h.b16 %v9995
        %v10342 = vunpack.c.l.b16 %v9996
        %v10343 = vunpack.c.h.b16 %v9996
        %v10344 = vunpack.c.l.b16 %v9997
        %v10345 = vunpack.c.h.b16 %v9997
        %v10346 = vunpack.c.l.b16 %v9998
        %v10347 = vunpack.c.h.b16 %v9998
        %v10348 = vunpack.c.l.b16 %v9999
        %v10349 = vunpack.c.h.b16 %v9999
        %v10350 = vunpack.c.l.b16 %v10000
        %v10351 = vunpack.c.h.b16 %v10000
        %v10352 = vunpack.c.l.b16 %v10001
        %v10353 = vunpack.c.h.b16 %v10001
        %v10354 = vunpack.c.l.b16 %v10002
        %v10355 = vunpack.c.h.b16 %v10002
        %v10356 = vunpack.c.l.b16 %v10003
        %v10357 = vunpack.c.h.b16 %v10003
        %v10358 = vunpack.c.l.b16 %v10004
        %v10359 = vunpack.c.h.b16 %v10004
        %v10360 = vunpack.c.l.b16 %v10005
        %v10361 = vunpack.c.h.b16 %v10005
        %v10362 = vunpack.c.l.b16 %v10006
        %v10363 = vunpack.c.h.b16 %v10006
        %v10364 = vunpack.c.l.b16 %v10007
        %v10365 = vunpack.c.h.b16 %v10007
        %v10366 = vunpack.c.l.b16 %v10008
        %v10367 = vunpack.c.h.b16 %v10008
        %v10368 = vunpack.c.l.b16 %v10009
        %v10369 = vunpack.c.h.b16 %v10009
        %v10370 = vunpack.c.l.b16 %v10010
        %v10371 = vunpack.c.h.b16 %v10010
        %v10372 = vunpack.c.l.b16 %v10011
        %v10373 = vunpack.c.h.b16 %v10011
        %v10374 = vunpack.c.l.b16 %v10012
        %v10375 = vunpack.c.h.b16 %v10012
        %v10376 = vunpack.c.l.b16 %v10013
        %v10377 = vunpack.c.h.b16 %v10013
        %v10378 = vunpack.c.l.b16 %v10014
        %v10379 = vunpack.c.h.b16 %v10014
        %v10380 = vunpack.c.l.b16 %v10015
        %v10381 = vunpack.c.h.b16 %v10015
        %v10382 = vunpack.c.l.b16 %v10016
        %v10383 = vunpack.c.h.b16 %v10016
        %v10384 = vunpack.c.l.b16 %v10017
        %v10385 = vunpack.c.h.b16 %v10017
        %v10386 = vunpack.c.l.b16 %v10018
        %v10387 = vunpack.c.h.b16 %v10018
        %v10388 = vunpack.c.l.b16 %v10019
        %v10389 = vunpack.c.h.b16 %v10019
        %v10390 = vunpack.c.l.b16 %v10020
        %v10391 = vunpack.c.h.b16 %v10020
        %v10392 = vunpack.c.l.b16 %v10021
        %v10393 = vunpack.c.h.b16 %v10021
        %v10394 = vunpack.c.l.b16 %v10022
        %v10395 = vunpack.c.h.b16 %v10022
        %v10396 = vunpack.c.l.b16 %v10023
        %v10397 = vunpack.c.h.b16 %v10023
        %v10398 = vunpack.c.l.b16 %v10024
        %v10399 = vunpack.c.h.b16 %v10024
        %v10400 = vunpack.c.l.b16 %v10025
        %v10401 = vunpack.c.h.b16 %v10025
        %v10402 = vunpack.c.l.b16 %v10026
        %v10403 = vunpack.c.h.b16 %v10026
        %v10404 = vunpack.c.l.b16 %v10027
        %v10405 = vunpack.c.h.b16 %v10027
        %v10406 = vunpack.c.l.b16 %v10028
        %v10407 = vunpack.c.h.b16 %v10028
        %v10408 = vunpack.c.l.b16 %v10029
        %v10409 = vunpack.c.h.b16 %v10029
        %v10410 = vunpack.c.l.b16 %v10030
        %v10411 = vunpack.c.h.b16 %v10030
        %v10412 = vunpack.c.l.b16 %v10031
        %v10413 = vunpack.c.h.b16 %v10031
        %v10414 = vunpack.c.l.b16 %v10032
        %v10415 = vunpack.c.h.b16 %v10032
        %v10416 = vunpack.c.l.b16 %v10033
        %v10417 = vunpack.c.h.b16 %v10033
        %v10418 = vunpack.c.l.b16 %v10034
        %v10419 = vunpack.c.h.b16 %v10034
        %v10420 = vunpack.c.l.b16 %v10035
        %v10421 = vunpack.c.h.b16 %v10035
        %v10422 = vunpack.c.l.b16 %v10036
        %v10423 = vunpack.c.h.b16 %v10036
        %v10424 = vunpack.c.l.b16 %v10037
        %v10425 = vunpack.c.h.b16 %v10037
        %v10426 = vunpack.c.l.b16 %v10038
        %v10427 = vunpack.c.h.b16 %v10038
        %v10428 = vunpack.c.l.b16 %v10039
        %v10429 = vunpack.c.h.b16 %v10039
        %v10430 = vunpack.c.l.b16 %v10040
        %v10431 = vunpack.c.h.b16 %v10040
        %v10432 = vunpack.c.l.b16 %v10041
        %v10433 = vunpack.c.h.b16 %v10041
        %v10434 = vunpack.c.l.b16 %v10042
        %v10435 = vunpack.c.h.b16 %v10042
        %v10436 = vunpack.c.l.b16 %v10043
        %v10437 = vunpack.c.h.b16 %v10043
        %v10438 = vunpack.c.l.b16 %v10044
        %v10439 = vunpack.c.h.b16 %v10044
        %v10440 = vunpack.c.l.b16 %v10045
        %v10441 = vunpack.c.h.b16 %v10045
        %v10442 = vpack.c.b16 %v10188, %v10186
        %v10443 = vpack.c.b16 %v10189, %v10187
        %v10444 = vpack.c.b16 %v10192, %v10190
        %v10445 = vpack.c.b16 %v10193, %v10191
        %v10446 = vpack.c.b16 %v10196, %v10194
        %v10447 = vpack.c.b16 %v10197, %v10195
        %v10448 = vpack.c.b16 %v10200, %v10198
        %v10449 = vpack.c.b16 %v10201, %v10199
        %v10450 = vpack.c.b16 %v10204, %v10202
        %v10451 = vpack.c.b16 %v10205, %v10203
        %v10452 = vpack.c.b16 %v10208, %v10206
        %v10453 = vpack.c.b16 %v10209, %v10207
        %v10454 = vpack.c.b16 %v10212, %v10210
        %v10455 = vpack.c.b16 %v10213, %v10211
        %v10456 = vpack.c.b16 %v10216, %v10214
        %v10457 = vpack.c.b16 %v10217, %v10215
        %v10458 = vpack.c.b16 %v10220, %v10218
        %v10459 = vpack.c.b16 %v10221, %v10219
        %v10460 = vpack.c.b16 %v10224, %v10222
        %v10461 = vpack.c.b16 %v10225, %v10223
        %v10462 = vpack.c.b16 %v10228, %v10226
        %v10463 = vpack.c.b16 %v10229, %v10227
        %v10464 = vpack.c.b16 %v10232, %v10230
        %v10465 = vpack.c.b16 %v10233, %v10231
        %v10466 = vpack.c.b16 %v10236, %v10234
        %v10467 = vpack.c.b16 %v10237, %v10235
        %v10468 = vpack.c.b16 %v10240, %v10238
        %v10469 = vpack.c.b16 %v10241, %v10239
        %v10470 = vpack.c.b16 %v10244, %v10242
        %v10471 = vpack.c.b16 %v10245, %v10243
        %v10472 = vpack.c.b16 %v10248, %v10246
        %v10473 = vpack.c.b16 %v10249, %v10247
        %v10474 = vpack.c.b16 %v10252, %v10250
        %v10475 = vpack.c.b16 %v10253, %v10251
        %v10476 = vpack.c.b16 %v10256, %v10254
        %v10477 = vpack.c.b16 %v10257, %v10255
        %v10478 = vpack.c.b16 %v10260, %v10258
        %v10479 = vpack.c.b16 %v10261, %v10259
        %v10480 = vpack.c.b16 %v10264, %v10262
        %v10481 = vpack.c.b16 %v10265, %v10263
        %v10482 = vpack.c.b16 %v10268, %v10266
        %v10483 = vpack.c.b16 %v10269, %v10267
        %v10484 = vpack.c.b16 %v10272, %v10270
        %v10485 = vpack.c.b16 %v10273, %v10271
        %v10486 = vpack.c.b16 %v10276, %v10274
        %v10487 = vpack.c.b16 %v10277, %v10275
        %v10488 = vpack.c.b16 %v10280, %v10278
        %v10489 = vpack.c.b16 %v10281, %v10279
        %v10490 = vpack.c.b16 %v10284, %v10282
        %v10491 = vpack.c.b16 %v10285, %v10283
        %v10492 = vpack.c.b16 %v10288, %v10286
        %v10493 = vpack.c.b16 %v10289, %v10287
        %v10494 = vpack.c.b16 %v10292, %v10290
        %v10495 = vpack.c.b16 %v10293, %v10291
        %v10496 = vpack.c.b16 %v10296, %v10294
        %v10497 = vpack.c.b16 %v10297, %v10295
        %v10498 = vpack.c.b16 %v10300, %v10298
        %v10499 = vpack.c.b16 %v10301, %v10299
        %v10500 = vpack.c.b16 %v10304, %v10302
        %v10501 = vpack.c.b16 %v10305, %v10303
        %v10502 = vpack.c.b16 %v10308, %v10306
        %v10503 = vpack.c.b16 %v10309, %v10307
        %v10504 = vpack.c.b16 %v10312, %v10310
        %v10505 = vpack.c.b16 %v10313, %v10311
        %v10506 = vpack.c.b16 %v10316, %v10314
        %v10507 = vpack.c.b16 %v10317, %v10315
        %v10508 = vpack.c.b16 %v10320, %v10318
        %v10509 = vpack.c.b16 %v10321, %v10319
        %v10510 = vpack.c.b16 %v10324, %v10322
        %v10511 = vpack.c.b16 %v10325, %v10323
        %v10512 = vpack.c.b16 %v10328, %v10326
        %v10513 = vpack.c.b16 %v10329, %v10327
        %v10514 = vpack.c.b16 %v10332, %v10330
        %v10515 = vpack.c.b16 %v10333, %v10331
        %v10516 = vpack.c.b16 %v10336, %v10334
        %v10517 = vpack.c.b16 %v10337, %v10335
        %v10518 = vpack.c.b16 %v10340, %v10338
        %v10519 = vpack.c.b16 %v10341, %v10339
        %v10520 = vpack.c.b16 %v10344, %v10342
        %v10521 = vpack.c.b16 %v10345, %v10343
        %v10522 = vpack.c.b16 %v10348, %v10346
        %v10523 = vpack.c.b16 %v10349, %v10347
        %v10524 = vpack.c.b16 %v10352, %v10350
        %v10525 = vpack.c.b16 %v10353, %v10351
        %v10526 = vpack.c.b16 %v10356, %v10354
        %v10527 = vpack.c.b16 %v10357, %v10355
        %v10528 = vpack.c.b16 %v10360, %v10358
        %v10529 = vpack.c.b16 %v10361, %v10359
        %v10530 = vpack.c.b16 %v10364, %v10362
        %v10531 = vpack.c.b16 %v10365, %v10363
        %v10532 = vpack.c.b16 %v10368, %v10366
        %v10533 = vpack.c.b16 %v10369, %v10367
        %v10534 = vpack.c.b16 %v10372, %v10370
        %v10535 = vpack.c.b16 %v10373, %v10371
        %v10536 = vpack.c.b16 %v10376, %v10374
        %v10537 = vpack.c.b16 %v10377, %v10375
        %v10538 = vpack.c.b16 %v10380, %v10378
        %v10539 = vpack.c.b16 %v10381, %v10379
        %v10540 = vpack.c.b16 %v10384, %v10382
        %v10541 = vpack.c.b16 %v10385, %v10383
        %v10542 = vpack.c.b16 %v10388, %v10386
        %v10543 = vpack.c.b16 %v10389, %v10387
        %v10544 = vpack.c.b16 %v10392, %v10390
        %v10545 = vpack.c.b16 %v10393, %v10391
        %v10546 = vpack.c.b16 %v10396, %v10394
        %v10547 = vpack.c.b16 %v10397, %v10395
        %v10548 = vpack.c.b16 %v10400, %v10398
        %v10549 = vpack.c.b16 %v10401, %v10399
        %v10550 = vpack.c.b16 %v10404, %v10402
        %v10551 = vpack.c.b16 %v10405, %v10403
        %v10552 = vpack.c.b16 %v10408, %v10406
        %v10553 = vpack.c.b16 %v10409, %v10407
        %v10554 = vpack.c.b16 %v10412, %v10410
        %v10555 = vpack.c.b16 %v10413, %v10411
        %v10556 = vpack.c.b16 %v10416, %v10414
        %v10557 = vpack.c.b16 %v10417, %v10415
        %v10558 = vpack.c.b16 %v10420, %v10418
        %v10559 = vpack.c.b16 %v10421, %v10419
        %v10560 = vpack.c.b16 %v10424, %v10422
        %v10561 = vpack.c.b16 %v10425, %v10423
        %v10562 = vpack.c.b16 %v10428, %v10426
        %v10563 = vpack.c.b16 %v10429, %v10427
        %v10564 = vpack.c.b16 %v10432, %v10430
        %v10565 = vpack.c.b16 %v10433, %v10431
        %v10566 = vpack.c.b16 %v10436, %v10434
        %v10567 = vpack.c.b16 %v10437, %v10435
        %v10568 = vpack.c.b16 %v10440, %v10438
        %v10569 = vpack.c.b16 %v10441, %v10439
        %10698 = vmatprep.subr.bf16.mxu0 %v10457
        %10699 = vmatpush1.bf16.msra.mxu0 %v10456
        %10700 = vmatprep.subr.bf16.mxu0 %v10455
        %10701 = vmatpush1.bf16.msra.mxu0 %v10454
        %10702 = vmatprep.subr.bf16.mxu0 %v10453
        %10703 = vmatpush1.bf16.msra.mxu0 %v10452
        %10704 = vmatprep.subr.bf16.mxu0 %v10451
        %10705 = vmatpush1.bf16.msra.mxu0 %v10450
        %10706 = vmatprep.subr.bf16.mxu0 %v10449
        %10707 = vmatpush1.bf16.msra.mxu0 %v10448
        %10708 = vmatprep.subr.bf16.mxu0 %v10447
        %10709 = vmatpush1.bf16.msra.mxu0 %v10446
        %10710 = vmatprep.subr.bf16.mxu0 %v10445
        %10711 = vmatpush1.bf16.msra.mxu0 %v10444
        %10712 = vmatprep.subr.bf16.mxu0 %v10443
        %10713 = vmatpush1.bf16.msra.mxu0 %v10442
        %10714 = vmatprep.subr.bf16.mxu0 %v10473
        %10715 = vmatpush2.bf16.msra.mxu0 %v10472
        %10716 = vmatprep.subr.bf16.mxu0 %v10471
        %10717 = vmatpush2.bf16.msra.mxu0 %v10470
        %10718 = vmatprep.subr.bf16.mxu0 %v10469
        %10719 = vmatpush2.bf16.msra.mxu0 %v10468
        %10720 = vmatprep.subr.bf16.mxu0 %v10467
        %10721 = vmatpush2.bf16.msra.mxu0 %v10466
        %10722 = vmatprep.subr.bf16.mxu0 %v10465
        %10723 = vmatpush2.bf16.msra.mxu0 %v10464
        %10724 = vmatprep.subr.bf16.mxu0 %v10463
        %10725 = vmatpush2.bf16.msra.mxu0 %v10462
        %10726 = vmatprep.subr.bf16.mxu0 %v10461
        %10727 = vmatpush2.bf16.msra.mxu0 %v10460
        %10728 = vmatprep.subr.bf16.mxu0 %v10459
        %10729 = vmatpush2.bf16.msra.mxu0 %v10458
        %10730 = vmatprep.mubr.bf16.mxu0 %v9855
        %10731 = vmatmul.mubr.bf16.gmra.mxu0 %v9854
        %v10732 = vpop.f32.mrf.mxu0
        %v10733 = vadd.f32 %v10051, %v10732
        %v10734 = vpop.f32.mrf.mxu0
        %v10735 = vadd.f32 %v10055, %v10734
        %v10736 = vpop.f32.mrf.mxu0
        %v10737 = vadd.f32 %v10051, %v10736
        %v10738 = vpop.f32.mrf.mxu0
        %v10739 = vadd.f32 %v10055, %v10738
        %10740 = vmatprep.mubr.bf16.mxu0 %v9863
        %10741 = vmatmul.mubr.bf16.gmra.mxu0 %v9862
        %v10742 = vpop.f32.mrf.mxu0
        %v10743 = vadd.f32 %v10051, %v10742
        %v10744 = vpop.f32.mrf.mxu0
        %v10745 = vadd.f32 %v10055, %v10744
        %v10746 = vpop.f32.mrf.mxu0
        %v10747 = vadd.f32 %v10051, %v10746
        %v10748 = vpop.f32.mrf.mxu0
        %v10749 = vadd.f32 %v10055, %v10748
        %10750 = vmatprep.mubr.bf16.mxu0 %v9871
        %10751 = vmatmul.mubr.bf16.gmra.mxu0 %v9870
        %v10752 = vpop.f32.mrf.mxu0
        %v10753 = vadd.f32 %v10051, %v10752
        %v10754 = vpop.f32.mrf.mxu0
        %v10755 = vadd.f32 %v10055, %v10754
        %v10756 = vpop.f32.mrf.mxu0
        %v10757 = vadd.f32 %v10051, %v10756
        %v10758 = vpop.f32.mrf.mxu0
        %v10759 = vadd.f32 %v10055, %v10758
        %10760 = vmatprep.mubr.bf16.mxu0 %v9879
        %10761 = vmatmul.mubr.bf16.gmra.mxu0 %v9878
        %v10762 = vpop.f32.mrf.mxu0
        %v10763 = vadd.f32 %v10051, %v10762
        %v10764 = vpop.f32.mrf.mxu0
        %v10765 = vadd.f32 %v10055, %v10764
        %v10766 = vpop.f32.mrf.mxu0
        %v10767 = vadd.f32 %v10051, %v10766
        %v10768 = vpop.f32.mrf.mxu0
        %v10769 = vadd.f32 %v10055, %v10768
        %10770 = vmatprep.mubr.bf16.mxu0 %v9887
        %10771 = vmatmul.mubr.bf16.gmra.mxu0 %v9886
        %v10772 = vpop.f32.mrf.mxu0
        %v10773 = vadd.f32 %v10051, %v10772
        %v10774 = vpop.f32.mrf.mxu0
        %v10775 = vadd.f32 %v10055, %v10774
        %v10776 = vpop.f32.mrf.mxu0
        %v10777 = vadd.f32 %v10051, %v10776
        %v10778 = vpop.f32.mrf.mxu0
        %v10779 = vadd.f32 %v10055, %v10778
        %10780 = vmatprep.mubr.bf16.mxu0 %v9895
        %10781 = vmatmul.mubr.bf16.gmra.mxu0 %v9894
        %v10782 = vpop.f32.mrf.mxu0
        %v10783 = vadd.f32 %v10051, %v10782
        %v10784 = vpop.f32.mrf.mxu0
        %v10785 = vadd.f32 %v10055, %v10784
        %v10786 = vpop.f32.mrf.mxu0
        %v10787 = vadd.f32 %v10051, %v10786
        %v10788 = vpop.f32.mrf.mxu0
        %v10789 = vadd.f32 %v10055, %v10788
        %10790 = vmatprep.mubr.bf16.mxu0 %v9903
        %10791 = vmatmul.mubr.bf16.gmra.mxu0 %v9902
        %v10792 = vpop.f32.mrf.mxu0
        %v10793 = vadd.f32 %v10051, %v10792
        %v10794 = vpop.f32.mrf.mxu0
        %v10795 = vadd.f32 %v10055, %v10794
        %v10796 = vpop.f32.mrf.mxu0
        %v10797 = vadd.f32 %v10051, %v10796
        %v10798 = vpop.f32.mrf.mxu0
        %v10799 = vadd.f32 %v10055, %v10798
        %10800 = vmatprep.mubr.bf16.mxu0 %v9911
        %10801 = vmatmul.mubr.bf16.gmra.mxu0 %v9910
        %v10802 = vpop.f32.mrf.mxu0
        %v10803 = vadd.f32 %v10051, %v10802
        %v10804 = vpop.f32.mrf.mxu0
        %v10805 = vadd.f32 %v10055, %v10804
        %v10806 = vpop.f32.mrf.mxu0
        %v10807 = vadd.f32 %v10051, %v10806
        %v10808 = vpop.f32.mrf.mxu0
        %v10809 = vadd.f32 %v10055, %v10808
        %10810 = vdwg.mxu0
        %10811 = vmatprep.subr.bf16.mxu0 %v10489
        %10812 = vmatpush1.bf16.msra.mxu0 %v10488
        %10813 = vmatprep.subr.bf16.mxu0 %v10487
        %10814 = vmatpush1.bf16.msra.mxu0 %v10486
        %10815 = vmatprep.subr.bf16.mxu0 %v10485
        %10816 = vmatpush1.bf16.msra.mxu0 %v10484
        %10817 = vmatprep.subr.bf16.mxu0 %v10483
        %10818 = vmatpush1.bf16.msra.mxu0 %v10482
        %10819 = vmatprep.subr.bf16.mxu0 %v10481
        %10820 = vmatpush1.bf16.msra.mxu0 %v10480
        %10821 = vmatprep.subr.bf16.mxu0 %v10479
        %10822 = vmatpush1.bf16.msra.mxu0 %v10478
        %10823 = vmatprep.subr.bf16.mxu0 %v10477
        %10824 = vmatpush1.bf16.msra.mxu0 %v10476
        %10825 = vmatprep.subr.bf16.mxu0 %v10475
        %10826 = vmatpush1.bf16.msra.mxu0 %v10474
        %10827 = vmatprep.subr.bf16.mxu0 %v10505
        %10828 = vmatpush2.bf16.msra.mxu0 %v10504
        %10829 = vmatprep.subr.bf16.mxu0 %v10503
        %10830 = vmatpush2.bf16.msra.mxu0 %v10502
        %10831 = vmatprep.subr.bf16.mxu0 %v10501
        %10832 = vmatpush2.bf16.msra.mxu0 %v10500
        %10833 = vmatprep.subr.bf16.mxu0 %v10499
        %10834 = vmatpush2.bf16.msra.mxu0 %v10498
        %10835 = vmatprep.subr.bf16.mxu0 %v10497
        %10836 = vmatpush2.bf16.msra.mxu0 %v10496
        %10837 = vmatprep.subr.bf16.mxu0 %v10495
        %10838 = vmatpush2.bf16.msra.mxu0 %v10494
        %10839 = vmatprep.subr.bf16.mxu0 %v10493
        %10840 = vmatpush2.bf16.msra.mxu0 %v10492
        %10841 = vmatprep.subr.bf16.mxu0 %v10491
        %10842 = vmatpush2.bf16.msra.mxu0 %v10490
        %10843 = vmatprep.mubr.bf16.mxu0 %v9857
        %10844 = vmatmul.mubr.bf16.gmra.mxu0 %v9856
        %v10845 = vpop.f32.mrf.mxu0
        %v10846 = vadd.f32 %v10733, %v10845
        %v10847 = vpop.f32.mrf.mxu0
        %v10848 = vadd.f32 %v10735, %v10847
        %v10849 = vpop.f32.mrf.mxu0
        %v10850 = vadd.f32 %v10737, %v10849
        %v10851 = vpop.f32.mrf.mxu0
        %v10852 = vadd.f32 %v10739, %v10851
        %10853 = vmatprep.mubr.bf16.mxu0 %v9865
        %10854 = vmatmul.mubr.bf16.gmra.mxu0 %v9864
        %v10855 = vpop.f32.mrf.mxu0
        %v10856 = vadd.f32 %v10743, %v10855
        %v10857 = vpop.f32.mrf.mxu0
        %v10858 = vadd.f32 %v10745, %v10857
        %v10859 = vpop.f32.mrf.mxu0
        %v10860 = vadd.f32 %v10747, %v10859
        %v10861 = vpop.f32.mrf.mxu0
        %v10862 = vadd.f32 %v10749, %v10861
        %10863 = vmatprep.mubr.bf16.mxu0 %v9873
        %10864 = vmatmul.mubr.bf16.gmra.mxu0 %v9872
        %v10865 = vpop.f32.mrf.mxu0
        %v10866 = vadd.f32 %v10753, %v10865
        %v10867 = vpop.f32.mrf.mxu0
        %v10868 = vadd.f32 %v10755, %v10867
        %v10869 = vpop.f32.mrf.mxu0
        %v10870 = vadd.f32 %v10757, %v10869
        %v10871 = vpop.f32.mrf.mxu0
        %v10872 = vadd.f32 %v10759, %v10871
        %10873 = vmatprep.mubr.bf16.mxu0 %v9881
        %10874 = vmatmul.mubr.bf16.gmra.mxu0 %v9880
        %v10875 = vpop.f32.mrf.mxu0
        %v10876 = vadd.f32 %v10763, %v10875
        %v10877 = vpop.f32.mrf.mxu0
        %v10878 = vadd.f32 %v10765, %v10877
        %v10879 = vpop.f32.mrf.mxu0
        %v10880 = vadd.f32 %v10767, %v10879
        %v10881 = vpop.f32.mrf.mxu0
        %v10882 = vadd.f32 %v10769, %v10881
        %10883 = vmatprep.mubr.bf16.mxu0 %v9889
        %10884 = vmatmul.mubr.bf16.gmra.mxu0 %v9888
        %v10885 = vpop.f32.mrf.mxu0
        %v10886 = vadd.f32 %v10773, %v10885
        %v10887 = vpop.f32.mrf.mxu0
        %v10888 = vadd.f32 %v10775, %v10887
        %v10889 = vpop.f32.mrf.mxu0
        %v10890 = vadd.f32 %v10777, %v10889
        %v10891 = vpop.f32.mrf.mxu0
        %v10892 = vadd.f32 %v10779, %v10891
        %10893 = vmatprep.mubr.bf16.mxu0 %v9897
        %10894 = vmatmul.mubr.bf16.gmra.mxu0 %v9896
        %v10895 = vpop.f32.mrf.mxu0
        %v10896 = vadd.f32 %v10783, %v10895
        %v10897 = vpop.f32.mrf.mxu0
        %v10898 = vadd.f32 %v10785, %v10897
        %v10899 = vpop.f32.mrf.mxu0
        %v10900 = vadd.f32 %v10787, %v10899
        %v10901 = vpop.f32.mrf.mxu0
        %v10902 = vadd.f32 %v10789, %v10901
        %10903 = vmatprep.mubr.bf16.mxu0 %v9905
        %10904 = vmatmul.mubr.bf16.gmra.mxu0 %v9904
        %v10905 = vpop.f32.mrf.mxu0
        %v10906 = vadd.f32 %v10793, %v10905
        %v10907 = vpop.f32.mrf.mxu0
        %v10908 = vadd.f32 %v10795, %v10907
        %v10909 = vpop.f32.mrf.mxu0
        %v10910 = vadd.f32 %v10797, %v10909
        %v10911 = vpop.f32.mrf.mxu0
        %v10912 = vadd.f32 %v10799, %v10911
        %10913 = vmatprep.mubr.bf16.mxu0 %v9913
        %10914 = vmatmul.mubr.bf16.gmra.mxu0 %v9912
        %v10915 = vpop.f32.mrf.mxu0
        %v10916 = vadd.f32 %v10803, %v10915
        %v10917 = vpop.f32.mrf.mxu0
        %v10918 = vadd.f32 %v10805, %v10917
        %v10919 = vpop.f32.mrf.mxu0
        %v10920 = vadd.f32 %v10807, %v10919
        %v10921 = vpop.f32.mrf.mxu0
        %v10922 = vadd.f32 %v10809, %v10921
        %10923 = vdwg.mxu0
        %10924 = vmatprep.subr.bf16.mxu0 %v10521
        %10925 = vmatpush1.bf16.msra.mxu0 %v10520
        %10926 = vmatprep.subr.bf16.mxu0 %v10519
        %10927 = vmatpush1.bf16.msra.mxu0 %v10518
        %10928 = vmatprep.subr.bf16.mxu0 %v10517
        %10929 = vmatpush1.bf16.msra.mxu0 %v10516
        %10930 = vmatprep.subr.bf16.mxu0 %v10515
        %10931 = vmatpush1.bf16.msra.mxu0 %v10514
        %10932 = vmatprep.subr.bf16.mxu0 %v10513
        %10933 = vmatpush1.bf16.msra.mxu0 %v10512
        %10934 = vmatprep.subr.bf16.mxu0 %v10511
        %10935 = vmatpush1.bf16.msra.mxu0 %v10510
        %10936 = vmatprep.subr.bf16.mxu0 %v10509
        %10937 = vmatpush1.bf16.msra.mxu0 %v10508
        %10938 = vmatprep.subr.bf16.mxu0 %v10507
        %10939 = vmatpush1.bf16.msra.mxu0 %v10506
        %10940 = vmatprep.subr.bf16.mxu0 %v10537
        %10941 = vmatpush2.bf16.msra.mxu0 %v10536
        %10942 = vmatprep.subr.bf16.mxu0 %v10535
        %10943 = vmatpush2.bf16.msra.mxu0 %v10534
        %10944 = vmatprep.subr.bf16.mxu0 %v10533
        %10945 = vmatpush2.bf16.msra.mxu0 %v10532
        %10946 = vmatprep.subr.bf16.mxu0 %v10531
        %10947 = vmatpush2.bf16.msra.mxu0 %v10530
        %10948 = vmatprep.subr.bf16.mxu0 %v10529
        %10949 = vmatpush2.bf16.msra.mxu0 %v10528
        %10950 = vmatprep.subr.bf16.mxu0 %v10527
        %10951 = vmatpush2.bf16.msra.mxu0 %v10526
        %10952 = vmatprep.subr.bf16.mxu0 %v10525
        %10953 = vmatpush2.bf16.msra.mxu0 %v10524
        %10954 = vmatprep.subr.bf16.mxu0 %v10523
        %10955 = vmatpush2.bf16.msra.mxu0 %v10522
        %10956 = vmatprep.mubr.bf16.mxu0 %v9859
        %10957 = vmatmul.mubr.bf16.gmra.mxu0 %v9858
        %v10958 = vpop.f32.mrf.mxu0
        %v10959 = vadd.f32 %v10846, %v10958
        %v10960 = vpop.f32.mrf.mxu0
        %v10961 = vadd.f32 %v10848, %v10960
        %v10962 = vpop.f32.mrf.mxu0
        %v10963 = vadd.f32 %v10850, %v10962
        %v10964 = vpop.f32.mrf.mxu0
        %v10965 = vadd.f32 %v10852, %v10964
        %10966 = vmatprep.mubr.bf16.mxu0 %v9867
        %10967 = vmatmul.mubr.bf16.gmra.mxu0 %v9866
        %v10968 = vpop.f32.mrf.mxu0
        %v10969 = vadd.f32 %v10856, %v10968
        %v10970 = vpop.f32.mrf.mxu0
        %v10971 = vadd.f32 %v10858, %v10970
        %v10972 = vpop.f32.mrf.mxu0
        %v10973 = vadd.f32 %v10860, %v10972
        %v10974 = vpop.f32.mrf.mxu0
        %v10975 = vadd.f32 %v10862, %v10974
        %10976 = vmatprep.mubr.bf16.mxu0 %v9875
        %10977 = vmatmul.mubr.bf16.gmra.mxu0 %v9874
        %v10978 = vpop.f32.mrf.mxu0
        %v10979 = vadd.f32 %v10866, %v10978
        %v10980 = vpop.f32.mrf.mxu0
        %v10981 = vadd.f32 %v10868, %v10980
        %v10982 = vpop.f32.mrf.mxu0
        %v10983 = vadd.f32 %v10870, %v10982
        %v10984 = vpop.f32.mrf.mxu0
        %v10985 = vadd.f32 %v10872, %v10984
        %10986 = vmatprep.mubr.bf16.mxu0 %v9883
        %10987 = vmatmul.mubr.bf16.gmra.mxu0 %v9882
        %v10988 = vpop.f32.mrf.mxu0
        %v10989 = vadd.f32 %v10876, %v10988
        %v10990 = vpop.f32.mrf.mxu0
        %v10991 = vadd.f32 %v10878, %v10990
        %v10992 = vpop.f32.mrf.mxu0
        %v10993 = vadd.f32 %v10880, %v10992
        %v10994 = vpop.f32.mrf.mxu0
        %v10995 = vadd.f32 %v10882, %v10994
        %10996 = vmatprep.mubr.bf16.mxu0 %v9891
        %10997 = vmatmul.mubr.bf16.gmra.mxu0 %v9890
        %v10998 = vpop.f32.mrf.mxu0
        %v10999 = vadd.f32 %v10886, %v10998
        %v11000 = vpop.f32.mrf.mxu0
        %v11001 = vadd.f32 %v10888, %v11000
        %v11002 = vpop.f32.mrf.mxu0
        %v11003 = vadd.f32 %v10890, %v11002
        %v11004 = vpop.f32.mrf.mxu0
        %v11005 = vadd.f32 %v10892, %v11004
        %11006 = vmatprep.mubr.bf16.mxu0 %v9899
        %11007 = vmatmul.mubr.bf16.gmra.mxu0 %v9898
        %v11008 = vpop.f32.mrf.mxu0
        %v11009 = vadd.f32 %v10896, %v11008
        %v11010 = vpop.f32.mrf.mxu0
        %v11011 = vadd.f32 %v10898, %v11010
        %v11012 = vpop.f32.mrf.mxu0
        %v11013 = vadd.f32 %v10900, %v11012
        %v11014 = vpop.f32.mrf.mxu0
        %v11015 = vadd.f32 %v10902, %v11014
        %11016 = vmatprep.mubr.bf16.mxu0 %v9907
        %11017 = vmatmul.mubr.bf16.gmra.mxu0 %v9906
        %v11018 = vpop.f32.mrf.mxu0
        %v11019 = vadd.f32 %v10906, %v11018
        %v11020 = vpop.f32.mrf.mxu0
        %v11021 = vadd.f32 %v10908, %v11020
        %v11022 = vpop.f32.mrf.mxu0
        %v11023 = vadd.f32 %v10910, %v11022
        %v11024 = vpop.f32.mrf.mxu0
        %v11025 = vadd.f32 %v10912, %v11024
        %11026 = vmatprep.mubr.bf16.mxu0 %v9915
        %11027 = vmatmul.mubr.bf16.gmra.mxu0 %v9914
        %v11028 = vpop.f32.mrf.mxu0
        %v11029 = vadd.f32 %v10916, %v11028
        %v11030 = vpop.f32.mrf.mxu0
        %v11031 = vadd.f32 %v10918, %v11030
        %v11032 = vpop.f32.mrf.mxu0
        %v11033 = vadd.f32 %v10920, %v11032
        %v11034 = vpop.f32.mrf.mxu0
        %v11035 = vadd.f32 %v10922, %v11034
        %11036 = vdwg.mxu0
        %11037 = vmatprep.subr.bf16.mxu0 %v10553
        %11038 = vmatpush1.bf16.msra.mxu0 %v10552
        %11039 = vmatprep.subr.bf16.mxu0 %v10551
        %11040 = vmatpush1.bf16.msra.mxu0 %v10550
        %11041 = vmatprep.subr.bf16.mxu0 %v10549
        %11042 = vmatpush1.bf16.msra.mxu0 %v10548
        %11043 = vmatprep.subr.bf16.mxu0 %v10547
        %11044 = vmatpush1.bf16.msra.mxu0 %v10546
        %11045 = vmatprep.subr.bf16.mxu0 %v10545
        %11046 = vmatpush1.bf16.msra.mxu0 %v10544
        %11047 = vmatprep.subr.bf16.mxu0 %v10543
        %11048 = vmatpush1.bf16.msra.mxu0 %v10542
        %11049 = vmatprep.subr.bf16.mxu0 %v10541
        %11050 = vmatpush1.bf16.msra.mxu0 %v10540
        %11051 = vmatprep.subr.bf16.mxu0 %v10539
        %11052 = vmatpush1.bf16.msra.mxu0 %v10538
        %11053 = vmatprep.subr.bf16.mxu0 %v10569
        %11054 = vmatpush2.bf16.msra.mxu0 %v10568
        %11055 = vmatprep.subr.bf16.mxu0 %v10567
        %11056 = vmatpush2.bf16.msra.mxu0 %v10566
        %11057 = vmatprep.subr.bf16.mxu0 %v10565
        %11058 = vmatpush2.bf16.msra.mxu0 %v10564
        %11059 = vmatprep.subr.bf16.mxu0 %v10563
        %11060 = vmatpush2.bf16.msra.mxu0 %v10562
        %11061 = vmatprep.subr.bf16.mxu0 %v10561
        %11062 = vmatpush2.bf16.msra.mxu0 %v10560
        %11063 = vmatprep.subr.bf16.mxu0 %v10559
        %11064 = vmatpush2.bf16.msra.mxu0 %v10558
        %11065 = vmatprep.subr.bf16.mxu0 %v10557
        %11066 = vmatpush2.bf16.msra.mxu0 %v10556
        %11067 = vmatprep.subr.bf16.mxu0 %v10555
        %11068 = vmatpush2.bf16.msra.mxu0 %v10554
        %11069 = vmatprep.mubr.bf16.mxu0 %v9861
        %11070 = vmatmul.mubr.bf16.gmra.mxu0 %v9860
        %v11071 = vpop.f32.mrf.mxu0
        %v11072 = vadd.f32 %v10959, %v11071
        %v11073 = vpop.f32.mrf.mxu0
        %v11074 = vadd.f32 %v10961, %v11073
        %v11075 = vpop.f32.mrf.mxu0
        %v11076 = vadd.f32 %v10963, %v11075
        %v11077 = vpop.f32.mrf.mxu0
        %v11078 = vadd.f32 %v10965, %v11077
        %11079 = vmatprep.mubr.bf16.mxu0 %v9869
        %11080 = vmatmul.mubr.bf16.gmra.mxu0 %v9868
        %v11081 = vpop.f32.mrf.mxu0
        %v11082 = vadd.f32 %v10969, %v11081
        %v11083 = vpop.f32.mrf.mxu0
        %v11084 = vadd.f32 %v10971, %v11083
        %v11085 = vpop.f32.mrf.mxu0
        %v11086 = vadd.f32 %v10973, %v11085
        %v11087 = vpop.f32.mrf.mxu0
        %v11088 = vadd.f32 %v10975, %v11087
        %11089 = vmatprep.mubr.bf16.mxu0 %v9877
        %11090 = vmatmul.mubr.bf16.gmra.mxu0 %v9876
        %v11091 = vpop.f32.mrf.mxu0
        %v11092 = vadd.f32 %v10979, %v11091
        %v11093 = vpop.f32.mrf.mxu0
        %v11094 = vadd.f32 %v10981, %v11093
        %v11095 = vpop.f32.mrf.mxu0
        %v11096 = vadd.f32 %v10983, %v11095
        %v11097 = vpop.f32.mrf.mxu0
        %v11098 = vadd.f32 %v10985, %v11097
        %11099 = vmatprep.mubr.bf16.mxu0 %v9885
        %11100 = vmatmul.mubr.bf16.gmra.mxu0 %v9884
        %v11101 = vpop.f32.mrf.mxu0
        %v11102 = vadd.f32 %v10989, %v11101
        %v11103 = vpop.f32.mrf.mxu0
        %v11104 = vadd.f32 %v10991, %v11103
        %v11105 = vpop.f32.mrf.mxu0
        %v11106 = vadd.f32 %v10993, %v11105
        %v11107 = vpop.f32.mrf.mxu0
        %v11108 = vadd.f32 %v10995, %v11107
        %11109 = vmatprep.mubr.bf16.mxu0 %v9893
        %11110 = vmatmul.mubr.bf16.gmra.mxu0 %v9892
        %v11111 = vpop.f32.mrf.mxu0
        %v11112 = vadd.f32 %v10999, %v11111
        %v11113 = vpop.f32.mrf.mxu0
        %v11114 = vadd.f32 %v11001, %v11113
        %v11115 = vpop.f32.mrf.mxu0
        %v11116 = vadd.f32 %v11003, %v11115
        %v11117 = vpop.f32.mrf.mxu0
        %v11118 = vadd.f32 %v11005, %v11117
        %11119 = vmatprep.mubr.bf16.mxu0 %v9901
        %11120 = vmatmul.mubr.bf16.gmra.mxu0 %v9900
        %v11121 = vpop.f32.mrf.mxu0
        %v11122 = vadd.f32 %v11009, %v11121
        %v11123 = vpop.f32.mrf.mxu0
        %v11124 = vadd.f32 %v11011, %v11123
        %v11125 = vpop.f32.mrf.mxu0
        %v11126 = vadd.f32 %v11013, %v11125
        %v11127 = vpop.f32.mrf.mxu0
        %v11128 = vadd.f32 %v11015, %v11127
        %11129 = vmatprep.mubr.bf16.mxu0 %v9909
        %11130 = vmatmul.mubr.bf16.gmra.mxu0 %v9908
        %v11131 = vpop.f32.mrf.mxu0
        %v11132 = vadd.f32 %v11019, %v11131
        %v11133 = vpop.f32.mrf.mxu0
        %v11134 = vadd.f32 %v11021, %v11133
        %v11135 = vpop.f32.mrf.mxu0
        %v11136 = vadd.f32 %v11023, %v11135
        %v11137 = vpop.f32.mrf.mxu0
        %v11138 = vadd.f32 %v11025, %v11137
        %11139 = vmatprep.mubr.bf16.mxu0 %v9917
        %11140 = vmatmul.mubr.bf16.gmra.mxu0 %v9916
        %v11141 = vpop.f32.mrf.mxu0
        %v11142 = vadd.f32 %v11029, %v11141
        %v11143 = vpop.f32.mrf.mxu0
        %v11144 = vadd.f32 %v11031, %v11143
        %v11145 = vpop.f32.mrf.mxu0
        %v11146 = vadd.f32 %v11033, %v11145
        %v11147 = vpop.f32.mrf.mxu0
        %v11148 = vadd.f32 %v11035, %v11147
        %11149 = vdwg.mxu0
        %v11150 = vadd.f32 %v4697, %v11072
        %v11151 = vadd.f32 %v4699, %v11074
        %v11152 = vadd.f32 %v4701, %v11076
        %v11153 = vadd.f32 %v4703, %v11078
        %v11154 = vadd.f32 %v4707, %v11082
        %v11155 = vadd.f32 %v4709, %v11084
        %v11156 = vadd.f32 %v4711, %v11086
        %v11157 = vadd.f32 %v4713, %v11088
        %v11158 = vadd.f32 %v4717, %v11092
        %v11159 = vadd.f32 %v4719, %v11094
        %v11160 = vadd.f32 %v4721, %v11096
        %v11161 = vadd.f32 %v4723, %v11098
        %v11162 = vadd.f32 %v4727, %v11102
        %v11163 = vadd.f32 %v4729, %v11104
        %v11164 = vadd.f32 %v4731, %v11106
        %v11165 = vadd.f32 %v4733, %v11108
        %v11166 = vadd.f32 %v4737, %v11112
        %v11167 = vadd.f32 %v4739, %v11114
        %v11168 = vadd.f32 %v4741, %v11116
        %v11169 = vadd.f32 %v4743, %v11118
        %v11170 = vadd.f32 %v4747, %v11122
        %v11171 = vadd.f32 %v4749, %v11124
        %v11172 = vadd.f32 %v4751, %v11126
        %v11173 = vadd.f32 %v4753, %v11128
        %v11174 = vadd.f32 %v4757, %v11132
        %v11175 = vadd.f32 %v4759, %v11134
        %v11176 = vadd.f32 %v4761, %v11136
        %v11177 = vadd.f32 %v4763, %v11138
        %v11178 = vadd.f32 %v4767, %v11142
        %v11179 = vadd.f32 %v4769, %v11144
        %v11180 = vadd.f32 %v4771, %v11146
        %v11181 = vadd.f32 %v4773, %v11148
        %11182 = vst [vmem:[%s604] sm:$0xff] %v11150
        %11183 = vst [vmem:[%s604 + $0x8] sm:$0xff] %v11151
        %11184 = vst [vmem:[%s604 + $0x10] sm:$0xff] %v11152
        %11185 = vst [vmem:[%s604 + $0x18] sm:$0xff] %v11153
        %11186 = vst [vmem:[%s604 + $0x20] sm:$0xff] %v11154
        %11187 = vst [vmem:[%s604 + $0x28] sm:$0xff] %v11155
        %11188 = vst [vmem:[%s604 + $0x30] sm:$0xff] %v11156
        %11189 = vst [vmem:[%s604 + $0x38] sm:$0xff] %v11157
        %11190 = vst [vmem:[%s604 + $0x40] sm:$0xff] %v11158
        %11191 = vst [vmem:[%s604 + $0x48] sm:$0xff] %v11159
        %11192 = vst [vmem:[%s604 + $0x50] sm:$0xff] %v11160
        %11193 = vst [vmem:[%s604 + $0x58] sm:$0xff] %v11161
        %11194 = vst [vmem:[%s604 + $0x60] sm:$0xff] %v11162
        %11195 = vst [vmem:[%s604 + $0x68] sm:$0xff] %v11163
        %11196 = vst [vmem:[%s604 + $0x70] sm:$0xff] %v11164
        %11197 = vst [vmem:[%s604 + $0x78] sm:$0xff] %v11165
        %11198 = vst [vmem:[%s604 + $0x80] sm:$0xff] %v11166
        %11199 = vst [vmem:[%s604 + $0x88] sm:$0xff] %v11167
        %11200 = vst [vmem:[%s604 + $0x90] sm:$0xff] %v11168
        %11201 = vst [vmem:[%s604 + $0x98] sm:$0xff] %v11169
        %11202 = vst [vmem:[%s604 + $0xa0] sm:$0xff] %v11170
        %11203 = vst [vmem:[%s604 + $0xa8] sm:$0xff] %v11171
        %11204 = vst [vmem:[%s604 + $0xb0] sm:$0xff] %v11172
        %11205 = vst [vmem:[%s604 + $0xb8] sm:$0xff] %v11173
        %11206 = vst [vmem:[%s604 + $0xc0] sm:$0xff] %v11174
        %11207 = vst [vmem:[%s604 + $0xc8] sm:$0xff] %v11175
        %11208 = vst [vmem:[%s604 + $0xd0] sm:$0xff] %v11176
        %11209 = vst [vmem:[%s604 + $0xd8] sm:$0xff] %v11177
        %11210 = vst [vmem:[%s604 + $0xe0] sm:$0xff] %v11178
        %11211 = vst [vmem:[%s604 + $0xe8] sm:$0xff] %v11179
        %11212 = vst [vmem:[%s604 + $0xf0] sm:$0xff] %v11180
        %11213 = vst [vmem:[%s604 + $0xf8] sm:$0xff] %v11181
        %s11214 = sand.u32 %s343, 1
        %s11215 = scalar_lea.sflag [#allocation8], %s11214
        %s11216 = sand.u32 %s343, 1
        %s11217 = smul.addr %s11216, 256
        %s11218 = scalar_lea.vmem [#allocation20], %s11217
        // Predicated region
        $region105: #{tpu_custom_call.1} parent=71 // pred_check
          %p11219 = pneg %p353
        $region106: #{tpu_custom_call.1} parent=71 // pred_check_branch
          %11221 = sbr.rel (%p11219) target = $region108
        $region107: #{tpu_custom_call.1} parent=71 // pred_region
          %s11222 = smul.u32 16, %s41
          %s11224 = ssub.s32 4096, 4096
          %11225 = vsyncadd %s11215, %s11224
          %s11226 = smul.addr %s11222, 2
          %s11227 = smul.addr %s40, 64
          %s11228 = sadd.s32 %s11226, %s11227
          %s11229 = smul.addr %s11228, 128
          %s11230 = scalar_lea.hbm %s13, %s11229
          %s11231 = sshll.u32 %s11218, 4
          %s11232 = int_to_ptr.vmem [resolvable:$true] %s11231
          %11237 = dma.vmem_to_hbm [thread:$0]  %s11232, 4096, %s11230, %s11215, 256, 256, 16
        $region108: #{tpu_custom_call.1} parent=71 // pred_fallthru
          _
      $region72: #{tpu_custom_call.1} parent=5 // pred_fallthru
        _
      %p11238 = scmp.le.s32.totalorder 2, %s31
      // Predicated region
      $region109: #{tpu_custom_call.1} parent=5 // pred_check
        %p11239 = pneg %p11238
      $region110: #{tpu_custom_call.1} parent=5 // pred_check_branch
        %11241 = sbr.rel (%p11239) target = $region112
      $region111: #{tpu_custom_call.1} parent=5 // pred_region
        %s11242 = ssub.s32 %s31, 2
        // Predicated region
        $region113: #{tpu_custom_call.1} parent=111 // pred_check
          %p11243 = pneg %p359
        $region114: #{tpu_custom_call.1} parent=111 // pred_check_branch
          %11245 = sbr.rel (%p11243) target = $region116
        $region115: #{tpu_custom_call.1} parent=111 // pred_region
          %s11246 = sand.u32 %s344, 1
          %s11247 = scalar_lea.sflag [#allocation8], %s11246
          %s11248 = sand.u32 %s344, 1
          %s11249 = smul.addr %s11248, 256
          %s11250 = scalar_lea.vmem [#allocation20], %s11249
          %11251 = dma.done %s11247, 4096
        $region116: #{tpu_custom_call.1} parent=111 // pred_fallthru
          _
      $region112: #{tpu_custom_call.1} parent=5 // pred_fallthru
        _
    $region6: #{tpu_custom_call.1} parent=1 // loop_footer
      %s35 = sadd.s32 1, %s31
    $region7: #{tpu_custom_call.1} parent=1 // loop_footer_branch
      %30 = sbr.rel target = $region3
    $region8: #{tpu_custom_call.1} parent=1 // loop_exit
      _
    %11252 = vsyncpa [#allocation7], 1
    %s11253 = scalar_lea.sflag [#allocation7], 1
    %11254 = vsyncpa %s11253, 1
    %11255 = vsyncpa [#allocation10], 1
    %s11256 = scalar_lea.sflag [#allocation10], 1
    %11257 = vsyncpa %s11256, 1
    %11258 = vsyncpa [#allocation13], 1
    %11259 = vsyncpa [#allocation16], 1
    %11260 = vsyncpa [#allocation19], 1
    %11261 = vsyncpa [#allocation8], 1
    %s11262 = scalar_lea.sflag [#allocation8], 1
    %11263 = vsyncpa %s11262, 1

</llo_original>
